<compile_context>
chip_gen: v7x
topology: tpu7x:2x2x1
jax: 0.10.0
libtpu: 0.0.40
codegen_flags: <defaults>
</compile_context>

<pallas_src>
import numpy as np
import jax
import jax.numpy as jnp
from jax.experimental import pallas as pl
from jax.experimental.pallas import tpu as pltpu

LATENT_DIM = 8
EPS = 1e-5
LANE = 128


# ----------------------------- Pallas kernel ------------------------------ #

def _bn_relu(y, s_scaled, st, gamma, beta):
    """BatchNorm (batch statistics) + ReLU on a (B, Npad) channel-major flat
    activation.

    s_scaled : (Npad, C) column->channel indicator with 1/(B*HW) pre-folded
               (padded rows are zero).
    st       : (C, Npad) plain indicator transpose (padded cols are zero).

    Single-pass stats (E[x^2] - E[x]^2), all stat math in f32.
    """
    col_sum = jnp.sum(y, axis=0, keepdims=True)              # (1, Npad)
    col_sumsq = jnp.sum(y * y, axis=0, keepdims=True)        # (1, Npad)
    stats = jnp.concatenate([col_sum, col_sumsq], axis=0)    # (2, Npad)
    ch = jnp.dot(stats, s_scaled,
                 preferred_element_type=jnp.float32)         # (2, C)
    mean = ch[0:1, :]
    var = ch[1:2, :] - mean * mean
    scale = gamma * jax.lax.rsqrt(var + EPS)                 # (1, C)
    shift = beta - mean * scale                              # (1, C)
    sc_sh = jnp.dot(jnp.concatenate([scale, shift], axis=0), st,
                    preferred_element_type=jnp.float32)      # (2, Npad)
    return jnp.maximum(y * sc_sh[0:1, :] + sc_sh[1:2, :], 0.0)


def decoder_kernel(x_ref, w1_ref, b1_ref,
                   m1_ref, bc1_ref, s1_ref, st1_ref, g1_ref, be1_ref,
                   m2_ref, bc2_ref, s2_ref, st2_ref, g2_ref, be2_ref,
                   m3_ref, bc3_ref,
                   out_ref):
    bf16 = jnp.bfloat16

    # linear1 + relu : (B, 128pad) @ (128, 128) -> (B, 128)
    h = jnp.dot(x_ref[...].astype(bf16), w1_ref[...],
                preferred_element_type=jnp.float32) + b1_ref[...]
    h = jnp.maximum(h, 0.0)

    # deconv1 + BN + relu : (B, 128) -> (B, 640)   [16*6*6 = 576 real cols]
    y = jnp.dot(h.astype(bf16), m1_ref[...],
                preferred_element_type=jnp.float32) + bc1_ref[...]
    y = _bn_relu(y, s1_ref[...], st1_ref[...], g1_ref[...], be1_ref[...])

    # deconv2 + BN + relu : (B, 640) -> (B, 1408)  [8*13*13 = 1352 real cols]
    y = jnp.dot(y.astype(bf16), m2_ref[...],
                preferred_element_type=jnp.float32) + bc2_ref[...]
    y = _bn_relu(y, s2_ref[...], st2_ref[...], g2_ref[...], be2_ref[...])

    # deconv3 + sigmoid : (B, 1408) -> (B, 896)    [1*28*28 = 784 real cols]
    y = jnp.dot(y.astype(bf16), m3_ref[...],
                preferred_element_type=jnp.float32) + bc3_ref[...]
    out_ref[...] = jax.nn.sigmoid(y)


# ------------------------ parameter / glue helpers ------------------------ #

def convt_dense(weight, bias, h_in, w_in, stride, padding, output_padding):
    """Lower ConvTranspose2d (PyTorch semantics, weight (Cin,Cout,kH,kW)) to a
    dense matrix acting on channel-major flattened NCHW vectors."""
    c_in, c_out, kh, kw = weight.shape
    h_out = (h_in - 1) * stride - 2 * padding + kh + output_padding
    w_out = (w_in - 1) * stride - 2 * padding + kw + output_padding
    m = np.zeros((c_in * h_in * w_in, c_out * h_out * w_out), dtype=np.float32)
    for ci in range(c_in):
        for ih in range(h_in):
            for iw in range(w_in):
                row = (ci * h_in + ih) * w_in + iw
                for co in range(c_out):
                    for dh in range(kh):
                        for dw in range(kw):
                            oh = ih * stride + dh - padding
                            ow = iw * stride + dw - padding
                            if 0 <= oh < h_out and 0 <= ow < w_out:
                                col = (co * h_out + oh) * w_out + ow
                                m[row, col] += weight[ci, co, dh, dw]
    bcols = np.repeat(bias.astype(np.float32), h_out * w_out)[None, :]
    return m, bcols, h_out, w_out


def chan_indicator(c, hw):
    s = np.zeros((c * hw, c), dtype=np.float32)
    for ci in range(c):
        s[ci * hw:(ci + 1) * hw, ci] = 1.0
    return s


def pad_last(a, mult=LANE):
    pad = (-a.shape[-1]) % mult
    if pad == 0:
        return a
    return np.pad(a, [(0, 0)] * (a.ndim - 1) + [(0, pad)])


def pad_axis0(a, new_rows):
    if a.shape[0] == new_rows:
        return a
    return np.pad(a, [(0, new_rows - a.shape[0])] + [(0, 0)] * (a.ndim - 1))


def ref_bn_relu(y, c, hw, gamma, beta):
    z = y.reshape(-1, c, hw)
    mean = z.mean(axis=(0, 2), keepdims=True)
    var = ((z - mean) ** 2).mean(axis=(0, 2), keepdims=True)
    z = (z - mean) * jax.lax.rsqrt(var + EPS) * gamma.reshape(1, c, 1) \
        + beta.reshape(1, c, 1)
    return jax.nn.relu(z).reshape(y.shape)


# --------------------------------- main ------------------------------------ #

if __name__ == "__main__":
    key = jax.random.PRNGKey(0)
    ks = jax.random.split(key, 10)
    B = 4
    bf16 = jnp.bfloat16

    x = jax.random.normal(ks[0], (B, LATENT_DIM), dtype=jnp.float32)

    # linear1
    w1 = 0.2 * jax.random.normal(ks[1], (LATENT_DIM, 128), dtype=jnp.float32)
    b1 = 0.1 * jax.random.normal(ks[2], (1, 128), dtype=jnp.float32)

    # deconv weights (PyTorch layout: (Cin, Cout, kH, kW))
    wd1 = 0.2 * np.asarray(jax.random.normal(ks[3], (32, 16, 3, 3), dtype=jnp.float32))
    bd1 = 0.1 * np.asarray(jax.random.normal(ks[4], (16,), dtype=jnp.float32))
    wd2 = 0.2 * np.asarray(jax.random.normal(ks[5], (16, 8, 3, 3), dtype=jnp.float32))
    bd2 = 0.1 * np.asarray(jax.random.normal(ks[6], (8,), dtype=jnp.float32))
    wd3 = 0.2 * np.asarray(jax.random.normal(ks[7], (8, 1, 3, 3), dtype=jnp.float32))
    bd3 = 0.1 * np.asarray(jax.random.normal(ks[8], (1,), dtype=jnp.float32))

    # BN affine params (PyTorch default init)
    g1, be1 = jnp.ones((1, 16), jnp.float32), jnp.zeros((1, 16), jnp.float32)
    g2, be2 = jnp.ones((1, 8), jnp.float32), jnp.zeros((1, 8), jnp.float32)

    # Lower transposed convolutions to dense matrices (glue, not hot path).
    m1, bc1, h1, w1o = convt_dense(wd1, bd1, 2, 2, stride=3, padding=0, output_padding=0)
    assert (h1, w1o) == (6, 6)
    m2, bc2, h2, w2o = convt_dense(wd2, bd2, 6, 6, stride=2, padding=0, output_padding=0)
    assert (h2, w2o) == (13, 13)
    m3, bc3, h3, w3o = convt_dense(wd3, bd3, 13, 13, stride=2, padding=0, output_padding=1)
    assert (h3, w3o) == (28, 28)

    n1_pad = ((16 * 36 + LANE - 1) // LANE) * LANE     # 640
    n2_pad = ((8 * 169 + LANE - 1) // LANE) * LANE     # 1408
    n3_pad = ((28 * 28 + LANE - 1) // LANE) * LANE     # 896

    # Zero-pad everything to lane-dense shapes (exact no-op for the math).
    xp = pad_last(np.asarray(x))                       # (B, 128)
    w1p = pad_axis0(np.asarray(w1), LANE)              # (128, 128)
    m1p = pad_last(m1)                                 # (128, 640)
    m2p = pad_last(pad_axis0(m2, n1_pad))              # (640, 1408)
    m3p = pad_last(pad_axis0(m3, n2_pad))              # (1408, 896)
    bc1p, bc2p, bc3p = pad_last(bc1), pad_last(bc2), pad_last(bc3)

    s1 = pad_axis0(chan_indicator(16, 36), n1_pad)     # (640, 16)
    s2 = pad_axis0(chan_indicator(8, 169), n2_pad)     # (1408, 8)
    st1 = np.ascontiguousarray(s1.T)                   # (16, 640)
    st2 = np.ascontiguousarray(s2.T)                   # (8, 1408)
    s1_scaled = s1 / float(B * 36)                     # fold 1/n into s
    s2_scaled = s2 / float(B * 169)

    args = (jnp.asarray(xp),
            jnp.asarray(w1p, bf16), jnp.asarray(b1),
            jnp.asarray(m1p, bf16), jnp.asarray(bc1p),
            jnp.asarray(s1_scaled), jnp.asarray(st1), g1, be1,
            jnp.asarray(m2p, bf16), jnp.asarray(bc2p),
            jnp.asarray(s2_scaled), jnp.asarray(st2), g2, be2,
            jnp.asarray(m3p, bf16), jnp.asarray(bc3p))

    out_pad = pl.pallas_call(
        decoder_kernel,
        out_shape=jax.ShapeDtypeStruct((B, n3_pad), jnp.float32),
        in_specs=[pl.BlockSpec(memory_space=pltpu.MemorySpace.VMEM)] * len(args),
        out_specs=pl.BlockSpec(memory_space=pltpu.MemorySpace.VMEM),
        compiler_params=pltpu.CompilerParams(vmem_limit_bytes=32 * 1024 * 1024),
    )(*args)

    out = out_pad[:, :28 * 28].reshape(B, 28, 28)      # final .view(-1, 28, 28)
    jax.block_until_ready(out)

    # Pure-JAX reference with the SAME bf16 weights (f32 accumulation) and a
    # two-pass reshape-based BN, on the unpadded shapes.
    w1_bf = jnp.asarray(np.asarray(w1), bf16)
    m1_bf = jnp.asarray(m1, bf16)
    m2_bf = jnp.asarray(m2, bf16)
    m3_bf = jnp.asarray(m3, bf16)

    h = jax.nn.relu(jnp.dot(x.astype(bf16), w1_bf,
                            preferred_element_type=jnp.float32) + b1)
    r = jnp.dot(h.astype(bf16), m1_bf,
                preferred_element_type=jnp.float32) + jnp.asarray(bc1)
    r = ref_bn_relu(r, 16, 36, g1, be1)
    r = jnp.dot(r.astype(bf16), m2_bf,
                preferred_element_type=jnp.float32) + jnp.asarray(bc2)
    r = ref_bn_relu(r, 8, 169, g2, be2)
    r = jax.nn.sigmoid(jnp.dot(r.astype(bf16), m3_bf,
                               preferred_element_type=jnp.float32) + jnp.asarray(bc3))

    np.testing.assert_allclose(np.asarray(out_pad[:, :28 * 28]), np.asarray(r),
                               rtol=1e-2, atol=1e-2)

    assert out.shape == (B, 28, 28) and bool(jnp.all(jnp.isfinite(out)))
    print("KERNEL_OK")
</pallas_src>

<mosaic_0001>
module attributes {stable_mosaic.version = 11 : i64} {
  func.func @decoder_kernel(%arg0: memref<4x128xf32, #tpu.memory_space<vmem>>, %arg1: memref<128x128xbf16, #tpu.memory_space<vmem>>, %arg2: memref<1x128xf32, #tpu.memory_space<vmem>>, %arg3: memref<128x640xbf16, #tpu.memory_space<vmem>>, %arg4: memref<1x640xf32, #tpu.memory_space<vmem>>, %arg5: memref<640x16xf32, #tpu.memory_space<vmem>>, %arg6: memref<16x640xf32, #tpu.memory_space<vmem>>, %arg7: memref<1x16xf32, #tpu.memory_space<vmem>>, %arg8: memref<1x16xf32, #tpu.memory_space<vmem>>, %arg9: memref<640x1408xbf16, #tpu.memory_space<vmem>>, %arg10: memref<1x1408xf32, #tpu.memory_space<vmem>>, %arg11: memref<1408x8xf32, #tpu.memory_space<vmem>>, %arg12: memref<8x1408xf32, #tpu.memory_space<vmem>>, %arg13: memref<1x8xf32, #tpu.memory_space<vmem>>, %arg14: memref<1x8xf32, #tpu.memory_space<vmem>>, %arg15: memref<1408x896xbf16, #tpu.memory_space<vmem>>, %arg16: memref<1x896xf32, #tpu.memory_space<vmem>>, %arg17: memref<4x896xf32, #tpu.memory_space<vmem>>) attributes {dimension_semantics = [], scalar_prefetch = 0 : i64, scratch_operands = 0 : i64, tpu.core_type = #tpu.core_type<tc>} {
    %c0 = arith.constant 0 : index
    %c0_0 = arith.constant 0 : index
    %0 = vector.load %arg0[%c0, %c0_0] : memref<4x128xf32, #tpu.memory_space<vmem>>, vector<4x128xf32>
    %1 = arith.truncf %0 : vector<4x128xf32> to vector<4x128xbf16>
    %c0_1 = arith.constant 0 : index
    %c0_2 = arith.constant 0 : index
    %2 = vector.load %arg1[%c0_1, %c0_2] : memref<128x128xbf16, #tpu.memory_space<vmem>>, vector<128x128xbf16>
    %cst = arith.constant dense<0.000000e+00> : vector<4x128xf32>
    %3 = tpu.matmul %1, %2, %cst {dimension_numbers = #tpu.dot_dimension_numbers<[1], [0], [0], [1], [0, 0, 1, 1], [], []>} : vector<4x128xbf16>, vector<128x128xbf16>, vector<4x128xf32> -> vector<4x128xf32>
    %c0_3 = arith.constant 0 : index
    %c0_4 = arith.constant 0 : index
    %4 = vector.load %arg2[%c0_3, %c0_4] : memref<1x128xf32, #tpu.memory_space<vmem>>, vector<1x128xf32>
    %5 = vector.broadcast %4 : vector<1x128xf32> to vector<4x128xf32>
    %6 = arith.addf %3, %5 : vector<4x128xf32>
    %cst_5 = arith.constant 0.000000e+00 : f32
    %7 = vector.broadcast %cst_5 : f32 to vector<4x128xf32>
    %8 = arith.maximumf %6, %7 : vector<4x128xf32>
    %9 = arith.truncf %8 : vector<4x128xf32> to vector<4x128xbf16>
    %c0_6 = arith.constant 0 : index
    %c0_7 = arith.constant 0 : index
    %10 = vector.load %arg3[%c0_6, %c0_7] : memref<128x640xbf16, #tpu.memory_space<vmem>>, vector<128x640xbf16>
    %cst_8 = arith.constant dense<0.000000e+00> : vector<4x640xf32>
    %11 = tpu.matmul %9, %10, %cst_8 {dimension_numbers = #tpu.dot_dimension_numbers<[1], [0], [0], [1], [0, 0, 1, 1], [], []>} : vector<4x128xbf16>, vector<128x640xbf16>, vector<4x640xf32> -> vector<4x640xf32>
    %c0_9 = arith.constant 0 : index
    %c0_10 = arith.constant 0 : index
    %12 = vector.load %arg4[%c0_9, %c0_10] : memref<1x640xf32, #tpu.memory_space<vmem>>, vector<1x640xf32>
    %13 = vector.broadcast %12 : vector<1x640xf32> to vector<4x640xf32>
    %14 = arith.addf %11, %13 : vector<4x640xf32>
    %c0_11 = arith.constant 0 : index
    %c0_12 = arith.constant 0 : index
    %15 = vector.load %arg5[%c0_11, %c0_12] : memref<640x16xf32, #tpu.memory_space<vmem>>, vector<640x16xf32>
    %c0_13 = arith.constant 0 : index
    %c0_14 = arith.constant 0 : index
    %16 = vector.load %arg6[%c0_13, %c0_14] : memref<16x640xf32, #tpu.memory_space<vmem>>, vector<16x640xf32>
    %c0_15 = arith.constant 0 : index
    %c0_16 = arith.constant 0 : index
    %17 = vector.load %arg7[%c0_15, %c0_16] : memref<1x16xf32, #tpu.memory_space<vmem>>, vector<1x16xf32>
    %c0_17 = arith.constant 0 : index
    %c0_18 = arith.constant 0 : index
    %18 = vector.load %arg8[%c0_17, %c0_18] : memref<1x16xf32, #tpu.memory_space<vmem>>, vector<1x16xf32>
    %cst_19 = arith.constant dense<0.000000e+00> : vector<640xf32>
    %19 = vector.multi_reduction <add>, %14, %cst_19 [0] : vector<4x640xf32> to vector<640xf32>
    %20 = vector.shape_cast %19 : vector<640xf32> to vector<1x640xf32>
    %21 = arith.mulf %14, %14 : vector<4x640xf32>
    %cst_20 = arith.constant dense<0.000000e+00> : vector<640xf32>
    %22 = vector.multi_reduction <add>, %21, %cst_20 [0] : vector<4x640xf32> to vector<640xf32>
    %23 = vector.shape_cast %22 : vector<640xf32> to vector<1x640xf32>
    %24 = tpu.concatenate %20, %23 in 0 : vector<1x640xf32>, vector<1x640xf32> -> vector<2x640xf32>
    %cst_21 = arith.constant dense<0.000000e+00> : vector<2x16xf32>
    %25 = tpu.matmul %24, %15, %cst_21 {dimension_numbers = #tpu.dot_dimension_numbers<[1], [0], [0], [1], [0, 0, 1, 1], [], []>} : vector<2x640xf32>, vector<640x16xf32>, vector<2x16xf32> -> vector<2x16xf32>
    %26 = vector.extract_strided_slice %25 {offsets = [0, 0], sizes = [1, 16], strides = [1, 1]} : vector<2x16xf32> to vector<1x16xf32>
    %27 = vector.extract_strided_slice %25 {offsets = [1, 0], sizes = [1, 16], strides = [1, 1]} : vector<2x16xf32> to vector<1x16xf32>
    %28 = arith.mulf %26, %26 : vector<1x16xf32>
    %29 = arith.subf %27, %28 : vector<1x16xf32>
    %cst_22 = arith.constant 9.99999974E-6 : f32
    %30 = vector.broadcast %cst_22 : f32 to vector<1x16xf32>
    %31 = arith.addf %29, %30 : vector<1x16xf32>
    %32 = math.rsqrt %31 : vector<1x16xf32>
    %33 = arith.mulf %17, %32 : vector<1x16xf32>
    %34 = arith.mulf %26, %33 : vector<1x16xf32>
    %35 = arith.subf %18, %34 : vector<1x16xf32>
    %36 = tpu.concatenate %33, %35 in 0 : vector<1x16xf32>, vector<1x16xf32> -> vector<2x16xf32>
    %cst_23 = arith.constant dense<0.000000e+00> : vector<2x640xf32>
    %37 = tpu.matmul %36, %16, %cst_23 {dimension_numbers = #tpu.dot_dimension_numbers<[1], [0], [0], [1], [0, 0, 1, 1], [], []>} : vector<2x16xf32>, vector<16x640xf32>, vector<2x640xf32> -> vector<2x640xf32>
    %38 = vector.extract_strided_slice %37 {offsets = [0, 0], sizes = [1, 640], strides = [1, 1]} : vector<2x640xf32> to vector<1x640xf32>
    %39 = vector.broadcast %38 : vector<1x640xf32> to vector<4x640xf32>
    %40 = arith.mulf %14, %39 : vector<4x640xf32>
    %41 = vector.extract_strided_slice %37 {offsets = [1, 0], sizes = [1, 640], strides = [1, 1]} : vector<2x640xf32> to vector<1x640xf32>
    %42 = vector.broadcast %41 : vector<1x640xf32> to vector<4x640xf32>
    %43 = arith.addf %40, %42 : vector<4x640xf32>
    %cst_24 = arith.constant 0.000000e+00 : f32
    %44 = vector.broadcast %cst_24 : f32 to vector<4x640xf32>
    %45 = arith.maximumf %43, %44 : vector<4x640xf32>
    %46 = arith.truncf %45 : vector<4x640xf32> to vector<4x640xbf16>
    %c0_25 = arith.constant 0 : index
    %c0_26 = arith.constant 0 : index
    %47 = vector.load %arg9[%c0_25, %c0_26] : memref<640x1408xbf16, #tpu.memory_space<vmem>>, vector<640x1408xbf16>
    %cst_27 = arith.constant dense<0.000000e+00> : vector<4x1408xf32>
    %48 = tpu.matmul %46, %47, %cst_27 {dimension_numbers = #tpu.dot_dimension_numbers<[1], [0], [0], [1], [0, 0, 1, 1], [], []>} : vector<4x640xbf16>, vector<640x1408xbf16>, vector<4x1408xf32> -> vector<4x1408xf32>
    %c0_28 = arith.constant 0 : index
    %c0_29 = arith.constant 0 : index
    %49 = vector.load %arg10[%c0_28, %c0_29] : memref<1x1408xf32, #tpu.memory_space<vmem>>, vector<1x1408xf32>
    %50 = vector.broadcast %49 : vector<1x1408xf32> to vector<4x1408xf32>
    %51 = arith.addf %48, %50 : vector<4x1408xf32>
    %c0_30 = arith.constant 0 : index
    %c0_31 = arith.constant 0 : index
    %52 = vector.load %arg11[%c0_30, %c0_31] : memref<1408x8xf32, #tpu.memory_space<vmem>>, vector<1408x8xf32>
    %c0_32 = arith.constant 0 : index
    %c0_33 = arith.constant 0 : index
    %53 = vector.load %arg12[%c0_32, %c0_33] : memref<8x1408xf32, #tpu.memory_space<vmem>>, vector<8x1408xf32>
    %c0_34 = arith.constant 0 : index
    %c0_35 = arith.constant 0 : index
    %54 = vector.load %arg13[%c0_34, %c0_35] : memref<1x8xf32, #tpu.memory_space<vmem>>, vector<1x8xf32>
    %c0_36 = arith.constant 0 : index
    %c0_37 = arith.constant 0 : index
    %55 = vector.load %arg14[%c0_36, %c0_37] : memref<1x8xf32, #tpu.memory_space<vmem>>, vector<1x8xf32>
    %cst_38 = arith.constant dense<0.000000e+00> : vector<1408xf32>
    %56 = vector.multi_reduction <add>, %51, %cst_38 [0] : vector<4x1408xf32> to vector<1408xf32>
    %57 = vector.shape_cast %56 : vector<1408xf32> to vector<1x1408xf32>
    %58 = arith.mulf %51, %51 : vector<4x1408xf32>
    %cst_39 = arith.constant dense<0.000000e+00> : vector<1408xf32>
    %59 = vector.multi_reduction <add>, %58, %cst_39 [0] : vector<4x1408xf32> to vector<1408xf32>
    %60 = vector.shape_cast %59 : vector<1408xf32> to vector<1x1408xf32>
    %61 = tpu.concatenate %57, %60 in 0 : vector<1x1408xf32>, vector<1x1408xf32> -> vector<2x1408xf32>
    %cst_40 = arith.constant dense<0.000000e+00> : vector<2x8xf32>
    %62 = tpu.matmul %61, %52, %cst_40 {dimension_numbers = #tpu.dot_dimension_numbers<[1], [0], [0], [1], [0, 0, 1, 1], [], []>} : vector<2x1408xf32>, vector<1408x8xf32>, vector<2x8xf32> -> vector<2x8xf32>
    %63 = vector.extract_strided_slice %62 {offsets = [0, 0], sizes = [1, 8], strides = [1, 1]} : vector<2x8xf32> to vector<1x8xf32>
    %64 = vector.extract_strided_slice %62 {offsets = [1, 0], sizes = [1, 8], strides = [1, 1]} : vector<2x8xf32> to vector<1x8xf32>
    %65 = arith.mulf %63, %63 : vector<1x8xf32>
    %66 = arith.subf %64, %65 : vector<1x8xf32>
    %cst_41 = arith.constant 9.99999974E-6 : f32
    %67 = vector.broadcast %cst_41 : f32 to vector<1x8xf32>
    %68 = arith.addf %66, %67 : vector<1x8xf32>
    %69 = math.rsqrt %68 : vector<1x8xf32>
    %70 = arith.mulf %54, %69 : vector<1x8xf32>
    %71 = arith.mulf %63, %70 : vector<1x8xf32>
    %72 = arith.subf %55, %71 : vector<1x8xf32>
    %73 = tpu.concatenate %70, %72 in 0 : vector<1x8xf32>, vector<1x8xf32> -> vector<2x8xf32>
    %cst_42 = arith.constant dense<0.000000e+00> : vector<2x1408xf32>
    %74 = tpu.matmul %73, %53, %cst_42 {dimension_numbers = #tpu.dot_dimension_numbers<[1], [0], [0], [1], [0, 0, 1, 1], [], []>} : vector<2x8xf32>, vector<8x1408xf32>, vector<2x1408xf32> -> vector<2x1408xf32>
    %75 = vector.extract_strided_slice %74 {offsets = [0, 0], sizes = [1, 1408], strides = [1, 1]} : vector<2x1408xf32> to vector<1x1408xf32>
    %76 = vector.broadcast %75 : vector<1x1408xf32> to vector<4x1408xf32>
    %77 = arith.mulf %51, %76 : vector<4x1408xf32>
    %78 = vector.extract_strided_slice %74 {offsets = [1, 0], sizes = [1, 1408], strides = [1, 1]} : vector<2x1408xf32> to vector<1x1408xf32>
    %79 = vector.broadcast %78 : vector<1x1408xf32> to vector<4x1408xf32>
    %80 = arith.addf %77, %79 : vector<4x1408xf32>
    %cst_43 = arith.constant 0.000000e+00 : f32
    %81 = vector.broadcast %cst_43 : f32 to vector<4x1408xf32>
    %82 = arith.maximumf %80, %81 : vector<4x1408xf32>
    %83 = arith.truncf %82 : vector<4x1408xf32> to vector<4x1408xbf16>
    %c0_44 = arith.constant 0 : index
    %c0_45 = arith.constant 0 : index
    %84 = vector.load %arg15[%c0_44, %c0_45] : memref<1408x896xbf16, #tpu.memory_space<vmem>>, vector<1408x896xbf16>
    %cst_46 = arith.constant dense<0.000000e+00> : vector<4x896xf32>
    %85 = tpu.matmul %83, %84, %cst_46 {dimension_numbers = #tpu.dot_dimension_numbers<[1], [0], [0], [1], [0, 0, 1, 1], [], []>} : vector<4x1408xbf16>, vector<1408x896xbf16>, vector<4x896xf32> -> vector<4x896xf32>
    %c0_47 = arith.constant 0 : index
    %c0_48 = arith.constant 0 : index
    %86 = vector.load %arg16[%c0_47, %c0_48] : memref<1x896xf32, #tpu.memory_space<vmem>>, vector<1x896xf32>
    %87 = vector.broadcast %86 : vector<1x896xf32> to vector<4x896xf32>
    %88 = arith.addf %85, %87 : vector<4x896xf32>
    %89 = arith.negf %88 : vector<4x896xf32>
    %90 = math.exp %89 : vector<4x896xf32>
    %cst_49 = arith.constant 1.000000e+00 : f32
    %91 = vector.broadcast %cst_49 : f32 to vector<4x896xf32>
    %92 = arith.addf %91, %90 : vector<4x896xf32>
    %93 = arith.divf %91, %92 : vector<4x896xf32>
    %c0_50 = arith.constant 0 : index
    %c0_51 = arith.constant 0 : index
    %94 = vector.load %arg17[%c0_50, %c0_51] : memref<4x896xf32, #tpu.memory_space<vmem>>, vector<4x896xf32>
    tpu.vector_store %arg17[%c0_50, %c0_51], %93 {strides = array<i32>} : memref<4x896xf32, #tpu.memory_space<vmem>>, vector<4x896xf32>,
    return
  }
}

</mosaic_0001>

<llo_original>
// kernel: tpu_custom_call.1
$region0: #{tpu_custom_call.1}
  #allocation0 [shape = 'u32[]', space=smem, size = 0x4, offset = 0x4, fixed_abs, tag = 'smem constant byte address 0x4 - core index']
  #allocation1 [shape = 'u32[144,128]{1,0:T(1,128)}', space=vmem, size = 0x12000, scoped, tag = 'internal scratch']
  %s0 = inlined_call_operand.hbm [shape: f32[4,128], index: 0, kind: input, shape index: {}]
  %s1 = inlined_call_operand.hbm [shape: bf16[128,128], index: 1, kind: input, shape index: {}]
  %s2 = inlined_call_operand.hbm [shape: f32[1,128], index: 2, kind: input, shape index: {}]
  %s3 = inlined_call_operand.hbm [shape: bf16[128,640], index: 3, kind: input, shape index: {}]
  %s4 = inlined_call_operand.hbm [shape: f32[1,640], index: 4, kind: input, shape index: {}]
  %s5 = inlined_call_operand.vmem [shape: f32[640,16], index: 5, kind: input, shape index: {}]
  %s6 = inlined_call_operand.hbm [shape: f32[16,640], index: 6, kind: input, shape index: {}]
  %s7 = inlined_call_operand.hbm [shape: f32[1,16], index: 7, kind: input, shape index: {}]
  %s8 = inlined_call_operand.hbm [shape: f32[1,16], index: 8, kind: input, shape index: {}]
  %s9 = inlined_call_operand.hbm [shape: bf16[640,1408], index: 9, kind: input, shape index: {}]
  %s10 = inlined_call_operand.hbm [shape: f32[1,1408], index: 10, kind: input, shape index: {}]
  %s11 = inlined_call_operand.vmem [shape: f32[1408,8], index: 11, kind: input, shape index: {}]
  %s12 = inlined_call_operand.hbm [shape: f32[8,1408], index: 12, kind: input, shape index: {}]
  %s13 = inlined_call_operand.hbm [shape: f32[1,8], index: 13, kind: input, shape index: {}]
  %s14 = inlined_call_operand.hbm [shape: f32[1,8], index: 14, kind: input, shape index: {}]
  %s15 = inlined_call_operand.hbm [shape: bf16[1408,896], index: 15, kind: input, shape index: {}]
  %s16 = inlined_call_operand.hbm [shape: f32[1,896], index: 16, kind: input, shape index: {}]
  %s17 = inlined_call_operand.hbm [shape: f32[4,896], index: 17, kind: output, shape index: {}]
  %s18 = sld [smem:[#allocation0]]
  $region138: #{tpu_custom_call.1} parent=0
    _
  %s20 = ssub.s32 1, %s18
  %s21 = scalar_select 0, %s20, %s18
  $region1: #{tpu_custom_call.1} parent=0
    #allocation2 [shape = 'u8[2048]{0}', space=vmem, size = 0x800, scoped, tag = 'input window, operand 0, single buffered']
    #allocation3 [shape = 's32[1]{0}', space=sflag, size = 0x4, scoped, tag = 'scoped memory for tpu_custom_call.1']
    #allocation4 [shape = 's32[1]{0}', space=sflag, size = 0x4, scoped, tag = 'scoped memory for tpu_custom_call.1']
    #allocation5 [shape = 'u8[32768]{0}', space=vmem, size = 0x8000, scoped, tag = 'input window, operand 1, single buffered']
    #allocation6 [shape = 's32[1]{0}', space=sflag, size = 0x4, scoped, tag = 'scoped memory for tpu_custom_call.1']
    #allocation7 [shape = 'u8[512]{0}', space=vmem, size = 0x400, scoped, tag = 'input window, operand 2, single buffered']
    #allocation8 [shape = 'u8[163840]{0}', space=vmem, size = 0x28000, scoped, tag = 'input window, operand 3, single buffered']
    #allocation9 [shape = 's32[1]{0}', space=sflag, size = 0x4, scoped, tag = 'scoped memory for tpu_custom_call.1']
    #allocation10 [shape = 'u8[2560]{0}', space=vmem, size = 0xc00, scoped, tag = 'input window, operand 4, single buffered']
    #allocation11 [shape = 'u8[40960]{0}', space=vmem, size = 0xa000, scoped, tag = 'input window, operand 6, single buffered']
    #allocation12 [shape = 's32[1]{0}', space=sflag, size = 0x4, scoped, tag = 'scoped memory for tpu_custom_call.1']
    #allocation13 [shape = 'u8[512]{0}', space=vmem, size = 0x400, scoped, tag = 'input window, operand 7, single buffered']
    #allocation14 [shape = 'u8[512]{0}', space=vmem, size = 0x400, scoped, tag = 'input window, operand 8, single buffered']
    #allocation15 [shape = 's32[1]{0}', space=sflag, size = 0x4, scoped, tag = 'scoped memory for tpu_custom_call.1']
    #allocation16 [shape = 'u8[1802240]{0}', space=vmem, size = 0x1b8000, scoped, tag = 'input window, operand 9, single buffered']
    #allocation17 [shape = 'u8[5632]{0}', space=vmem, size = 0x1800, scoped, tag = 'input window, operand 10, single buffered']
    #allocation18 [shape = 's32[1]{0}', space=sflag, size = 0x4, scoped, tag = 'scoped memory for tpu_custom_call.1']
    #allocation19 [shape = 'u8[45056]{0}', space=vmem, size = 0xb000, scoped, tag = 'input window, operand 12, single buffered']
    #allocation20 [shape = 'u8[512]{0}', space=vmem, size = 0x400, scoped, tag = 'input window, operand 13, single buffered']
    #allocation21 [shape = 's32[1]{0}', space=sflag, size = 0x4, scoped, tag = 'scoped memory for tpu_custom_call.1']
    #allocation22 [shape = 'u8[512]{0}', space=vmem, size = 0x400, scoped, tag = 'input window, operand 14, single buffered']
    #allocation23 [shape = 'u8[2523136]{0}', space=vmem, size = 0x268000, scoped, tag = 'input window, operand 15, single buffered']
    #allocation24 [shape = 's32[1]{0}', space=sflag, size = 0x4, scoped, tag = 'scoped memory for tpu_custom_call.1']
    #allocation25 [shape = 'u8[3584]{0}', space=vmem, size = 0x1000, scoped, tag = 'input window, operand 16, single buffered']
    #allocation26 [shape = 'u8[14336]{0}', space=vmem, size = 0x3800, scoped, tag = 'output window, operand 0, single buffered']
    %22 = vsyncpa [#allocation3], 0
    %23 = vsyncpa [#allocation6], 0
    %24 = vsyncpa [#allocation9], 0
    %25 = vsyncpa [#allocation12], 0
    %26 = vsyncpa [#allocation15], 0
    %27 = vsyncpa [#allocation18], 0
    %28 = vsyncpa [#allocation21], 0
    %29 = vsyncpa [#allocation24], 0
    %30 = vsyncpa [#allocation4], 0
    // Predicated region
    $region2: #{tpu_custom_call.1} parent=1 // pred_check
      _
    $region3: #{tpu_custom_call.1} parent=1 // pred_check_branch
      %32 = sbr.rel (0) target = $region5
    $region4: #{tpu_custom_call.1} parent=1 // pred_region
      %s34 = ssub.s32 64, 64
      %35 = vsyncadd [#allocation3], %s34
      %s37 = sshll.u32 [#allocation2], 4
      %s38 = int_to_ptr.vmem [resolvable:$true] %s37
      %40 = dma.hbm_to_vmem [thread:$0]  %s0, 64, %s38, [#allocation3]
    $region5: #{tpu_custom_call.1} parent=1 // pred_fallthru
      _
    // Predicated region
    $region6: #{tpu_custom_call.1} parent=1 // pred_check
      _
    $region7: #{tpu_custom_call.1} parent=1 // pred_check_branch
      %42 = sbr.rel (0) target = $region9
    $region8: #{tpu_custom_call.1} parent=1 // pred_region
      %s44 = ssub.s32 1024, 1024
      %45 = vsyncadd [#allocation6], %s44
      %s46 = sshll.u32 [#allocation5], 4
      %s47 = int_to_ptr.vmem [resolvable:$true] %s46
      %52 = dma.hbm_to_vmem [thread:$0]  %s1, 1024, %s47, [#allocation6], 64, 64, 4
    $region9: #{tpu_custom_call.1} parent=1 // pred_fallthru
      _
    // Predicated region
    $region10: #{tpu_custom_call.1} parent=1 // pred_check
      _
    $region11: #{tpu_custom_call.1} parent=1 // pred_check_branch
      %54 = sbr.rel (0) target = $region13
    $region12: #{tpu_custom_call.1} parent=1 // pred_region
      %s56 = ssub.s32 16, 16
      %57 = vsyncadd [#allocation6], %s56
      %s59 = sshll.u32 [#allocation7], 4
      %s60 = int_to_ptr.vmem [resolvable:$true] %s59
      %62 = dma.hbm_to_vmem [thread:$0]  %s2, 16, %s60, [#allocation6]
    $region13: #{tpu_custom_call.1} parent=1 // pred_fallthru
      _
    // Predicated region
    $region14: #{tpu_custom_call.1} parent=1 // pred_check
      _
    $region15: #{tpu_custom_call.1} parent=1 // pred_check_branch
      %64 = sbr.rel (0) target = $region17
    $region16: #{tpu_custom_call.1} parent=1 // pred_region
      %s66 = ssub.s32 5120, 5120
      %67 = vsyncadd [#allocation9], %s66
      %s68 = sshll.u32 [#allocation8], 4
      %s69 = int_to_ptr.vmem [resolvable:$true] %s68
      %74 = dma.hbm_to_vmem [thread:$0]  %s3, 5120, %s69, [#allocation9], 320, 320, 20
    $region17: #{tpu_custom_call.1} parent=1 // pred_fallthru
      _
    // Predicated region
    $region18: #{tpu_custom_call.1} parent=1 // pred_check
      _
    $region19: #{tpu_custom_call.1} parent=1 // pred_check_branch
      %76 = sbr.rel (0) target = $region21
    $region20: #{tpu_custom_call.1} parent=1 // pred_region
      %s78 = ssub.s32 80, 80
      %79 = vsyncadd [#allocation9], %s78
      %s81 = sshll.u32 [#allocation10], 4
      %s82 = int_to_ptr.vmem [resolvable:$true] %s81
      %84 = dma.hbm_to_vmem [thread:$0]  %s4, 80, %s82, [#allocation9]
    $region21: #{tpu_custom_call.1} parent=1 // pred_fallthru
      _
    // Predicated region
    $region22: #{tpu_custom_call.1} parent=1 // pred_check
      _
    $region23: #{tpu_custom_call.1} parent=1 // pred_check_branch
      %86 = sbr.rel (0) target = $region25
    $region24: #{tpu_custom_call.1} parent=1 // pred_region
      _
    $region25: #{tpu_custom_call.1} parent=1 // pred_fallthru
      _
    // Predicated region
    $region26: #{tpu_custom_call.1} parent=1 // pred_check
      _
    $region27: #{tpu_custom_call.1} parent=1 // pred_check_branch
      %88 = sbr.rel (0) target = $region29
    $region28: #{tpu_custom_call.1} parent=1 // pred_region
      %s90 = ssub.s32 1280, 1280
      %91 = vsyncadd [#allocation12], %s90
      %s92 = sshll.u32 [#allocation11], 4
      %s93 = int_to_ptr.vmem [resolvable:$true] %s92
      %98 = dma.hbm_to_vmem [thread:$0]  %s6, 1280, %s93, [#allocation12], 640, 640, 40
    $region29: #{tpu_custom_call.1} parent=1 // pred_fallthru
      _
    // Predicated region
    $region30: #{tpu_custom_call.1} parent=1 // pred_check
      _
    $region31: #{tpu_custom_call.1} parent=1 // pred_check_branch
      %100 = sbr.rel (0) target = $region33
    $region32: #{tpu_custom_call.1} parent=1 // pred_region
      %s102 = ssub.s32 16, 16
      %103 = vsyncadd [#allocation12], %s102
      %s105 = sshll.u32 [#allocation13], 4
      %s106 = int_to_ptr.vmem [resolvable:$true] %s105
      %108 = dma.hbm_to_vmem [thread:$0]  %s7, 16, %s106, [#allocation12]
    $region33: #{tpu_custom_call.1} parent=1 // pred_fallthru
      _
    // Predicated region
    $region34: #{tpu_custom_call.1} parent=1 // pred_check
      _
    $region35: #{tpu_custom_call.1} parent=1 // pred_check_branch
      %110 = sbr.rel (0) target = $region37
    $region36: #{tpu_custom_call.1} parent=1 // pred_region
      %s112 = ssub.s32 16, 16
      %113 = vsyncadd [#allocation15], %s112
      %s115 = sshll.u32 [#allocation14], 4
      %s116 = int_to_ptr.vmem [resolvable:$true] %s115
      %118 = dma.hbm_to_vmem [thread:$0]  %s8, 16, %s116, [#allocation15]
    $region37: #{tpu_custom_call.1} parent=1 // pred_fallthru
      _
    // Predicated region
    $region38: #{tpu_custom_call.1} parent=1 // pred_check
      _
    $region39: #{tpu_custom_call.1} parent=1 // pred_check_branch
      %120 = sbr.rel (0) target = $region41
    $region40: #{tpu_custom_call.1} parent=1 // pred_region
      %s122 = ssub.s32 56320, 56320
      %123 = vsyncadd [#allocation15], %s122
      %s124 = sshll.u32 [#allocation16], 4
      %s125 = int_to_ptr.vmem [resolvable:$true] %s124
      %130 = dma.hbm_to_vmem [thread:$0]  %s9, 56320, %s125, [#allocation15], 704, 704, 44
    $region41: #{tpu_custom_call.1} parent=1 // pred_fallthru
      _
    // Predicated region
    $region42: #{tpu_custom_call.1} parent=1 // pred_check
      _
    $region43: #{tpu_custom_call.1} parent=1 // pred_check_branch
      %132 = sbr.rel (0) target = $region45
    $region44: #{tpu_custom_call.1} parent=1 // pred_region
      %s134 = ssub.s32 176, 176
      %135 = vsyncadd [#allocation18], %s134
      %s137 = sshll.u32 [#allocation17], 4
      %s138 = int_to_ptr.vmem [resolvable:$true] %s137
      %140 = dma.hbm_to_vmem [thread:$0]  %s10, 176, %s138, [#allocation18]
    $region45: #{tpu_custom_call.1} parent=1 // pred_fallthru
      _
    // Predicated region
    $region46: #{tpu_custom_call.1} parent=1 // pred_check
      _
    $region47: #{tpu_custom_call.1} parent=1 // pred_check_branch
      %142 = sbr.rel (0) target = $region49
    $region48: #{tpu_custom_call.1} parent=1 // pred_region
      _
    $region49: #{tpu_custom_call.1} parent=1 // pred_fallthru
      _
    // Predicated region
    $region50: #{tpu_custom_call.1} parent=1 // pred_check
      _
    $region51: #{tpu_custom_call.1} parent=1 // pred_check_branch
      %144 = sbr.rel (0) target = $region53
    $region52: #{tpu_custom_call.1} parent=1 // pred_region
      %s146 = ssub.s32 1408, 1408
      %147 = vsyncadd [#allocation18], %s146
      %s149 = sshll.u32 [#allocation19], 4
      %s150 = int_to_ptr.vmem [resolvable:$true] %s149
      %152 = dma.hbm_to_vmem [thread:$0]  %s12, 1408, %s150, [#allocation18]
    $region53: #{tpu_custom_call.1} parent=1 // pred_fallthru
      _
    // Predicated region
    $region54: #{tpu_custom_call.1} parent=1 // pred_check
      _
    $region55: #{tpu_custom_call.1} parent=1 // pred_check_branch
      %154 = sbr.rel (0) target = $region57
    $region56: #{tpu_custom_call.1} parent=1 // pred_region
      %s156 = ssub.s32 16, 16
      %157 = vsyncadd [#allocation21], %s156
      %s159 = sshll.u32 [#allocation20], 4
      %s160 = int_to_ptr.vmem [resolvable:$true] %s159
      %162 = dma.hbm_to_vmem [thread:$0]  %s13, 16, %s160, [#allocation21]
    $region57: #{tpu_custom_call.1} parent=1 // pred_fallthru
      _
    // Predicated region
    $region58: #{tpu_custom_call.1} parent=1 // pred_check
      _
    $region59: #{tpu_custom_call.1} parent=1 // pred_check_branch
      %164 = sbr.rel (0) target = $region61
    $region60: #{tpu_custom_call.1} parent=1 // pred_region
      %s166 = ssub.s32 16, 16
      %167 = vsyncadd [#allocation21], %s166
      %s169 = sshll.u32 [#allocation22], 4
      %s170 = int_to_ptr.vmem [resolvable:$true] %s169
      %172 = dma.hbm_to_vmem [thread:$0]  %s14, 16, %s170, [#allocation21]
    $region61: #{tpu_custom_call.1} parent=1 // pred_fallthru
      _
    // Predicated region
    $region62: #{tpu_custom_call.1} parent=1 // pred_check
      _
    $region63: #{tpu_custom_call.1} parent=1 // pred_check_branch
      %174 = sbr.rel (0) target = $region65
    $region64: #{tpu_custom_call.1} parent=1 // pred_region
      %s176 = ssub.s32 78848, 78848
      %177 = vsyncadd [#allocation24], %s176
      %s178 = sshll.u32 [#allocation23], 4
      %s179 = int_to_ptr.vmem [resolvable:$true] %s178
      %184 = dma.hbm_to_vmem [thread:$0]  %s15, 78848, %s179, [#allocation24], 448, 448, 28
    $region65: #{tpu_custom_call.1} parent=1 // pred_fallthru
      _
    // Predicated region
    $region66: #{tpu_custom_call.1} parent=1 // pred_check
      _
    $region67: #{tpu_custom_call.1} parent=1 // pred_check_branch
      %186 = sbr.rel (0) target = $region69
    $region68: #{tpu_custom_call.1} parent=1 // pred_region
      %s188 = ssub.s32 112, 112
      %189 = vsyncadd [#allocation24], %s188
      %s191 = sshll.u32 [#allocation25], 4
      %s192 = int_to_ptr.vmem [resolvable:$true] %s191
      %194 = dma.hbm_to_vmem [thread:$0]  %s16, 112, %s192, [#allocation24]
    $region69: #{tpu_custom_call.1} parent=1 // pred_fallthru
      _
    // Predicated region
    $region70: #{tpu_custom_call.1} parent=1 // pred_check
      _
    $region71: #{tpu_custom_call.1} parent=1 // pred_check_branch
      %196 = sbr.rel (0) target = $region73
    $region72: #{tpu_custom_call.1} parent=1 // pred_region
      %197 = dma.done [#allocation3], 64
    $region73: #{tpu_custom_call.1} parent=1 // pred_fallthru
      _
    // Predicated region
    $region74: #{tpu_custom_call.1} parent=1 // pred_check
      _
    $region75: #{tpu_custom_call.1} parent=1 // pred_check_branch
      %199 = sbr.rel (0) target = $region77
    $region76: #{tpu_custom_call.1} parent=1 // pred_region
      %200 = dma.done [#allocation6], 1024
    $region77: #{tpu_custom_call.1} parent=1 // pred_fallthru
      _
    // Predicated region
    $region78: #{tpu_custom_call.1} parent=1 // pred_check
      _
    $region79: #{tpu_custom_call.1} parent=1 // pred_check_branch
      %202 = sbr.rel (0) target = $region81
    $region80: #{tpu_custom_call.1} parent=1 // pred_region
      %203 = dma.done [#allocation6], 16
    $region81: #{tpu_custom_call.1} parent=1 // pred_fallthru
      _
    // Predicated region
    $region82: #{tpu_custom_call.1} parent=1 // pred_check
      _
    $region83: #{tpu_custom_call.1} parent=1 // pred_check_branch
      %205 = sbr.rel (0) target = $region85
    $region84: #{tpu_custom_call.1} parent=1 // pred_region
      %206 = dma.done [#allocation9], 5120
    $region85: #{tpu_custom_call.1} parent=1 // pred_fallthru
      _
    // Predicated region
    $region86: #{tpu_custom_call.1} parent=1 // pred_check
      _
    $region87: #{tpu_custom_call.1} parent=1 // pred_check_branch
      %208 = sbr.rel (0) target = $region89
    $region88: #{tpu_custom_call.1} parent=1 // pred_region
      %209 = dma.done [#allocation9], 80
    $region89: #{tpu_custom_call.1} parent=1 // pred_fallthru
      _
    // Predicated region
    $region90: #{tpu_custom_call.1} parent=1 // pred_check
      _
    $region91: #{tpu_custom_call.1} parent=1 // pred_check_branch
      %211 = sbr.rel (0) target = $region93
    $region92: #{tpu_custom_call.1} parent=1 // pred_region
      %212 = dma.done [#allocation12], 1280
    $region93: #{tpu_custom_call.1} parent=1 // pred_fallthru
      _
    // Predicated region
    $region94: #{tpu_custom_call.1} parent=1 // pred_check
      _
    $region95: #{tpu_custom_call.1} parent=1 // pred_check_branch
      %214 = sbr.rel (0) target = $region97
    $region96: #{tpu_custom_call.1} parent=1 // pred_region
      %215 = dma.done [#allocation12], 16
    $region97: #{tpu_custom_call.1} parent=1 // pred_fallthru
      _
    // Predicated region
    $region98: #{tpu_custom_call.1} parent=1 // pred_check
      _
    $region99: #{tpu_custom_call.1} parent=1 // pred_check_branch
      %217 = sbr.rel (0) target = $region101
    $region100: #{tpu_custom_call.1} parent=1 // pred_region
      %218 = dma.done [#allocation15], 16
    $region101: #{tpu_custom_call.1} parent=1 // pred_fallthru
      _
    // Predicated region
    $region102: #{tpu_custom_call.1} parent=1 // pred_check
      _
    $region103: #{tpu_custom_call.1} parent=1 // pred_check_branch
      %220 = sbr.rel (0) target = $region105
    $region104: #{tpu_custom_call.1} parent=1 // pred_region
      %221 = dma.done [#allocation15], 56320
    $region105: #{tpu_custom_call.1} parent=1 // pred_fallthru
      _
    // Predicated region
    $region106: #{tpu_custom_call.1} parent=1 // pred_check
      _
    $region107: #{tpu_custom_call.1} parent=1 // pred_check_branch
      %223 = sbr.rel (0) target = $region109
    $region108: #{tpu_custom_call.1} parent=1 // pred_region
      %224 = dma.done [#allocation18], 176
    $region109: #{tpu_custom_call.1} parent=1 // pred_fallthru
      _
    // Predicated region
    $region110: #{tpu_custom_call.1} parent=1 // pred_check
      _
    $region111: #{tpu_custom_call.1} parent=1 // pred_check_branch
      %226 = sbr.rel (0) target = $region113
    $region112: #{tpu_custom_call.1} parent=1 // pred_region
      %227 = dma.done [#allocation18], 1408
    $region113: #{tpu_custom_call.1} parent=1 // pred_fallthru
      _
    // Predicated region
    $region114: #{tpu_custom_call.1} parent=1 // pred_check
      _
    $region115: #{tpu_custom_call.1} parent=1 // pred_check_branch
      %229 = sbr.rel (0) target = $region117
    $region116: #{tpu_custom_call.1} parent=1 // pred_region
      %230 = dma.done [#allocation21], 16
    $region117: #{tpu_custom_call.1} parent=1 // pred_fallthru
      _
    // Predicated region
    $region118: #{tpu_custom_call.1} parent=1 // pred_check
      _
    $region119: #{tpu_custom_call.1} parent=1 // pred_check_branch
      %232 = sbr.rel (0) target = $region121
    $region120: #{tpu_custom_call.1} parent=1 // pred_region
      %233 = dma.done [#allocation21], 16
    $region121: #{tpu_custom_call.1} parent=1 // pred_fallthru
      _
    // Predicated region
    $region122: #{tpu_custom_call.1} parent=1 // pred_check
      _
    $region123: #{tpu_custom_call.1} parent=1 // pred_check_branch
      %235 = sbr.rel (0) target = $region125
    $region124: #{tpu_custom_call.1} parent=1 // pred_region
      %236 = dma.done [#allocation24], 78848
    $region125: #{tpu_custom_call.1} parent=1 // pred_fallthru
      _
    // Predicated region
    $region126: #{tpu_custom_call.1} parent=1 // pred_check
      _
    $region127: #{tpu_custom_call.1} parent=1 // pred_check_branch
      %238 = sbr.rel (0) target = $region129
    $region128: #{tpu_custom_call.1} parent=1 // pred_region
      %239 = dma.done [#allocation24], 112
    $region129: #{tpu_custom_call.1} parent=1 // pred_fallthru
      _
    %v241 = vld [vmem:[#allocation2] sm:$0xf]
    %v242 = vpack.c.bf16 %v241, %v241
    %v243 = vld [vmem:[#allocation5] sm:$0xf]
    %v244 = vld [vmem:[#allocation5 + $0x4] sm:$0xf]
    %v245 = vld [vmem:[#allocation5 + $0x8] sm:$0xf]
    %v246 = vld [vmem:[#allocation5 + $0xc] sm:$0xf]
    %v247 = vld [vmem:[#allocation5 + $0x10] sm:$0xf]
    %v248 = vld [vmem:[#allocation5 + $0x14] sm:$0xf]
    %v249 = vld [vmem:[#allocation5 + $0x18] sm:$0xf]
    %v250 = vld [vmem:[#allocation5 + $0x1c] sm:$0xf]
    %v251 = vld [vmem:[#allocation5 + $0x20] sm:$0xf]
    %v252 = vld [vmem:[#allocation5 + $0x24] sm:$0xf]
    %v253 = vld [vmem:[#allocation5 + $0x28] sm:$0xf]
    %v254 = vld [vmem:[#allocation5 + $0x2c] sm:$0xf]
    %v255 = vld [vmem:[#allocation5 + $0x30] sm:$0xf]
    %v256 = vld [vmem:[#allocation5 + $0x34] sm:$0xf]
    %v257 = vld [vmem:[#allocation5 + $0x38] sm:$0xf]
    %v258 = vld [vmem:[#allocation5 + $0x3c] sm:$0xf]
    %v259 = vld [vmem:[#allocation7] sm:$0x1]
    %v261 = vlaneseq
    %v262 = vshrl.u32 %v261, 7
    %v263 = vsub.s32 0, %v262
    %v264 = vrot.slane %v259, %v263
    %v282 = vunpack.c.l.b16 %v243
    %v283 = vunpack.c.l.b16 %v244
    %v284 = vunpack.c.l.b16 %v245
    %v285 = vunpack.c.l.b16 %v246
    %v286 = vunpack.c.l.b16 %v247
    %v287 = vunpack.c.l.b16 %v248
    %v288 = vunpack.c.l.b16 %v249
    %v289 = vunpack.c.l.b16 %v250
    %v290 = vunpack.c.l.b16 %v251
    %v291 = vunpack.c.l.b16 %v252
    %v292 = vunpack.c.l.b16 %v253
    %v293 = vunpack.c.l.b16 %v254
    %v294 = vunpack.c.l.b16 %v255
    %v295 = vunpack.c.l.b16 %v256
    %v296 = vunpack.c.l.b16 %v257
    %v297 = vunpack.c.l.b16 %v258
    %v298 = vpack.c.b16 %v283, %v282
    %v299 = vpack.c.b16 %v285, %v284
    %v300 = vpack.c.b16 %v287, %v286
    %v301 = vpack.c.b16 %v289, %v288
    %v302 = vpack.c.b16 %v291, %v290
    %v303 = vpack.c.b16 %v293, %v292
    %v304 = vpack.c.b16 %v295, %v294
    %v305 = vpack.c.b16 %v297, %v296
    %314 = vmatprep.subr.bf16.mxu0 0
    %315 = vmatpush1.bf16.msra.mxu0 %v298
    %316 = vmatprep.subr.bf16.mxu0 0
    %317 = vmatpush1.bf16.msra.mxu0 %v299
    %318 = vmatprep.subr.bf16.mxu0 0
    %319 = vmatpush1.bf16.msra.mxu0 %v300
    %320 = vmatprep.subr.bf16.mxu0 0
    %321 = vmatpush1.bf16.msra.mxu0 %v301
    %322 = vmatprep.subr.bf16.mxu0 0
    %323 = vmatpush1.bf16.msra.mxu0 %v302
    %324 = vmatprep.subr.bf16.mxu0 0
    %325 = vmatpush1.bf16.msra.mxu0 %v303
    %326 = vmatprep.subr.bf16.mxu0 0
    %327 = vmatpush1.bf16.msra.mxu0 %v304
    %328 = vmatprep.subr.bf16.mxu0 0
    %329 = vmatpush1.bf16.msra.mxu0 %v305
    %330 = vmatprep.subr.bf16.mxu0 0
    %331 = vmatpush1.bf16.msra.mxu0 0
    %332 = vmatprep.subr.bf16.mxu0 0
    %333 = vmatpush1.bf16.msra.mxu0 0
    %334 = vmatprep.subr.bf16.mxu0 0
    %335 = vmatpush1.bf16.msra.mxu0 0
    %336 = vmatprep.subr.bf16.mxu0 0
    %337 = vmatpush1.bf16.msra.mxu0 0
    %338 = vmatprep.subr.bf16.mxu0 0
    %339 = vmatpush1.bf16.msra.mxu0 0
    %340 = vmatprep.subr.bf16.mxu0 0
    %341 = vmatpush1.bf16.msra.mxu0 0
    %342 = vmatprep.subr.bf16.mxu0 0
    %343 = vmatpush1.bf16.msra.mxu0 0
    %344 = vmatprep.subr.bf16.mxu0 0
    %345 = vmatpush1.bf16.msra.mxu0 0
    %346 = vmatprep.mubr.bf16.mxu0 0
    %347 = vmatmul.mubr.bf16.gmra.mrb[0].mxu0 %v242
    %v348 = vpop.f32.mrb[0].mxu0
    %v349 = vadd.f32 %v264, %v348
    %v350 = vpop.f32.mrb[0].mxu0
    %v351 = vpop.f32.mrb[0].mxu0
    %v352 = vpop.f32.mrb[0].mxu0
    %353 = vdwg.mxu0
    %v354 = vmax.f32 %v349, 0.0
    %v355 = vpack.c.bf16 %v354, %v354
    %v356 = vld [vmem:[#allocation8] sm:$0xff]
    %v357 = vld [vmem:[#allocation8 + $0x8] sm:$0xff]
    %v358 = vld [vmem:[#allocation8 + $0x10] sm:$0xf]
    %v359 = vld [vmem:[#allocation8 + $0x14] sm:$0xff]
    %v360 = vld [vmem:[#allocation8 + $0x1c] sm:$0xff]
    %v361 = vld [vmem:[#allocation8 + $0x24] sm:$0xf]
    %v362 = vld [vmem:[#allocation8 + $0x28] sm:$0xff]
    %v363 = vld [vmem:[#allocation8 + $0x30] sm:$0xff]
    %v364 = vld [vmem:[#allocation8 + $0x38] sm:$0xf]
    %v365 = vld [vmem:[#allocation8 + $0x3c] sm:$0xff]
    %v366 = vld [vmem:[#allocation8 + $0x44] sm:$0xff]
    %v367 = vld [vmem:[#allocation8 + $0x4c] sm:$0xf]
    %v368 = vld [vmem:[#allocation8 + $0x50] sm:$0xff]
    %v369 = vld [vmem:[#allocation8 + $0x58] sm:$0xff]
    %v370 = vld [vmem:[#allocation8 + $0x60] sm:$0xf]
    %v371 = vld [vmem:[#allocation8 + $0x64] sm:$0xff]
    %v372 = vld [vmem:[#allocation8 + $0x6c] sm:$0xff]
    %v373 = vld [vmem:[#allocation8 + $0x74] sm:$0xf]
    %v374 = vld [vmem:[#allocation8 + $0x78] sm:$0xff]
    %v375 = vld [vmem:[#allocation8 + $0x80] sm:$0xff]
    %v376 = vld [vmem:[#allocation8 + $0x88] sm:$0xf]
    %v377 = vld [vmem:[#allocation8 + $0x8c] sm:$0xff]
    %v378 = vld [vmem:[#allocation8 + $0x94] sm:$0xff]
    %v379 = vld [vmem:[#allocation8 + $0x9c] sm:$0xf]
    %v380 = vld [vmem:[#allocation8 + $0xa0] sm:$0xff]
    %v381 = vld [vmem:[#allocation8 + $0xa8] sm:$0xff]
    %v382 = vld [vmem:[#allocation8 + $0xb0] sm:$0xf]
    %v383 = vld [vmem:[#allocation8 + $0xb4] sm:$0xff]
    %v384 = vld [vmem:[#allocation8 + $0xbc] sm:$0xff]
    %v385 = vld [vmem:[#allocation8 + $0xc4] sm:$0xf]
    %v386 = vld [vmem:[#allocation8 + $0xc8] sm:$0xff]
    %v387 = vld [vmem:[#allocation8 + $0xd0] sm:$0xff]
    %v388 = vld [vmem:[#allocation8 + $0xd8] sm:$0xf]
    %v389 = vld [vmem:[#allocation8 + $0xdc] sm:$0xff]
    %v390 = vld [vmem:[#allocation8 + $0xe4] sm:$0xff]
    %v391 = vld [vmem:[#allocation8 + $0xec] sm:$0xf]
    %v392 = vld [vmem:[#allocation8 + $0xf0] sm:$0xff]
    %v393 = vld [vmem:[#allocation8 + $0xf8] sm:$0xff]
    %v394 = vld [vmem:[#allocation8 + $0x100] sm:$0xf]
    %v395 = vld [vmem:[#allocation8 + $0x104] sm:$0xff]
    %v396 = vld [vmem:[#allocation8 + $0x10c] sm:$0xff]
    %v397 = vld [vmem:[#allocation8 + $0x114] sm:$0xf]
    %v398 = vld [vmem:[#allocation8 + $0x118] sm:$0xff]
    %v399 = vld [vmem:[#allocation8 + $0x120] sm:$0xff]
    %v400 = vld [vmem:[#allocation8 + $0x128] sm:$0xf]
    %v401 = vld [vmem:[#allocation8 + $0x12c] sm:$0xff]
    %v402 = vld [vmem:[#allocation8 + $0x134] sm:$0xff]
    %v403 = vld [vmem:[#allocation8 + $0x13c] sm:$0xf]
    %v404 = vld [vmem:[#allocation10] sm:$0x1f]
    %v406 = vlaneseq
    %v407 = vshrl.u32 %v406, 7
    %v408 = vsub.s32 0, %v407
    %v409 = vrot.slane %v404, %v408
    %v410 = vlaneseq
    %v411 = vshrl.u32 %v410, 7
    %v412 = vsub.s32 1, %v411
    %v413 = vrot.slane %v404, %v412
    %v414 = vlaneseq
    %v415 = vshrl.u32 %v414, 7
    %v416 = vsub.s32 2, %v415
    %v417 = vrot.slane %v404, %v416
    %v418 = vlaneseq
    %v419 = vshrl.u32 %v418, 7
    %v420 = vsub.s32 3, %v419
    %v421 = vrot.slane %v404, %v420
    %v422 = vlaneseq
    %v423 = vshrl.u32 %v422, 7
    %v424 = vsub.s32 4, %v423
    %v425 = vrot.slane %v404, %v424
    %v479 = vunpack.c.l.b16 %v356
    %v480 = vunpack.c.h.b16 %v356
    %v481 = vunpack.c.l.b16 %v357
    %v482 = vunpack.c.h.b16 %v357
    %v483 = vunpack.c.l.b16 %v358
    %v484 = vunpack.c.l.b16 %v359
    %v485 = vunpack.c.h.b16 %v359
    %v486 = vunpack.c.l.b16 %v360
    %v487 = vunpack.c.h.b16 %v360
    %v488 = vunpack.c.l.b16 %v361
    %v489 = vunpack.c.l.b16 %v362
    %v490 = vunpack.c.h.b16 %v362
    %v491 = vunpack.c.l.b16 %v363
    %v492 = vunpack.c.h.b16 %v363
    %v493 = vunpack.c.l.b16 %v364
    %v494 = vunpack.c.l.b16 %v365
    %v495 = vunpack.c.h.b16 %v365
    %v496 = vunpack.c.l.b16 %v366
    %v497 = vunpack.c.h.b16 %v366
    %v498 = vunpack.c.l.b16 %v367
    %v499 = vunpack.c.l.b16 %v368
    %v500 = vunpack.c.h.b16 %v368
    %v501 = vunpack.c.l.b16 %v369
    %v502 = vunpack.c.h.b16 %v369
    %v503 = vunpack.c.l.b16 %v370
    %v504 = vunpack.c.l.b16 %v371
    %v505 = vunpack.c.h.b16 %v371
    %v506 = vunpack.c.l.b16 %v372
    %v507 = vunpack.c.h.b16 %v372
    %v508 = vunpack.c.l.b16 %v373
    %v509 = vunpack.c.l.b16 %v374
    %v510 = vunpack.c.h.b16 %v374
    %v511 = vunpack.c.l.b16 %v375
    %v512 = vunpack.c.h.b16 %v375
    %v513 = vunpack.c.l.b16 %v376
    %v514 = vunpack.c.l.b16 %v377
    %v515 = vunpack.c.h.b16 %v377
    %v516 = vunpack.c.l.b16 %v378
    %v517 = vunpack.c.h.b16 %v378
    %v518 = vunpack.c.l.b16 %v379
    %v519 = vunpack.c.l.b16 %v380
    %v520 = vunpack.c.h.b16 %v380
    %v521 = vunpack.c.l.b16 %v381
    %v522 = vunpack.c.h.b16 %v381
    %v523 = vunpack.c.l.b16 %v382
    %v524 = vunpack.c.l.b16 %v383
    %v525 = vunpack.c.h.b16 %v383
    %v526 = vunpack.c.l.b16 %v384
    %v527 = vunpack.c.h.b16 %v384
    %v528 = vunpack.c.l.b16 %v385
    %v529 = vunpack.c.l.b16 %v386
    %v530 = vunpack.c.h.b16 %v386
    %v531 = vunpack.c.l.b16 %v387
    %v532 = vunpack.c.h.b16 %v387
    %v533 = vunpack.c.l.b16 %v388
    %v534 = vunpack.c.l.b16 %v389
    %v535 = vunpack.c.h.b16 %v389
    %v536 = vunpack.c.l.b16 %v390
    %v537 = vunpack.c.h.b16 %v390
    %v538 = vunpack.c.l.b16 %v391
    %v539 = vunpack.c.l.b16 %v392
    %v540 = vunpack.c.h.b16 %v392
    %v541 = vunpack.c.l.b16 %v393
    %v542 = vunpack.c.h.b16 %v393
    %v543 = vunpack.c.l.b16 %v394
    %v544 = vunpack.c.l.b16 %v395
    %v545 = vunpack.c.h.b16 %v395
    %v546 = vunpack.c.l.b16 %v396
    %v547 = vunpack.c.h.b16 %v396
    %v548 = vunpack.c.l.b16 %v397
    %v549 = vunpack.c.l.b16 %v398
    %v550 = vunpack.c.h.b16 %v398
    %v551 = vunpack.c.l.b16 %v399
    %v552 = vunpack.c.h.b16 %v399
    %v553 = vunpack.c.l.b16 %v400
    %v554 = vunpack.c.l.b16 %v401
    %v555 = vunpack.c.h.b16 %v401
    %v556 = vunpack.c.l.b16 %v402
    %v557 = vunpack.c.h.b16 %v402
    %v558 = vunpack.c.l.b16 %v403
    %v559 = vpack.c.b16 %v484, %v479
    %v560 = vpack.c.b16 %v485, %v480
    %v561 = vpack.c.b16 %v486, %v481
    %v562 = vpack.c.b16 %v487, %v482
    %v563 = vpack.c.b16 %v488, %v483
    %v564 = vpack.c.b16 %v494, %v489
    %v565 = vpack.c.b16 %v495, %v490
    %v566 = vpack.c.b16 %v496, %v491
    %v567 = vpack.c.b16 %v497, %v492
    %v568 = vpack.c.b16 %v498, %v493
    %v569 = vpack.c.b16 %v504, %v499
    %v570 = vpack.c.b16 %v505, %v500
    %v571 = vpack.c.b16 %v506, %v501
    %v572 = vpack.c.b16 %v507, %v502
    %v573 = vpack.c.b16 %v508, %v503
    %v574 = vpack.c.b16 %v514, %v509
    %v575 = vpack.c.b16 %v515, %v510
    %v576 = vpack.c.b16 %v516, %v511
    %v577 = vpack.c.b16 %v517, %v512
    %v578 = vpack.c.b16 %v518, %v513
    %v579 = vpack.c.b16 %v524, %v519
    %v580 = vpack.c.b16 %v525, %v520
    %v581 = vpack.c.b16 %v526, %v521
    %v582 = vpack.c.b16 %v527, %v522
    %v583 = vpack.c.b16 %v528, %v523
    %v584 = vpack.c.b16 %v534, %v529
    %v585 = vpack.c.b16 %v535, %v530
    %v586 = vpack.c.b16 %v536, %v531
    %v587 = vpack.c.b16 %v537, %v532
    %v588 = vpack.c.b16 %v538, %v533
    %v589 = vpack.c.b16 %v544, %v539
    %v590 = vpack.c.b16 %v545, %v540
    %v591 = vpack.c.b16 %v546, %v541
    %v592 = vpack.c.b16 %v547, %v542
    %v593 = vpack.c.b16 %v548, %v543
    %v594 = vpack.c.b16 %v554, %v549
    %v595 = vpack.c.b16 %v555, %v550
    %v596 = vpack.c.b16 %v556, %v551
    %v597 = vpack.c.b16 %v557, %v552
    %v598 = vpack.c.b16 %v558, %v553
    %639 = vmatprep.subr.bf16.mxu0 %v560
    %640 = vmatpush1.bf16.msra.mxu0 %v559
    %641 = vmatprep.subr.bf16.mxu0 %v565
    %642 = vmatpush1.bf16.msra.mxu0 %v564
    %643 = vmatprep.subr.bf16.mxu0 %v570
    %644 = vmatpush1.bf16.msra.mxu0 %v569
    %645 = vmatprep.subr.bf16.mxu0 %v575
    %646 = vmatpush1.bf16.msra.mxu0 %v574
    %647 = vmatprep.subr.bf16.mxu0 %v580
    %648 = vmatpush1.bf16.msra.mxu0 %v579
    %649 = vmatprep.subr.bf16.mxu0 %v585
    %650 = vmatpush1.bf16.msra.mxu0 %v584
    %651 = vmatprep.subr.bf16.mxu0 %v590
    %652 = vmatpush1.bf16.msra.mxu0 %v589
    %653 = vmatprep.subr.bf16.mxu0 %v595
    %654 = vmatpush1.bf16.msra.mxu0 %v594
    %655 = vmatprep.subr.bf16.mxu0 0
    %656 = vmatpush1.bf16.msra.mxu0 0
    %657 = vmatprep.subr.bf16.mxu0 0
    %658 = vmatpush1.bf16.msra.mxu0 0
    %659 = vmatprep.subr.bf16.mxu0 0
    %660 = vmatpush1.bf16.msra.mxu0 0
    %661 = vmatprep.subr.bf16.mxu0 0
    %662 = vmatpush1.bf16.msra.mxu0 0
    %663 = vmatprep.subr.bf16.mxu0 0
    %664 = vmatpush1.bf16.msra.mxu0 0
    %665 = vmatprep.subr.bf16.mxu0 0
    %666 = vmatpush1.bf16.msra.mxu0 0
    %667 = vmatprep.subr.bf16.mxu0 0
    %668 = vmatpush1.bf16.msra.mxu0 0
    %669 = vmatprep.subr.bf16.mxu0 0
    %670 = vmatpush1.bf16.msra.mxu0 0
    %671 = vmatprep.mubr.bf16.mxu0 0
    %672 = vmatmul.mubr.bf16.gmra.mrb[0].mxu0 %v355
    %v673 = vpop.f32.mrb[0].mxu0
    %v674 = vadd.f32 %v409, %v673
    %v675 = vpop.f32.mrb[0].mxu0
    %v676 = vadd.f32 %v413, %v675
    %v677 = vpop.f32.mrb[0].mxu0
    %v678 = vpop.f32.mrb[0].mxu0
    %679 = vdwg.mxu0
    %680 = vmatprep.subr.bf16.mxu0 %v562
    %681 = vmatpush1.bf16.msra.mxu0 %v561
    %682 = vmatprep.subr.bf16.mxu0 %v567
    %683 = vmatpush1.bf16.msra.mxu0 %v566
    %684 = vmatprep.subr.bf16.mxu0 %v572
    %685 = vmatpush1.bf16.msra.mxu0 %v571
    %686 = vmatprep.subr.bf16.mxu0 %v577
    %687 = vmatpush1.bf16.msra.mxu0 %v576
    %688 = vmatprep.subr.bf16.mxu0 %v582
    %689 = vmatpush1.bf16.msra.mxu0 %v581
    %690 = vmatprep.subr.bf16.mxu0 %v587
    %691 = vmatpush1.bf16.msra.mxu0 %v586
    %692 = vmatprep.subr.bf16.mxu0 %v592
    %693 = vmatpush1.bf16.msra.mxu0 %v591
    %694 = vmatprep.subr.bf16.mxu0 %v597
    %695 = vmatpush1.bf16.msra.mxu0 %v596
    %696 = vmatprep.subr.bf16.mxu0 0
    %697 = vmatpush1.bf16.msra.mxu0 0
    %698 = vmatprep.subr.bf16.mxu0 0
    %699 = vmatpush1.bf16.msra.mxu0 0
    %700 = vmatprep.subr.bf16.mxu0 0
    %701 = vmatpush1.bf16.msra.mxu0 0
    %702 = vmatprep.subr.bf16.mxu0 0
    %703 = vmatpush1.bf16.msra.mxu0 0
    %704 = vmatprep.subr.bf16.mxu0 0
    %705 = vmatpush1.bf16.msra.mxu0 0
    %706 = vmatprep.subr.bf16.mxu0 0
    %707 = vmatpush1.bf16.msra.mxu0 0
    %708 = vmatprep.subr.bf16.mxu0 0
    %709 = vmatpush1.bf16.msra.mxu0 0
    %710 = vmatprep.subr.bf16.mxu0 0
    %711 = vmatpush1.bf16.msra.mxu0 0
    %712 = vmatprep.mubr.bf16.mxu0 0
    %713 = vmatmul.mubr.bf16.gmra.mrb[0].mxu0 %v355
    %v714 = vpop.f32.mrb[0].mxu0
    %v715 = vadd.f32 %v417, %v714
    %v716 = vpop.f32.mrb[0].mxu0
    %v717 = vadd.f32 %v421, %v716
    %v718 = vpop.f32.mrb[0].mxu0
    %v719 = vpop.f32.mrb[0].mxu0
    %720 = vdwg.mxu0
    %721 = vmatprep.subr.bf16.mxu0 0
    %722 = vmatpush1.bf16.msra.mxu0 %v563
    %723 = vmatprep.subr.bf16.mxu0 0
    %724 = vmatpush1.bf16.msra.mxu0 %v568
    %725 = vmatprep.subr.bf16.mxu0 0
    %726 = vmatpush1.bf16.msra.mxu0 %v573
    %727 = vmatprep.subr.bf16.mxu0 0
    %728 = vmatpush1.bf16.msra.mxu0 %v578
    %729 = vmatprep.subr.bf16.mxu0 0
    %730 = vmatpush1.bf16.msra.mxu0 %v583
    %731 = vmatprep.subr.bf16.mxu0 0
    %732 = vmatpush1.bf16.msra.mxu0 %v588
    %733 = vmatprep.subr.bf16.mxu0 0
    %734 = vmatpush1.bf16.msra.mxu0 %v593
    %735 = vmatprep.subr.bf16.mxu0 0
    %736 = vmatpush1.bf16.msra.mxu0 %v598
    %737 = vmatprep.subr.bf16.mxu0 0
    %738 = vmatpush1.bf16.msra.mxu0 0
    %739 = vmatprep.subr.bf16.mxu0 0
    %740 = vmatpush1.bf16.msra.mxu0 0
    %741 = vmatprep.subr.bf16.mxu0 0
    %742 = vmatpush1.bf16.msra.mxu0 0
    %743 = vmatprep.subr.bf16.mxu0 0
    %744 = vmatpush1.bf16.msra.mxu0 0
    %745 = vmatprep.subr.bf16.mxu0 0
    %746 = vmatpush1.bf16.msra.mxu0 0
    %747 = vmatprep.subr.bf16.mxu0 0
    %748 = vmatpush1.bf16.msra.mxu0 0
    %749 = vmatprep.subr.bf16.mxu0 0
    %750 = vmatpush1.bf16.msra.mxu0 0
    %751 = vmatprep.subr.bf16.mxu0 0
    %752 = vmatpush1.bf16.msra.mxu0 0
    %753 = vmatprep.mubr.bf16.mxu0 0
    %754 = vmatmul.mubr.bf16.gmra.mrb[0].mxu0 %v355
    %v755 = vpop.f32.mrb[0].mxu0
    %v756 = vadd.f32 %v425, %v755
    %v757 = vpop.f32.mrb[0].mxu0
    %v758 = vpop.f32.mrb[0].mxu0
    %v759 = vpop.f32.mrb[0].mxu0
    %760 = vdwg.mxu0
    %v761 = vld [vmem:[%s5] sm:$0xff]
    %v762 = vld [vmem:[%s5 + $0x8] sm:$0xff]
    %v763 = vld [vmem:[%s5 + $0x10] sm:$0xff]
    %v764 = vld [vmem:[%s5 + $0x18] sm:$0xff]
    %v765 = vld [vmem:[%s5 + $0x20] sm:$0xff]
    %v766 = vld [vmem:[%s5 + $0x28] sm:$0xff]
    %v767 = vld [vmem:[%s5 + $0x30] sm:$0xff]
    %v768 = vld [vmem:[%s5 + $0x38] sm:$0xff]
    %v769 = vld [vmem:[%s5 + $0x40] sm:$0xff]
    %v770 = vld [vmem:[%s5 + $0x48] sm:$0xff]
    %v771 = vld [vmem:[%s5 + $0x50] sm:$0xff]
    %v772 = vld [vmem:[%s5 + $0x58] sm:$0xff]
    %v773 = vld [vmem:[%s5 + $0x60] sm:$0xff]
    %v774 = vld [vmem:[%s5 + $0x68] sm:$0xff]
    %v775 = vld [vmem:[%s5 + $0x70] sm:$0xff]
    %v776 = vld [vmem:[%s5 + $0x78] sm:$0xff]
    %v777 = vld [vmem:[%s5 + $0x80] sm:$0xff]
    %v778 = vld [vmem:[%s5 + $0x88] sm:$0xff]
    %v779 = vld [vmem:[%s5 + $0x90] sm:$0xff]
    %v780 = vld [vmem:[%s5 + $0x98] sm:$0xff]
    %v781 = vld [vmem:[%s5 + $0xa0] sm:$0xff]
    %v782 = vld [vmem:[%s5 + $0xa8] sm:$0xff]
    %v783 = vld [vmem:[%s5 + $0xb0] sm:$0xff]
    %v784 = vld [vmem:[%s5 + $0xb8] sm:$0xff]
    %v785 = vld [vmem:[%s5 + $0xc0] sm:$0xff]
    %v786 = vld [vmem:[%s5 + $0xc8] sm:$0xff]
    %v787 = vld [vmem:[%s5 + $0xd0] sm:$0xff]
    %v788 = vld [vmem:[%s5 + $0xd8] sm:$0xff]
    %v789 = vld [vmem:[%s5 + $0xe0] sm:$0xff]
    %v790 = vld [vmem:[%s5 + $0xe8] sm:$0xff]
    %v791 = vld [vmem:[%s5 + $0xf0] sm:$0xff]
    %v792 = vld [vmem:[%s5 + $0xf8] sm:$0xff]
    %v793 = vld [vmem:[%s5 + $0x100] sm:$0xff]
    %v794 = vld [vmem:[%s5 + $0x108] sm:$0xff]
    %v795 = vld [vmem:[%s5 + $0x110] sm:$0xff]
    %v796 = vld [vmem:[%s5 + $0x118] sm:$0xff]
    %v797 = vld [vmem:[%s5 + $0x120] sm:$0xff]
    %v798 = vld [vmem:[%s5 + $0x128] sm:$0xff]
    %v799 = vld [vmem:[%s5 + $0x130] sm:$0xff]
    %v800 = vld [vmem:[%s5 + $0x138] sm:$0xff]
    %v801 = vld [vmem:[%s5 + $0x140] sm:$0xff]
    %v802 = vld [vmem:[%s5 + $0x148] sm:$0xff]
    %v803 = vld [vmem:[%s5 + $0x150] sm:$0xff]
    %v804 = vld [vmem:[%s5 + $0x158] sm:$0xff]
    %v805 = vld [vmem:[%s5 + $0x160] sm:$0xff]
    %v806 = vld [vmem:[%s5 + $0x168] sm:$0xff]
    %v807 = vld [vmem:[%s5 + $0x170] sm:$0xff]
    %v808 = vld [vmem:[%s5 + $0x178] sm:$0xff]
    %v809 = vld [vmem:[%s5 + $0x180] sm:$0xff]
    %v810 = vld [vmem:[%s5 + $0x188] sm:$0xff]
    %v811 = vld [vmem:[%s5 + $0x190] sm:$0xff]
    %v812 = vld [vmem:[%s5 + $0x198] sm:$0xff]
    %v813 = vld [vmem:[%s5 + $0x1a0] sm:$0xff]
    %v814 = vld [vmem:[%s5 + $0x1a8] sm:$0xff]
    %v815 = vld [vmem:[%s5 + $0x1b0] sm:$0xff]
    %v816 = vld [vmem:[%s5 + $0x1b8] sm:$0xff]
    %v817 = vld [vmem:[%s5 + $0x1c0] sm:$0xff]
    %v818 = vld [vmem:[%s5 + $0x1c8] sm:$0xff]
    %v819 = vld [vmem:[%s5 + $0x1d0] sm:$0xff]
    %v820 = vld [vmem:[%s5 + $0x1d8] sm:$0xff]
    %v821 = vld [vmem:[%s5 + $0x1e0] sm:$0xff]
    %v822 = vld [vmem:[%s5 + $0x1e8] sm:$0xff]
    %v823 = vld [vmem:[%s5 + $0x1f0] sm:$0xff]
    %v824 = vld [vmem:[%s5 + $0x1f8] sm:$0xff]
    %v825 = vld [vmem:[%s5 + $0x200] sm:$0xff]
    %v826 = vld [vmem:[%s5 + $0x208] sm:$0xff]
    %v827 = vld [vmem:[%s5 + $0x210] sm:$0xff]
    %v828 = vld [vmem:[%s5 + $0x218] sm:$0xff]
    %v829 = vld [vmem:[%s5 + $0x220] sm:$0xff]
    %v830 = vld [vmem:[%s5 + $0x228] sm:$0xff]
    %v831 = vld [vmem:[%s5 + $0x230] sm:$0xff]
    %v832 = vld [vmem:[%s5 + $0x238] sm:$0xff]
    %v833 = vld [vmem:[%s5 + $0x240] sm:$0xff]
    %v834 = vld [vmem:[%s5 + $0x248] sm:$0xff]
    %v835 = vld [vmem:[%s5 + $0x250] sm:$0xff]
    %v836 = vld [vmem:[%s5 + $0x258] sm:$0xff]
    %v837 = vld [vmem:[%s5 + $0x260] sm:$0xff]
    %v838 = vld [vmem:[%s5 + $0x268] sm:$0xff]
    %v839 = vld [vmem:[%s5 + $0x270] sm:$0xff]
    %v840 = vld [vmem:[%s5 + $0x278] sm:$0xff]
    %v841 = vld [vmem:[#allocation11] sm:$0xff]
    %v842 = vld [vmem:[#allocation11 + $0x8] sm:$0xff]
    %v843 = vld [vmem:[#allocation11 + $0x10] sm:$0xff]
    %v844 = vld [vmem:[#allocation11 + $0x18] sm:$0xff]
    %v845 = vld [vmem:[#allocation11 + $0x20] sm:$0xff]
    %v846 = vld [vmem:[#allocation11 + $0x28] sm:$0xff]
    %v847 = vld [vmem:[#allocation11 + $0x30] sm:$0xff]
    %v848 = vld [vmem:[#allocation11 + $0x38] sm:$0xff]
    %v849 = vld [vmem:[#allocation11 + $0x40] sm:$0xff]
    %v850 = vld [vmem:[#allocation11 + $0x48] sm:$0xff]
    %v851 = vld [vmem:[#allocation13] sm:$0x1]
    %v852 = vld [vmem:[#allocation14] sm:$0x1]
    %vm853 = vcmask 1043456
    %v854 = vsel %vm853, %v674, 0.0
    %v855 = vrot.slane %v854, 4
    %v856 = vadd.f32 %v854, %v855
    %v857 = vrot.slane %v856, 2
    %v858 = vadd.f32 %v856, %v857
    %v859 = vrot.slane %v858, 1
    %v860 = vadd.f32 %v858, %v859
    %v861 = vsel %vm853, %v676, 0.0
    %v862 = vrot.slane %v861, 4
    %v863 = vadd.f32 %v861, %v862
    %v864 = vrot.slane %v863, 2
    %v865 = vadd.f32 %v863, %v864
    %v866 = vrot.slane %v865, 1
    %v867 = vadd.f32 %v865, %v866
    %v868 = vsel %vm853, %v715, 0.0
    %v869 = vrot.slane %v868, 4
    %v870 = vadd.f32 %v868, %v869
    %v871 = vrot.slane %v870, 2
    %v872 = vadd.f32 %v870, %v871
    %v873 = vrot.slane %v872, 1
    %v874 = vadd.f32 %v872, %v873
    %v875 = vsel %vm853, %v717, 0.0
    %v876 = vrot.slane %v875, 4
    %v877 = vadd.f32 %v875, %v876
    %v878 = vrot.slane %v877, 2
    %v879 = vadd.f32 %v877, %v878
    %v880 = vrot.slane %v879, 1
    %v881 = vadd.f32 %v879, %v880
    %v882 = vsel %vm853, %v756, 0.0
    %v883 = vrot.slane %v882, 4
    %v884 = vadd.f32 %v882, %v883
    %v885 = vrot.slane %v884, 2
    %v886 = vadd.f32 %v884, %v885
    %v887 = vrot.slane %v886, 1
    %v888 = vadd.f32 %v886, %v887
    %v889 = vmul.f32 %v674, %v674
    %v890 = vmul.f32 %v676, %v676
    %v891 = vmul.f32 %v715, %v715
    %v892 = vmul.f32 %v717, %v717
    %v893 = vmul.f32 %v756, %v756
    %v894 = vsel %vm853, %v889, 0.0
    %v895 = vrot.slane %v894, 4
    %v896 = vadd.f32 %v894, %v895
    %v897 = vrot.slane %v896, 2
    %v898 = vadd.f32 %v896, %v897
    %v899 = vrot.slane %v898, 1
    %v900 = vadd.f32 %v898, %v899
    %v901 = vsel %vm853, %v890, 0.0
    %v902 = vrot.slane %v901, 4
    %v903 = vadd.f32 %v901, %v902
    %v904 = vrot.slane %v903, 2
    %v905 = vadd.f32 %v903, %v904
    %v906 = vrot.slane %v905, 1
    %v907 = vadd.f32 %v905, %v906
    %v908 = vsel %vm853, %v891, 0.0
    %v909 = vrot.slane %v908, 4
    %v910 = vadd.f32 %v908, %v909
    %v911 = vrot.slane %v910, 2
    %v912 = vadd.f32 %v910, %v911
    %v913 = vrot.slane %v912, 1
    %v914 = vadd.f32 %v912, %v913
    %v915 = vsel %vm853, %v892, 0.0
    %v916 = vrot.slane %v915, 4
    %v917 = vadd.f32 %v915, %v916
    %v918 = vrot.slane %v917, 2
    %v919 = vadd.f32 %v917, %v918
    %v920 = vrot.slane %v919, 1
    %v921 = vadd.f32 %v919, %v920
    %v922 = vsel %vm853, %v893, 0.0
    %v923 = vrot.slane %v922, 4
    %v924 = vadd.f32 %v922, %v923
    %v925 = vrot.slane %v924, 2
    %v926 = vadd.f32 %v924, %v925
    %v927 = vrot.slane %v926, 1
    %v928 = vadd.f32 %v926, %v927
    %vm929 = vcmask 1040384
    %v930 = vsel %vm929, %v860, %v900
    %v931 = vsel %vm929, %v867, %v907
    %v932 = vsel %vm929, %v874, %v914
    %v933 = vsel %vm929, %v881, %v921
    %v934 = vsel %vm929, %v888, %v928
    %935 = vmatprep.subr.mxu0 0.0
    %936 = vmatpush1.msra.mxu0 %v761
    %937 = vmatprep.subr.mxu0 0.0
    %938 = vmatpush1.msra.mxu0 %v762
    %939 = vmatprep.subr.mxu0 0.0
    %940 = vmatpush1.msra.mxu0 %v763
    %941 = vmatprep.subr.mxu0 0.0
    %942 = vmatpush1.msra.mxu0 %v764
    %943 = vmatprep.subr.mxu0 0.0
    %944 = vmatpush1.msra.mxu0 %v765
    %945 = vmatprep.subr.mxu0 0.0
    %946 = vmatpush1.msra.mxu0 %v766
    %947 = vmatprep.subr.mxu0 0.0
    %948 = vmatpush1.msra.mxu0 %v767
    %949 = vmatprep.subr.mxu0 0.0
    %950 = vmatpush1.msra.mxu0 %v768
    %951 = vmatprep.subr.mxu0 0.0
    %952 = vmatpush1.msra.mxu0 %v769
    %953 = vmatprep.subr.mxu0 0.0
    %954 = vmatpush1.msra.mxu0 %v770
    %955 = vmatprep.subr.mxu0 0.0
    %956 = vmatpush1.msra.mxu0 %v771
    %957 = vmatprep.subr.mxu0 0.0
    %958 = vmatpush1.msra.mxu0 %v772
    %959 = vmatprep.subr.mxu0 0.0
    %960 = vmatpush1.msra.mxu0 %v773
    %961 = vmatprep.subr.mxu0 0.0
    %962 = vmatpush1.msra.mxu0 %v774
    %963 = vmatprep.subr.mxu0 0.0
    %964 = vmatpush1.msra.mxu0 %v775
    %965 = vmatprep.subr.mxu0 0.0
    %966 = vmatpush1.msra.mxu0 %v776
    %967 = vmatprep.subr.mxu0 0.0
    %968 = vmatpush1.msra.mxu0 %v777
    %969 = vmatprep.subr.mxu0 0.0
    %970 = vmatpush1.msra.mxu0 %v778
    %971 = vmatprep.subr.mxu0 0.0
    %972 = vmatpush1.msra.mxu0 %v779
    %973 = vmatprep.subr.mxu0 0.0
    %974 = vmatpush1.msra.mxu0 %v780
    %975 = vmatprep.subr.mxu0 0.0
    %976 = vmatpush1.msra.mxu0 %v781
    %977 = vmatprep.subr.mxu0 0.0
    %978 = vmatpush1.msra.mxu0 %v782
    %979 = vmatprep.subr.mxu0 0.0
    %980 = vmatpush1.msra.mxu0 %v783
    %981 = vmatprep.subr.mxu0 0.0
    %982 = vmatpush1.msra.mxu0 %v784
    %983 = vmatprep.subr.mxu0 0.0
    %984 = vmatpush1.msra.mxu0 %v785
    %985 = vmatprep.subr.mxu0 0.0
    %986 = vmatpush1.msra.mxu0 %v786
    %987 = vmatprep.subr.mxu0 0.0
    %988 = vmatpush1.msra.mxu0 %v787
    %989 = vmatprep.subr.mxu0 0.0
    %990 = vmatpush1.msra.mxu0 %v788
    %991 = vmatprep.subr.mxu0 0.0
    %992 = vmatpush1.msra.mxu0 %v789
    %993 = vmatprep.subr.mxu0 0.0
    %994 = vmatpush1.msra.mxu0 %v790
    %995 = vmatprep.subr.mxu0 0.0
    %996 = vmatpush1.msra.mxu0 %v791
    %997 = vmatprep.subr.mxu0 0.0
    %998 = vmatpush1.msra.mxu0 %v792
    %999 = vmatprep.mubr.f32.mxu0 %v931
    %1000 = vmatmul.mubr.f32.gmra.mrb[0].mxu0 %v930
    %v1001 = vpop.f32.mrb[0].mxu0
    %v1002 = vadd.f32 0.0, %v1001
    %v1003 = vpop.f32.mrb[0].mxu0
    %1004 = vdwg.mxu0
    %1005 = vmatprep.subr.mxu0 0.0
    %1006 = vmatpush1.msra.mxu0 %v793
    %1007 = vmatprep.subr.mxu0 0.0
    %1008 = vmatpush1.msra.mxu0 %v794
    %1009 = vmatprep.subr.mxu0 0.0
    %1010 = vmatpush1.msra.mxu0 %v795
    %1011 = vmatprep.subr.mxu0 0.0
    %1012 = vmatpush1.msra.mxu0 %v796
    %1013 = vmatprep.subr.mxu0 0.0
    %1014 = vmatpush1.msra.mxu0 %v797
    %1015 = vmatprep.subr.mxu0 0.0
    %1016 = vmatpush1.msra.mxu0 %v798
    %1017 = vmatprep.subr.mxu0 0.0
    %1018 = vmatpush1.msra.mxu0 %v799
    %1019 = vmatprep.subr.mxu0 0.0
    %1020 = vmatpush1.msra.mxu0 %v800
    %1021 = vmatprep.subr.mxu0 0.0
    %1022 = vmatpush1.msra.mxu0 %v801
    %1023 = vmatprep.subr.mxu0 0.0
    %1024 = vmatpush1.msra.mxu0 %v802
    %1025 = vmatprep.subr.mxu0 0.0
    %1026 = vmatpush1.msra.mxu0 %v803
    %1027 = vmatprep.subr.mxu0 0.0
    %1028 = vmatpush1.msra.mxu0 %v804
    %1029 = vmatprep.subr.mxu0 0.0
    %1030 = vmatpush1.msra.mxu0 %v805
    %1031 = vmatprep.subr.mxu0 0.0
    %1032 = vmatpush1.msra.mxu0 %v806
    %1033 = vmatprep.subr.mxu0 0.0
    %1034 = vmatpush1.msra.mxu0 %v807
    %1035 = vmatprep.subr.mxu0 0.0
    %1036 = vmatpush1.msra.mxu0 %v808
    %1037 = vmatprep.subr.mxu0 0.0
    %1038 = vmatpush1.msra.mxu0 %v809
    %1039 = vmatprep.subr.mxu0 0.0
    %1040 = vmatpush1.msra.mxu0 %v810
    %1041 = vmatprep.subr.mxu0 0.0
    %1042 = vmatpush1.msra.mxu0 %v811
    %1043 = vmatprep.subr.mxu0 0.0
    %1044 = vmatpush1.msra.mxu0 %v812
    %1045 = vmatprep.subr.mxu0 0.0
    %1046 = vmatpush1.msra.mxu0 %v813
    %1047 = vmatprep.subr.mxu0 0.0
    %1048 = vmatpush1.msra.mxu0 %v814
    %1049 = vmatprep.subr.mxu0 0.0
    %1050 = vmatpush1.msra.mxu0 %v815
    %1051 = vmatprep.subr.mxu0 0.0
    %1052 = vmatpush1.msra.mxu0 %v816
    %1053 = vmatprep.subr.mxu0 0.0
    %1054 = vmatpush1.msra.mxu0 %v817
    %1055 = vmatprep.subr.mxu0 0.0
    %1056 = vmatpush1.msra.mxu0 %v818
    %1057 = vmatprep.subr.mxu0 0.0
    %1058 = vmatpush1.msra.mxu0 %v819
    %1059 = vmatprep.subr.mxu0 0.0
    %1060 = vmatpush1.msra.mxu0 %v820
    %1061 = vmatprep.subr.mxu0 0.0
    %1062 = vmatpush1.msra.mxu0 %v821
    %1063 = vmatprep.subr.mxu0 0.0
    %1064 = vmatpush1.msra.mxu0 %v822
    %1065 = vmatprep.subr.mxu0 0.0
    %1066 = vmatpush1.msra.mxu0 %v823
    %1067 = vmatprep.subr.mxu0 0.0
    %1068 = vmatpush1.msra.mxu0 %v824
    %1069 = vmatprep.mubr.f32.mxu0 %v933
    %1070 = vmatmul.mubr.f32.gmra.mrb[0].mxu0 %v932
    %v1071 = vpop.f32.mrb[0].mxu0
    %v1072 = vadd.f32 %v1002, %v1071
    %v1073 = vpop.f32.mrb[0].mxu0
    %1074 = vdwg.mxu0
    %1075 = vmatprep.subr.mxu0 0.0
    %1076 = vmatpush1.msra.mxu0 %v825
    %1077 = vmatprep.subr.mxu0 0.0
    %1078 = vmatpush1.msra.mxu0 %v826
    %1079 = vmatprep.subr.mxu0 0.0
    %1080 = vmatpush1.msra.mxu0 %v827
    %1081 = vmatprep.subr.mxu0 0.0
    %1082 = vmatpush1.msra.mxu0 %v828
    %1083 = vmatprep.subr.mxu0 0.0
    %1084 = vmatpush1.msra.mxu0 %v829
    %1085 = vmatprep.subr.mxu0 0.0
    %1086 = vmatpush1.msra.mxu0 %v830
    %1087 = vmatprep.subr.mxu0 0.0
    %1088 = vmatpush1.msra.mxu0 %v831
    %1089 = vmatprep.subr.mxu0 0.0
    %1090 = vmatpush1.msra.mxu0 %v832
    %1091 = vmatprep.subr.mxu0 0.0
    %1092 = vmatpush1.msra.mxu0 %v833
    %1093 = vmatprep.subr.mxu0 0.0
    %1094 = vmatpush1.msra.mxu0 %v834
    %1095 = vmatprep.subr.mxu0 0.0
    %1096 = vmatpush1.msra.mxu0 %v835
    %1097 = vmatprep.subr.mxu0 0.0
    %1098 = vmatpush1.msra.mxu0 %v836
    %1099 = vmatprep.subr.mxu0 0.0
    %1100 = vmatpush1.msra.mxu0 %v837
    %1101 = vmatprep.subr.mxu0 0.0
    %1102 = vmatpush1.msra.mxu0 %v838
    %1103 = vmatprep.subr.mxu0 0.0
    %1104 = vmatpush1.msra.mxu0 %v839
    %1105 = vmatprep.subr.mxu0 0.0
    %1106 = vmatpush1.msra.mxu0 %v840
    %1107 = vmatprep.subr.mxu0 0.0
    %1108 = vmatpush1.msra.mxu0 0.0
    %1109 = vmatprep.subr.mxu0 0.0
    %1110 = vmatpush1.msra.mxu0 0.0
    %1111 = vmatprep.subr.mxu0 0.0
    %1112 = vmatpush1.msra.mxu0 0.0
    %1113 = vmatprep.subr.mxu0 0.0
    %1114 = vmatpush1.msra.mxu0 0.0
    %1115 = vmatprep.subr.mxu0 0.0
    %1116 = vmatpush1.msra.mxu0 0.0
    %1117 = vmatprep.subr.mxu0 0.0
    %1118 = vmatpush1.msra.mxu0 0.0
    %1119 = vmatprep.subr.mxu0 0.0
    %1120 = vmatpush1.msra.mxu0 0.0
    %1121 = vmatprep.subr.mxu0 0.0
    %1122 = vmatpush1.msra.mxu0 0.0
    %1123 = vmatprep.subr.mxu0 0.0
    %1124 = vmatpush1.msra.mxu0 0.0
    %1125 = vmatprep.subr.mxu0 0.0
    %1126 = vmatpush1.msra.mxu0 0.0
    %1127 = vmatprep.subr.mxu0 0.0
    %1128 = vmatpush1.msra.mxu0 0.0
    %1129 = vmatprep.subr.mxu0 0.0
    %1130 = vmatpush1.msra.mxu0 0.0
    %1131 = vmatprep.subr.mxu0 0.0
    %1132 = vmatpush1.msra.mxu0 0.0
    %1133 = vmatprep.subr.mxu0 0.0
    %1134 = vmatpush1.msra.mxu0 0.0
    %1135 = vmatprep.subr.mxu0 0.0
    %1136 = vmatpush1.msra.mxu0 0.0
    %1137 = vmatprep.subr.mxu0 0.0
    %1138 = vmatpush1.msra.mxu0 0.0
    %1139 = vmatprep.mubr.f32.mxu0 0.0
    %1140 = vmatmul.mubr.f32.gmra.mrb[0].mxu0 %v934
    %v1141 = vpop.f32.mrb[0].mxu0
    %v1142 = vadd.f32 %v1072, %v1141
    %v1143 = vpop.f32.mrb[0].mxu0
    %1144 = vdwg.mxu0
    %v1145 = vmul.f32 %v1142, %v1142
    %v1147 = vrot.slane %v1145, 7
    %v1149 = vsub.f32 %v1142, %v1147
    %v1150 = vadd.f32 %v1149, 1e-05
    %v1151 = vrsqrt.pop %v1150
    %v1154 = vunpack.c.l.s4 1966171168
    %v1155 = vunpack.c.0.s8 %v1154
    %v1156 = vlaneseq
    %v1157 = vshrl.u32 %v1156, 7
    %v1158 = vsub.s32 %v1155, %v1157
    %v1159 = vrot.slane %v1151, %v1158
    %v1160 = vcombine.high %v1159, %v1159
    %v1162 = vunpack.c.l.s4 1966171168
    %v1163 = vunpack.c.0.s8 %v1162
    %v1164 = vlaneseq
    %v1165 = vshrl.u32 %v1164, 7
    %v1166 = vsub.s32 %v1163, %v1165
    %v1167 = vrot.slane %v1160, %v1166
    %v1169 = vmul.f32 %v851, %v1167
    %v1170 = vmul.f32 %v1142, %v1169
    %v1171 = vsub.f32 %v852, %v1170
    %v1173 = vlaneseq
    %v1174 = vshrl.u32 %v1173, 7
    %v1175 = vsub.s32 0, %v1174
    %v1176 = vrot.slane %v1171, %v1175
    %v1178 = vsel %vm929, %v1169, %v1176
    %vm1179 = vcmask 130048
    %v1181 = vsel %vm1179, %v1178, 0
    %1183 = vmatprep.subr.mxu0 %v842
    %1184 = vmatpush1.msra.mxu0 %v841
    %1185 = vmatprep.subr.mxu0 %v847
    %1186 = vmatpush1.msra.mxu0 %v846
    %1187 = vmatprep.subr.mxu0 0.0
    %1188 = vmatpush1.msra.mxu0 0.0
    %1189 = vmatprep.subr.mxu0 0.0
    %1190 = vmatpush1.msra.mxu0 0.0
    %1191 = vmatprep.subr.mxu0 0.0
    %1192 = vmatpush1.msra.mxu0 0.0
    %1193 = vmatprep.subr.mxu0 0.0
    %1194 = vmatpush1.msra.mxu0 0.0
    %1195 = vmatprep.subr.mxu0 0.0
    %1196 = vmatpush1.msra.mxu0 0.0
    %1197 = vmatprep.subr.mxu0 0.0
    %1198 = vmatpush1.msra.mxu0 0.0
    %1199 = vmatprep.subr.mxu0 0.0
    %1200 = vmatpush1.msra.mxu0 0.0
    %1201 = vmatprep.subr.mxu0 0.0
    %1202 = vmatpush1.msra.mxu0 0.0
    %1203 = vmatprep.subr.mxu0 0.0
    %1204 = vmatpush1.msra.mxu0 0.0
    %1205 = vmatprep.subr.mxu0 0.0
    %1206 = vmatpush1.msra.mxu0 0.0
    %1207 = vmatprep.subr.mxu0 0.0
    %1208 = vmatpush1.msra.mxu0 0.0
    %1209 = vmatprep.subr.mxu0 0.0
    %1210 = vmatpush1.msra.mxu0 0.0
    %1211 = vmatprep.subr.mxu0 0.0
    %1212 = vmatpush1.msra.mxu0 0.0
    %1213 = vmatprep.subr.mxu0 0.0
    %1214 = vmatpush1.msra.mxu0 0.0
    %1215 = vmatprep.subr.mxu0 0.0
    %1216 = vmatpush1.msra.mxu0 0.0
    %1217 = vmatprep.subr.mxu0 0.0
    %1218 = vmatpush1.msra.mxu0 0.0
    %1219 = vmatprep.subr.mxu0 0.0
    %1220 = vmatpush1.msra.mxu0 0.0
    %1221 = vmatprep.subr.mxu0 0.0
    %1222 = vmatpush1.msra.mxu0 0.0
    %1223 = vmatprep.subr.mxu0 0.0
    %1224 = vmatpush1.msra.mxu0 0.0
    %1225 = vmatprep.subr.mxu0 0.0
    %1226 = vmatpush1.msra.mxu0 0.0
    %1227 = vmatprep.subr.mxu0 0.0
    %1228 = vmatpush1.msra.mxu0 0.0
    %1229 = vmatprep.subr.mxu0 0.0
    %1230 = vmatpush1.msra.mxu0 0.0
    %1231 = vmatprep.subr.mxu0 0.0
    %1232 = vmatpush1.msra.mxu0 0.0
    %1233 = vmatprep.subr.mxu0 0.0
    %1234 = vmatpush1.msra.mxu0 0.0
    %1235 = vmatprep.subr.mxu0 0.0
    %1236 = vmatpush1.msra.mxu0 0.0
    %1237 = vmatprep.subr.mxu0 0.0
    %1238 = vmatpush1.msra.mxu0 0.0
    %1239 = vmatprep.subr.mxu0 0.0
    %1240 = vmatpush1.msra.mxu0 0.0
    %1241 = vmatprep.subr.mxu0 0.0
    %1242 = vmatpush1.msra.mxu0 0.0
    %1243 = vmatprep.subr.mxu0 0.0
    %1244 = vmatpush1.msra.mxu0 0.0
    %1245 = vmatprep.subr.mxu0 0.0
    %1246 = vmatpush1.msra.mxu0 0.0
    %1247 = vmatprep.mubr.f32.mxu0 0.0
    %1248 = vmatmul.mubr.f32.gmra.mrb[0].mxu0 %v1181
    %v1249 = vpop.f32.mrb[0].mxu0
    %v1250 = vadd.f32 0.0, %v1249
    %v1251 = vpop.f32.mrb[0].mxu0
    %v1252 = vadd.f32 0.0, %v1251
    %1253 = vdwg.mxu0
    %1254 = vmatprep.subr.mxu0 %v844
    %1255 = vmatpush1.msra.mxu0 %v843
    %1256 = vmatprep.subr.mxu0 %v849
    %1257 = vmatpush1.msra.mxu0 %v848
    %1258 = vmatprep.subr.mxu0 0.0
    %1259 = vmatpush1.msra.mxu0 0.0
    %1260 = vmatprep.subr.mxu0 0.0
    %1261 = vmatpush1.msra.mxu0 0.0
    %1262 = vmatprep.subr.mxu0 0.0
    %1263 = vmatpush1.msra.mxu0 0.0
    %1264 = vmatprep.subr.mxu0 0.0
    %1265 = vmatpush1.msra.mxu0 0.0
    %1266 = vmatprep.subr.mxu0 0.0
    %1267 = vmatpush1.msra.mxu0 0.0
    %1268 = vmatprep.subr.mxu0 0.0
    %1269 = vmatpush1.msra.mxu0 0.0
    %1270 = vmatprep.subr.mxu0 0.0
    %1271 = vmatpush1.msra.mxu0 0.0
    %1272 = vmatprep.subr.mxu0 0.0
    %1273 = vmatpush1.msra.mxu0 0.0
    %1274 = vmatprep.subr.mxu0 0.0
    %1275 = vmatpush1.msra.mxu0 0.0
    %1276 = vmatprep.subr.mxu0 0.0
    %1277 = vmatpush1.msra.mxu0 0.0
    %1278 = vmatprep.subr.mxu0 0.0
    %1279 = vmatpush1.msra.mxu0 0.0
    %1280 = vmatprep.subr.mxu0 0.0
    %1281 = vmatpush1.msra.mxu0 0.0
    %1282 = vmatprep.subr.mxu0 0.0
    %1283 = vmatpush1.msra.mxu0 0.0
    %1284 = vmatprep.subr.mxu0 0.0
    %1285 = vmatpush1.msra.mxu0 0.0
    %1286 = vmatprep.subr.mxu0 0.0
    %1287 = vmatpush1.msra.mxu0 0.0
    %1288 = vmatprep.subr.mxu0 0.0
    %1289 = vmatpush1.msra.mxu0 0.0
    %1290 = vmatprep.subr.mxu0 0.0
    %1291 = vmatpush1.msra.mxu0 0.0
    %1292 = vmatprep.subr.mxu0 0.0
    %1293 = vmatpush1.msra.mxu0 0.0
    %1294 = vmatprep.subr.mxu0 0.0
    %1295 = vmatpush1.msra.mxu0 0.0
    %1296 = vmatprep.subr.mxu0 0.0
    %1297 = vmatpush1.msra.mxu0 0.0
    %1298 = vmatprep.subr.mxu0 0.0
    %1299 = vmatpush1.msra.mxu0 0.0
    %1300 = vmatprep.subr.mxu0 0.0
    %1301 = vmatpush1.msra.mxu0 0.0
    %1302 = vmatprep.subr.mxu0 0.0
    %1303 = vmatpush1.msra.mxu0 0.0
    %1304 = vmatprep.subr.mxu0 0.0
    %1305 = vmatpush1.msra.mxu0 0.0
    %1306 = vmatprep.subr.mxu0 0.0
    %1307 = vmatpush1.msra.mxu0 0.0
    %1308 = vmatprep.subr.mxu0 0.0
    %1309 = vmatpush1.msra.mxu0 0.0
    %1310 = vmatprep.subr.mxu0 0.0
    %1311 = vmatpush1.msra.mxu0 0.0
    %1312 = vmatprep.subr.mxu0 0.0
    %1313 = vmatpush1.msra.mxu0 0.0
    %1314 = vmatprep.subr.mxu0 0.0
    %1315 = vmatpush1.msra.mxu0 0.0
    %1316 = vmatprep.subr.mxu0 0.0
    %1317 = vmatpush1.msra.mxu0 0.0
    %1318 = vmatprep.mubr.f32.mxu0 0.0
    %1319 = vmatmul.mubr.f32.gmra.mrb[0].mxu0 %v1181
    %v1320 = vpop.f32.mrb[0].mxu0
    %v1321 = vadd.f32 0.0, %v1320
    %v1322 = vpop.f32.mrb[0].mxu0
    %v1323 = vadd.f32 0.0, %v1322
    %1324 = vdwg.mxu0
    %1325 = vmatprep.subr.mxu0 0.0
    %1326 = vmatpush1.msra.mxu0 %v845
    %1327 = vmatprep.subr.mxu0 0.0
    %1328 = vmatpush1.msra.mxu0 %v850
    %1329 = vmatprep.subr.mxu0 0.0
    %1330 = vmatpush1.msra.mxu0 0.0
    %1331 = vmatprep.subr.mxu0 0.0
    %1332 = vmatpush1.msra.mxu0 0.0
    %1333 = vmatprep.subr.mxu0 0.0
    %1334 = vmatpush1.msra.mxu0 0.0
    %1335 = vmatprep.subr.mxu0 0.0
    %1336 = vmatpush1.msra.mxu0 0.0
    %1337 = vmatprep.subr.mxu0 0.0
    %1338 = vmatpush1.msra.mxu0 0.0
    %1339 = vmatprep.subr.mxu0 0.0
    %1340 = vmatpush1.msra.mxu0 0.0
    %1341 = vmatprep.subr.mxu0 0.0
    %1342 = vmatpush1.msra.mxu0 0.0
    %1343 = vmatprep.subr.mxu0 0.0
    %1344 = vmatpush1.msra.mxu0 0.0
    %1345 = vmatprep.subr.mxu0 0.0
    %1346 = vmatpush1.msra.mxu0 0.0
    %1347 = vmatprep.subr.mxu0 0.0
    %1348 = vmatpush1.msra.mxu0 0.0
    %1349 = vmatprep.subr.mxu0 0.0
    %1350 = vmatpush1.msra.mxu0 0.0
    %1351 = vmatprep.subr.mxu0 0.0
    %1352 = vmatpush1.msra.mxu0 0.0
    %1353 = vmatprep.subr.mxu0 0.0
    %1354 = vmatpush1.msra.mxu0 0.0
    %1355 = vmatprep.subr.mxu0 0.0
    %1356 = vmatpush1.msra.mxu0 0.0
    %1357 = vmatprep.subr.mxu0 0.0
    %1358 = vmatpush1.msra.mxu0 0.0
    %1359 = vmatprep.subr.mxu0 0.0
    %1360 = vmatpush1.msra.mxu0 0.0
    %1361 = vmatprep.subr.mxu0 0.0
    %1362 = vmatpush1.msra.mxu0 0.0
    %1363 = vmatprep.subr.mxu0 0.0
    %1364 = vmatpush1.msra.mxu0 0.0
    %1365 = vmatprep.subr.mxu0 0.0
    %1366 = vmatpush1.msra.mxu0 0.0
    %1367 = vmatprep.subr.mxu0 0.0
    %1368 = vmatpush1.msra.mxu0 0.0
    %1369 = vmatprep.subr.mxu0 0.0
    %1370 = vmatpush1.msra.mxu0 0.0
    %1371 = vmatprep.subr.mxu0 0.0
    %1372 = vmatpush1.msra.mxu0 0.0
    %1373 = vmatprep.subr.mxu0 0.0
    %1374 = vmatpush1.msra.mxu0 0.0
    %1375 = vmatprep.subr.mxu0 0.0
    %1376 = vmatpush1.msra.mxu0 0.0
    %1377 = vmatprep.subr.mxu0 0.0
    %1378 = vmatpush1.msra.mxu0 0.0
    %1379 = vmatprep.subr.mxu0 0.0
    %1380 = vmatpush1.msra.mxu0 0.0
    %1381 = vmatprep.subr.mxu0 0.0
    %1382 = vmatpush1.msra.mxu0 0.0
    %1383 = vmatprep.subr.mxu0 0.0
    %1384 = vmatpush1.msra.mxu0 0.0
    %1385 = vmatprep.subr.mxu0 0.0
    %1386 = vmatpush1.msra.mxu0 0.0
    %1387 = vmatprep.subr.mxu0 0.0
    %1388 = vmatpush1.msra.mxu0 0.0
    %1389 = vmatprep.mubr.f32.mxu0 0.0
    %1390 = vmatmul.mubr.f32.gmra.mrb[0].mxu0 %v1181
    %v1391 = vpop.f32.mrb[0].mxu0
    %v1392 = vadd.f32 0.0, %v1391
    %v1393 = vpop.f32.mrb[0].mxu0
    %1394 = vdwg.mxu0
    %v1395 = vlaneseq
    %v1396 = vshrl.u32 %v1395, 7
    %v1397 = vsub.s32 0, %v1396
    %v1398 = vrot.slane %v1250, %v1397
    %v1399 = vlaneseq
    %v1400 = vshrl.u32 %v1399, 7
    %v1401 = vsub.s32 0, %v1400
    %v1402 = vrot.slane %v1252, %v1401
    %v1403 = vlaneseq
    %v1404 = vshrl.u32 %v1403, 7
    %v1405 = vsub.s32 0, %v1404
    %v1406 = vrot.slane %v1321, %v1405
    %v1407 = vlaneseq
    %v1408 = vshrl.u32 %v1407, 7
    %v1409 = vsub.s32 0, %v1408
    %v1410 = vrot.slane %v1323, %v1409
    %v1411 = vlaneseq
    %v1412 = vshrl.u32 %v1411, 7
    %v1413 = vsub.s32 0, %v1412
    %v1414 = vrot.slane %v1392, %v1413
    %v1415 = vmul.f32 %v674, %v1398
    %v1416 = vmul.f32 %v676, %v1402
    %v1417 = vmul.f32 %v715, %v1406
    %v1418 = vmul.f32 %v717, %v1410
    %v1419 = vmul.f32 %v756, %v1414
    %v1420 = vlaneseq
    %v1421 = vshrl.u32 %v1420, 7
    %v1422 = vsub.s32 1, %v1421
    %v1423 = vrot.slane %v1250, %v1422
    %v1424 = vlaneseq
    %v1425 = vshrl.u32 %v1424, 7
    %v1426 = vsub.s32 1, %v1425
    %v1427 = vrot.slane %v1252, %v1426
    %v1428 = vlaneseq
    %v1429 = vshrl.u32 %v1428, 7
    %v1430 = vsub.s32 1, %v1429
    %v1431 = vrot.slane %v1321, %v1430
    %v1432 = vlaneseq
    %v1433 = vshrl.u32 %v1432, 7
    %v1434 = vsub.s32 1, %v1433
    %v1435 = vrot.slane %v1323, %v1434
    %v1436 = vlaneseq
    %v1437 = vshrl.u32 %v1436, 7
    %v1438 = vsub.s32 1, %v1437
    %v1439 = vrot.slane %v1392, %v1438
    %v1440 = vadd.f32 %v1415, %v1423
    %v1441 = vadd.f32 %v1416, %v1427
    %v1442 = vadd.f32 %v1417, %v1431
    %v1443 = vadd.f32 %v1418, %v1435
    %v1444 = vadd.f32 %v1419, %v1439
    %v1445 = vmax.f32 %v1440, 0.0
    %v1446 = vmax.f32 %v1441, 0.0
    %v1447 = vmax.f32 %v1442, 0.0
    %v1448 = vmax.f32 %v1443, 0.0
    %v1449 = vmax.f32 %v1444, 0.0
    %v1450 = vpack.c.bf16 %v1445, %v1445
    %v1451 = vpack.c.bf16 %v1446, %v1446
    %v1452 = vpack.c.bf16 %v1447, %v1447
    %v1453 = vpack.c.bf16 %v1448, %v1448
    %v1454 = vpack.c.bf16 %v1449, %v1449
    %v1455 = vld [vmem:[#allocation16] sm:$0xff]
    %v1456 = vld [vmem:[#allocation16 + $0x8] sm:$0xff]
    %v1457 = vld [vmem:[#allocation16 + $0x10] sm:$0xff]
    %v1458 = vld [vmem:[#allocation16 + $0x18] sm:$0xff]
    %v1459 = vld [vmem:[#allocation16 + $0x20] sm:$0xff]
    %v1460 = vld [vmem:[#allocation16 + $0x28] sm:$0xf]
    %v1461 = vld [vmem:[#allocation16 + $0x2c] sm:$0xff]
    %v1462 = vld [vmem:[#allocation16 + $0x34] sm:$0xff]
    %v1463 = vld [vmem:[#allocation16 + $0x3c] sm:$0xff]
    %v1464 = vld [vmem:[#allocation16 + $0x44] sm:$0xff]
    %v1465 = vld [vmem:[#allocation16 + $0x4c] sm:$0xff]
    %v1466 = vld [vmem:[#allocation16 + $0x54] sm:$0xf]
    %v1467 = vld [vmem:[#allocation16 + $0x58] sm:$0xff]
    %v1468 = vld [vmem:[#allocation16 + $0x60] sm:$0xff]
    %v1469 = vld [vmem:[#allocation16 + $0x68] sm:$0xff]
    %v1470 = vld [vmem:[#allocation16 + $0x70] sm:$0xff]
    %v1471 = vld [vmem:[#allocation16 + $0x78] sm:$0xff]
    %v1472 = vld [vmem:[#allocation16 + $0x80] sm:$0xf]
    %v1473 = vld [vmem:[#allocation16 + $0x84] sm:$0xff]
    %v1474 = vld [vmem:[#allocation16 + $0x8c] sm:$0xff]
    %v1475 = vld [vmem:[#allocation16 + $0x94] sm:$0xff]
    %v1476 = vld [vmem:[#allocation16 + $0x9c] sm:$0xff]
    %v1477 = vld [vmem:[#allocation16 + $0xa4] sm:$0xff]
    %v1478 = vld [vmem:[#allocation16 + $0xac] sm:$0xf]
    %v1479 = vld [vmem:[#allocation16 + $0xb0] sm:$0xff]
    %v1480 = vld [vmem:[#allocation16 + $0xb8] sm:$0xff]
    %v1481 = vld [vmem:[#allocation16 + $0xc0] sm:$0xff]
    %v1482 = vld [vmem:[#allocation16 + $0xc8] sm:$0xff]
    %v1483 = vld [vmem:[#allocation16 + $0xd0] sm:$0xff]
    %v1484 = vld [vmem:[#allocation16 + $0xd8] sm:$0xf]
    %v1485 = vld [vmem:[#allocation16 + $0xdc] sm:$0xff]
    %v1486 = vld [vmem:[#allocation16 + $0xe4] sm:$0xff]
    %v1487 = vld [vmem:[#allocation16 + $0xec] sm:$0xff]
    %v1488 = vld [vmem:[#allocation16 + $0xf4] sm:$0xff]
    %v1489 = vld [vmem:[#allocation16 + $0xfc] sm:$0xff]
    %v1490 = vld [vmem:[#allocation16 + $0x104] sm:$0xf]
    %v1491 = vld [vmem:[#allocation16 + $0x108] sm:$0xff]
    %v1492 = vld [vmem:[#allocation16 + $0x110] sm:$0xff]
    %v1493 = vld [vmem:[#allocation16 + $0x118] sm:$0xff]
    %v1494 = vld [vmem:[#allocation16 + $0x120] sm:$0xff]
    %v1495 = vld [vmem:[#allocation16 + $0x128] sm:$0xff]
    %v1496 = vld [vmem:[#allocation16 + $0x130] sm:$0xf]
    %v1497 = vld [vmem:[#allocation16 + $0x134] sm:$0xff]
    %v1498 = vld [vmem:[#allocation16 + $0x13c] sm:$0xff]
    %v1499 = vld [vmem:[#allocation16 + $0x144] sm:$0xff]
    %v1500 = vld [vmem:[#allocation16 + $0x14c] sm:$0xff]
    %v1501 = vld [vmem:[#allocation16 + $0x154] sm:$0xff]
    %v1502 = vld [vmem:[#allocation16 + $0x15c] sm:$0xf]
    %v1503 = vld [vmem:[#allocation16 + $0x160] sm:$0xff]
    %v1504 = vld [vmem:[#allocation16 + $0x168] sm:$0xff]
    %v1505 = vld [vmem:[#allocation16 + $0x170] sm:$0xff]
    %v1506 = vld [vmem:[#allocation16 + $0x178] sm:$0xff]
    %v1507 = vld [vmem:[#allocation16 + $0x180] sm:$0xff]
    %v1508 = vld [vmem:[#allocation16 + $0x188] sm:$0xf]
    %v1509 = vld [vmem:[#allocation16 + $0x18c] sm:$0xff]
    %v1510 = vld [vmem:[#allocation16 + $0x194] sm:$0xff]
    %v1511 = vld [vmem:[#allocation16 + $0x19c] sm:$0xff]
    %v1512 = vld [vmem:[#allocation16 + $0x1a4] sm:$0xff]
    %v1513 = vld [vmem:[#allocation16 + $0x1ac] sm:$0xff]
    %v1514 = vld [vmem:[#allocation16 + $0x1b4] sm:$0xf]
    %v1515 = vld [vmem:[#allocation16 + $0x1b8] sm:$0xff]
    %v1516 = vld [vmem:[#allocation16 + $0x1c0] sm:$0xff]
    %v1517 = vld [vmem:[#allocation16 + $0x1c8] sm:$0xff]
    %v1518 = vld [vmem:[#allocation16 + $0x1d0] sm:$0xff]
    %v1519 = vld [vmem:[#allocation16 + $0x1d8] sm:$0xff]
    %v1520 = vld [vmem:[#allocation16 + $0x1e0] sm:$0xf]
    %v1521 = vld [vmem:[#allocation16 + $0x1e4] sm:$0xff]
    %v1522 = vld [vmem:[#allocation16 + $0x1ec] sm:$0xff]
    %v1523 = vld [vmem:[#allocation16 + $0x1f4] sm:$0xff]
    %v1524 = vld [vmem:[#allocation16 + $0x1fc] sm:$0xff]
    %v1525 = vld [vmem:[#allocation16 + $0x204] sm:$0xff]
    %v1526 = vld [vmem:[#allocation16 + $0x20c] sm:$0xf]
    %v1527 = vld [vmem:[#allocation16 + $0x210] sm:$0xff]
    %v1528 = vld [vmem:[#allocation16 + $0x218] sm:$0xff]
    %v1529 = vld [vmem:[#allocation16 + $0x220] sm:$0xff]
    %v1530 = vld [vmem:[#allocation16 + $0x228] sm:$0xff]
    %v1531 = vld [vmem:[#allocation16 + $0x230] sm:$0xff]
    %v1532 = vld [vmem:[#allocation16 + $0x238] sm:$0xf]
    %v1533 = vld [vmem:[#allocation16 + $0x23c] sm:$0xff]
    %v1534 = vld [vmem:[#allocation16 + $0x244] sm:$0xff]
    %v1535 = vld [vmem:[#allocation16 + $0x24c] sm:$0xff]
    %v1536 = vld [vmem:[#allocation16 + $0x254] sm:$0xff]
    %v1537 = vld [vmem:[#allocation16 + $0x25c] sm:$0xff]
    %v1538 = vld [vmem:[#allocation16 + $0x264] sm:$0xf]
    %v1539 = vld [vmem:[#allocation16 + $0x268] sm:$0xff]
    %v1540 = vld [vmem:[#allocation16 + $0x270] sm:$0xff]
    %v1541 = vld [vmem:[#allocation16 + $0x278] sm:$0xff]
    %v1542 = vld [vmem:[#allocation16 + $0x280] sm:$0xff]
    %v1543 = vld [vmem:[#allocation16 + $0x288] sm:$0xff]
    %v1544 = vld [vmem:[#allocation16 + $0x290] sm:$0xf]
    %v1545 = vld [vmem:[#allocation16 + $0x294] sm:$0xff]
    %v1546 = vld [vmem:[#allocation16 + $0x29c] sm:$0xff]
    %v1547 = vld [vmem:[#allocation16 + $0x2a4] sm:$0xff]
    %v1548 = vld [vmem:[#allocation16 + $0x2ac] sm:$0xff]
    %v1549 = vld [vmem:[#allocation16 + $0x2b4] sm:$0xff]
    %v1550 = vld [vmem:[#allocation16 + $0x2bc] sm:$0xf]
    %v1551 = vld [vmem:[#allocation16 + $0x2c0] sm:$0xff]
    %v1552 = vld [vmem:[#allocation16 + $0x2c8] sm:$0xff]
    %v1553 = vld [vmem:[#allocation16 + $0x2d0] sm:$0xff]
    %v1554 = vld [vmem:[#allocation16 + $0x2d8] sm:$0xff]
    %v1555 = vld [vmem:[#allocation16 + $0x2e0] sm:$0xff]
    %v1556 = vld [vmem:[#allocation16 + $0x2e8] sm:$0xf]
    %v1557 = vld [vmem:[#allocation16 + $0x2ec] sm:$0xff]
    %v1558 = vld [vmem:[#allocation16 + $0x2f4] sm:$0xff]
    %v1559 = vld [vmem:[#allocation16 + $0x2fc] sm:$0xff]
    %v1560 = vld [vmem:[#allocation16 + $0x304] sm:$0xff]
    %v1561 = vld [vmem:[#allocation16 + $0x30c] sm:$0xff]
    %v1562 = vld [vmem:[#allocation16 + $0x314] sm:$0xf]
    %v1563 = vld [vmem:[#allocation16 + $0x318] sm:$0xff]
    %v1564 = vld [vmem:[#allocation16 + $0x320] sm:$0xff]
    %v1565 = vld [vmem:[#allocation16 + $0x328] sm:$0xff]
    %v1566 = vld [vmem:[#allocation16 + $0x330] sm:$0xff]
    %v1567 = vld [vmem:[#allocation16 + $0x338] sm:$0xff]
    %v1568 = vld [vmem:[#allocation16 + $0x340] sm:$0xf]
    %v1569 = vld [vmem:[#allocation16 + $0x344] sm:$0xff]
    %v1570 = vld [vmem:[#allocation16 + $0x34c] sm:$0xff]
    %v1571 = vld [vmem:[#allocation16 + $0x354] sm:$0xff]
    %v1572 = vld [vmem:[#allocation16 + $0x35c] sm:$0xff]
    %v1573 = vld [vmem:[#allocation16 + $0x364] sm:$0xff]
    %v1574 = vld [vmem:[#allocation16 + $0x36c] sm:$0xf]
    %v1575 = vld [vmem:[#allocation16 + $0x370] sm:$0xff]
    %v1576 = vld [vmem:[#allocation16 + $0x378] sm:$0xff]
    %v1577 = vld [vmem:[#allocation16 + $0x380] sm:$0xff]
    %v1578 = vld [vmem:[#allocation16 + $0x388] sm:$0xff]
    %v1579 = vld [vmem:[#allocation16 + $0x390] sm:$0xff]
    %v1580 = vld [vmem:[#allocation16 + $0x398] sm:$0xf]
    %v1581 = vld [vmem:[#allocation16 + $0x39c] sm:$0xff]
    %v1582 = vld [vmem:[#allocation16 + $0x3a4] sm:$0xff]
    %v1583 = vld [vmem:[#allocation16 + $0x3ac] sm:$0xff]
    %v1584 = vld [vmem:[#allocation16 + $0x3b4] sm:$0xff]
    %v1585 = vld [vmem:[#allocation16 + $0x3bc] sm:$0xff]
    %v1586 = vld [vmem:[#allocation16 + $0x3c4] sm:$0xf]
    %v1587 = vld [vmem:[#allocation16 + $0x3c8] sm:$0xff]
    %v1588 = vld [vmem:[#allocation16 + $0x3d0] sm:$0xff]
    %v1589 = vld [vmem:[#allocation16 + $0x3d8] sm:$0xff]
    %v1590 = vld [vmem:[#allocation16 + $0x3e0] sm:$0xff]
    %v1591 = vld [vmem:[#allocation16 + $0x3e8] sm:$0xff]
    %v1592 = vld [vmem:[#allocation16 + $0x3f0] sm:$0xf]
    %v1593 = vld [vmem:[#allocation16 + $0x3f4] sm:$0xff]
    %v1594 = vld [vmem:[#allocation16 + $0x3fc] sm:$0xff]
    %v1595 = vld [vmem:[#allocation16 + $0x404] sm:$0xff]
    %v1596 = vld [vmem:[#allocation16 + $0x40c] sm:$0xff]
    %v1597 = vld [vmem:[#allocation16 + $0x414] sm:$0xff]
    %v1598 = vld [vmem:[#allocation16 + $0x41c] sm:$0xf]
    %v1599 = vld [vmem:[#allocation16 + $0x420] sm:$0xff]
    %v1600 = vld [vmem:[#allocation16 + $0x428] sm:$0xff]
    %v1601 = vld [vmem:[#allocation16 + $0x430] sm:$0xff]
    %v1602 = vld [vmem:[#allocation16 + $0x438] sm:$0xff]
    %v1603 = vld [vmem:[#allocation16 + $0x440] sm:$0xff]
    %v1604 = vld [vmem:[#allocation16 + $0x448] sm:$0xf]
    %v1605 = vld [vmem:[#allocation16 + $0x44c] sm:$0xff]
    %v1606 = vld [vmem:[#allocation16 + $0x454] sm:$0xff]
    %v1607 = vld [vmem:[#allocation16 + $0x45c] sm:$0xff]
    %v1608 = vld [vmem:[#allocation16 + $0x464] sm:$0xff]
    %v1609 = vld [vmem:[#allocation16 + $0x46c] sm:$0xff]
    %v1610 = vld [vmem:[#allocation16 + $0x474] sm:$0xf]
    %v1611 = vld [vmem:[#allocation16 + $0x478] sm:$0xff]
    %v1612 = vld [vmem:[#allocation16 + $0x480] sm:$0xff]
    %v1613 = vld [vmem:[#allocation16 + $0x488] sm:$0xff]
    %v1614 = vld [vmem:[#allocation16 + $0x490] sm:$0xff]
    %v1615 = vld [vmem:[#allocation16 + $0x498] sm:$0xff]
    %v1616 = vld [vmem:[#allocation16 + $0x4a0] sm:$0xf]
    %v1617 = vld [vmem:[#allocation16 + $0x4a4] sm:$0xff]
    %v1618 = vld [vmem:[#allocation16 + $0x4ac] sm:$0xff]
    %v1619 = vld [vmem:[#allocation16 + $0x4b4] sm:$0xff]
    %v1620 = vld [vmem:[#allocation16 + $0x4bc] sm:$0xff]
    %v1621 = vld [vmem:[#allocation16 + $0x4c4] sm:$0xff]
    %v1622 = vld [vmem:[#allocation16 + $0x4cc] sm:$0xf]
    %v1623 = vld [vmem:[#allocation16 + $0x4d0] sm:$0xff]
    %v1624 = vld [vmem:[#allocation16 + $0x4d8] sm:$0xff]
    %v1625 = vld [vmem:[#allocation16 + $0x4e0] sm:$0xff]
    %v1626 = vld [vmem:[#allocation16 + $0x4e8] sm:$0xff]
    %v1627 = vld [vmem:[#allocation16 + $0x4f0] sm:$0xff]
    %v1628 = vld [vmem:[#allocation16 + $0x4f8] sm:$0xf]
    %v1629 = vld [vmem:[#allocation16 + $0x4fc] sm:$0xff]
    %v1630 = vld [vmem:[#allocation16 + $0x504] sm:$0xff]
    %v1631 = vld [vmem:[#allocation16 + $0x50c] sm:$0xff]
    %v1632 = vld [vmem:[#allocation16 + $0x514] sm:$0xff]
    %v1633 = vld [vmem:[#allocation16 + $0x51c] sm:$0xff]
    %v1634 = vld [vmem:[#allocation16 + $0x524] sm:$0xf]
    %v1635 = vld [vmem:[#allocation16 + $0x528] sm:$0xff]
    %v1636 = vld [vmem:[#allocation16 + $0x530] sm:$0xff]
    %v1637 = vld [vmem:[#allocation16 + $0x538] sm:$0xff]
    %v1638 = vld [vmem:[#allocation16 + $0x540] sm:$0xff]
    %v1639 = vld [vmem:[#allocation16 + $0x548] sm:$0xff]
    %v1640 = vld [vmem:[#allocation16 + $0x550] sm:$0xf]
    %v1641 = vld [vmem:[#allocation16 + $0x554] sm:$0xff]
    %v1642 = vld [vmem:[#allocation16 + $0x55c] sm:$0xff]
    %v1643 = vld [vmem:[#allocation16 + $0x564] sm:$0xff]
    %v1644 = vld [vmem:[#allocation16 + $0x56c] sm:$0xff]
    %v1645 = vld [vmem:[#allocation16 + $0x574] sm:$0xff]
    %v1646 = vld [vmem:[#allocation16 + $0x57c] sm:$0xf]
    %v1647 = vld [vmem:[#allocation16 + $0x580] sm:$0xff]
    %v1648 = vld [vmem:[#allocation16 + $0x588] sm:$0xff]
    %v1649 = vld [vmem:[#allocation16 + $0x590] sm:$0xff]
    %v1650 = vld [vmem:[#allocation16 + $0x598] sm:$0xff]
    %v1651 = vld [vmem:[#allocation16 + $0x5a0] sm:$0xff]
    %v1652 = vld [vmem:[#allocation16 + $0x5a8] sm:$0xf]
    %v1653 = vld [vmem:[#allocation16 + $0x5ac] sm:$0xff]
    %v1654 = vld [vmem:[#allocation16 + $0x5b4] sm:$0xff]
    %v1655 = vld [vmem:[#allocation16 + $0x5bc] sm:$0xff]
    %v1656 = vld [vmem:[#allocation16 + $0x5c4] sm:$0xff]
    %v1657 = vld [vmem:[#allocation16 + $0x5cc] sm:$0xff]
    %v1658 = vld [vmem:[#allocation16 + $0x5d4] sm:$0xf]
    %v1659 = vld [vmem:[#allocation16 + $0x5d8] sm:$0xff]
    %v1660 = vld [vmem:[#allocation16 + $0x5e0] sm:$0xff]
    %v1661 = vld [vmem:[#allocation16 + $0x5e8] sm:$0xff]
    %v1662 = vld [vmem:[#allocation16 + $0x5f0] sm:$0xff]
    %v1663 = vld [vmem:[#allocation16 + $0x5f8] sm:$0xff]
    %v1664 = vld [vmem:[#allocation16 + $0x600] sm:$0xf]
    %v1665 = vld [vmem:[#allocation16 + $0x604] sm:$0xff]
    %v1666 = vld [vmem:[#allocation16 + $0x60c] sm:$0xff]
    %v1667 = vld [vmem:[#allocation16 + $0x614] sm:$0xff]
    %v1668 = vld [vmem:[#allocation16 + $0x61c] sm:$0xff]
    %v1669 = vld [vmem:[#allocation16 + $0x624] sm:$0xff]
    %v1670 = vld [vmem:[#allocation16 + $0x62c] sm:$0xf]
    %v1671 = vld [vmem:[#allocation16 + $0x630] sm:$0xff]
    %v1672 = vld [vmem:[#allocation16 + $0x638] sm:$0xff]
    %v1673 = vld [vmem:[#allocation16 + $0x640] sm:$0xff]
    %v1674 = vld [vmem:[#allocation16 + $0x648] sm:$0xff]
    %v1675 = vld [vmem:[#allocation16 + $0x650] sm:$0xff]
    %v1676 = vld [vmem:[#allocation16 + $0x658] sm:$0xf]
    %v1677 = vld [vmem:[#allocation16 + $0x65c] sm:$0xff]
    %v1678 = vld [vmem:[#allocation16 + $0x664] sm:$0xff]
    %v1679 = vld [vmem:[#allocation16 + $0x66c] sm:$0xff]
    %v1680 = vld [vmem:[#allocation16 + $0x674] sm:$0xff]
    %v1681 = vld [vmem:[#allocation16 + $0x67c] sm:$0xff]
    %v1682 = vld [vmem:[#allocation16 + $0x684] sm:$0xf]
    %v1683 = vld [vmem:[#allocation16 + $0x688] sm:$0xff]
    %v1684 = vld [vmem:[#allocation16 + $0x690] sm:$0xff]
    %v1685 = vld [vmem:[#allocation16 + $0x698] sm:$0xff]
    %v1686 = vld [vmem:[#allocation16 + $0x6a0] sm:$0xff]
    %v1687 = vld [vmem:[#allocation16 + $0x6a8] sm:$0xff]
    %v1688 = vld [vmem:[#allocation16 + $0x6b0] sm:$0xf]
    %v1689 = vld [vmem:[#allocation16 + $0x6b4] sm:$0xff]
    %v1690 = vld [vmem:[#allocation16 + $0x6bc] sm:$0xff]
    %v1691 = vld [vmem:[#allocation16 + $0x6c4] sm:$0xff]
    %v1692 = vld [vmem:[#allocation16 + $0x6cc] sm:$0xff]
    %v1693 = vld [vmem:[#allocation16 + $0x6d4] sm:$0xff]
    %v1694 = vld [vmem:[#allocation16 + $0x6dc] sm:$0xf]
    %v1695 = vld [vmem:[#allocation16 + $0x6e0] sm:$0xff]
    %v1696 = vld [vmem:[#allocation16 + $0x6e8] sm:$0xff]
    %v1697 = vld [vmem:[#allocation16 + $0x6f0] sm:$0xff]
    %v1698 = vld [vmem:[#allocation16 + $0x6f8] sm:$0xff]
    %v1699 = vld [vmem:[#allocation16 + $0x700] sm:$0xff]
    %v1700 = vld [vmem:[#allocation16 + $0x708] sm:$0xf]
    %v1701 = vld [vmem:[#allocation16 + $0x70c] sm:$0xff]
    %v1702 = vld [vmem:[#allocation16 + $0x714] sm:$0xff]
    %v1703 = vld [vmem:[#allocation16 + $0x71c] sm:$0xff]
    %v1704 = vld [vmem:[#allocation16 + $0x724] sm:$0xff]
    %v1705 = vld [vmem:[#allocation16 + $0x72c] sm:$0xff]
    %v1706 = vld [vmem:[#allocation16 + $0x734] sm:$0xf]
    %v1707 = vld [vmem:[#allocation16 + $0x738] sm:$0xff]
    %v1708 = vld [vmem:[#allocation16 + $0x740] sm:$0xff]
    %v1709 = vld [vmem:[#allocation16 + $0x748] sm:$0xff]
    %v1710 = vld [vmem:[#allocation16 + $0x750] sm:$0xff]
    %v1711 = vld [vmem:[#allocation16 + $0x758] sm:$0xff]
    %v1712 = vld [vmem:[#allocation16 + $0x760] sm:$0xf]
    %v1713 = vld [vmem:[#allocation16 + $0x764] sm:$0xff]
    %v1714 = vld [vmem:[#allocation16 + $0x76c] sm:$0xff]
    %v1715 = vld [vmem:[#allocation16 + $0x774] sm:$0xff]
    %v1716 = vld [vmem:[#allocation16 + $0x77c] sm:$0xff]
    %v1717 = vld [vmem:[#allocation16 + $0x784] sm:$0xff]
    %v1718 = vld [vmem:[#allocation16 + $0x78c] sm:$0xf]
    %v1719 = vld [vmem:[#allocation16 + $0x790] sm:$0xff]
    %v1720 = vld [vmem:[#allocation16 + $0x798] sm:$0xff]
    %v1721 = vld [vmem:[#allocation16 + $0x7a0] sm:$0xff]
    %v1722 = vld [vmem:[#allocation16 + $0x7a8] sm:$0xff]
    %v1723 = vld [vmem:[#allocation16 + $0x7b0] sm:$0xff]
    %v1724 = vld [vmem:[#allocation16 + $0x7b8] sm:$0xf]
    %v1725 = vld [vmem:[#allocation16 + $0x7bc] sm:$0xff]
    %v1726 = vld [vmem:[#allocation16 + $0x7c4] sm:$0xff]
    %v1727 = vld [vmem:[#allocation16 + $0x7cc] sm:$0xff]
    %v1728 = vld [vmem:[#allocation16 + $0x7d4] sm:$0xff]
    %v1729 = vld [vmem:[#allocation16 + $0x7dc] sm:$0xff]
    %v1730 = vld [vmem:[#allocation16 + $0x7e4] sm:$0xf]
    %v1731 = vld [vmem:[#allocation16 + $0x7e8] sm:$0xff]
    %v1732 = vld [vmem:[#allocation16 + $0x7f0] sm:$0xff]
    %v1733 = vld [vmem:[#allocation16 + $0x7f8] sm:$0xff]
    %v1734 = vld [vmem:[#allocation16 + $0x800] sm:$0xff]
    %v1735 = vld [vmem:[#allocation16 + $0x808] sm:$0xff]
    %v1736 = vld [vmem:[#allocation16 + $0x810] sm:$0xf]
    %v1737 = vld [vmem:[#allocation16 + $0x814] sm:$0xff]
    %v1738 = vld [vmem:[#allocation16 + $0x81c] sm:$0xff]
    %v1739 = vld [vmem:[#allocation16 + $0x824] sm:$0xff]
    %v1740 = vld [vmem:[#allocation16 + $0x82c] sm:$0xff]
    %v1741 = vld [vmem:[#allocation16 + $0x834] sm:$0xff]
    %v1742 = vld [vmem:[#allocation16 + $0x83c] sm:$0xf]
    %v1743 = vld [vmem:[#allocation16 + $0x840] sm:$0xff]
    %v1744 = vld [vmem:[#allocation16 + $0x848] sm:$0xff]
    %v1745 = vld [vmem:[#allocation16 + $0x850] sm:$0xff]
    %v1746 = vld [vmem:[#allocation16 + $0x858] sm:$0xff]
    %v1747 = vld [vmem:[#allocation16 + $0x860] sm:$0xff]
    %v1748 = vld [vmem:[#allocation16 + $0x868] sm:$0xf]
    %v1749 = vld [vmem:[#allocation16 + $0x86c] sm:$0xff]
    %v1750 = vld [vmem:[#allocation16 + $0x874] sm:$0xff]
    %v1751 = vld [vmem:[#allocation16 + $0x87c] sm:$0xff]
    %v1752 = vld [vmem:[#allocation16 + $0x884] sm:$0xff]
    %v1753 = vld [vmem:[#allocation16 + $0x88c] sm:$0xff]
    %v1754 = vld [vmem:[#allocation16 + $0x894] sm:$0xf]
    %v1755 = vld [vmem:[#allocation16 + $0x898] sm:$0xff]
    %v1756 = vld [vmem:[#allocation16 + $0x8a0] sm:$0xff]
    %v1757 = vld [vmem:[#allocation16 + $0x8a8] sm:$0xff]
    %v1758 = vld [vmem:[#allocation16 + $0x8b0] sm:$0xff]
    %v1759 = vld [vmem:[#allocation16 + $0x8b8] sm:$0xff]
    %v1760 = vld [vmem:[#allocation16 + $0x8c0] sm:$0xf]
    %v1761 = vld [vmem:[#allocation16 + $0x8c4] sm:$0xff]
    %v1762 = vld [vmem:[#allocation16 + $0x8cc] sm:$0xff]
    %v1763 = vld [vmem:[#allocation16 + $0x8d4] sm:$0xff]
    %v1764 = vld [vmem:[#allocation16 + $0x8dc] sm:$0xff]
    %v1765 = vld [vmem:[#allocation16 + $0x8e4] sm:$0xff]
    %v1766 = vld [vmem:[#allocation16 + $0x8ec] sm:$0xf]
    %v1767 = vld [vmem:[#allocation16 + $0x8f0] sm:$0xff]
    %v1768 = vld [vmem:[#allocation16 + $0x8f8] sm:$0xff]
    %v1769 = vld [vmem:[#allocation16 + $0x900] sm:$0xff]
    %v1770 = vld [vmem:[#allocation16 + $0x908] sm:$0xff]
    %v1771 = vld [vmem:[#allocation16 + $0x910] sm:$0xff]
    %v1772 = vld [vmem:[#allocation16 + $0x918] sm:$0xf]
    %v1773 = vld [vmem:[#allocation16 + $0x91c] sm:$0xff]
    %v1774 = vld [vmem:[#allocation16 + $0x924] sm:$0xff]
    %v1775 = vld [vmem:[#allocation16 + $0x92c] sm:$0xff]
    %v1776 = vld [vmem:[#allocation16 + $0x934] sm:$0xff]
    %v1777 = vld [vmem:[#allocation16 + $0x93c] sm:$0xff]
    %v1778 = vld [vmem:[#allocation16 + $0x944] sm:$0xf]
    %v1779 = vld [vmem:[#allocation16 + $0x948] sm:$0xff]
    %v1780 = vld [vmem:[#allocation16 + $0x950] sm:$0xff]
    %v1781 = vld [vmem:[#allocation16 + $0x958] sm:$0xff]
    %v1782 = vld [vmem:[#allocation16 + $0x960] sm:$0xff]
    %v1783 = vld [vmem:[#allocation16 + $0x968] sm:$0xff]
    %v1784 = vld [vmem:[#allocation16 + $0x970] sm:$0xf]
    %v1785 = vld [vmem:[#allocation16 + $0x974] sm:$0xff]
    %v1786 = vld [vmem:[#allocation16 + $0x97c] sm:$0xff]
    %v1787 = vld [vmem:[#allocation16 + $0x984] sm:$0xff]
    %v1788 = vld [vmem:[#allocation16 + $0x98c] sm:$0xff]
    %v1789 = vld [vmem:[#allocation16 + $0x994] sm:$0xff]
    %v1790 = vld [vmem:[#allocation16 + $0x99c] sm:$0xf]
    %v1791 = vld [vmem:[#allocation16 + $0x9a0] sm:$0xff]
    %v1792 = vld [vmem:[#allocation16 + $0x9a8] sm:$0xff]
    %v1793 = vld [vmem:[#allocation16 + $0x9b0] sm:$0xff]
    %v1794 = vld [vmem:[#allocation16 + $0x9b8] sm:$0xff]
    %v1795 = vld [vmem:[#allocation16 + $0x9c0] sm:$0xff]
    %v1796 = vld [vmem:[#allocation16 + $0x9c8] sm:$0xf]
    %v1797 = vld [vmem:[#allocation16 + $0x9cc] sm:$0xff]
    %v1798 = vld [vmem:[#allocation16 + $0x9d4] sm:$0xff]
    %v1799 = vld [vmem:[#allocation16 + $0x9dc] sm:$0xff]
    %v1800 = vld [vmem:[#allocation16 + $0x9e4] sm:$0xff]
    %v1801 = vld [vmem:[#allocation16 + $0x9ec] sm:$0xff]
    %v1802 = vld [vmem:[#allocation16 + $0x9f4] sm:$0xf]
    %v1803 = vld [vmem:[#allocation16 + $0x9f8] sm:$0xff]
    %v1804 = vld [vmem:[#allocation16 + $0xa00] sm:$0xff]
    %v1805 = vld [vmem:[#allocation16 + $0xa08] sm:$0xff]
    %v1806 = vld [vmem:[#allocation16 + $0xa10] sm:$0xff]
    %v1807 = vld [vmem:[#allocation16 + $0xa18] sm:$0xff]
    %v1808 = vld [vmem:[#allocation16 + $0xa20] sm:$0xf]
    %v1809 = vld [vmem:[#allocation16 + $0xa24] sm:$0xff]
    %v1810 = vld [vmem:[#allocation16 + $0xa2c] sm:$0xff]
    %v1811 = vld [vmem:[#allocation16 + $0xa34] sm:$0xff]
    %v1812 = vld [vmem:[#allocation16 + $0xa3c] sm:$0xff]
    %v1813 = vld [vmem:[#allocation16 + $0xa44] sm:$0xff]
    %v1814 = vld [vmem:[#allocation16 + $0xa4c] sm:$0xf]
    %v1815 = vld [vmem:[#allocation16 + $0xa50] sm:$0xff]
    %v1816 = vld [vmem:[#allocation16 + $0xa58] sm:$0xff]
    %v1817 = vld [vmem:[#allocation16 + $0xa60] sm:$0xff]
    %v1818 = vld [vmem:[#allocation16 + $0xa68] sm:$0xff]
    %v1819 = vld [vmem:[#allocation16 + $0xa70] sm:$0xff]
    %v1820 = vld [vmem:[#allocation16 + $0xa78] sm:$0xf]
    %v1821 = vld [vmem:[#allocation16 + $0xa7c] sm:$0xff]
    %v1822 = vld [vmem:[#allocation16 + $0xa84] sm:$0xff]
    %v1823 = vld [vmem:[#allocation16 + $0xa8c] sm:$0xff]
    %v1824 = vld [vmem:[#allocation16 + $0xa94] sm:$0xff]
    %v1825 = vld [vmem:[#allocation16 + $0xa9c] sm:$0xff]
    %v1826 = vld [vmem:[#allocation16 + $0xaa4] sm:$0xf]
    %v1827 = vld [vmem:[#allocation16 + $0xaa8] sm:$0xff]
    %v1828 = vld [vmem:[#allocation16 + $0xab0] sm:$0xff]
    %v1829 = vld [vmem:[#allocation16 + $0xab8] sm:$0xff]
    %v1830 = vld [vmem:[#allocation16 + $0xac0] sm:$0xff]
    %v1831 = vld [vmem:[#allocation16 + $0xac8] sm:$0xff]
    %v1832 = vld [vmem:[#allocation16 + $0xad0] sm:$0xf]
    %v1833 = vld [vmem:[#allocation16 + $0xad4] sm:$0xff]
    %v1834 = vld [vmem:[#allocation16 + $0xadc] sm:$0xff]
    %v1835 = vld [vmem:[#allocation16 + $0xae4] sm:$0xff]
    %v1836 = vld [vmem:[#allocation16 + $0xaec] sm:$0xff]
    %v1837 = vld [vmem:[#allocation16 + $0xaf4] sm:$0xff]
    %v1838 = vld [vmem:[#allocation16 + $0xafc] sm:$0xf]
    %v1839 = vld [vmem:[#allocation16 + $0xb00] sm:$0xff]
    %v1840 = vld [vmem:[#allocation16 + $0xb08] sm:$0xff]
    %v1841 = vld [vmem:[#allocation16 + $0xb10] sm:$0xff]
    %v1842 = vld [vmem:[#allocation16 + $0xb18] sm:$0xff]
    %v1843 = vld [vmem:[#allocation16 + $0xb20] sm:$0xff]
    %v1844 = vld [vmem:[#allocation16 + $0xb28] sm:$0xf]
    %v1845 = vld [vmem:[#allocation16 + $0xb2c] sm:$0xff]
    %v1846 = vld [vmem:[#allocation16 + $0xb34] sm:$0xff]
    %v1847 = vld [vmem:[#allocation16 + $0xb3c] sm:$0xff]
    %v1848 = vld [vmem:[#allocation16 + $0xb44] sm:$0xff]
    %v1849 = vld [vmem:[#allocation16 + $0xb4c] sm:$0xff]
    %v1850 = vld [vmem:[#allocation16 + $0xb54] sm:$0xf]
    %v1851 = vld [vmem:[#allocation16 + $0xb58] sm:$0xff]
    %v1852 = vld [vmem:[#allocation16 + $0xb60] sm:$0xff]
    %v1853 = vld [vmem:[#allocation16 + $0xb68] sm:$0xff]
    %v1854 = vld [vmem:[#allocation16 + $0xb70] sm:$0xff]
    %v1855 = vld [vmem:[#allocation16 + $0xb78] sm:$0xff]
    %v1856 = vld [vmem:[#allocation16 + $0xb80] sm:$0xf]
    %v1857 = vld [vmem:[#allocation16 + $0xb84] sm:$0xff]
    %v1858 = vld [vmem:[#allocation16 + $0xb8c] sm:$0xff]
    %v1859 = vld [vmem:[#allocation16 + $0xb94] sm:$0xff]
    %v1860 = vld [vmem:[#allocation16 + $0xb9c] sm:$0xff]
    %v1861 = vld [vmem:[#allocation16 + $0xba4] sm:$0xff]
    %v1862 = vld [vmem:[#allocation16 + $0xbac] sm:$0xf]
    %v1863 = vld [vmem:[#allocation16 + $0xbb0] sm:$0xff]
    %v1864 = vld [vmem:[#allocation16 + $0xbb8] sm:$0xff]
    %v1865 = vld [vmem:[#allocation16 + $0xbc0] sm:$0xff]
    %v1866 = vld [vmem:[#allocation16 + $0xbc8] sm:$0xff]
    %v1867 = vld [vmem:[#allocation16 + $0xbd0] sm:$0xff]
    %v1868 = vld [vmem:[#allocation16 + $0xbd8] sm:$0xf]
    %v1869 = vld [vmem:[#allocation16 + $0xbdc] sm:$0xff]
    %v1870 = vld [vmem:[#allocation16 + $0xbe4] sm:$0xff]
    %v1871 = vld [vmem:[#allocation16 + $0xbec] sm:$0xff]
    %v1872 = vld [vmem:[#allocation16 + $0xbf4] sm:$0xff]
    %v1873 = vld [vmem:[#allocation16 + $0xbfc] sm:$0xff]
    %v1874 = vld [vmem:[#allocation16 + $0xc04] sm:$0xf]
    %v1875 = vld [vmem:[#allocation16 + $0xc08] sm:$0xff]
    %v1876 = vld [vmem:[#allocation16 + $0xc10] sm:$0xff]
    %v1877 = vld [vmem:[#allocation16 + $0xc18] sm:$0xff]
    %v1878 = vld [vmem:[#allocation16 + $0xc20] sm:$0xff]
    %v1879 = vld [vmem:[#allocation16 + $0xc28] sm:$0xff]
    %v1880 = vld [vmem:[#allocation16 + $0xc30] sm:$0xf]
    %v1881 = vld [vmem:[#allocation16 + $0xc34] sm:$0xff]
    %v1882 = vld [vmem:[#allocation16 + $0xc3c] sm:$0xff]
    %v1883 = vld [vmem:[#allocation16 + $0xc44] sm:$0xff]
    %v1884 = vld [vmem:[#allocation16 + $0xc4c] sm:$0xff]
    %v1885 = vld [vmem:[#allocation16 + $0xc54] sm:$0xff]
    %v1886 = vld [vmem:[#allocation16 + $0xc5c] sm:$0xf]
    %v1887 = vld [vmem:[#allocation16 + $0xc60] sm:$0xff]
    %v1888 = vld [vmem:[#allocation16 + $0xc68] sm:$0xff]
    %v1889 = vld [vmem:[#allocation16 + $0xc70] sm:$0xff]
    %v1890 = vld [vmem:[#allocation16 + $0xc78] sm:$0xff]
    %v1891 = vld [vmem:[#allocation16 + $0xc80] sm:$0xff]
    %v1892 = vld [vmem:[#allocation16 + $0xc88] sm:$0xf]
    %v1893 = vld [vmem:[#allocation16 + $0xc8c] sm:$0xff]
    %v1894 = vld [vmem:[#allocation16 + $0xc94] sm:$0xff]
    %v1895 = vld [vmem:[#allocation16 + $0xc9c] sm:$0xff]
    %v1896 = vld [vmem:[#allocation16 + $0xca4] sm:$0xff]
    %v1897 = vld [vmem:[#allocation16 + $0xcac] sm:$0xff]
    %v1898 = vld [vmem:[#allocation16 + $0xcb4] sm:$0xf]
    %v1899 = vld [vmem:[#allocation16 + $0xcb8] sm:$0xff]
    %v1900 = vld [vmem:[#allocation16 + $0xcc0] sm:$0xff]
    %v1901 = vld [vmem:[#allocation16 + $0xcc8] sm:$0xff]
    %v1902 = vld [vmem:[#allocation16 + $0xcd0] sm:$0xff]
    %v1903 = vld [vmem:[#allocation16 + $0xcd8] sm:$0xff]
    %v1904 = vld [vmem:[#allocation16 + $0xce0] sm:$0xf]
    %v1905 = vld [vmem:[#allocation16 + $0xce4] sm:$0xff]
    %v1906 = vld [vmem:[#allocation16 + $0xcec] sm:$0xff]
    %v1907 = vld [vmem:[#allocation16 + $0xcf4] sm:$0xff]
    %v1908 = vld [vmem:[#allocation16 + $0xcfc] sm:$0xff]
    %v1909 = vld [vmem:[#allocation16 + $0xd04] sm:$0xff]
    %v1910 = vld [vmem:[#allocation16 + $0xd0c] sm:$0xf]
    %v1911 = vld [vmem:[#allocation16 + $0xd10] sm:$0xff]
    %v1912 = vld [vmem:[#allocation16 + $0xd18] sm:$0xff]
    %v1913 = vld [vmem:[#allocation16 + $0xd20] sm:$0xff]
    %v1914 = vld [vmem:[#allocation16 + $0xd28] sm:$0xff]
    %v1915 = vld [vmem:[#allocation16 + $0xd30] sm:$0xff]
    %v1916 = vld [vmem:[#allocation16 + $0xd38] sm:$0xf]
    %v1917 = vld [vmem:[#allocation16 + $0xd3c] sm:$0xff]
    %v1918 = vld [vmem:[#allocation16 + $0xd44] sm:$0xff]
    %v1919 = vld [vmem:[#allocation16 + $0xd4c] sm:$0xff]
    %v1920 = vld [vmem:[#allocation16 + $0xd54] sm:$0xff]
    %v1921 = vld [vmem:[#allocation16 + $0xd5c] sm:$0xff]
    %v1922 = vld [vmem:[#allocation16 + $0xd64] sm:$0xf]
    %v1923 = vld [vmem:[#allocation16 + $0xd68] sm:$0xff]
    %v1924 = vld [vmem:[#allocation16 + $0xd70] sm:$0xff]
    %v1925 = vld [vmem:[#allocation16 + $0xd78] sm:$0xff]
    %v1926 = vld [vmem:[#allocation16 + $0xd80] sm:$0xff]
    %v1927 = vld [vmem:[#allocation16 + $0xd88] sm:$0xff]
    %v1928 = vld [vmem:[#allocation16 + $0xd90] sm:$0xf]
    %v1929 = vld [vmem:[#allocation16 + $0xd94] sm:$0xff]
    %v1930 = vld [vmem:[#allocation16 + $0xd9c] sm:$0xff]
    %v1931 = vld [vmem:[#allocation16 + $0xda4] sm:$0xff]
    %v1932 = vld [vmem:[#allocation16 + $0xdac] sm:$0xff]
    %v1933 = vld [vmem:[#allocation16 + $0xdb4] sm:$0xff]
    %v1934 = vld [vmem:[#allocation16 + $0xdbc] sm:$0xf]
    %v1935 = vld [vmem:[#allocation17] sm:$0xff]
    %v1936 = vld [vmem:[#allocation17 + $0x8] sm:$0x7]
    %v1939 = vlaneseq
    %v1940 = vshrl.u32 %v1939, 7
    %v1941 = vsub.s32 0, %v1940
    %v1942 = vrot.slane %v1935, %v1941
    %v1943 = vlaneseq
    %v1944 = vshrl.u32 %v1943, 7
    %v1945 = vsub.s32 1, %v1944
    %v1946 = vrot.slane %v1935, %v1945
    %v1947 = vlaneseq
    %v1948 = vshrl.u32 %v1947, 7
    %v1949 = vsub.s32 2, %v1948
    %v1950 = vrot.slane %v1935, %v1949
    %v1951 = vlaneseq
    %v1952 = vshrl.u32 %v1951, 7
    %v1953 = vsub.s32 3, %v1952
    %v1954 = vrot.slane %v1935, %v1953
    %v1955 = vlaneseq
    %v1956 = vshrl.u32 %v1955, 7
    %v1957 = vsub.s32 4, %v1956
    %v1958 = vrot.slane %v1935, %v1957
    %v1959 = vlaneseq
    %v1960 = vshrl.u32 %v1959, 7
    %v1961 = vsub.s32 5, %v1960
    %v1962 = vrot.slane %v1935, %v1961
    %v1963 = vlaneseq
    %v1964 = vshrl.u32 %v1963, 7
    %v1965 = vsub.s32 6, %v1964
    %v1966 = vrot.slane %v1935, %v1965
    %v1967 = vlaneseq
    %v1968 = vshrl.u32 %v1967, 7
    %v1969 = vsub.s32 7, %v1968
    %v1970 = vrot.slane %v1935, %v1969
    %v1971 = vlaneseq
    %v1972 = vshrl.u32 %v1971, 7
    %v1973 = vsub.s32 0, %v1972
    %v1974 = vrot.slane %v1936, %v1973
    %v1975 = vlaneseq
    %v1976 = vshrl.u32 %v1975, 7
    %v1977 = vsub.s32 1, %v1976
    %v1978 = vrot.slane %v1936, %v1977
    %v1979 = vlaneseq
    %v1980 = vshrl.u32 %v1979, 7
    %v1981 = vsub.s32 2, %v1980
    %v1982 = vrot.slane %v1936, %v1981
    %v2474 = vunpack.c.l.b16 %v1455
    %v2475 = vunpack.c.h.b16 %v1455
    %v2476 = vunpack.c.l.b16 %v1456
    %v2477 = vunpack.c.h.b16 %v1456
    %v2478 = vunpack.c.l.b16 %v1457
    %v2479 = vunpack.c.h.b16 %v1457
    %v2480 = vunpack.c.l.b16 %v1458
    %v2481 = vunpack.c.h.b16 %v1458
    %v2482 = vunpack.c.l.b16 %v1459
    %v2483 = vunpack.c.h.b16 %v1459
    %v2484 = vunpack.c.l.b16 %v1460
    %v2485 = vunpack.c.l.b16 %v1461
    %v2486 = vunpack.c.h.b16 %v1461
    %v2487 = vunpack.c.l.b16 %v1462
    %v2488 = vunpack.c.h.b16 %v1462
    %v2489 = vunpack.c.l.b16 %v1463
    %v2490 = vunpack.c.h.b16 %v1463
    %v2491 = vunpack.c.l.b16 %v1464
    %v2492 = vunpack.c.h.b16 %v1464
    %v2493 = vunpack.c.l.b16 %v1465
    %v2494 = vunpack.c.h.b16 %v1465
    %v2495 = vunpack.c.l.b16 %v1466
    %v2496 = vunpack.c.l.b16 %v1467
    %v2497 = vunpack.c.h.b16 %v1467
    %v2498 = vunpack.c.l.b16 %v1468
    %v2499 = vunpack.c.h.b16 %v1468
    %v2500 = vunpack.c.l.b16 %v1469
    %v2501 = vunpack.c.h.b16 %v1469
    %v2502 = vunpack.c.l.b16 %v1470
    %v2503 = vunpack.c.h.b16 %v1470
    %v2504 = vunpack.c.l.b16 %v1471
    %v2505 = vunpack.c.h.b16 %v1471
    %v2506 = vunpack.c.l.b16 %v1472
    %v2507 = vunpack.c.l.b16 %v1473
    %v2508 = vunpack.c.h.b16 %v1473
    %v2509 = vunpack.c.l.b16 %v1474
    %v2510 = vunpack.c.h.b16 %v1474
    %v2511 = vunpack.c.l.b16 %v1475
    %v2512 = vunpack.c.h.b16 %v1475
    %v2513 = vunpack.c.l.b16 %v1476
    %v2514 = vunpack.c.h.b16 %v1476
    %v2515 = vunpack.c.l.b16 %v1477
    %v2516 = vunpack.c.h.b16 %v1477
    %v2517 = vunpack.c.l.b16 %v1478
    %v2518 = vunpack.c.l.b16 %v1479
    %v2519 = vunpack.c.h.b16 %v1479
    %v2520 = vunpack.c.l.b16 %v1480
    %v2521 = vunpack.c.h.b16 %v1480
    %v2522 = vunpack.c.l.b16 %v1481
    %v2523 = vunpack.c.h.b16 %v1481
    %v2524 = vunpack.c.l.b16 %v1482
    %v2525 = vunpack.c.h.b16 %v1482
    %v2526 = vunpack.c.l.b16 %v1483
    %v2527 = vunpack.c.h.b16 %v1483
    %v2528 = vunpack.c.l.b16 %v1484
    %v2529 = vunpack.c.l.b16 %v1485
    %v2530 = vunpack.c.h.b16 %v1485
    %v2531 = vunpack.c.l.b16 %v1486
    %v2532 = vunpack.c.h.b16 %v1486
    %v2533 = vunpack.c.l.b16 %v1487
    %v2534 = vunpack.c.h.b16 %v1487
    %v2535 = vunpack.c.l.b16 %v1488
    %v2536 = vunpack.c.h.b16 %v1488
    %v2537 = vunpack.c.l.b16 %v1489
    %v2538 = vunpack.c.h.b16 %v1489
    %v2539 = vunpack.c.l.b16 %v1490
    %v2540 = vunpack.c.l.b16 %v1491
    %v2541 = vunpack.c.h.b16 %v1491
    %v2542 = vunpack.c.l.b16 %v1492
    %v2543 = vunpack.c.h.b16 %v1492
    %v2544 = vunpack.c.l.b16 %v1493
    %v2545 = vunpack.c.h.b16 %v1493
    %v2546 = vunpack.c.l.b16 %v1494
    %v2547 = vunpack.c.h.b16 %v1494
    %v2548 = vunpack.c.l.b16 %v1495
    %v2549 = vunpack.c.h.b16 %v1495
    %v2550 = vunpack.c.l.b16 %v1496
    %v2551 = vunpack.c.l.b16 %v1497
    %v2552 = vunpack.c.h.b16 %v1497
    %v2553 = vunpack.c.l.b16 %v1498
    %v2554 = vunpack.c.h.b16 %v1498
    %v2555 = vunpack.c.l.b16 %v1499
    %v2556 = vunpack.c.h.b16 %v1499
    %v2557 = vunpack.c.l.b16 %v1500
    %v2558 = vunpack.c.h.b16 %v1500
    %v2559 = vunpack.c.l.b16 %v1501
    %v2560 = vunpack.c.h.b16 %v1501
    %v2561 = vunpack.c.l.b16 %v1502
    %v2562 = vunpack.c.l.b16 %v1503
    %v2563 = vunpack.c.h.b16 %v1503
    %v2564 = vunpack.c.l.b16 %v1504
    %v2565 = vunpack.c.h.b16 %v1504
    %v2566 = vunpack.c.l.b16 %v1505
    %v2567 = vunpack.c.h.b16 %v1505
    %v2568 = vunpack.c.l.b16 %v1506
    %v2569 = vunpack.c.h.b16 %v1506
    %v2570 = vunpack.c.l.b16 %v1507
    %v2571 = vunpack.c.h.b16 %v1507
    %v2572 = vunpack.c.l.b16 %v1508
    %v2573 = vunpack.c.l.b16 %v1509
    %v2574 = vunpack.c.h.b16 %v1509
    %v2575 = vunpack.c.l.b16 %v1510
    %v2576 = vunpack.c.h.b16 %v1510
    %v2577 = vunpack.c.l.b16 %v1511
    %v2578 = vunpack.c.h.b16 %v1511
    %v2579 = vunpack.c.l.b16 %v1512
    %v2580 = vunpack.c.h.b16 %v1512
    %v2581 = vunpack.c.l.b16 %v1513
    %v2582 = vunpack.c.h.b16 %v1513
    %v2583 = vunpack.c.l.b16 %v1514
    %v2584 = vunpack.c.l.b16 %v1515
    %v2585 = vunpack.c.h.b16 %v1515
    %v2586 = vunpack.c.l.b16 %v1516
    %v2587 = vunpack.c.h.b16 %v1516
    %v2588 = vunpack.c.l.b16 %v1517
    %v2589 = vunpack.c.h.b16 %v1517
    %v2590 = vunpack.c.l.b16 %v1518
    %v2591 = vunpack.c.h.b16 %v1518
    %v2592 = vunpack.c.l.b16 %v1519
    %v2593 = vunpack.c.h.b16 %v1519
    %v2594 = vunpack.c.l.b16 %v1520
    %v2595 = vunpack.c.l.b16 %v1521
    %v2596 = vunpack.c.h.b16 %v1521
    %v2597 = vunpack.c.l.b16 %v1522
    %v2598 = vunpack.c.h.b16 %v1522
    %v2599 = vunpack.c.l.b16 %v1523
    %v2600 = vunpack.c.h.b16 %v1523
    %v2601 = vunpack.c.l.b16 %v1524
    %v2602 = vunpack.c.h.b16 %v1524
    %v2603 = vunpack.c.l.b16 %v1525
    %v2604 = vunpack.c.h.b16 %v1525
    %v2605 = vunpack.c.l.b16 %v1526
    %v2606 = vunpack.c.l.b16 %v1527
    %v2607 = vunpack.c.h.b16 %v1527
    %v2608 = vunpack.c.l.b16 %v1528
    %v2609 = vunpack.c.h.b16 %v1528
    %v2610 = vunpack.c.l.b16 %v1529
    %v2611 = vunpack.c.h.b16 %v1529
    %v2612 = vunpack.c.l.b16 %v1530
    %v2613 = vunpack.c.h.b16 %v1530
    %v2614 = vunpack.c.l.b16 %v1531
    %v2615 = vunpack.c.h.b16 %v1531
    %v2616 = vunpack.c.l.b16 %v1532
    %v2617 = vunpack.c.l.b16 %v1533
    %v2618 = vunpack.c.h.b16 %v1533
    %v2619 = vunpack.c.l.b16 %v1534
    %v2620 = vunpack.c.h.b16 %v1534
    %v2621 = vunpack.c.l.b16 %v1535
    %v2622 = vunpack.c.h.b16 %v1535
    %v2623 = vunpack.c.l.b16 %v1536
    %v2624 = vunpack.c.h.b16 %v1536
    %v2625 = vunpack.c.l.b16 %v1537
    %v2626 = vunpack.c.h.b16 %v1537
    %v2627 = vunpack.c.l.b16 %v1538
    %v2628 = vunpack.c.l.b16 %v1539
    %v2629 = vunpack.c.h.b16 %v1539
    %v2630 = vunpack.c.l.b16 %v1540
    %v2631 = vunpack.c.h.b16 %v1540
    %v2632 = vunpack.c.l.b16 %v1541
    %v2633 = vunpack.c.h.b16 %v1541
    %v2634 = vunpack.c.l.b16 %v1542
    %v2635 = vunpack.c.h.b16 %v1542
    %v2636 = vunpack.c.l.b16 %v1543
    %v2637 = vunpack.c.h.b16 %v1543
    %v2638 = vunpack.c.l.b16 %v1544
    %v2639 = vunpack.c.l.b16 %v1545
    %v2640 = vunpack.c.h.b16 %v1545
    %v2641 = vunpack.c.l.b16 %v1546
    %v2642 = vunpack.c.h.b16 %v1546
    %v2643 = vunpack.c.l.b16 %v1547
    %v2644 = vunpack.c.h.b16 %v1547
    %v2645 = vunpack.c.l.b16 %v1548
    %v2646 = vunpack.c.h.b16 %v1548
    %v2647 = vunpack.c.l.b16 %v1549
    %v2648 = vunpack.c.h.b16 %v1549
    %v2649 = vunpack.c.l.b16 %v1550
    %v2650 = vunpack.c.l.b16 %v1551
    %v2651 = vunpack.c.h.b16 %v1551
    %v2652 = vunpack.c.l.b16 %v1552
    %v2653 = vunpack.c.h.b16 %v1552
    %v2654 = vunpack.c.l.b16 %v1553
    %v2655 = vunpack.c.h.b16 %v1553
    %v2656 = vunpack.c.l.b16 %v1554
    %v2657 = vunpack.c.h.b16 %v1554
    %v2658 = vunpack.c.l.b16 %v1555
    %v2659 = vunpack.c.h.b16 %v1555
    %v2660 = vunpack.c.l.b16 %v1556
    %v2661 = vunpack.c.l.b16 %v1557
    %v2662 = vunpack.c.h.b16 %v1557
    %v2663 = vunpack.c.l.b16 %v1558
    %v2664 = vunpack.c.h.b16 %v1558
    %v2665 = vunpack.c.l.b16 %v1559
    %v2666 = vunpack.c.h.b16 %v1559
    %v2667 = vunpack.c.l.b16 %v1560
    %v2668 = vunpack.c.h.b16 %v1560
    %v2669 = vunpack.c.l.b16 %v1561
    %v2670 = vunpack.c.h.b16 %v1561
    %v2671 = vunpack.c.l.b16 %v1562
    %v2672 = vunpack.c.l.b16 %v1563
    %v2673 = vunpack.c.h.b16 %v1563
    %v2674 = vunpack.c.l.b16 %v1564
    %v2675 = vunpack.c.h.b16 %v1564
    %v2676 = vunpack.c.l.b16 %v1565
    %v2677 = vunpack.c.h.b16 %v1565
    %v2678 = vunpack.c.l.b16 %v1566
    %v2679 = vunpack.c.h.b16 %v1566
    %v2680 = vunpack.c.l.b16 %v1567
    %v2681 = vunpack.c.h.b16 %v1567
    %v2682 = vunpack.c.l.b16 %v1568
    %v2683 = vunpack.c.l.b16 %v1569
    %v2684 = vunpack.c.h.b16 %v1569
    %v2685 = vunpack.c.l.b16 %v1570
    %v2686 = vunpack.c.h.b16 %v1570
    %v2687 = vunpack.c.l.b16 %v1571
    %v2688 = vunpack.c.h.b16 %v1571
    %v2689 = vunpack.c.l.b16 %v1572
    %v2690 = vunpack.c.h.b16 %v1572
    %v2691 = vunpack.c.l.b16 %v1573
    %v2692 = vunpack.c.h.b16 %v1573
    %v2693 = vunpack.c.l.b16 %v1574
    %v2694 = vunpack.c.l.b16 %v1575
    %v2695 = vunpack.c.h.b16 %v1575
    %v2696 = vunpack.c.l.b16 %v1576
    %v2697 = vunpack.c.h.b16 %v1576
    %v2698 = vunpack.c.l.b16 %v1577
    %v2699 = vunpack.c.h.b16 %v1577
    %v2700 = vunpack.c.l.b16 %v1578
    %v2701 = vunpack.c.h.b16 %v1578
    %v2702 = vunpack.c.l.b16 %v1579
    %v2703 = vunpack.c.h.b16 %v1579
    %v2704 = vunpack.c.l.b16 %v1580
    %v2705 = vunpack.c.l.b16 %v1581
    %v2706 = vunpack.c.h.b16 %v1581
    %v2707 = vunpack.c.l.b16 %v1582
    %v2708 = vunpack.c.h.b16 %v1582
    %v2709 = vunpack.c.l.b16 %v1583
    %v2710 = vunpack.c.h.b16 %v1583
    %v2711 = vunpack.c.l.b16 %v1584
    %v2712 = vunpack.c.h.b16 %v1584
    %v2713 = vunpack.c.l.b16 %v1585
    %v2714 = vunpack.c.h.b16 %v1585
    %v2715 = vunpack.c.l.b16 %v1586
    %v2716 = vunpack.c.l.b16 %v1587
    %v2717 = vunpack.c.h.b16 %v1587
    %v2718 = vunpack.c.l.b16 %v1588
    %v2719 = vunpack.c.h.b16 %v1588
    %v2720 = vunpack.c.l.b16 %v1589
    %v2721 = vunpack.c.h.b16 %v1589
    %v2722 = vunpack.c.l.b16 %v1590
    %v2723 = vunpack.c.h.b16 %v1590
    %v2724 = vunpack.c.l.b16 %v1591
    %v2725 = vunpack.c.h.b16 %v1591
    %v2726 = vunpack.c.l.b16 %v1592
    %v2727 = vunpack.c.l.b16 %v1593
    %v2728 = vunpack.c.h.b16 %v1593
    %v2729 = vunpack.c.l.b16 %v1594
    %v2730 = vunpack.c.h.b16 %v1594
    %v2731 = vunpack.c.l.b16 %v1595
    %v2732 = vunpack.c.h.b16 %v1595
    %v2733 = vunpack.c.l.b16 %v1596
    %v2734 = vunpack.c.h.b16 %v1596
    %v2735 = vunpack.c.l.b16 %v1597
    %v2736 = vunpack.c.h.b16 %v1597
    %v2737 = vunpack.c.l.b16 %v1598
    %v2738 = vunpack.c.l.b16 %v1599
    %v2739 = vunpack.c.h.b16 %v1599
    %v2740 = vunpack.c.l.b16 %v1600
    %v2741 = vunpack.c.h.b16 %v1600
    %v2742 = vunpack.c.l.b16 %v1601
    %v2743 = vunpack.c.h.b16 %v1601
    %v2744 = vunpack.c.l.b16 %v1602
    %v2745 = vunpack.c.h.b16 %v1602
    %v2746 = vunpack.c.l.b16 %v1603
    %v2747 = vunpack.c.h.b16 %v1603
    %v2748 = vunpack.c.l.b16 %v1604
    %v2749 = vunpack.c.l.b16 %v1605
    %v2750 = vunpack.c.h.b16 %v1605
    %v2751 = vunpack.c.l.b16 %v1606
    %v2752 = vunpack.c.h.b16 %v1606
    %v2753 = vunpack.c.l.b16 %v1607
    %v2754 = vunpack.c.h.b16 %v1607
    %v2755 = vunpack.c.l.b16 %v1608
    %v2756 = vunpack.c.h.b16 %v1608
    %v2757 = vunpack.c.l.b16 %v1609
    %v2758 = vunpack.c.h.b16 %v1609
    %v2759 = vunpack.c.l.b16 %v1610
    %v2760 = vunpack.c.l.b16 %v1611
    %v2761 = vunpack.c.h.b16 %v1611
    %v2762 = vunpack.c.l.b16 %v1612
    %v2763 = vunpack.c.h.b16 %v1612
    %v2764 = vunpack.c.l.b16 %v1613
    %v2765 = vunpack.c.h.b16 %v1613
    %v2766 = vunpack.c.l.b16 %v1614
    %v2767 = vunpack.c.h.b16 %v1614
    %v2768 = vunpack.c.l.b16 %v1615
    %v2769 = vunpack.c.h.b16 %v1615
    %v2770 = vunpack.c.l.b16 %v1616
    %v2771 = vunpack.c.l.b16 %v1617
    %v2772 = vunpack.c.h.b16 %v1617
    %v2773 = vunpack.c.l.b16 %v1618
    %v2774 = vunpack.c.h.b16 %v1618
    %v2775 = vunpack.c.l.b16 %v1619
    %v2776 = vunpack.c.h.b16 %v1619
    %v2777 = vunpack.c.l.b16 %v1620
    %v2778 = vunpack.c.h.b16 %v1620
    %v2779 = vunpack.c.l.b16 %v1621
    %v2780 = vunpack.c.h.b16 %v1621
    %v2781 = vunpack.c.l.b16 %v1622
    %v2782 = vunpack.c.l.b16 %v1623
    %v2783 = vunpack.c.h.b16 %v1623
    %v2784 = vunpack.c.l.b16 %v1624
    %v2785 = vunpack.c.h.b16 %v1624
    %v2786 = vunpack.c.l.b16 %v1625
    %v2787 = vunpack.c.h.b16 %v1625
    %v2788 = vunpack.c.l.b16 %v1626
    %v2789 = vunpack.c.h.b16 %v1626
    %v2790 = vunpack.c.l.b16 %v1627
    %v2791 = vunpack.c.h.b16 %v1627
    %v2792 = vunpack.c.l.b16 %v1628
    %v2793 = vunpack.c.l.b16 %v1629
    %v2794 = vunpack.c.h.b16 %v1629
    %v2795 = vunpack.c.l.b16 %v1630
    %v2796 = vunpack.c.h.b16 %v1630
    %v2797 = vunpack.c.l.b16 %v1631
    %v2798 = vunpack.c.h.b16 %v1631
    %v2799 = vunpack.c.l.b16 %v1632
    %v2800 = vunpack.c.h.b16 %v1632
    %v2801 = vunpack.c.l.b16 %v1633
    %v2802 = vunpack.c.h.b16 %v1633
    %v2803 = vunpack.c.l.b16 %v1634
    %v2804 = vunpack.c.l.b16 %v1635
    %v2805 = vunpack.c.h.b16 %v1635
    %v2806 = vunpack.c.l.b16 %v1636
    %v2807 = vunpack.c.h.b16 %v1636
    %v2808 = vunpack.c.l.b16 %v1637
    %v2809 = vunpack.c.h.b16 %v1637
    %v2810 = vunpack.c.l.b16 %v1638
    %v2811 = vunpack.c.h.b16 %v1638
    %v2812 = vunpack.c.l.b16 %v1639
    %v2813 = vunpack.c.h.b16 %v1639
    %v2814 = vunpack.c.l.b16 %v1640
    %v2815 = vunpack.c.l.b16 %v1641
    %v2816 = vunpack.c.h.b16 %v1641
    %v2817 = vunpack.c.l.b16 %v1642
    %v2818 = vunpack.c.h.b16 %v1642
    %v2819 = vunpack.c.l.b16 %v1643
    %v2820 = vunpack.c.h.b16 %v1643
    %v2821 = vunpack.c.l.b16 %v1644
    %v2822 = vunpack.c.h.b16 %v1644
    %v2823 = vunpack.c.l.b16 %v1645
    %v2824 = vunpack.c.h.b16 %v1645
    %v2825 = vunpack.c.l.b16 %v1646
    %v2826 = vunpack.c.l.b16 %v1647
    %v2827 = vunpack.c.h.b16 %v1647
    %v2828 = vunpack.c.l.b16 %v1648
    %v2829 = vunpack.c.h.b16 %v1648
    %v2830 = vunpack.c.l.b16 %v1649
    %v2831 = vunpack.c.h.b16 %v1649
    %v2832 = vunpack.c.l.b16 %v1650
    %v2833 = vunpack.c.h.b16 %v1650
    %v2834 = vunpack.c.l.b16 %v1651
    %v2835 = vunpack.c.h.b16 %v1651
    %v2836 = vunpack.c.l.b16 %v1652
    %v2837 = vunpack.c.l.b16 %v1653
    %v2838 = vunpack.c.h.b16 %v1653
    %v2839 = vunpack.c.l.b16 %v1654
    %v2840 = vunpack.c.h.b16 %v1654
    %v2841 = vunpack.c.l.b16 %v1655
    %v2842 = vunpack.c.h.b16 %v1655
    %v2843 = vunpack.c.l.b16 %v1656
    %v2844 = vunpack.c.h.b16 %v1656
    %v2845 = vunpack.c.l.b16 %v1657
    %v2846 = vunpack.c.h.b16 %v1657
    %v2847 = vunpack.c.l.b16 %v1658
    %v2848 = vunpack.c.l.b16 %v1659
    %v2849 = vunpack.c.h.b16 %v1659
    %v2850 = vunpack.c.l.b16 %v1660
    %v2851 = vunpack.c.h.b16 %v1660
    %v2852 = vunpack.c.l.b16 %v1661
    %v2853 = vunpack.c.h.b16 %v1661
    %v2854 = vunpack.c.l.b16 %v1662
    %v2855 = vunpack.c.h.b16 %v1662
    %v2856 = vunpack.c.l.b16 %v1663
    %v2857 = vunpack.c.h.b16 %v1663
    %v2858 = vunpack.c.l.b16 %v1664
    %v2859 = vunpack.c.l.b16 %v1665
    %v2860 = vunpack.c.h.b16 %v1665
    %v2861 = vunpack.c.l.b16 %v1666
    %v2862 = vunpack.c.h.b16 %v1666
    %v2863 = vunpack.c.l.b16 %v1667
    %v2864 = vunpack.c.h.b16 %v1667
    %v2865 = vunpack.c.l.b16 %v1668
    %v2866 = vunpack.c.h.b16 %v1668
    %v2867 = vunpack.c.l.b16 %v1669
    %v2868 = vunpack.c.h.b16 %v1669
    %v2869 = vunpack.c.l.b16 %v1670
    %v2870 = vunpack.c.l.b16 %v1671
    %v2871 = vunpack.c.h.b16 %v1671
    %v2872 = vunpack.c.l.b16 %v1672
    %v2873 = vunpack.c.h.b16 %v1672
    %v2874 = vunpack.c.l.b16 %v1673
    %v2875 = vunpack.c.h.b16 %v1673
    %v2876 = vunpack.c.l.b16 %v1674
    %v2877 = vunpack.c.h.b16 %v1674
    %v2878 = vunpack.c.l.b16 %v1675
    %v2879 = vunpack.c.h.b16 %v1675
    %v2880 = vunpack.c.l.b16 %v1676
    %v2881 = vunpack.c.l.b16 %v1677
    %v2882 = vunpack.c.h.b16 %v1677
    %v2883 = vunpack.c.l.b16 %v1678
    %v2884 = vunpack.c.h.b16 %v1678
    %v2885 = vunpack.c.l.b16 %v1679
    %v2886 = vunpack.c.h.b16 %v1679
    %v2887 = vunpack.c.l.b16 %v1680
    %v2888 = vunpack.c.h.b16 %v1680
    %v2889 = vunpack.c.l.b16 %v1681
    %v2890 = vunpack.c.h.b16 %v1681
    %v2891 = vunpack.c.l.b16 %v1682
    %v2892 = vunpack.c.l.b16 %v1683
    %v2893 = vunpack.c.h.b16 %v1683
    %v2894 = vunpack.c.l.b16 %v1684
    %v2895 = vunpack.c.h.b16 %v1684
    %v2896 = vunpack.c.l.b16 %v1685
    %v2897 = vunpack.c.h.b16 %v1685
    %v2898 = vunpack.c.l.b16 %v1686
    %v2899 = vunpack.c.h.b16 %v1686
    %v2900 = vunpack.c.l.b16 %v1687
    %v2901 = vunpack.c.h.b16 %v1687
    %v2902 = vunpack.c.l.b16 %v1688
    %v2903 = vunpack.c.l.b16 %v1689
    %v2904 = vunpack.c.h.b16 %v1689
    %v2905 = vunpack.c.l.b16 %v1690
    %v2906 = vunpack.c.h.b16 %v1690
    %v2907 = vunpack.c.l.b16 %v1691
    %v2908 = vunpack.c.h.b16 %v1691
    %v2909 = vunpack.c.l.b16 %v1692
    %v2910 = vunpack.c.h.b16 %v1692
    %v2911 = vunpack.c.l.b16 %v1693
    %v2912 = vunpack.c.h.b16 %v1693
    %v2913 = vunpack.c.l.b16 %v1694
    %v2914 = vunpack.c.l.b16 %v1695
    %v2915 = vunpack.c.h.b16 %v1695
    %v2916 = vunpack.c.l.b16 %v1696
    %v2917 = vunpack.c.h.b16 %v1696
    %v2918 = vunpack.c.l.b16 %v1697
    %v2919 = vunpack.c.h.b16 %v1697
    %v2920 = vunpack.c.l.b16 %v1698
    %v2921 = vunpack.c.h.b16 %v1698
    %v2922 = vunpack.c.l.b16 %v1699
    %v2923 = vunpack.c.h.b16 %v1699
    %v2924 = vunpack.c.l.b16 %v1700
    %v2925 = vunpack.c.l.b16 %v1701
    %v2926 = vunpack.c.h.b16 %v1701
    %v2927 = vunpack.c.l.b16 %v1702
    %v2928 = vunpack.c.h.b16 %v1702
    %v2929 = vunpack.c.l.b16 %v1703
    %v2930 = vunpack.c.h.b16 %v1703
    %v2931 = vunpack.c.l.b16 %v1704
    %v2932 = vunpack.c.h.b16 %v1704
    %v2933 = vunpack.c.l.b16 %v1705
    %v2934 = vunpack.c.h.b16 %v1705
    %v2935 = vunpack.c.l.b16 %v1706
    %v2936 = vunpack.c.l.b16 %v1707
    %v2937 = vunpack.c.h.b16 %v1707
    %v2938 = vunpack.c.l.b16 %v1708
    %v2939 = vunpack.c.h.b16 %v1708
    %v2940 = vunpack.c.l.b16 %v1709
    %v2941 = vunpack.c.h.b16 %v1709
    %v2942 = vunpack.c.l.b16 %v1710
    %v2943 = vunpack.c.h.b16 %v1710
    %v2944 = vunpack.c.l.b16 %v1711
    %v2945 = vunpack.c.h.b16 %v1711
    %v2946 = vunpack.c.l.b16 %v1712
    %v2947 = vunpack.c.l.b16 %v1713
    %v2948 = vunpack.c.h.b16 %v1713
    %v2949 = vunpack.c.l.b16 %v1714
    %v2950 = vunpack.c.h.b16 %v1714
    %v2951 = vunpack.c.l.b16 %v1715
    %v2952 = vunpack.c.h.b16 %v1715
    %v2953 = vunpack.c.l.b16 %v1716
    %v2954 = vunpack.c.h.b16 %v1716
    %v2955 = vunpack.c.l.b16 %v1717
    %v2956 = vunpack.c.h.b16 %v1717
    %v2957 = vunpack.c.l.b16 %v1718
    %v2958 = vunpack.c.l.b16 %v1719
    %v2959 = vunpack.c.h.b16 %v1719
    %v2960 = vunpack.c.l.b16 %v1720
    %v2961 = vunpack.c.h.b16 %v1720
    %v2962 = vunpack.c.l.b16 %v1721
    %v2963 = vunpack.c.h.b16 %v1721
    %v2964 = vunpack.c.l.b16 %v1722
    %v2965 = vunpack.c.h.b16 %v1722
    %v2966 = vunpack.c.l.b16 %v1723
    %v2967 = vunpack.c.h.b16 %v1723
    %v2968 = vunpack.c.l.b16 %v1724
    %v2969 = vunpack.c.l.b16 %v1725
    %v2970 = vunpack.c.h.b16 %v1725
    %v2971 = vunpack.c.l.b16 %v1726
    %v2972 = vunpack.c.h.b16 %v1726
    %v2973 = vunpack.c.l.b16 %v1727
    %v2974 = vunpack.c.h.b16 %v1727
    %v2975 = vunpack.c.l.b16 %v1728
    %v2976 = vunpack.c.h.b16 %v1728
    %v2977 = vunpack.c.l.b16 %v1729
    %v2978 = vunpack.c.h.b16 %v1729
    %v2979 = vunpack.c.l.b16 %v1730
    %v2980 = vunpack.c.l.b16 %v1731
    %v2981 = vunpack.c.h.b16 %v1731
    %v2982 = vunpack.c.l.b16 %v1732
    %v2983 = vunpack.c.h.b16 %v1732
    %v2984 = vunpack.c.l.b16 %v1733
    %v2985 = vunpack.c.h.b16 %v1733
    %v2986 = vunpack.c.l.b16 %v1734
    %v2987 = vunpack.c.h.b16 %v1734
    %v2988 = vunpack.c.l.b16 %v1735
    %v2989 = vunpack.c.h.b16 %v1735
    %v2990 = vunpack.c.l.b16 %v1736
    %v2991 = vunpack.c.l.b16 %v1737
    %v2992 = vunpack.c.h.b16 %v1737
    %v2993 = vunpack.c.l.b16 %v1738
    %v2994 = vunpack.c.h.b16 %v1738
    %v2995 = vunpack.c.l.b16 %v1739
    %v2996 = vunpack.c.h.b16 %v1739
    %v2997 = vunpack.c.l.b16 %v1740
    %v2998 = vunpack.c.h.b16 %v1740
    %v2999 = vunpack.c.l.b16 %v1741
    %v3000 = vunpack.c.h.b16 %v1741
    %v3001 = vunpack.c.l.b16 %v1742
    %v3002 = vunpack.c.l.b16 %v1743
    %v3003 = vunpack.c.h.b16 %v1743
    %v3004 = vunpack.c.l.b16 %v1744
    %v3005 = vunpack.c.h.b16 %v1744
    %v3006 = vunpack.c.l.b16 %v1745
    %v3007 = vunpack.c.h.b16 %v1745
    %v3008 = vunpack.c.l.b16 %v1746
    %v3009 = vunpack.c.h.b16 %v1746
    %v3010 = vunpack.c.l.b16 %v1747
    %v3011 = vunpack.c.h.b16 %v1747
    %v3012 = vunpack.c.l.b16 %v1748
    %v3013 = vunpack.c.l.b16 %v1749
    %v3014 = vunpack.c.h.b16 %v1749
    %v3015 = vunpack.c.l.b16 %v1750
    %v3016 = vunpack.c.h.b16 %v1750
    %v3017 = vunpack.c.l.b16 %v1751
    %v3018 = vunpack.c.h.b16 %v1751
    %v3019 = vunpack.c.l.b16 %v1752
    %v3020 = vunpack.c.h.b16 %v1752
    %v3021 = vunpack.c.l.b16 %v1753
    %v3022 = vunpack.c.h.b16 %v1753
    %v3023 = vunpack.c.l.b16 %v1754
    %v3024 = vunpack.c.l.b16 %v1755
    %v3025 = vunpack.c.h.b16 %v1755
    %v3026 = vunpack.c.l.b16 %v1756
    %v3027 = vunpack.c.h.b16 %v1756
    %v3028 = vunpack.c.l.b16 %v1757
    %v3029 = vunpack.c.h.b16 %v1757
    %v3030 = vunpack.c.l.b16 %v1758
    %v3031 = vunpack.c.h.b16 %v1758
    %v3032 = vunpack.c.l.b16 %v1759
    %v3033 = vunpack.c.h.b16 %v1759
    %v3034 = vunpack.c.l.b16 %v1760
    %v3035 = vunpack.c.l.b16 %v1761
    %v3036 = vunpack.c.h.b16 %v1761
    %v3037 = vunpack.c.l.b16 %v1762
    %v3038 = vunpack.c.h.b16 %v1762
    %v3039 = vunpack.c.l.b16 %v1763
    %v3040 = vunpack.c.h.b16 %v1763
    %v3041 = vunpack.c.l.b16 %v1764
    %v3042 = vunpack.c.h.b16 %v1764
    %v3043 = vunpack.c.l.b16 %v1765
    %v3044 = vunpack.c.h.b16 %v1765
    %v3045 = vunpack.c.l.b16 %v1766
    %v3046 = vunpack.c.l.b16 %v1767
    %v3047 = vunpack.c.h.b16 %v1767
    %v3048 = vunpack.c.l.b16 %v1768
    %v3049 = vunpack.c.h.b16 %v1768
    %v3050 = vunpack.c.l.b16 %v1769
    %v3051 = vunpack.c.h.b16 %v1769
    %v3052 = vunpack.c.l.b16 %v1770
    %v3053 = vunpack.c.h.b16 %v1770
    %v3054 = vunpack.c.l.b16 %v1771
    %v3055 = vunpack.c.h.b16 %v1771
    %v3056 = vunpack.c.l.b16 %v1772
    %v3057 = vunpack.c.l.b16 %v1773
    %v3058 = vunpack.c.h.b16 %v1773
    %v3059 = vunpack.c.l.b16 %v1774
    %v3060 = vunpack.c.h.b16 %v1774
    %v3061 = vunpack.c.l.b16 %v1775
    %v3062 = vunpack.c.h.b16 %v1775
    %v3063 = vunpack.c.l.b16 %v1776
    %v3064 = vunpack.c.h.b16 %v1776
    %v3065 = vunpack.c.l.b16 %v1777
    %v3066 = vunpack.c.h.b16 %v1777
    %v3067 = vunpack.c.l.b16 %v1778
    %v3068 = vunpack.c.l.b16 %v1779
    %v3069 = vunpack.c.h.b16 %v1779
    %v3070 = vunpack.c.l.b16 %v1780
    %v3071 = vunpack.c.h.b16 %v1780
    %v3072 = vunpack.c.l.b16 %v1781
    %v3073 = vunpack.c.h.b16 %v1781
    %v3074 = vunpack.c.l.b16 %v1782
    %v3075 = vunpack.c.h.b16 %v1782
    %v3076 = vunpack.c.l.b16 %v1783
    %v3077 = vunpack.c.h.b16 %v1783
    %v3078 = vunpack.c.l.b16 %v1784
    %v3079 = vunpack.c.l.b16 %v1785
    %v3080 = vunpack.c.h.b16 %v1785
    %v3081 = vunpack.c.l.b16 %v1786
    %v3082 = vunpack.c.h.b16 %v1786
    %v3083 = vunpack.c.l.b16 %v1787
    %v3084 = vunpack.c.h.b16 %v1787
    %v3085 = vunpack.c.l.b16 %v1788
    %v3086 = vunpack.c.h.b16 %v1788
    %v3087 = vunpack.c.l.b16 %v1789
    %v3088 = vunpack.c.h.b16 %v1789
    %v3089 = vunpack.c.l.b16 %v1790
    %v3090 = vunpack.c.l.b16 %v1791
    %v3091 = vunpack.c.h.b16 %v1791
    %v3092 = vunpack.c.l.b16 %v1792
    %v3093 = vunpack.c.h.b16 %v1792
    %v3094 = vunpack.c.l.b16 %v1793
    %v3095 = vunpack.c.h.b16 %v1793
    %v3096 = vunpack.c.l.b16 %v1794
    %v3097 = vunpack.c.h.b16 %v1794
    %v3098 = vunpack.c.l.b16 %v1795
    %v3099 = vunpack.c.h.b16 %v1795
    %v3100 = vunpack.c.l.b16 %v1796
    %v3101 = vunpack.c.l.b16 %v1797
    %v3102 = vunpack.c.h.b16 %v1797
    %v3103 = vunpack.c.l.b16 %v1798
    %v3104 = vunpack.c.h.b16 %v1798
    %v3105 = vunpack.c.l.b16 %v1799
    %v3106 = vunpack.c.h.b16 %v1799
    %v3107 = vunpack.c.l.b16 %v1800
    %v3108 = vunpack.c.h.b16 %v1800
    %v3109 = vunpack.c.l.b16 %v1801
    %v3110 = vunpack.c.h.b16 %v1801
    %v3111 = vunpack.c.l.b16 %v1802
    %v3112 = vunpack.c.l.b16 %v1803
    %v3113 = vunpack.c.h.b16 %v1803
    %v3114 = vunpack.c.l.b16 %v1804
    %v3115 = vunpack.c.h.b16 %v1804
    %v3116 = vunpack.c.l.b16 %v1805
    %v3117 = vunpack.c.h.b16 %v1805
    %v3118 = vunpack.c.l.b16 %v1806
    %v3119 = vunpack.c.h.b16 %v1806
    %v3120 = vunpack.c.l.b16 %v1807
    %v3121 = vunpack.c.h.b16 %v1807
    %v3122 = vunpack.c.l.b16 %v1808
    %v3123 = vunpack.c.l.b16 %v1809
    %v3124 = vunpack.c.h.b16 %v1809
    %v3125 = vunpack.c.l.b16 %v1810
    %v3126 = vunpack.c.h.b16 %v1810
    %v3127 = vunpack.c.l.b16 %v1811
    %v3128 = vunpack.c.h.b16 %v1811
    %v3129 = vunpack.c.l.b16 %v1812
    %v3130 = vunpack.c.h.b16 %v1812
    %v3131 = vunpack.c.l.b16 %v1813
    %v3132 = vunpack.c.h.b16 %v1813
    %v3133 = vunpack.c.l.b16 %v1814
    %v3134 = vunpack.c.l.b16 %v1815
    %v3135 = vunpack.c.h.b16 %v1815
    %v3136 = vunpack.c.l.b16 %v1816
    %v3137 = vunpack.c.h.b16 %v1816
    %v3138 = vunpack.c.l.b16 %v1817
    %v3139 = vunpack.c.h.b16 %v1817
    %v3140 = vunpack.c.l.b16 %v1818
    %v3141 = vunpack.c.h.b16 %v1818
    %v3142 = vunpack.c.l.b16 %v1819
    %v3143 = vunpack.c.h.b16 %v1819
    %v3144 = vunpack.c.l.b16 %v1820
    %v3145 = vunpack.c.l.b16 %v1821
    %v3146 = vunpack.c.h.b16 %v1821
    %v3147 = vunpack.c.l.b16 %v1822
    %v3148 = vunpack.c.h.b16 %v1822
    %v3149 = vunpack.c.l.b16 %v1823
    %v3150 = vunpack.c.h.b16 %v1823
    %v3151 = vunpack.c.l.b16 %v1824
    %v3152 = vunpack.c.h.b16 %v1824
    %v3153 = vunpack.c.l.b16 %v1825
    %v3154 = vunpack.c.h.b16 %v1825
    %v3155 = vunpack.c.l.b16 %v1826
    %v3156 = vunpack.c.l.b16 %v1827
    %v3157 = vunpack.c.h.b16 %v1827
    %v3158 = vunpack.c.l.b16 %v1828
    %v3159 = vunpack.c.h.b16 %v1828
    %v3160 = vunpack.c.l.b16 %v1829
    %v3161 = vunpack.c.h.b16 %v1829
    %v3162 = vunpack.c.l.b16 %v1830
    %v3163 = vunpack.c.h.b16 %v1830
    %v3164 = vunpack.c.l.b16 %v1831
    %v3165 = vunpack.c.h.b16 %v1831
    %v3166 = vunpack.c.l.b16 %v1832
    %v3167 = vunpack.c.l.b16 %v1833
    %v3168 = vunpack.c.h.b16 %v1833
    %v3169 = vunpack.c.l.b16 %v1834
    %v3170 = vunpack.c.h.b16 %v1834
    %v3171 = vunpack.c.l.b16 %v1835
    %v3172 = vunpack.c.h.b16 %v1835
    %v3173 = vunpack.c.l.b16 %v1836
    %v3174 = vunpack.c.h.b16 %v1836
    %v3175 = vunpack.c.l.b16 %v1837
    %v3176 = vunpack.c.h.b16 %v1837
    %v3177 = vunpack.c.l.b16 %v1838
    %v3178 = vunpack.c.l.b16 %v1839
    %v3179 = vunpack.c.h.b16 %v1839
    %v3180 = vunpack.c.l.b16 %v1840
    %v3181 = vunpack.c.h.b16 %v1840
    %v3182 = vunpack.c.l.b16 %v1841
    %v3183 = vunpack.c.h.b16 %v1841
    %v3184 = vunpack.c.l.b16 %v1842
    %v3185 = vunpack.c.h.b16 %v1842
    %v3186 = vunpack.c.l.b16 %v1843
    %v3187 = vunpack.c.h.b16 %v1843
    %v3188 = vunpack.c.l.b16 %v1844
    %v3189 = vunpack.c.l.b16 %v1845
    %v3190 = vunpack.c.h.b16 %v1845
    %v3191 = vunpack.c.l.b16 %v1846
    %v3192 = vunpack.c.h.b16 %v1846
    %v3193 = vunpack.c.l.b16 %v1847
    %v3194 = vunpack.c.h.b16 %v1847
    %v3195 = vunpack.c.l.b16 %v1848
    %v3196 = vunpack.c.h.b16 %v1848
    %v3197 = vunpack.c.l.b16 %v1849
    %v3198 = vunpack.c.h.b16 %v1849
    %v3199 = vunpack.c.l.b16 %v1850
    %v3200 = vunpack.c.l.b16 %v1851
    %v3201 = vunpack.c.h.b16 %v1851
    %v3202 = vunpack.c.l.b16 %v1852
    %v3203 = vunpack.c.h.b16 %v1852
    %v3204 = vunpack.c.l.b16 %v1853
    %v3205 = vunpack.c.h.b16 %v1853
    %v3206 = vunpack.c.l.b16 %v1854
    %v3207 = vunpack.c.h.b16 %v1854
    %v3208 = vunpack.c.l.b16 %v1855
    %v3209 = vunpack.c.h.b16 %v1855
    %v3210 = vunpack.c.l.b16 %v1856
    %v3211 = vunpack.c.l.b16 %v1857
    %v3212 = vunpack.c.h.b16 %v1857
    %v3213 = vunpack.c.l.b16 %v1858
    %v3214 = vunpack.c.h.b16 %v1858
    %v3215 = vunpack.c.l.b16 %v1859
    %v3216 = vunpack.c.h.b16 %v1859
    %v3217 = vunpack.c.l.b16 %v1860
    %v3218 = vunpack.c.h.b16 %v1860
    %v3219 = vunpack.c.l.b16 %v1861
    %v3220 = vunpack.c.h.b16 %v1861
    %v3221 = vunpack.c.l.b16 %v1862
    %v3222 = vunpack.c.l.b16 %v1863
    %v3223 = vunpack.c.h.b16 %v1863
    %v3224 = vunpack.c.l.b16 %v1864
    %v3225 = vunpack.c.h.b16 %v1864
    %v3226 = vunpack.c.l.b16 %v1865
    %v3227 = vunpack.c.h.b16 %v1865
    %v3228 = vunpack.c.l.b16 %v1866
    %v3229 = vunpack.c.h.b16 %v1866
    %v3230 = vunpack.c.l.b16 %v1867
    %v3231 = vunpack.c.h.b16 %v1867
    %v3232 = vunpack.c.l.b16 %v1868
    %v3233 = vunpack.c.l.b16 %v1869
    %v3234 = vunpack.c.h.b16 %v1869
    %v3235 = vunpack.c.l.b16 %v1870
    %v3236 = vunpack.c.h.b16 %v1870
    %v3237 = vunpack.c.l.b16 %v1871
    %v3238 = vunpack.c.h.b16 %v1871
    %v3239 = vunpack.c.l.b16 %v1872
    %v3240 = vunpack.c.h.b16 %v1872
    %v3241 = vunpack.c.l.b16 %v1873
    %v3242 = vunpack.c.h.b16 %v1873
    %v3243 = vunpack.c.l.b16 %v1874
    %v3244 = vunpack.c.l.b16 %v1875
    %v3245 = vunpack.c.h.b16 %v1875
    %v3246 = vunpack.c.l.b16 %v1876
    %v3247 = vunpack.c.h.b16 %v1876
    %v3248 = vunpack.c.l.b16 %v1877
    %v3249 = vunpack.c.h.b16 %v1877
    %v3250 = vunpack.c.l.b16 %v1878
    %v3251 = vunpack.c.h.b16 %v1878
    %v3252 = vunpack.c.l.b16 %v1879
    %v3253 = vunpack.c.h.b16 %v1879
    %v3254 = vunpack.c.l.b16 %v1880
    %v3255 = vunpack.c.l.b16 %v1881
    %v3256 = vunpack.c.h.b16 %v1881
    %v3257 = vunpack.c.l.b16 %v1882
    %v3258 = vunpack.c.h.b16 %v1882
    %v3259 = vunpack.c.l.b16 %v1883
    %v3260 = vunpack.c.h.b16 %v1883
    %v3261 = vunpack.c.l.b16 %v1884
    %v3262 = vunpack.c.h.b16 %v1884
    %v3263 = vunpack.c.l.b16 %v1885
    %v3264 = vunpack.c.h.b16 %v1885
    %v3265 = vunpack.c.l.b16 %v1886
    %v3266 = vunpack.c.l.b16 %v1887
    %v3267 = vunpack.c.h.b16 %v1887
    %v3268 = vunpack.c.l.b16 %v1888
    %v3269 = vunpack.c.h.b16 %v1888
    %v3270 = vunpack.c.l.b16 %v1889
    %v3271 = vunpack.c.h.b16 %v1889
    %v3272 = vunpack.c.l.b16 %v1890
    %v3273 = vunpack.c.h.b16 %v1890
    %v3274 = vunpack.c.l.b16 %v1891
    %v3275 = vunpack.c.h.b16 %v1891
    %v3276 = vunpack.c.l.b16 %v1892
    %v3277 = vunpack.c.l.b16 %v1893
    %v3278 = vunpack.c.h.b16 %v1893
    %v3279 = vunpack.c.l.b16 %v1894
    %v3280 = vunpack.c.h.b16 %v1894
    %v3281 = vunpack.c.l.b16 %v1895
    %v3282 = vunpack.c.h.b16 %v1895
    %v3283 = vunpack.c.l.b16 %v1896
    %v3284 = vunpack.c.h.b16 %v1896
    %v3285 = vunpack.c.l.b16 %v1897
    %v3286 = vunpack.c.h.b16 %v1897
    %v3287 = vunpack.c.l.b16 %v1898
    %v3288 = vunpack.c.l.b16 %v1899
    %v3289 = vunpack.c.h.b16 %v1899
    %v3290 = vunpack.c.l.b16 %v1900
    %v3291 = vunpack.c.h.b16 %v1900
    %v3292 = vunpack.c.l.b16 %v1901
    %v3293 = vunpack.c.h.b16 %v1901
    %v3294 = vunpack.c.l.b16 %v1902
    %v3295 = vunpack.c.h.b16 %v1902
    %v3296 = vunpack.c.l.b16 %v1903
    %v3297 = vunpack.c.h.b16 %v1903
    %v3298 = vunpack.c.l.b16 %v1904
    %v3299 = vunpack.c.l.b16 %v1905
    %v3300 = vunpack.c.h.b16 %v1905
    %v3301 = vunpack.c.l.b16 %v1906
    %v3302 = vunpack.c.h.b16 %v1906
    %v3303 = vunpack.c.l.b16 %v1907
    %v3304 = vunpack.c.h.b16 %v1907
    %v3305 = vunpack.c.l.b16 %v1908
    %v3306 = vunpack.c.h.b16 %v1908
    %v3307 = vunpack.c.l.b16 %v1909
    %v3308 = vunpack.c.h.b16 %v1909
    %v3309 = vunpack.c.l.b16 %v1910
    %v3310 = vunpack.c.l.b16 %v1911
    %v3311 = vunpack.c.h.b16 %v1911
    %v3312 = vunpack.c.l.b16 %v1912
    %v3313 = vunpack.c.h.b16 %v1912
    %v3314 = vunpack.c.l.b16 %v1913
    %v3315 = vunpack.c.h.b16 %v1913
    %v3316 = vunpack.c.l.b16 %v1914
    %v3317 = vunpack.c.h.b16 %v1914
    %v3318 = vunpack.c.l.b16 %v1915
    %v3319 = vunpack.c.h.b16 %v1915
    %v3320 = vunpack.c.l.b16 %v1916
    %v3321 = vunpack.c.l.b16 %v1917
    %v3322 = vunpack.c.h.b16 %v1917
    %v3323 = vunpack.c.l.b16 %v1918
    %v3324 = vunpack.c.h.b16 %v1918
    %v3325 = vunpack.c.l.b16 %v1919
    %v3326 = vunpack.c.h.b16 %v1919
    %v3327 = vunpack.c.l.b16 %v1920
    %v3328 = vunpack.c.h.b16 %v1920
    %v3329 = vunpack.c.l.b16 %v1921
    %v3330 = vunpack.c.h.b16 %v1921
    %v3331 = vunpack.c.l.b16 %v1922
    %v3332 = vunpack.c.l.b16 %v1923
    %v3333 = vunpack.c.h.b16 %v1923
    %v3334 = vunpack.c.l.b16 %v1924
    %v3335 = vunpack.c.h.b16 %v1924
    %v3336 = vunpack.c.l.b16 %v1925
    %v3337 = vunpack.c.h.b16 %v1925
    %v3338 = vunpack.c.l.b16 %v1926
    %v3339 = vunpack.c.h.b16 %v1926
    %v3340 = vunpack.c.l.b16 %v1927
    %v3341 = vunpack.c.h.b16 %v1927
    %v3342 = vunpack.c.l.b16 %v1928
    %v3343 = vunpack.c.l.b16 %v1929
    %v3344 = vunpack.c.h.b16 %v1929
    %v3345 = vunpack.c.l.b16 %v1930
    %v3346 = vunpack.c.h.b16 %v1930
    %v3347 = vunpack.c.l.b16 %v1931
    %v3348 = vunpack.c.h.b16 %v1931
    %v3349 = vunpack.c.l.b16 %v1932
    %v3350 = vunpack.c.h.b16 %v1932
    %v3351 = vunpack.c.l.b16 %v1933
    %v3352 = vunpack.c.h.b16 %v1933
    %v3353 = vunpack.c.l.b16 %v1934
    %v3354 = vpack.c.b16 %v2485, %v2474
    %v3355 = vpack.c.b16 %v2486, %v2475
    %v3356 = vpack.c.b16 %v2487, %v2476
    %v3357 = vpack.c.b16 %v2488, %v2477
    %v3358 = vpack.c.b16 %v2489, %v2478
    %v3359 = vpack.c.b16 %v2490, %v2479
    %v3360 = vpack.c.b16 %v2491, %v2480
    %v3361 = vpack.c.b16 %v2492, %v2481
    %v3362 = vpack.c.b16 %v2493, %v2482
    %v3363 = vpack.c.b16 %v2494, %v2483
    %v3364 = vpack.c.b16 %v2495, %v2484
    %v3365 = vpack.c.b16 %v2507, %v2496
    %v3366 = vpack.c.b16 %v2508, %v2497
    %v3367 = vpack.c.b16 %v2509, %v2498
    %v3368 = vpack.c.b16 %v2510, %v2499
    %v3369 = vpack.c.b16 %v2511, %v2500
    %v3370 = vpack.c.b16 %v2512, %v2501
    %v3371 = vpack.c.b16 %v2513, %v2502
    %v3372 = vpack.c.b16 %v2514, %v2503
    %v3373 = vpack.c.b16 %v2515, %v2504
    %v3374 = vpack.c.b16 %v2516, %v2505
    %v3375 = vpack.c.b16 %v2517, %v2506
    %v3376 = vpack.c.b16 %v2529, %v2518
    %v3377 = vpack.c.b16 %v2530, %v2519
    %v3378 = vpack.c.b16 %v2531, %v2520
    %v3379 = vpack.c.b16 %v2532, %v2521
    %v3380 = vpack.c.b16 %v2533, %v2522
    %v3381 = vpack.c.b16 %v2534, %v2523
    %v3382 = vpack.c.b16 %v2535, %v2524
    %v3383 = vpack.c.b16 %v2536, %v2525
    %v3384 = vpack.c.b16 %v2537, %v2526
    %v3385 = vpack.c.b16 %v2538, %v2527
    %v3386 = vpack.c.b16 %v2539, %v2528
    %v3387 = vpack.c.b16 %v2551, %v2540
    %v3388 = vpack.c.b16 %v2552, %v2541
    %v3389 = vpack.c.b16 %v2553, %v2542
    %v3390 = vpack.c.b16 %v2554, %v2543
    %v3391 = vpack.c.b16 %v2555, %v2544
    %v3392 = vpack.c.b16 %v2556, %v2545
    %v3393 = vpack.c.b16 %v2557, %v2546
    %v3394 = vpack.c.b16 %v2558, %v2547
    %v3395 = vpack.c.b16 %v2559, %v2548
    %v3396 = vpack.c.b16 %v2560, %v2549
    %v3397 = vpack.c.b16 %v2561, %v2550
    %v3398 = vpack.c.b16 %v2573, %v2562
    %v3399 = vpack.c.b16 %v2574, %v2563
    %v3400 = vpack.c.b16 %v2575, %v2564
    %v3401 = vpack.c.b16 %v2576, %v2565
    %v3402 = vpack.c.b16 %v2577, %v2566
    %v3403 = vpack.c.b16 %v2578, %v2567
    %v3404 = vpack.c.b16 %v2579, %v2568
    %v3405 = vpack.c.b16 %v2580, %v2569
    %v3406 = vpack.c.b16 %v2581, %v2570
    %v3407 = vpack.c.b16 %v2582, %v2571
    %v3408 = vpack.c.b16 %v2583, %v2572
    %v3409 = vpack.c.b16 %v2595, %v2584
    %v3410 = vpack.c.b16 %v2596, %v2585
    %v3411 = vpack.c.b16 %v2597, %v2586
    %v3412 = vpack.c.b16 %v2598, %v2587
    %v3413 = vpack.c.b16 %v2599, %v2588
    %v3414 = vpack.c.b16 %v2600, %v2589
    %v3415 = vpack.c.b16 %v2601, %v2590
    %v3416 = vpack.c.b16 %v2602, %v2591
    %v3417 = vpack.c.b16 %v2603, %v2592
    %v3418 = vpack.c.b16 %v2604, %v2593
    %v3419 = vpack.c.b16 %v2605, %v2594
    %v3420 = vpack.c.b16 %v2617, %v2606
    %v3421 = vpack.c.b16 %v2618, %v2607
    %v3422 = vpack.c.b16 %v2619, %v2608
    %v3423 = vpack.c.b16 %v2620, %v2609
    %v3424 = vpack.c.b16 %v2621, %v2610
    %v3425 = vpack.c.b16 %v2622, %v2611
    %v3426 = vpack.c.b16 %v2623, %v2612
    %v3427 = vpack.c.b16 %v2624, %v2613
    %v3428 = vpack.c.b16 %v2625, %v2614
    %v3429 = vpack.c.b16 %v2626, %v2615
    %v3430 = vpack.c.b16 %v2627, %v2616
    %v3431 = vpack.c.b16 %v2639, %v2628
    %v3432 = vpack.c.b16 %v2640, %v2629
    %v3433 = vpack.c.b16 %v2641, %v2630
    %v3434 = vpack.c.b16 %v2642, %v2631
    %v3435 = vpack.c.b16 %v2643, %v2632
    %v3436 = vpack.c.b16 %v2644, %v2633
    %v3437 = vpack.c.b16 %v2645, %v2634
    %v3438 = vpack.c.b16 %v2646, %v2635
    %v3439 = vpack.c.b16 %v2647, %v2636
    %v3440 = vpack.c.b16 %v2648, %v2637
    %v3441 = vpack.c.b16 %v2649, %v2638
    %v3442 = vpack.c.b16 %v2661, %v2650
    %v3443 = vpack.c.b16 %v2662, %v2651
    %v3444 = vpack.c.b16 %v2663, %v2652
    %v3445 = vpack.c.b16 %v2664, %v2653
    %v3446 = vpack.c.b16 %v2665, %v2654
    %v3447 = vpack.c.b16 %v2666, %v2655
    %v3448 = vpack.c.b16 %v2667, %v2656
    %v3449 = vpack.c.b16 %v2668, %v2657
    %v3450 = vpack.c.b16 %v2669, %v2658
    %v3451 = vpack.c.b16 %v2670, %v2659
    %v3452 = vpack.c.b16 %v2671, %v2660
    %v3453 = vpack.c.b16 %v2683, %v2672
    %v3454 = vpack.c.b16 %v2684, %v2673
    %v3455 = vpack.c.b16 %v2685, %v2674
    %v3456 = vpack.c.b16 %v2686, %v2675
    %v3457 = vpack.c.b16 %v2687, %v2676
    %v3458 = vpack.c.b16 %v2688, %v2677
    %v3459 = vpack.c.b16 %v2689, %v2678
    %v3460 = vpack.c.b16 %v2690, %v2679
    %v3461 = vpack.c.b16 %v2691, %v2680
    %v3462 = vpack.c.b16 %v2692, %v2681
    %v3463 = vpack.c.b16 %v2693, %v2682
    %v3464 = vpack.c.b16 %v2705, %v2694
    %v3465 = vpack.c.b16 %v2706, %v2695
    %v3466 = vpack.c.b16 %v2707, %v2696
    %v3467 = vpack.c.b16 %v2708, %v2697
    %v3468 = vpack.c.b16 %v2709, %v2698
    %v3469 = vpack.c.b16 %v2710, %v2699
    %v3470 = vpack.c.b16 %v2711, %v2700
    %v3471 = vpack.c.b16 %v2712, %v2701
    %v3472 = vpack.c.b16 %v2713, %v2702
    %v3473 = vpack.c.b16 %v2714, %v2703
    %v3474 = vpack.c.b16 %v2715, %v2704
    %v3475 = vpack.c.b16 %v2727, %v2716
    %v3476 = vpack.c.b16 %v2728, %v2717
    %v3477 = vpack.c.b16 %v2729, %v2718
    %v3478 = vpack.c.b16 %v2730, %v2719
    %v3479 = vpack.c.b16 %v2731, %v2720
    %v3480 = vpack.c.b16 %v2732, %v2721
    %v3481 = vpack.c.b16 %v2733, %v2722
    %v3482 = vpack.c.b16 %v2734, %v2723
    %v3483 = vpack.c.b16 %v2735, %v2724
    %v3484 = vpack.c.b16 %v2736, %v2725
    %v3485 = vpack.c.b16 %v2737, %v2726
    %v3486 = vpack.c.b16 %v2749, %v2738
    %v3487 = vpack.c.b16 %v2750, %v2739
    %v3488 = vpack.c.b16 %v2751, %v2740
    %v3489 = vpack.c.b16 %v2752, %v2741
    %v3490 = vpack.c.b16 %v2753, %v2742
    %v3491 = vpack.c.b16 %v2754, %v2743
    %v3492 = vpack.c.b16 %v2755, %v2744
    %v3493 = vpack.c.b16 %v2756, %v2745
    %v3494 = vpack.c.b16 %v2757, %v2746
    %v3495 = vpack.c.b16 %v2758, %v2747
    %v3496 = vpack.c.b16 %v2759, %v2748
    %v3497 = vpack.c.b16 %v2771, %v2760
    %v3498 = vpack.c.b16 %v2772, %v2761
    %v3499 = vpack.c.b16 %v2773, %v2762
    %v3500 = vpack.c.b16 %v2774, %v2763
    %v3501 = vpack.c.b16 %v2775, %v2764
    %v3502 = vpack.c.b16 %v2776, %v2765
    %v3503 = vpack.c.b16 %v2777, %v2766
    %v3504 = vpack.c.b16 %v2778, %v2767
    %v3505 = vpack.c.b16 %v2779, %v2768
    %v3506 = vpack.c.b16 %v2780, %v2769
    %v3507 = vpack.c.b16 %v2781, %v2770
    %v3508 = vpack.c.b16 %v2793, %v2782
    %v3509 = vpack.c.b16 %v2794, %v2783
    %v3510 = vpack.c.b16 %v2795, %v2784
    %v3511 = vpack.c.b16 %v2796, %v2785
    %v3512 = vpack.c.b16 %v2797, %v2786
    %v3513 = vpack.c.b16 %v2798, %v2787
    %v3514 = vpack.c.b16 %v2799, %v2788
    %v3515 = vpack.c.b16 %v2800, %v2789
    %v3516 = vpack.c.b16 %v2801, %v2790
    %v3517 = vpack.c.b16 %v2802, %v2791
    %v3518 = vpack.c.b16 %v2803, %v2792
    %v3519 = vpack.c.b16 %v2815, %v2804
    %v3520 = vpack.c.b16 %v2816, %v2805
    %v3521 = vpack.c.b16 %v2817, %v2806
    %v3522 = vpack.c.b16 %v2818, %v2807
    %v3523 = vpack.c.b16 %v2819, %v2808
    %v3524 = vpack.c.b16 %v2820, %v2809
    %v3525 = vpack.c.b16 %v2821, %v2810
    %v3526 = vpack.c.b16 %v2822, %v2811
    %v3527 = vpack.c.b16 %v2823, %v2812
    %v3528 = vpack.c.b16 %v2824, %v2813
    %v3529 = vpack.c.b16 %v2825, %v2814
    %v3530 = vpack.c.b16 %v2837, %v2826
    %v3531 = vpack.c.b16 %v2838, %v2827
    %v3532 = vpack.c.b16 %v2839, %v2828
    %v3533 = vpack.c.b16 %v2840, %v2829
    %v3534 = vpack.c.b16 %v2841, %v2830
    %v3535 = vpack.c.b16 %v2842, %v2831
    %v3536 = vpack.c.b16 %v2843, %v2832
    %v3537 = vpack.c.b16 %v2844, %v2833
    %v3538 = vpack.c.b16 %v2845, %v2834
    %v3539 = vpack.c.b16 %v2846, %v2835
    %v3540 = vpack.c.b16 %v2847, %v2836
    %v3541 = vpack.c.b16 %v2859, %v2848
    %v3542 = vpack.c.b16 %v2860, %v2849
    %v3543 = vpack.c.b16 %v2861, %v2850
    %v3544 = vpack.c.b16 %v2862, %v2851
    %v3545 = vpack.c.b16 %v2863, %v2852
    %v3546 = vpack.c.b16 %v2864, %v2853
    %v3547 = vpack.c.b16 %v2865, %v2854
    %v3548 = vpack.c.b16 %v2866, %v2855
    %v3549 = vpack.c.b16 %v2867, %v2856
    %v3550 = vpack.c.b16 %v2868, %v2857
    %v3551 = vpack.c.b16 %v2869, %v2858
    %v3552 = vpack.c.b16 %v2881, %v2870
    %v3553 = vpack.c.b16 %v2882, %v2871
    %v3554 = vpack.c.b16 %v2883, %v2872
    %v3555 = vpack.c.b16 %v2884, %v2873
    %v3556 = vpack.c.b16 %v2885, %v2874
    %v3557 = vpack.c.b16 %v2886, %v2875
    %v3558 = vpack.c.b16 %v2887, %v2876
    %v3559 = vpack.c.b16 %v2888, %v2877
    %v3560 = vpack.c.b16 %v2889, %v2878
    %v3561 = vpack.c.b16 %v2890, %v2879
    %v3562 = vpack.c.b16 %v2891, %v2880
    %v3563 = vpack.c.b16 %v2903, %v2892
    %v3564 = vpack.c.b16 %v2904, %v2893
    %v3565 = vpack.c.b16 %v2905, %v2894
    %v3566 = vpack.c.b16 %v2906, %v2895
    %v3567 = vpack.c.b16 %v2907, %v2896
    %v3568 = vpack.c.b16 %v2908, %v2897
    %v3569 = vpack.c.b16 %v2909, %v2898
    %v3570 = vpack.c.b16 %v2910, %v2899
    %v3571 = vpack.c.b16 %v2911, %v2900
    %v3572 = vpack.c.b16 %v2912, %v2901
    %v3573 = vpack.c.b16 %v2913, %v2902
    %v3574 = vpack.c.b16 %v2925, %v2914
    %v3575 = vpack.c.b16 %v2926, %v2915
    %v3576 = vpack.c.b16 %v2927, %v2916
    %v3577 = vpack.c.b16 %v2928, %v2917
    %v3578 = vpack.c.b16 %v2929, %v2918
    %v3579 = vpack.c.b16 %v2930, %v2919
    %v3580 = vpack.c.b16 %v2931, %v2920
    %v3581 = vpack.c.b16 %v2932, %v2921
    %v3582 = vpack.c.b16 %v2933, %v2922
    %v3583 = vpack.c.b16 %v2934, %v2923
    %v3584 = vpack.c.b16 %v2935, %v2924
    %v3585 = vpack.c.b16 %v2947, %v2936
    %v3586 = vpack.c.b16 %v2948, %v2937
    %v3587 = vpack.c.b16 %v2949, %v2938
    %v3588 = vpack.c.b16 %v2950, %v2939
    %v3589 = vpack.c.b16 %v2951, %v2940
    %v3590 = vpack.c.b16 %v2952, %v2941
    %v3591 = vpack.c.b16 %v2953, %v2942
    %v3592 = vpack.c.b16 %v2954, %v2943
    %v3593 = vpack.c.b16 %v2955, %v2944
    %v3594 = vpack.c.b16 %v2956, %v2945
    %v3595 = vpack.c.b16 %v2957, %v2946
    %v3596 = vpack.c.b16 %v2969, %v2958
    %v3597 = vpack.c.b16 %v2970, %v2959
    %v3598 = vpack.c.b16 %v2971, %v2960
    %v3599 = vpack.c.b16 %v2972, %v2961
    %v3600 = vpack.c.b16 %v2973, %v2962
    %v3601 = vpack.c.b16 %v2974, %v2963
    %v3602 = vpack.c.b16 %v2975, %v2964
    %v3603 = vpack.c.b16 %v2976, %v2965
    %v3604 = vpack.c.b16 %v2977, %v2966
    %v3605 = vpack.c.b16 %v2978, %v2967
    %v3606 = vpack.c.b16 %v2979, %v2968
    %v3607 = vpack.c.b16 %v2991, %v2980
    %v3608 = vpack.c.b16 %v2992, %v2981
    %v3609 = vpack.c.b16 %v2993, %v2982
    %v3610 = vpack.c.b16 %v2994, %v2983
    %v3611 = vpack.c.b16 %v2995, %v2984
    %v3612 = vpack.c.b16 %v2996, %v2985
    %v3613 = vpack.c.b16 %v2997, %v2986
    %v3614 = vpack.c.b16 %v2998, %v2987
    %v3615 = vpack.c.b16 %v2999, %v2988
    %v3616 = vpack.c.b16 %v3000, %v2989
    %v3617 = vpack.c.b16 %v3001, %v2990
    %v3618 = vpack.c.b16 %v3013, %v3002
    %v3619 = vpack.c.b16 %v3014, %v3003
    %v3620 = vpack.c.b16 %v3015, %v3004
    %v3621 = vpack.c.b16 %v3016, %v3005
    %v3622 = vpack.c.b16 %v3017, %v3006
    %v3623 = vpack.c.b16 %v3018, %v3007
    %v3624 = vpack.c.b16 %v3019, %v3008
    %v3625 = vpack.c.b16 %v3020, %v3009
    %v3626 = vpack.c.b16 %v3021, %v3010
    %v3627 = vpack.c.b16 %v3022, %v3011
    %v3628 = vpack.c.b16 %v3023, %v3012
    %v3629 = vpack.c.b16 %v3035, %v3024
    %v3630 = vpack.c.b16 %v3036, %v3025
    %v3631 = vpack.c.b16 %v3037, %v3026
    %v3632 = vpack.c.b16 %v3038, %v3027
    %v3633 = vpack.c.b16 %v3039, %v3028
    %v3634 = vpack.c.b16 %v3040, %v3029
    %v3635 = vpack.c.b16 %v3041, %v3030
    %v3636 = vpack.c.b16 %v3042, %v3031
    %v3637 = vpack.c.b16 %v3043, %v3032
    %v3638 = vpack.c.b16 %v3044, %v3033
    %v3639 = vpack.c.b16 %v3045, %v3034
    %v3640 = vpack.c.b16 %v3057, %v3046
    %v3641 = vpack.c.b16 %v3058, %v3047
    %v3642 = vpack.c.b16 %v3059, %v3048
    %v3643 = vpack.c.b16 %v3060, %v3049
    %v3644 = vpack.c.b16 %v3061, %v3050
    %v3645 = vpack.c.b16 %v3062, %v3051
    %v3646 = vpack.c.b16 %v3063, %v3052
    %v3647 = vpack.c.b16 %v3064, %v3053
    %v3648 = vpack.c.b16 %v3065, %v3054
    %v3649 = vpack.c.b16 %v3066, %v3055
    %v3650 = vpack.c.b16 %v3067, %v3056
    %v3651 = vpack.c.b16 %v3079, %v3068
    %v3652 = vpack.c.b16 %v3080, %v3069
    %v3653 = vpack.c.b16 %v3081, %v3070
    %v3654 = vpack.c.b16 %v3082, %v3071
    %v3655 = vpack.c.b16 %v3083, %v3072
    %v3656 = vpack.c.b16 %v3084, %v3073
    %v3657 = vpack.c.b16 %v3085, %v3074
    %v3658 = vpack.c.b16 %v3086, %v3075
    %v3659 = vpack.c.b16 %v3087, %v3076
    %v3660 = vpack.c.b16 %v3088, %v3077
    %v3661 = vpack.c.b16 %v3089, %v3078
    %v3662 = vpack.c.b16 %v3101, %v3090
    %v3663 = vpack.c.b16 %v3102, %v3091
    %v3664 = vpack.c.b16 %v3103, %v3092
    %v3665 = vpack.c.b16 %v3104, %v3093
    %v3666 = vpack.c.b16 %v3105, %v3094
    %v3667 = vpack.c.b16 %v3106, %v3095
    %v3668 = vpack.c.b16 %v3107, %v3096
    %v3669 = vpack.c.b16 %v3108, %v3097
    %v3670 = vpack.c.b16 %v3109, %v3098
    %v3671 = vpack.c.b16 %v3110, %v3099
    %v3672 = vpack.c.b16 %v3111, %v3100
    %v3673 = vpack.c.b16 %v3123, %v3112
    %v3674 = vpack.c.b16 %v3124, %v3113
    %v3675 = vpack.c.b16 %v3125, %v3114
    %v3676 = vpack.c.b16 %v3126, %v3115
    %v3677 = vpack.c.b16 %v3127, %v3116
    %v3678 = vpack.c.b16 %v3128, %v3117
    %v3679 = vpack.c.b16 %v3129, %v3118
    %v3680 = vpack.c.b16 %v3130, %v3119
    %v3681 = vpack.c.b16 %v3131, %v3120
    %v3682 = vpack.c.b16 %v3132, %v3121
    %v3683 = vpack.c.b16 %v3133, %v3122
    %v3684 = vpack.c.b16 %v3145, %v3134
    %v3685 = vpack.c.b16 %v3146, %v3135
    %v3686 = vpack.c.b16 %v3147, %v3136
    %v3687 = vpack.c.b16 %v3148, %v3137
    %v3688 = vpack.c.b16 %v3149, %v3138
    %v3689 = vpack.c.b16 %v3150, %v3139
    %v3690 = vpack.c.b16 %v3151, %v3140
    %v3691 = vpack.c.b16 %v3152, %v3141
    %v3692 = vpack.c.b16 %v3153, %v3142
    %v3693 = vpack.c.b16 %v3154, %v3143
    %v3694 = vpack.c.b16 %v3155, %v3144
    %v3695 = vpack.c.b16 %v3167, %v3156
    %v3696 = vpack.c.b16 %v3168, %v3157
    %v3697 = vpack.c.b16 %v3169, %v3158
    %v3698 = vpack.c.b16 %v3170, %v3159
    %v3699 = vpack.c.b16 %v3171, %v3160
    %v3700 = vpack.c.b16 %v3172, %v3161
    %v3701 = vpack.c.b16 %v3173, %v3162
    %v3702 = vpack.c.b16 %v3174, %v3163
    %v3703 = vpack.c.b16 %v3175, %v3164
    %v3704 = vpack.c.b16 %v3176, %v3165
    %v3705 = vpack.c.b16 %v3177, %v3166
    %v3706 = vpack.c.b16 %v3189, %v3178
    %v3707 = vpack.c.b16 %v3190, %v3179
    %v3708 = vpack.c.b16 %v3191, %v3180
    %v3709 = vpack.c.b16 %v3192, %v3181
    %v3710 = vpack.c.b16 %v3193, %v3182
    %v3711 = vpack.c.b16 %v3194, %v3183
    %v3712 = vpack.c.b16 %v3195, %v3184
    %v3713 = vpack.c.b16 %v3196, %v3185
    %v3714 = vpack.c.b16 %v3197, %v3186
    %v3715 = vpack.c.b16 %v3198, %v3187
    %v3716 = vpack.c.b16 %v3199, %v3188
    %v3717 = vpack.c.b16 %v3211, %v3200
    %v3718 = vpack.c.b16 %v3212, %v3201
    %v3719 = vpack.c.b16 %v3213, %v3202
    %v3720 = vpack.c.b16 %v3214, %v3203
    %v3721 = vpack.c.b16 %v3215, %v3204
    %v3722 = vpack.c.b16 %v3216, %v3205
    %v3723 = vpack.c.b16 %v3217, %v3206
    %v3724 = vpack.c.b16 %v3218, %v3207
    %v3725 = vpack.c.b16 %v3219, %v3208
    %v3726 = vpack.c.b16 %v3220, %v3209
    %v3727 = vpack.c.b16 %v3221, %v3210
    %v3728 = vpack.c.b16 %v3233, %v3222
    %v3729 = vpack.c.b16 %v3234, %v3223
    %v3730 = vpack.c.b16 %v3235, %v3224
    %v3731 = vpack.c.b16 %v3236, %v3225
    %v3732 = vpack.c.b16 %v3237, %v3226
    %v3733 = vpack.c.b16 %v3238, %v3227
    %v3734 = vpack.c.b16 %v3239, %v3228
    %v3735 = vpack.c.b16 %v3240, %v3229
    %v3736 = vpack.c.b16 %v3241, %v3230
    %v3737 = vpack.c.b16 %v3242, %v3231
    %v3738 = vpack.c.b16 %v3243, %v3232
    %v3739 = vpack.c.b16 %v3255, %v3244
    %v3740 = vpack.c.b16 %v3256, %v3245
    %v3741 = vpack.c.b16 %v3257, %v3246
    %v3742 = vpack.c.b16 %v3258, %v3247
    %v3743 = vpack.c.b16 %v3259, %v3248
    %v3744 = vpack.c.b16 %v3260, %v3249
    %v3745 = vpack.c.b16 %v3261, %v3250
    %v3746 = vpack.c.b16 %v3262, %v3251
    %v3747 = vpack.c.b16 %v3263, %v3252
    %v3748 = vpack.c.b16 %v3264, %v3253
    %v3749 = vpack.c.b16 %v3265, %v3254
    %v3750 = vpack.c.b16 %v3277, %v3266
    %v3751 = vpack.c.b16 %v3278, %v3267
    %v3752 = vpack.c.b16 %v3279, %v3268
    %v3753 = vpack.c.b16 %v3280, %v3269
    %v3754 = vpack.c.b16 %v3281, %v3270
    %v3755 = vpack.c.b16 %v3282, %v3271
    %v3756 = vpack.c.b16 %v3283, %v3272
    %v3757 = vpack.c.b16 %v3284, %v3273
    %v3758 = vpack.c.b16 %v3285, %v3274
    %v3759 = vpack.c.b16 %v3286, %v3275
    %v3760 = vpack.c.b16 %v3287, %v3276
    %v3761 = vpack.c.b16 %v3299, %v3288
    %v3762 = vpack.c.b16 %v3300, %v3289
    %v3763 = vpack.c.b16 %v3301, %v3290
    %v3764 = vpack.c.b16 %v3302, %v3291
    %v3765 = vpack.c.b16 %v3303, %v3292
    %v3766 = vpack.c.b16 %v3304, %v3293
    %v3767 = vpack.c.b16 %v3305, %v3294
    %v3768 = vpack.c.b16 %v3306, %v3295
    %v3769 = vpack.c.b16 %v3307, %v3296
    %v3770 = vpack.c.b16 %v3308, %v3297
    %v3771 = vpack.c.b16 %v3309, %v3298
    %v3772 = vpack.c.b16 %v3321, %v3310
    %v3773 = vpack.c.b16 %v3322, %v3311
    %v3774 = vpack.c.b16 %v3323, %v3312
    %v3775 = vpack.c.b16 %v3324, %v3313
    %v3776 = vpack.c.b16 %v3325, %v3314
    %v3777 = vpack.c.b16 %v3326, %v3315
    %v3778 = vpack.c.b16 %v3327, %v3316
    %v3779 = vpack.c.b16 %v3328, %v3317
    %v3780 = vpack.c.b16 %v3329, %v3318
    %v3781 = vpack.c.b16 %v3330, %v3319
    %v3782 = vpack.c.b16 %v3331, %v3320
    %v3783 = vpack.c.b16 %v3343, %v3332
    %v3784 = vpack.c.b16 %v3344, %v3333
    %v3785 = vpack.c.b16 %v3345, %v3334
    %v3786 = vpack.c.b16 %v3346, %v3335
    %v3787 = vpack.c.b16 %v3347, %v3336
    %v3788 = vpack.c.b16 %v3348, %v3337
    %v3789 = vpack.c.b16 %v3349, %v3338
    %v3790 = vpack.c.b16 %v3350, %v3339
    %v3791 = vpack.c.b16 %v3351, %v3340
    %v3792 = vpack.c.b16 %v3352, %v3341
    %v3793 = vpack.c.b16 %v3353, %v3342
    %4234 = vmatprep.subr.bf16.mxu0 %v3355
    %4235 = vmatpush1.bf16.msra.mxu0 %v3354
    %4236 = vmatprep.subr.bf16.mxu0 %v3366
    %4237 = vmatpush1.bf16.msra.mxu0 %v3365
    %4238 = vmatprep.subr.bf16.mxu0 %v3377
    %4239 = vmatpush1.bf16.msra.mxu0 %v3376
    %4240 = vmatprep.subr.bf16.mxu0 %v3388
    %4241 = vmatpush1.bf16.msra.mxu0 %v3387
    %4242 = vmatprep.subr.bf16.mxu0 %v3399
    %4243 = vmatpush1.bf16.msra.mxu0 %v3398
    %4244 = vmatprep.subr.bf16.mxu0 %v3410
    %4245 = vmatpush1.bf16.msra.mxu0 %v3409
    %4246 = vmatprep.subr.bf16.mxu0 %v3421
    %4247 = vmatpush1.bf16.msra.mxu0 %v3420
    %4248 = vmatprep.subr.bf16.mxu0 %v3432
    %4249 = vmatpush1.bf16.msra.mxu0 %v3431
    %4250 = vmatprep.subr.bf16.mxu0 %v3443
    %4251 = vmatpush1.bf16.msra.mxu0 %v3442
    %4252 = vmatprep.subr.bf16.mxu0 %v3454
    %4253 = vmatpush1.bf16.msra.mxu0 %v3453
    %4254 = vmatprep.subr.bf16.mxu0 %v3465
    %4255 = vmatpush1.bf16.msra.mxu0 %v3464
    %4256 = vmatprep.subr.bf16.mxu0 %v3476
    %4257 = vmatpush1.bf16.msra.mxu0 %v3475
    %4258 = vmatprep.subr.bf16.mxu0 %v3487
    %4259 = vmatpush1.bf16.msra.mxu0 %v3486
    %4260 = vmatprep.subr.bf16.mxu0 %v3498
    %4261 = vmatpush1.bf16.msra.mxu0 %v3497
    %4262 = vmatprep.subr.bf16.mxu0 %v3509
    %4263 = vmatpush1.bf16.msra.mxu0 %v3508
    %4264 = vmatprep.subr.bf16.mxu0 %v3520
    %4265 = vmatpush1.bf16.msra.mxu0 %v3519
    %4266 = vmatprep.mubr.bf16.mxu0 %v1451
    %4267 = vmatmul.mubr.bf16.gmra.mrb[0].mxu0 %v1450
    %v4268 = vpop.f32.mrb[0].mxu0
    %v4269 = vadd.f32 %v1942, %v4268
    %v4270 = vpop.f32.mrb[0].mxu0
    %v4271 = vadd.f32 %v1946, %v4270
    %v4272 = vpop.f32.mrb[0].mxu0
    %v4273 = vpop.f32.mrb[0].mxu0
    %4274 = vdwg.mxu0
    %4275 = vmatprep.subr.bf16.mxu0 %v3531
    %4276 = vmatpush1.bf16.msra.mxu0 %v3530
    %4277 = vmatprep.subr.bf16.mxu0 %v3542
    %4278 = vmatpush1.bf16.msra.mxu0 %v3541
    %4279 = vmatprep.subr.bf16.mxu0 %v3553
    %4280 = vmatpush1.bf16.msra.mxu0 %v3552
    %4281 = vmatprep.subr.bf16.mxu0 %v3564
    %4282 = vmatpush1.bf16.msra.mxu0 %v3563
    %4283 = vmatprep.subr.bf16.mxu0 %v3575
    %4284 = vmatpush1.bf16.msra.mxu0 %v3574
    %4285 = vmatprep.subr.bf16.mxu0 %v3586
    %4286 = vmatpush1.bf16.msra.mxu0 %v3585
    %4287 = vmatprep.subr.bf16.mxu0 %v3597
    %4288 = vmatpush1.bf16.msra.mxu0 %v3596
    %4289 = vmatprep.subr.bf16.mxu0 %v3608
    %4290 = vmatpush1.bf16.msra.mxu0 %v3607
    %4291 = vmatprep.subr.bf16.mxu0 %v3619
    %4292 = vmatpush1.bf16.msra.mxu0 %v3618
    %4293 = vmatprep.subr.bf16.mxu0 %v3630
    %4294 = vmatpush1.bf16.msra.mxu0 %v3629
    %4295 = vmatprep.subr.bf16.mxu0 %v3641
    %4296 = vmatpush1.bf16.msra.mxu0 %v3640
    %4297 = vmatprep.subr.bf16.mxu0 %v3652
    %4298 = vmatpush1.bf16.msra.mxu0 %v3651
    %4299 = vmatprep.subr.bf16.mxu0 %v3663
    %4300 = vmatpush1.bf16.msra.mxu0 %v3662
    %4301 = vmatprep.subr.bf16.mxu0 %v3674
    %4302 = vmatpush1.bf16.msra.mxu0 %v3673
    %4303 = vmatprep.subr.bf16.mxu0 %v3685
    %4304 = vmatpush1.bf16.msra.mxu0 %v3684
    %4305 = vmatprep.subr.bf16.mxu0 %v3696
    %4306 = vmatpush1.bf16.msra.mxu0 %v3695
    %4307 = vmatprep.mubr.bf16.mxu0 %v1453
    %4308 = vmatmul.mubr.bf16.gmra.mrb[0].mxu0 %v1452
    %v4309 = vpop.f32.mrb[0].mxu0
    %v4310 = vadd.f32 %v4269, %v4309
    %v4311 = vpop.f32.mrb[0].mxu0
    %v4312 = vadd.f32 %v4271, %v4311
    %v4313 = vpop.f32.mrb[0].mxu0
    %v4314 = vpop.f32.mrb[0].mxu0
    %4315 = vdwg.mxu0
    %4316 = vmatprep.subr.bf16.mxu0 %v3707
    %4317 = vmatpush1.bf16.msra.mxu0 %v3706
    %4318 = vmatprep.subr.bf16.mxu0 %v3718
    %4319 = vmatpush1.bf16.msra.mxu0 %v3717
    %4320 = vmatprep.subr.bf16.mxu0 %v3729
    %4321 = vmatpush1.bf16.msra.mxu0 %v3728
    %4322 = vmatprep.subr.bf16.mxu0 %v3740
    %4323 = vmatpush1.bf16.msra.mxu0 %v3739
    %4324 = vmatprep.subr.bf16.mxu0 %v3751
    %4325 = vmatpush1.bf16.msra.mxu0 %v3750
    %4326 = vmatprep.subr.bf16.mxu0 %v3762
    %4327 = vmatpush1.bf16.msra.mxu0 %v3761
    %4328 = vmatprep.subr.bf16.mxu0 %v3773
    %4329 = vmatpush1.bf16.msra.mxu0 %v3772
    %4330 = vmatprep.subr.bf16.mxu0 %v3784
    %4331 = vmatpush1.bf16.msra.mxu0 %v3783
    %4332 = vmatprep.subr.bf16.mxu0 0
    %4333 = vmatpush1.bf16.msra.mxu0 0
    %4334 = vmatprep.subr.bf16.mxu0 0
    %4335 = vmatpush1.bf16.msra.mxu0 0
    %4336 = vmatprep.subr.bf16.mxu0 0
    %4337 = vmatpush1.bf16.msra.mxu0 0
    %4338 = vmatprep.subr.bf16.mxu0 0
    %4339 = vmatpush1.bf16.msra.mxu0 0
    %4340 = vmatprep.subr.bf16.mxu0 0
    %4341 = vmatpush1.bf16.msra.mxu0 0
    %4342 = vmatprep.subr.bf16.mxu0 0
    %4343 = vmatpush1.bf16.msra.mxu0 0
    %4344 = vmatprep.subr.bf16.mxu0 0
    %4345 = vmatpush1.bf16.msra.mxu0 0
    %4346 = vmatprep.subr.bf16.mxu0 0
    %4347 = vmatpush1.bf16.msra.mxu0 0
    %4348 = vmatprep.mubr.bf16.mxu0 0
    %4349 = vmatmul.mubr.bf16.gmra.mrb[0].mxu0 %v1454
    %v4350 = vpop.f32.mrb[0].mxu0
    %v4351 = vadd.f32 %v4310, %v4350
    %v4352 = vpop.f32.mrb[0].mxu0
    %v4353 = vadd.f32 %v4312, %v4352
    %v4354 = vpop.f32.mrb[0].mxu0
    %v4355 = vpop.f32.mrb[0].mxu0
    %4356 = vdwg.mxu0
    %4357 = vmatprep.subr.bf16.mxu0 %v3357
    %4358 = vmatpush1.bf16.msra.mxu0 %v3356
    %4359 = vmatprep.subr.bf16.mxu0 %v3368
    %4360 = vmatpush1.bf16.msra.mxu0 %v3367
    %4361 = vmatprep.subr.bf16.mxu0 %v3379
    %4362 = vmatpush1.bf16.msra.mxu0 %v3378
    %4363 = vmatprep.subr.bf16.mxu0 %v3390
    %4364 = vmatpush1.bf16.msra.mxu0 %v3389
    %4365 = vmatprep.subr.bf16.mxu0 %v3401
    %4366 = vmatpush1.bf16.msra.mxu0 %v3400
    %4367 = vmatprep.subr.bf16.mxu0 %v3412
    %4368 = vmatpush1.bf16.msra.mxu0 %v3411
    %4369 = vmatprep.subr.bf16.mxu0 %v3423
    %4370 = vmatpush1.bf16.msra.mxu0 %v3422
    %4371 = vmatprep.subr.bf16.mxu0 %v3434
    %4372 = vmatpush1.bf16.msra.mxu0 %v3433
    %4373 = vmatprep.subr.bf16.mxu0 %v3445
    %4374 = vmatpush1.bf16.msra.mxu0 %v3444
    %4375 = vmatprep.subr.bf16.mxu0 %v3456
    %4376 = vmatpush1.bf16.msra.mxu0 %v3455
    %4377 = vmatprep.subr.bf16.mxu0 %v3467
    %4378 = vmatpush1.bf16.msra.mxu0 %v3466
    %4379 = vmatprep.subr.bf16.mxu0 %v3478
    %4380 = vmatpush1.bf16.msra.mxu0 %v3477
    %4381 = vmatprep.subr.bf16.mxu0 %v3489
    %4382 = vmatpush1.bf16.msra.mxu0 %v3488
    %4383 = vmatprep.subr.bf16.mxu0 %v3500
    %4384 = vmatpush1.bf16.msra.mxu0 %v3499
    %4385 = vmatprep.subr.bf16.mxu0 %v3511
    %4386 = vmatpush1.bf16.msra.mxu0 %v3510
    %4387 = vmatprep.subr.bf16.mxu0 %v3522
    %4388 = vmatpush1.bf16.msra.mxu0 %v3521
    %4389 = vmatprep.mubr.bf16.mxu0 %v1451
    %4390 = vmatmul.mubr.bf16.gmra.mrb[0].mxu0 %v1450
    %v4391 = vpop.f32.mrb[0].mxu0
    %v4392 = vadd.f32 %v1950, %v4391
    %v4393 = vpop.f32.mrb[0].mxu0
    %v4394 = vadd.f32 %v1954, %v4393
    %v4395 = vpop.f32.mrb[0].mxu0
    %v4396 = vpop.f32.mrb[0].mxu0
    %4397 = vdwg.mxu0
    %4398 = vmatprep.subr.bf16.mxu0 %v3533
    %4399 = vmatpush1.bf16.msra.mxu0 %v3532
    %4400 = vmatprep.subr.bf16.mxu0 %v3544
    %4401 = vmatpush1.bf16.msra.mxu0 %v3543
    %4402 = vmatprep.subr.bf16.mxu0 %v3555
    %4403 = vmatpush1.bf16.msra.mxu0 %v3554
    %4404 = vmatprep.subr.bf16.mxu0 %v3566
    %4405 = vmatpush1.bf16.msra.mxu0 %v3565
    %4406 = vmatprep.subr.bf16.mxu0 %v3577
    %4407 = vmatpush1.bf16.msra.mxu0 %v3576
    %4408 = vmatprep.subr.bf16.mxu0 %v3588
    %4409 = vmatpush1.bf16.msra.mxu0 %v3587
    %4410 = vmatprep.subr.bf16.mxu0 %v3599
    %4411 = vmatpush1.bf16.msra.mxu0 %v3598
    %4412 = vmatprep.subr.bf16.mxu0 %v3610
    %4413 = vmatpush1.bf16.msra.mxu0 %v3609
    %4414 = vmatprep.subr.bf16.mxu0 %v3621
    %4415 = vmatpush1.bf16.msra.mxu0 %v3620
    %4416 = vmatprep.subr.bf16.mxu0 %v3632
    %4417 = vmatpush1.bf16.msra.mxu0 %v3631
    %4418 = vmatprep.subr.bf16.mxu0 %v3643
    %4419 = vmatpush1.bf16.msra.mxu0 %v3642
    %4420 = vmatprep.subr.bf16.mxu0 %v3654
    %4421 = vmatpush1.bf16.msra.mxu0 %v3653
    %4422 = vmatprep.subr.bf16.mxu0 %v3665
    %4423 = vmatpush1.bf16.msra.mxu0 %v3664
    %4424 = vmatprep.subr.bf16.mxu0 %v3676
    %4425 = vmatpush1.bf16.msra.mxu0 %v3675
    %4426 = vmatprep.subr.bf16.mxu0 %v3687
    %4427 = vmatpush1.bf16.msra.mxu0 %v3686
    %4428 = vmatprep.subr.bf16.mxu0 %v3698
    %4429 = vmatpush1.bf16.msra.mxu0 %v3697
    %4430 = vmatprep.mubr.bf16.mxu0 %v1453
    %4431 = vmatmul.mubr.bf16.gmra.mrb[0].mxu0 %v1452
    %v4432 = vpop.f32.mrb[0].mxu0
    %v4433 = vadd.f32 %v4392, %v4432
    %v4434 = vpop.f32.mrb[0].mxu0
    %v4435 = vadd.f32 %v4394, %v4434
    %v4436 = vpop.f32.mrb[0].mxu0
    %v4437 = vpop.f32.mrb[0].mxu0
    %4438 = vdwg.mxu0
    %4439 = vmatprep.subr.bf16.mxu0 %v3709
    %4440 = vmatpush1.bf16.msra.mxu0 %v3708
    %4441 = vmatprep.subr.bf16.mxu0 %v3720
    %4442 = vmatpush1.bf16.msra.mxu0 %v3719
    %4443 = vmatprep.subr.bf16.mxu0 %v3731
    %4444 = vmatpush1.bf16.msra.mxu0 %v3730
    %4445 = vmatprep.subr.bf16.mxu0 %v3742
    %4446 = vmatpush1.bf16.msra.mxu0 %v3741
    %4447 = vmatprep.subr.bf16.mxu0 %v3753
    %4448 = vmatpush1.bf16.msra.mxu0 %v3752
    %4449 = vmatprep.subr.bf16.mxu0 %v3764
    %4450 = vmatpush1.bf16.msra.mxu0 %v3763
    %4451 = vmatprep.subr.bf16.mxu0 %v3775
    %4452 = vmatpush1.bf16.msra.mxu0 %v3774
    %4453 = vmatprep.subr.bf16.mxu0 %v3786
    %4454 = vmatpush1.bf16.msra.mxu0 %v3785
    %4455 = vmatprep.subr.bf16.mxu0 0
    %4456 = vmatpush1.bf16.msra.mxu0 0
    %4457 = vmatprep.subr.bf16.mxu0 0
    %4458 = vmatpush1.bf16.msra.mxu0 0
    %4459 = vmatprep.subr.bf16.mxu0 0
    %4460 = vmatpush1.bf16.msra.mxu0 0
    %4461 = vmatprep.subr.bf16.mxu0 0
    %4462 = vmatpush1.bf16.msra.mxu0 0
    %4463 = vmatprep.subr.bf16.mxu0 0
    %4464 = vmatpush1.bf16.msra.mxu0 0
    %4465 = vmatprep.subr.bf16.mxu0 0
    %4466 = vmatpush1.bf16.msra.mxu0 0
    %4467 = vmatprep.subr.bf16.mxu0 0
    %4468 = vmatpush1.bf16.msra.mxu0 0
    %4469 = vmatprep.subr.bf16.mxu0 0
    %4470 = vmatpush1.bf16.msra.mxu0 0
    %4471 = vmatprep.mubr.bf16.mxu0 0
    %4472 = vmatmul.mubr.bf16.gmra.mrb[0].mxu0 %v1454
    %v4473 = vpop.f32.mrb[0].mxu0
    %v4474 = vadd.f32 %v4433, %v4473
    %v4475 = vpop.f32.mrb[0].mxu0
    %v4476 = vadd.f32 %v4435, %v4475
    %v4477 = vpop.f32.mrb[0].mxu0
    %v4478 = vpop.f32.mrb[0].mxu0
    %4479 = vdwg.mxu0
    %4480 = vmatprep.subr.bf16.mxu0 %v3359
    %4481 = vmatpush1.bf16.msra.mxu0 %v3358
    %4482 = vmatprep.subr.bf16.mxu0 %v3370
    %4483 = vmatpush1.bf16.msra.mxu0 %v3369
    %4484 = vmatprep.subr.bf16.mxu0 %v3381
    %4485 = vmatpush1.bf16.msra.mxu0 %v3380
    %4486 = vmatprep.subr.bf16.mxu0 %v3392
    %4487 = vmatpush1.bf16.msra.mxu0 %v3391
    %4488 = vmatprep.subr.bf16.mxu0 %v3403
    %4489 = vmatpush1.bf16.msra.mxu0 %v3402
    %4490 = vmatprep.subr.bf16.mxu0 %v3414
    %4491 = vmatpush1.bf16.msra.mxu0 %v3413
    %4492 = vmatprep.subr.bf16.mxu0 %v3425
    %4493 = vmatpush1.bf16.msra.mxu0 %v3424
    %4494 = vmatprep.subr.bf16.mxu0 %v3436
    %4495 = vmatpush1.bf16.msra.mxu0 %v3435
    %4496 = vmatprep.subr.bf16.mxu0 %v3447
    %4497 = vmatpush1.bf16.msra.mxu0 %v3446
    %4498 = vmatprep.subr.bf16.mxu0 %v3458
    %4499 = vmatpush1.bf16.msra.mxu0 %v3457
    %4500 = vmatprep.subr.bf16.mxu0 %v3469
    %4501 = vmatpush1.bf16.msra.mxu0 %v3468
    %4502 = vmatprep.subr.bf16.mxu0 %v3480
    %4503 = vmatpush1.bf16.msra.mxu0 %v3479
    %4504 = vmatprep.subr.bf16.mxu0 %v3491
    %4505 = vmatpush1.bf16.msra.mxu0 %v3490
    %4506 = vmatprep.subr.bf16.mxu0 %v3502
    %4507 = vmatpush1.bf16.msra.mxu0 %v3501
    %4508 = vmatprep.subr.bf16.mxu0 %v3513
    %4509 = vmatpush1.bf16.msra.mxu0 %v3512
    %4510 = vmatprep.subr.bf16.mxu0 %v3524
    %4511 = vmatpush1.bf16.msra.mxu0 %v3523
    %4512 = vmatprep.mubr.bf16.mxu0 %v1451
    %4513 = vmatmul.mubr.bf16.gmra.mrb[0].mxu0 %v1450
    %v4514 = vpop.f32.mrb[0].mxu0
    %v4515 = vadd.f32 %v1958, %v4514
    %v4516 = vpop.f32.mrb[0].mxu0
    %v4517 = vadd.f32 %v1962, %v4516
    %v4518 = vpop.f32.mrb[0].mxu0
    %v4519 = vpop.f32.mrb[0].mxu0
    %4520 = vdwg.mxu0
    %4521 = vmatprep.subr.bf16.mxu0 %v3535
    %4522 = vmatpush1.bf16.msra.mxu0 %v3534
    %4523 = vmatprep.subr.bf16.mxu0 %v3546
    %4524 = vmatpush1.bf16.msra.mxu0 %v3545
    %4525 = vmatprep.subr.bf16.mxu0 %v3557
    %4526 = vmatpush1.bf16.msra.mxu0 %v3556
    %4527 = vmatprep.subr.bf16.mxu0 %v3568
    %4528 = vmatpush1.bf16.msra.mxu0 %v3567
    %4529 = vmatprep.subr.bf16.mxu0 %v3579
    %4530 = vmatpush1.bf16.msra.mxu0 %v3578
    %4531 = vmatprep.subr.bf16.mxu0 %v3590
    %4532 = vmatpush1.bf16.msra.mxu0 %v3589
    %4533 = vmatprep.subr.bf16.mxu0 %v3601
    %4534 = vmatpush1.bf16.msra.mxu0 %v3600
    %4535 = vmatprep.subr.bf16.mxu0 %v3612
    %4536 = vmatpush1.bf16.msra.mxu0 %v3611
    %4537 = vmatprep.subr.bf16.mxu0 %v3623
    %4538 = vmatpush1.bf16.msra.mxu0 %v3622
    %4539 = vmatprep.subr.bf16.mxu0 %v3634
    %4540 = vmatpush1.bf16.msra.mxu0 %v3633
    %4541 = vmatprep.subr.bf16.mxu0 %v3645
    %4542 = vmatpush1.bf16.msra.mxu0 %v3644
    %4543 = vmatprep.subr.bf16.mxu0 %v3656
    %4544 = vmatpush1.bf16.msra.mxu0 %v3655
    %4545 = vmatprep.subr.bf16.mxu0 %v3667
    %4546 = vmatpush1.bf16.msra.mxu0 %v3666
    %4547 = vmatprep.subr.bf16.mxu0 %v3678
    %4548 = vmatpush1.bf16.msra.mxu0 %v3677
    %4549 = vmatprep.subr.bf16.mxu0 %v3689
    %4550 = vmatpush1.bf16.msra.mxu0 %v3688
    %4551 = vmatprep.subr.bf16.mxu0 %v3700
    %4552 = vmatpush1.bf16.msra.mxu0 %v3699
    %4553 = vmatprep.mubr.bf16.mxu0 %v1453
    %4554 = vmatmul.mubr.bf16.gmra.mrb[0].mxu0 %v1452
    %v4555 = vpop.f32.mrb[0].mxu0
    %v4556 = vadd.f32 %v4515, %v4555
    %v4557 = vpop.f32.mrb[0].mxu0
    %v4558 = vadd.f32 %v4517, %v4557
    %v4559 = vpop.f32.mrb[0].mxu0
    %v4560 = vpop.f32.mrb[0].mxu0
    %4561 = vdwg.mxu0
    %4562 = vmatprep.subr.bf16.mxu0 %v3711
    %4563 = vmatpush1.bf16.msra.mxu0 %v3710
    %4564 = vmatprep.subr.bf16.mxu0 %v3722
    %4565 = vmatpush1.bf16.msra.mxu0 %v3721
    %4566 = vmatprep.subr.bf16.mxu0 %v3733
    %4567 = vmatpush1.bf16.msra.mxu0 %v3732
    %4568 = vmatprep.subr.bf16.mxu0 %v3744
    %4569 = vmatpush1.bf16.msra.mxu0 %v3743
    %4570 = vmatprep.subr.bf16.mxu0 %v3755
    %4571 = vmatpush1.bf16.msra.mxu0 %v3754
    %4572 = vmatprep.subr.bf16.mxu0 %v3766
    %4573 = vmatpush1.bf16.msra.mxu0 %v3765
    %4574 = vmatprep.subr.bf16.mxu0 %v3777
    %4575 = vmatpush1.bf16.msra.mxu0 %v3776
    %4576 = vmatprep.subr.bf16.mxu0 %v3788
    %4577 = vmatpush1.bf16.msra.mxu0 %v3787
    %4578 = vmatprep.subr.bf16.mxu0 0
    %4579 = vmatpush1.bf16.msra.mxu0 0
    %4580 = vmatprep.subr.bf16.mxu0 0
    %4581 = vmatpush1.bf16.msra.mxu0 0
    %4582 = vmatprep.subr.bf16.mxu0 0
    %4583 = vmatpush1.bf16.msra.mxu0 0
    %4584 = vmatprep.subr.bf16.mxu0 0
    %4585 = vmatpush1.bf16.msra.mxu0 0
    %4586 = vmatprep.subr.bf16.mxu0 0
    %4587 = vmatpush1.bf16.msra.mxu0 0
    %4588 = vmatprep.subr.bf16.mxu0 0
    %4589 = vmatpush1.bf16.msra.mxu0 0
    %4590 = vmatprep.subr.bf16.mxu0 0
    %4591 = vmatpush1.bf16.msra.mxu0 0
    %4592 = vmatprep.subr.bf16.mxu0 0
    %4593 = vmatpush1.bf16.msra.mxu0 0
    %4594 = vmatprep.mubr.bf16.mxu0 0
    %4595 = vmatmul.mubr.bf16.gmra.mrb[0].mxu0 %v1454
    %v4596 = vpop.f32.mrb[0].mxu0
    %v4597 = vadd.f32 %v4556, %v4596
    %v4598 = vpop.f32.mrb[0].mxu0
    %v4599 = vadd.f32 %v4558, %v4598
    %v4600 = vpop.f32.mrb[0].mxu0
    %v4601 = vpop.f32.mrb[0].mxu0
    %4602 = vdwg.mxu0
    %4603 = vmatprep.subr.bf16.mxu0 %v3361
    %4604 = vmatpush1.bf16.msra.mxu0 %v3360
    %4605 = vmatprep.subr.bf16.mxu0 %v3372
    %4606 = vmatpush1.bf16.msra.mxu0 %v3371
    %4607 = vmatprep.subr.bf16.mxu0 %v3383
    %4608 = vmatpush1.bf16.msra.mxu0 %v3382
    %4609 = vmatprep.subr.bf16.mxu0 %v3394
    %4610 = vmatpush1.bf16.msra.mxu0 %v3393
    %4611 = vmatprep.subr.bf16.mxu0 %v3405
    %4612 = vmatpush1.bf16.msra.mxu0 %v3404
    %4613 = vmatprep.subr.bf16.mxu0 %v3416
    %4614 = vmatpush1.bf16.msra.mxu0 %v3415
    %4615 = vmatprep.subr.bf16.mxu0 %v3427
    %4616 = vmatpush1.bf16.msra.mxu0 %v3426
    %4617 = vmatprep.subr.bf16.mxu0 %v3438
    %4618 = vmatpush1.bf16.msra.mxu0 %v3437
    %4619 = vmatprep.subr.bf16.mxu0 %v3449
    %4620 = vmatpush1.bf16.msra.mxu0 %v3448
    %4621 = vmatprep.subr.bf16.mxu0 %v3460
    %4622 = vmatpush1.bf16.msra.mxu0 %v3459
    %4623 = vmatprep.subr.bf16.mxu0 %v3471
    %4624 = vmatpush1.bf16.msra.mxu0 %v3470
    %4625 = vmatprep.subr.bf16.mxu0 %v3482
    %4626 = vmatpush1.bf16.msra.mxu0 %v3481
    %4627 = vmatprep.subr.bf16.mxu0 %v3493
    %4628 = vmatpush1.bf16.msra.mxu0 %v3492
    %4629 = vmatprep.subr.bf16.mxu0 %v3504
    %4630 = vmatpush1.bf16.msra.mxu0 %v3503
    %4631 = vmatprep.subr.bf16.mxu0 %v3515
    %4632 = vmatpush1.bf16.msra.mxu0 %v3514
    %4633 = vmatprep.subr.bf16.mxu0 %v3526
    %4634 = vmatpush1.bf16.msra.mxu0 %v3525
    %4635 = vmatprep.mubr.bf16.mxu0 %v1451
    %4636 = vmatmul.mubr.bf16.gmra.mrb[0].mxu0 %v1450
    %v4637 = vpop.f32.mrb[0].mxu0
    %v4638 = vadd.f32 %v1966, %v4637
    %v4639 = vpop.f32.mrb[0].mxu0
    %v4640 = vadd.f32 %v1970, %v4639
    %v4641 = vpop.f32.mrb[0].mxu0
    %v4642 = vpop.f32.mrb[0].mxu0
    %4643 = vdwg.mxu0
    %4644 = vmatprep.subr.bf16.mxu0 %v3537
    %4645 = vmatpush1.bf16.msra.mxu0 %v3536
    %4646 = vmatprep.subr.bf16.mxu0 %v3548
    %4647 = vmatpush1.bf16.msra.mxu0 %v3547
    %4648 = vmatprep.subr.bf16.mxu0 %v3559
    %4649 = vmatpush1.bf16.msra.mxu0 %v3558
    %4650 = vmatprep.subr.bf16.mxu0 %v3570
    %4651 = vmatpush1.bf16.msra.mxu0 %v3569
    %4652 = vmatprep.subr.bf16.mxu0 %v3581
    %4653 = vmatpush1.bf16.msra.mxu0 %v3580
    %4654 = vmatprep.subr.bf16.mxu0 %v3592
    %4655 = vmatpush1.bf16.msra.mxu0 %v3591
    %4656 = vmatprep.subr.bf16.mxu0 %v3603
    %4657 = vmatpush1.bf16.msra.mxu0 %v3602
    %4658 = vmatprep.subr.bf16.mxu0 %v3614
    %4659 = vmatpush1.bf16.msra.mxu0 %v3613
    %4660 = vmatprep.subr.bf16.mxu0 %v3625
    %4661 = vmatpush1.bf16.msra.mxu0 %v3624
    %4662 = vmatprep.subr.bf16.mxu0 %v3636
    %4663 = vmatpush1.bf16.msra.mxu0 %v3635
    %4664 = vmatprep.subr.bf16.mxu0 %v3647
    %4665 = vmatpush1.bf16.msra.mxu0 %v3646
    %4666 = vmatprep.subr.bf16.mxu0 %v3658
    %4667 = vmatpush1.bf16.msra.mxu0 %v3657
    %4668 = vmatprep.subr.bf16.mxu0 %v3669
    %4669 = vmatpush1.bf16.msra.mxu0 %v3668
    %4670 = vmatprep.subr.bf16.mxu0 %v3680
    %4671 = vmatpush1.bf16.msra.mxu0 %v3679
    %4672 = vmatprep.subr.bf16.mxu0 %v3691
    %4673 = vmatpush1.bf16.msra.mxu0 %v3690
    %4674 = vmatprep.subr.bf16.mxu0 %v3702
    %4675 = vmatpush1.bf16.msra.mxu0 %v3701
    %4676 = vmatprep.mubr.bf16.mxu0 %v1453
    %4677 = vmatmul.mubr.bf16.gmra.mrb[0].mxu0 %v1452
    %v4678 = vpop.f32.mrb[0].mxu0
    %v4679 = vadd.f32 %v4638, %v4678
    %v4680 = vpop.f32.mrb[0].mxu0
    %v4681 = vadd.f32 %v4640, %v4680
    %v4682 = vpop.f32.mrb[0].mxu0
    %v4683 = vpop.f32.mrb[0].mxu0
    %4684 = vdwg.mxu0
    %4685 = vmatprep.subr.bf16.mxu0 %v3713
    %4686 = vmatpush1.bf16.msra.mxu0 %v3712
    %4687 = vmatprep.subr.bf16.mxu0 %v3724
    %4688 = vmatpush1.bf16.msra.mxu0 %v3723
    %4689 = vmatprep.subr.bf16.mxu0 %v3735
    %4690 = vmatpush1.bf16.msra.mxu0 %v3734
    %4691 = vmatprep.subr.bf16.mxu0 %v3746
    %4692 = vmatpush1.bf16.msra.mxu0 %v3745
    %4693 = vmatprep.subr.bf16.mxu0 %v3757
    %4694 = vmatpush1.bf16.msra.mxu0 %v3756
    %4695 = vmatprep.subr.bf16.mxu0 %v3768
    %4696 = vmatpush1.bf16.msra.mxu0 %v3767
    %4697 = vmatprep.subr.bf16.mxu0 %v3779
    %4698 = vmatpush1.bf16.msra.mxu0 %v3778
    %4699 = vmatprep.subr.bf16.mxu0 %v3790
    %4700 = vmatpush1.bf16.msra.mxu0 %v3789
    %4701 = vmatprep.subr.bf16.mxu0 0
    %4702 = vmatpush1.bf16.msra.mxu0 0
    %4703 = vmatprep.subr.bf16.mxu0 0
    %4704 = vmatpush1.bf16.msra.mxu0 0
    %4705 = vmatprep.subr.bf16.mxu0 0
    %4706 = vmatpush1.bf16.msra.mxu0 0
    %4707 = vmatprep.subr.bf16.mxu0 0
    %4708 = vmatpush1.bf16.msra.mxu0 0
    %4709 = vmatprep.subr.bf16.mxu0 0
    %4710 = vmatpush1.bf16.msra.mxu0 0
    %4711 = vmatprep.subr.bf16.mxu0 0
    %4712 = vmatpush1.bf16.msra.mxu0 0
    %4713 = vmatprep.subr.bf16.mxu0 0
    %4714 = vmatpush1.bf16.msra.mxu0 0
    %4715 = vmatprep.subr.bf16.mxu0 0
    %4716 = vmatpush1.bf16.msra.mxu0 0
    %4717 = vmatprep.mubr.bf16.mxu0 0
    %4718 = vmatmul.mubr.bf16.gmra.mrb[0].mxu0 %v1454
    %v4719 = vpop.f32.mrb[0].mxu0
    %v4720 = vadd.f32 %v4679, %v4719
    %v4721 = vpop.f32.mrb[0].mxu0
    %v4722 = vadd.f32 %v4681, %v4721
    %v4723 = vpop.f32.mrb[0].mxu0
    %v4724 = vpop.f32.mrb[0].mxu0
    %4725 = vdwg.mxu0
    %4726 = vmatprep.subr.bf16.mxu0 %v3363
    %4727 = vmatpush1.bf16.msra.mxu0 %v3362
    %4728 = vmatprep.subr.bf16.mxu0 %v3374
    %4729 = vmatpush1.bf16.msra.mxu0 %v3373
    %4730 = vmatprep.subr.bf16.mxu0 %v3385
    %4731 = vmatpush1.bf16.msra.mxu0 %v3384
    %4732 = vmatprep.subr.bf16.mxu0 %v3396
    %4733 = vmatpush1.bf16.msra.mxu0 %v3395
    %4734 = vmatprep.subr.bf16.mxu0 %v3407
    %4735 = vmatpush1.bf16.msra.mxu0 %v3406
    %4736 = vmatprep.subr.bf16.mxu0 %v3418
    %4737 = vmatpush1.bf16.msra.mxu0 %v3417
    %4738 = vmatprep.subr.bf16.mxu0 %v3429
    %4739 = vmatpush1.bf16.msra.mxu0 %v3428
    %4740 = vmatprep.subr.bf16.mxu0 %v3440
    %4741 = vmatpush1.bf16.msra.mxu0 %v3439
    %4742 = vmatprep.subr.bf16.mxu0 %v3451
    %4743 = vmatpush1.bf16.msra.mxu0 %v3450
    %4744 = vmatprep.subr.bf16.mxu0 %v3462
    %4745 = vmatpush1.bf16.msra.mxu0 %v3461
    %4746 = vmatprep.subr.bf16.mxu0 %v3473
    %4747 = vmatpush1.bf16.msra.mxu0 %v3472
    %4748 = vmatprep.subr.bf16.mxu0 %v3484
    %4749 = vmatpush1.bf16.msra.mxu0 %v3483
    %4750 = vmatprep.subr.bf16.mxu0 %v3495
    %4751 = vmatpush1.bf16.msra.mxu0 %v3494
    %4752 = vmatprep.subr.bf16.mxu0 %v3506
    %4753 = vmatpush1.bf16.msra.mxu0 %v3505
    %4754 = vmatprep.subr.bf16.mxu0 %v3517
    %4755 = vmatpush1.bf16.msra.mxu0 %v3516
    %4756 = vmatprep.subr.bf16.mxu0 %v3528
    %4757 = vmatpush1.bf16.msra.mxu0 %v3527
    %4758 = vmatprep.mubr.bf16.mxu0 %v1451
    %4759 = vmatmul.mubr.bf16.gmra.mrb[0].mxu0 %v1450
    %v4760 = vpop.f32.mrb[0].mxu0
    %v4761 = vadd.f32 %v1974, %v4760
    %v4762 = vpop.f32.mrb[0].mxu0
    %v4763 = vadd.f32 %v1978, %v4762
    %v4764 = vpop.f32.mrb[0].mxu0
    %v4765 = vpop.f32.mrb[0].mxu0
    %4766 = vdwg.mxu0
    %4767 = vmatprep.subr.bf16.mxu0 %v3539
    %4768 = vmatpush1.bf16.msra.mxu0 %v3538
    %4769 = vmatprep.subr.bf16.mxu0 %v3550
    %4770 = vmatpush1.bf16.msra.mxu0 %v3549
    %4771 = vmatprep.subr.bf16.mxu0 %v3561
    %4772 = vmatpush1.bf16.msra.mxu0 %v3560
    %4773 = vmatprep.subr.bf16.mxu0 %v3572
    %4774 = vmatpush1.bf16.msra.mxu0 %v3571
    %4775 = vmatprep.subr.bf16.mxu0 %v3583
    %4776 = vmatpush1.bf16.msra.mxu0 %v3582
    %4777 = vmatprep.subr.bf16.mxu0 %v3594
    %4778 = vmatpush1.bf16.msra.mxu0 %v3593
    %4779 = vmatprep.subr.bf16.mxu0 %v3605
    %4780 = vmatpush1.bf16.msra.mxu0 %v3604
    %4781 = vmatprep.subr.bf16.mxu0 %v3616
    %4782 = vmatpush1.bf16.msra.mxu0 %v3615
    %4783 = vmatprep.subr.bf16.mxu0 %v3627
    %4784 = vmatpush1.bf16.msra.mxu0 %v3626
    %4785 = vmatprep.subr.bf16.mxu0 %v3638
    %4786 = vmatpush1.bf16.msra.mxu0 %v3637
    %4787 = vmatprep.subr.bf16.mxu0 %v3649
    %4788 = vmatpush1.bf16.msra.mxu0 %v3648
    %4789 = vmatprep.subr.bf16.mxu0 %v3660
    %4790 = vmatpush1.bf16.msra.mxu0 %v3659
    %4791 = vmatprep.subr.bf16.mxu0 %v3671
    %4792 = vmatpush1.bf16.msra.mxu0 %v3670
    %4793 = vmatprep.subr.bf16.mxu0 %v3682
    %4794 = vmatpush1.bf16.msra.mxu0 %v3681
    %4795 = vmatprep.subr.bf16.mxu0 %v3693
    %4796 = vmatpush1.bf16.msra.mxu0 %v3692
    %4797 = vmatprep.subr.bf16.mxu0 %v3704
    %4798 = vmatpush1.bf16.msra.mxu0 %v3703
    %4799 = vmatprep.mubr.bf16.mxu0 %v1453
    %4800 = vmatmul.mubr.bf16.gmra.mrb[0].mxu0 %v1452
    %v4801 = vpop.f32.mrb[0].mxu0
    %v4802 = vadd.f32 %v4761, %v4801
    %v4803 = vpop.f32.mrb[0].mxu0
    %v4804 = vadd.f32 %v4763, %v4803
    %v4805 = vpop.f32.mrb[0].mxu0
    %v4806 = vpop.f32.mrb[0].mxu0
    %4807 = vdwg.mxu0
    %4808 = vmatprep.subr.bf16.mxu0 %v3715
    %4809 = vmatpush1.bf16.msra.mxu0 %v3714
    %4810 = vmatprep.subr.bf16.mxu0 %v3726
    %4811 = vmatpush1.bf16.msra.mxu0 %v3725
    %4812 = vmatprep.subr.bf16.mxu0 %v3737
    %4813 = vmatpush1.bf16.msra.mxu0 %v3736
    %4814 = vmatprep.subr.bf16.mxu0 %v3748
    %4815 = vmatpush1.bf16.msra.mxu0 %v3747
    %4816 = vmatprep.subr.bf16.mxu0 %v3759
    %4817 = vmatpush1.bf16.msra.mxu0 %v3758
    %4818 = vmatprep.subr.bf16.mxu0 %v3770
    %4819 = vmatpush1.bf16.msra.mxu0 %v3769
    %4820 = vmatprep.subr.bf16.mxu0 %v3781
    %4821 = vmatpush1.bf16.msra.mxu0 %v3780
    %4822 = vmatprep.subr.bf16.mxu0 %v3792
    %4823 = vmatpush1.bf16.msra.mxu0 %v3791
    %4824 = vmatprep.subr.bf16.mxu0 0
    %4825 = vmatpush1.bf16.msra.mxu0 0
    %4826 = vmatprep.subr.bf16.mxu0 0
    %4827 = vmatpush1.bf16.msra.mxu0 0
    %4828 = vmatprep.subr.bf16.mxu0 0
    %4829 = vmatpush1.bf16.msra.mxu0 0
    %4830 = vmatprep.subr.bf16.mxu0 0
    %4831 = vmatpush1.bf16.msra.mxu0 0
    %4832 = vmatprep.subr.bf16.mxu0 0
    %4833 = vmatpush1.bf16.msra.mxu0 0
    %4834 = vmatprep.subr.bf16.mxu0 0
    %4835 = vmatpush1.bf16.msra.mxu0 0
    %4836 = vmatprep.subr.bf16.mxu0 0
    %4837 = vmatpush1.bf16.msra.mxu0 0
    %4838 = vmatprep.subr.bf16.mxu0 0
    %4839 = vmatpush1.bf16.msra.mxu0 0
    %4840 = vmatprep.mubr.bf16.mxu0 0
    %4841 = vmatmul.mubr.bf16.gmra.mrb[0].mxu0 %v1454
    %v4842 = vpop.f32.mrb[0].mxu0
    %v4843 = vadd.f32 %v4802, %v4842
    %v4844 = vpop.f32.mrb[0].mxu0
    %v4845 = vadd.f32 %v4804, %v4844
    %v4846 = vpop.f32.mrb[0].mxu0
    %v4847 = vpop.f32.mrb[0].mxu0
    %4848 = vdwg.mxu0
    %4849 = vmatprep.subr.bf16.mxu0 0
    %4850 = vmatpush1.bf16.msra.mxu0 %v3364
    %4851 = vmatprep.subr.bf16.mxu0 0
    %4852 = vmatpush1.bf16.msra.mxu0 %v3375
    %4853 = vmatprep.subr.bf16.mxu0 0
    %4854 = vmatpush1.bf16.msra.mxu0 %v3386
    %4855 = vmatprep.subr.bf16.mxu0 0
    %4856 = vmatpush1.bf16.msra.mxu0 %v3397
    %4857 = vmatprep.subr.bf16.mxu0 0
    %4858 = vmatpush1.bf16.msra.mxu0 %v3408
    %4859 = vmatprep.subr.bf16.mxu0 0
    %4860 = vmatpush1.bf16.msra.mxu0 %v3419
    %4861 = vmatprep.subr.bf16.mxu0 0
    %4862 = vmatpush1.bf16.msra.mxu0 %v3430
    %4863 = vmatprep.subr.bf16.mxu0 0
    %4864 = vmatpush1.bf16.msra.mxu0 %v3441
    %4865 = vmatprep.subr.bf16.mxu0 0
    %4866 = vmatpush1.bf16.msra.mxu0 %v3452
    %4867 = vmatprep.subr.bf16.mxu0 0
    %4868 = vmatpush1.bf16.msra.mxu0 %v3463
    %4869 = vmatprep.subr.bf16.mxu0 0
    %4870 = vmatpush1.bf16.msra.mxu0 %v3474
    %4871 = vmatprep.subr.bf16.mxu0 0
    %4872 = vmatpush1.bf16.msra.mxu0 %v3485
    %4873 = vmatprep.subr.bf16.mxu0 0
    %4874 = vmatpush1.bf16.msra.mxu0 %v3496
    %4875 = vmatprep.subr.bf16.mxu0 0
    %4876 = vmatpush1.bf16.msra.mxu0 %v3507
    %4877 = vmatprep.subr.bf16.mxu0 0
    %4878 = vmatpush1.bf16.msra.mxu0 %v3518
    %4879 = vmatprep.subr.bf16.mxu0 0
    %4880 = vmatpush1.bf16.msra.mxu0 %v3529
    %4881 = vmatprep.mubr.bf16.mxu0 %v1451
    %4882 = vmatmul.mubr.bf16.gmra.mrb[0].mxu0 %v1450
    %v4883 = vpop.f32.mrb[0].mxu0
    %v4884 = vadd.f32 %v1982, %v4883
    %v4885 = vpop.f32.mrb[0].mxu0
    %v4886 = vpop.f32.mrb[0].mxu0
    %v4887 = vpop.f32.mrb[0].mxu0
    %4888 = vdwg.mxu0
    %4889 = vmatprep.subr.bf16.mxu0 0
    %4890 = vmatpush1.bf16.msra.mxu0 %v3540
    %4891 = vmatprep.subr.bf16.mxu0 0
    %4892 = vmatpush1.bf16.msra.mxu0 %v3551
    %4893 = vmatprep.subr.bf16.mxu0 0
    %4894 = vmatpush1.bf16.msra.mxu0 %v3562
    %4895 = vmatprep.subr.bf16.mxu0 0
    %4896 = vmatpush1.bf16.msra.mxu0 %v3573
    %4897 = vmatprep.subr.bf16.mxu0 0
    %4898 = vmatpush1.bf16.msra.mxu0 %v3584
    %4899 = vmatprep.subr.bf16.mxu0 0
    %4900 = vmatpush1.bf16.msra.mxu0 %v3595
    %4901 = vmatprep.subr.bf16.mxu0 0
    %4902 = vmatpush1.bf16.msra.mxu0 %v3606
    %4903 = vmatprep.subr.bf16.mxu0 0
    %4904 = vmatpush1.bf16.msra.mxu0 %v3617
    %4905 = vmatprep.subr.bf16.mxu0 0
    %4906 = vmatpush1.bf16.msra.mxu0 %v3628
    %4907 = vmatprep.subr.bf16.mxu0 0
    %4908 = vmatpush1.bf16.msra.mxu0 %v3639
    %4909 = vmatprep.subr.bf16.mxu0 0
    %4910 = vmatpush1.bf16.msra.mxu0 %v3650
    %4911 = vmatprep.subr.bf16.mxu0 0
    %4912 = vmatpush1.bf16.msra.mxu0 %v3661
    %4913 = vmatprep.subr.bf16.mxu0 0
    %4914 = vmatpush1.bf16.msra.mxu0 %v3672
    %4915 = vmatprep.subr.bf16.mxu0 0
    %4916 = vmatpush1.bf16.msra.mxu0 %v3683
    %4917 = vmatprep.subr.bf16.mxu0 0
    %4918 = vmatpush1.bf16.msra.mxu0 %v3694
    %4919 = vmatprep.subr.bf16.mxu0 0
    %4920 = vmatpush1.bf16.msra.mxu0 %v3705
    %4921 = vmatprep.mubr.bf16.mxu0 %v1453
    %4922 = vmatmul.mubr.bf16.gmra.mrb[0].mxu0 %v1452
    %v4923 = vpop.f32.mrb[0].mxu0
    %v4924 = vadd.f32 %v4884, %v4923
    %v4925 = vpop.f32.mrb[0].mxu0
    %v4926 = vpop.f32.mrb[0].mxu0
    %v4927 = vpop.f32.mrb[0].mxu0
    %4928 = vdwg.mxu0
    %4929 = vmatprep.subr.bf16.mxu0 0
    %4930 = vmatpush1.bf16.msra.mxu0 %v3716
    %4931 = vmatprep.subr.bf16.mxu0 0
    %4932 = vmatpush1.bf16.msra.mxu0 %v3727
    %4933 = vmatprep.subr.bf16.mxu0 0
    %4934 = vmatpush1.bf16.msra.mxu0 %v3738
    %4935 = vmatprep.subr.bf16.mxu0 0
    %4936 = vmatpush1.bf16.msra.mxu0 %v3749
    %4937 = vmatprep.subr.bf16.mxu0 0
    %4938 = vmatpush1.bf16.msra.mxu0 %v3760
    %4939 = vmatprep.subr.bf16.mxu0 0
    %4940 = vmatpush1.bf16.msra.mxu0 %v3771
    %4941 = vmatprep.subr.bf16.mxu0 0
    %4942 = vmatpush1.bf16.msra.mxu0 %v3782
    %4943 = vmatprep.subr.bf16.mxu0 0
    %4944 = vmatpush1.bf16.msra.mxu0 %v3793
    %4945 = vmatprep.subr.bf16.mxu0 0
    %4946 = vmatpush1.bf16.msra.mxu0 0
    %4947 = vmatprep.subr.bf16.mxu0 0
    %4948 = vmatpush1.bf16.msra.mxu0 0
    %4949 = vmatprep.subr.bf16.mxu0 0
    %4950 = vmatpush1.bf16.msra.mxu0 0
    %4951 = vmatprep.subr.bf16.mxu0 0
    %4952 = vmatpush1.bf16.msra.mxu0 0
    %4953 = vmatprep.subr.bf16.mxu0 0
    %4954 = vmatpush1.bf16.msra.mxu0 0
    %4955 = vmatprep.subr.bf16.mxu0 0
    %4956 = vmatpush1.bf16.msra.mxu0 0
    %4957 = vmatprep.subr.bf16.mxu0 0
    %4958 = vmatpush1.bf16.msra.mxu0 0
    %4959 = vmatprep.subr.bf16.mxu0 0
    %4960 = vmatpush1.bf16.msra.mxu0 0
    %4961 = vmatprep.mubr.bf16.mxu0 0
    %4962 = vmatmul.mubr.bf16.gmra.mrb[0].mxu0 %v1454
    %v4963 = vpop.f32.mrb[0].mxu0
    %v4964 = vadd.f32 %v4924, %v4963
    %v4965 = vpop.f32.mrb[0].mxu0
    %v4966 = vpop.f32.mrb[0].mxu0
    %v4967 = vpop.f32.mrb[0].mxu0
    %4968 = vdwg.mxu0
    %v4969 = vld [vmem:[%s11] sm:$0xff]
    %v4970 = vld [vmem:[%s11 + $0x8] sm:$0xff]
    %v4971 = vld [vmem:[%s11 + $0x10] sm:$0xff]
    %v4972 = vld [vmem:[%s11 + $0x18] sm:$0xff]
    %v4973 = vld [vmem:[%s11 + $0x20] sm:$0xff]
    %v4974 = vld [vmem:[%s11 + $0x28] sm:$0xff]
    %v4975 = vld [vmem:[%s11 + $0x30] sm:$0xff]
    %v4976 = vld [vmem:[%s11 + $0x38] sm:$0xff]
    %v4977 = vld [vmem:[%s11 + $0x40] sm:$0xff]
    %v4978 = vld [vmem:[%s11 + $0x48] sm:$0xff]
    %v4979 = vld [vmem:[%s11 + $0x50] sm:$0xff]
    %v4980 = vld [vmem:[%s11 + $0x58] sm:$0xff]
    %v4981 = vld [vmem:[%s11 + $0x60] sm:$0xff]
    %v4982 = vld [vmem:[%s11 + $0x68] sm:$0xff]
    %v4983 = vld [vmem:[%s11 + $0x70] sm:$0xff]
    %v4984 = vld [vmem:[%s11 + $0x78] sm:$0xff]
    %v4985 = vld [vmem:[%s11 + $0x80] sm:$0xff]
    %v4986 = vld [vmem:[%s11 + $0x88] sm:$0xff]
    %v4987 = vld [vmem:[%s11 + $0x90] sm:$0xff]
    %v4988 = vld [vmem:[%s11 + $0x98] sm:$0xff]
    %v4989 = vld [vmem:[%s11 + $0xa0] sm:$0xff]
    %v4990 = vld [vmem:[%s11 + $0xa8] sm:$0xff]
    %v4991 = vld [vmem:[%s11 + $0xb0] sm:$0xff]
    %v4992 = vld [vmem:[%s11 + $0xb8] sm:$0xff]
    %v4993 = vld [vmem:[%s11 + $0xc0] sm:$0xff]
    %v4994 = vld [vmem:[%s11 + $0xc8] sm:$0xff]
    %v4995 = vld [vmem:[%s11 + $0xd0] sm:$0xff]
    %v4996 = vld [vmem:[%s11 + $0xd8] sm:$0xff]
    %v4997 = vld [vmem:[%s11 + $0xe0] sm:$0xff]
    %v4998 = vld [vmem:[%s11 + $0xe8] sm:$0xff]
    %v4999 = vld [vmem:[%s11 + $0xf0] sm:$0xff]
    %v5000 = vld [vmem:[%s11 + $0xf8] sm:$0xff]
    %v5001 = vld [vmem:[%s11 + $0x100] sm:$0xff]
    %v5002 = vld [vmem:[%s11 + $0x108] sm:$0xff]
    %v5003 = vld [vmem:[%s11 + $0x110] sm:$0xff]
    %v5004 = vld [vmem:[%s11 + $0x118] sm:$0xff]
    %v5005 = vld [vmem:[%s11 + $0x120] sm:$0xff]
    %v5006 = vld [vmem:[%s11 + $0x128] sm:$0xff]
    %v5007 = vld [vmem:[%s11 + $0x130] sm:$0xff]
    %v5008 = vld [vmem:[%s11 + $0x138] sm:$0xff]
    %v5009 = vld [vmem:[%s11 + $0x140] sm:$0xff]
    %v5010 = vld [vmem:[%s11 + $0x148] sm:$0xff]
    %v5011 = vld [vmem:[%s11 + $0x150] sm:$0xff]
    %v5012 = vld [vmem:[%s11 + $0x158] sm:$0xff]
    %v5013 = vld [vmem:[%s11 + $0x160] sm:$0xff]
    %v5014 = vld [vmem:[%s11 + $0x168] sm:$0xff]
    %v5015 = vld [vmem:[%s11 + $0x170] sm:$0xff]
    %v5016 = vld [vmem:[%s11 + $0x178] sm:$0xff]
    %v5017 = vld [vmem:[%s11 + $0x180] sm:$0xff]
    %v5018 = vld [vmem:[%s11 + $0x188] sm:$0xff]
    %v5019 = vld [vmem:[%s11 + $0x190] sm:$0xff]
    %v5020 = vld [vmem:[%s11 + $0x198] sm:$0xff]
    %v5021 = vld [vmem:[%s11 + $0x1a0] sm:$0xff]
    %v5022 = vld [vmem:[%s11 + $0x1a8] sm:$0xff]
    %v5023 = vld [vmem:[%s11 + $0x1b0] sm:$0xff]
    %v5024 = vld [vmem:[%s11 + $0x1b8] sm:$0xff]
    %v5025 = vld [vmem:[%s11 + $0x1c0] sm:$0xff]
    %v5026 = vld [vmem:[%s11 + $0x1c8] sm:$0xff]
    %v5027 = vld [vmem:[%s11 + $0x1d0] sm:$0xff]
    %v5028 = vld [vmem:[%s11 + $0x1d8] sm:$0xff]
    %v5029 = vld [vmem:[%s11 + $0x1e0] sm:$0xff]
    %v5030 = vld [vmem:[%s11 + $0x1e8] sm:$0xff]
    %v5031 = vld [vmem:[%s11 + $0x1f0] sm:$0xff]
    %v5032 = vld [vmem:[%s11 + $0x1f8] sm:$0xff]
    %v5033 = vld [vmem:[%s11 + $0x200] sm:$0xff]
    %v5034 = vld [vmem:[%s11 + $0x208] sm:$0xff]
    %v5035 = vld [vmem:[%s11 + $0x210] sm:$0xff]
    %v5036 = vld [vmem:[%s11 + $0x218] sm:$0xff]
    %v5037 = vld [vmem:[%s11 + $0x220] sm:$0xff]
    %v5038 = vld [vmem:[%s11 + $0x228] sm:$0xff]
    %v5039 = vld [vmem:[%s11 + $0x230] sm:$0xff]
    %v5040 = vld [vmem:[%s11 + $0x238] sm:$0xff]
    %v5041 = vld [vmem:[%s11 + $0x240] sm:$0xff]
    %v5042 = vld [vmem:[%s11 + $0x248] sm:$0xff]
    %v5043 = vld [vmem:[%s11 + $0x250] sm:$0xff]
    %v5044 = vld [vmem:[%s11 + $0x258] sm:$0xff]
    %v5045 = vld [vmem:[%s11 + $0x260] sm:$0xff]
    %v5046 = vld [vmem:[%s11 + $0x268] sm:$0xff]
    %v5047 = vld [vmem:[%s11 + $0x270] sm:$0xff]
    %v5048 = vld [vmem:[%s11 + $0x278] sm:$0xff]
    %v5049 = vld [vmem:[%s11 + $0x280] sm:$0xff]
    %v5050 = vld [vmem:[%s11 + $0x288] sm:$0xff]
    %v5051 = vld [vmem:[%s11 + $0x290] sm:$0xff]
    %v5052 = vld [vmem:[%s11 + $0x298] sm:$0xff]
    %v5053 = vld [vmem:[%s11 + $0x2a0] sm:$0xff]
    %v5054 = vld [vmem:[%s11 + $0x2a8] sm:$0xff]
    %v5055 = vld [vmem:[%s11 + $0x2b0] sm:$0xff]
    %v5056 = vld [vmem:[%s11 + $0x2b8] sm:$0xff]
    %v5057 = vld [vmem:[%s11 + $0x2c0] sm:$0xff]
    %v5058 = vld [vmem:[%s11 + $0x2c8] sm:$0xff]
    %v5059 = vld [vmem:[%s11 + $0x2d0] sm:$0xff]
    %v5060 = vld [vmem:[%s11 + $0x2d8] sm:$0xff]
    %v5061 = vld [vmem:[%s11 + $0x2e0] sm:$0xff]
    %v5062 = vld [vmem:[%s11 + $0x2e8] sm:$0xff]
    %v5063 = vld [vmem:[%s11 + $0x2f0] sm:$0xff]
    %v5064 = vld [vmem:[%s11 + $0x2f8] sm:$0xff]
    %v5065 = vld [vmem:[%s11 + $0x300] sm:$0xff]
    %v5066 = vld [vmem:[%s11 + $0x308] sm:$0xff]
    %v5067 = vld [vmem:[%s11 + $0x310] sm:$0xff]
    %v5068 = vld [vmem:[%s11 + $0x318] sm:$0xff]
    %v5069 = vld [vmem:[%s11 + $0x320] sm:$0xff]
    %v5070 = vld [vmem:[%s11 + $0x328] sm:$0xff]
    %v5071 = vld [vmem:[%s11 + $0x330] sm:$0xff]
    %v5072 = vld [vmem:[%s11 + $0x338] sm:$0xff]
    %v5073 = vld [vmem:[%s11 + $0x340] sm:$0xff]
    %v5074 = vld [vmem:[%s11 + $0x348] sm:$0xff]
    %v5075 = vld [vmem:[%s11 + $0x350] sm:$0xff]
    %v5076 = vld [vmem:[%s11 + $0x358] sm:$0xff]
    %v5077 = vld [vmem:[%s11 + $0x360] sm:$0xff]
    %v5078 = vld [vmem:[%s11 + $0x368] sm:$0xff]
    %v5079 = vld [vmem:[%s11 + $0x370] sm:$0xff]
    %v5080 = vld [vmem:[%s11 + $0x378] sm:$0xff]
    %v5081 = vld [vmem:[%s11 + $0x380] sm:$0xff]
    %v5082 = vld [vmem:[%s11 + $0x388] sm:$0xff]
    %v5083 = vld [vmem:[%s11 + $0x390] sm:$0xff]
    %v5084 = vld [vmem:[%s11 + $0x398] sm:$0xff]
    %v5085 = vld [vmem:[%s11 + $0x3a0] sm:$0xff]
    %v5086 = vld [vmem:[%s11 + $0x3a8] sm:$0xff]
    %v5087 = vld [vmem:[%s11 + $0x3b0] sm:$0xff]
    %v5088 = vld [vmem:[%s11 + $0x3b8] sm:$0xff]
    %v5089 = vld [vmem:[%s11 + $0x3c0] sm:$0xff]
    %v5090 = vld [vmem:[%s11 + $0x3c8] sm:$0xff]
    %v5091 = vld [vmem:[%s11 + $0x3d0] sm:$0xff]
    %v5092 = vld [vmem:[%s11 + $0x3d8] sm:$0xff]
    %v5093 = vld [vmem:[%s11 + $0x3e0] sm:$0xff]
    %v5094 = vld [vmem:[%s11 + $0x3e8] sm:$0xff]
    %v5095 = vld [vmem:[%s11 + $0x3f0] sm:$0xff]
    %v5096 = vld [vmem:[%s11 + $0x3f8] sm:$0xff]
    %v5097 = vld [vmem:[%s11 + $0x400] sm:$0xff]
    %v5098 = vld [vmem:[%s11 + $0x408] sm:$0xff]
    %v5099 = vld [vmem:[%s11 + $0x410] sm:$0xff]
    %v5100 = vld [vmem:[%s11 + $0x418] sm:$0xff]
    %v5101 = vld [vmem:[%s11 + $0x420] sm:$0xff]
    %v5102 = vld [vmem:[%s11 + $0x428] sm:$0xff]
    %v5103 = vld [vmem:[%s11 + $0x430] sm:$0xff]
    %v5104 = vld [vmem:[%s11 + $0x438] sm:$0xff]
    %v5105 = vld [vmem:[%s11 + $0x440] sm:$0xff]
    %v5106 = vld [vmem:[%s11 + $0x448] sm:$0xff]
    %v5107 = vld [vmem:[%s11 + $0x450] sm:$0xff]
    %v5108 = vld [vmem:[%s11 + $0x458] sm:$0xff]
    %v5109 = vld [vmem:[%s11 + $0x460] sm:$0xff]
    %v5110 = vld [vmem:[%s11 + $0x468] sm:$0xff]
    %v5111 = vld [vmem:[%s11 + $0x470] sm:$0xff]
    %v5112 = vld [vmem:[%s11 + $0x478] sm:$0xff]
    %v5113 = vld [vmem:[%s11 + $0x480] sm:$0xff]
    %v5114 = vld [vmem:[%s11 + $0x488] sm:$0xff]
    %v5115 = vld [vmem:[%s11 + $0x490] sm:$0xff]
    %v5116 = vld [vmem:[%s11 + $0x498] sm:$0xff]
    %v5117 = vld [vmem:[%s11 + $0x4a0] sm:$0xff]
    %v5118 = vld [vmem:[%s11 + $0x4a8] sm:$0xff]
    %v5119 = vld [vmem:[%s11 + $0x4b0] sm:$0xff]
    %v5120 = vld [vmem:[%s11 + $0x4b8] sm:$0xff]
    %v5121 = vld [vmem:[%s11 + $0x4c0] sm:$0xff]
    %v5122 = vld [vmem:[%s11 + $0x4c8] sm:$0xff]
    %v5123 = vld [vmem:[%s11 + $0x4d0] sm:$0xff]
    %v5124 = vld [vmem:[%s11 + $0x4d8] sm:$0xff]
    %v5125 = vld [vmem:[%s11 + $0x4e0] sm:$0xff]
    %v5126 = vld [vmem:[%s11 + $0x4e8] sm:$0xff]
    %v5127 = vld [vmem:[%s11 + $0x4f0] sm:$0xff]
    %v5128 = vld [vmem:[%s11 + $0x4f8] sm:$0xff]
    %v5129 = vld [vmem:[%s11 + $0x500] sm:$0xff]
    %v5130 = vld [vmem:[%s11 + $0x508] sm:$0xff]
    %v5131 = vld [vmem:[%s11 + $0x510] sm:$0xff]
    %v5132 = vld [vmem:[%s11 + $0x518] sm:$0xff]
    %v5133 = vld [vmem:[%s11 + $0x520] sm:$0xff]
    %v5134 = vld [vmem:[%s11 + $0x528] sm:$0xff]
    %v5135 = vld [vmem:[%s11 + $0x530] sm:$0xff]
    %v5136 = vld [vmem:[%s11 + $0x538] sm:$0xff]
    %v5137 = vld [vmem:[%s11 + $0x540] sm:$0xff]
    %v5138 = vld [vmem:[%s11 + $0x548] sm:$0xff]
    %v5139 = vld [vmem:[%s11 + $0x550] sm:$0xff]
    %v5140 = vld [vmem:[%s11 + $0x558] sm:$0xff]
    %v5141 = vld [vmem:[%s11 + $0x560] sm:$0xff]
    %v5142 = vld [vmem:[%s11 + $0x568] sm:$0xff]
    %v5143 = vld [vmem:[%s11 + $0x570] sm:$0xff]
    %v5144 = vld [vmem:[%s11 + $0x578] sm:$0xff]
    %v5145 = vld [vmem:[#allocation19] sm:$0xff]
    %v5146 = vld [vmem:[#allocation19 + $0x8] sm:$0xff]
    %v5147 = vld [vmem:[#allocation19 + $0x10] sm:$0xff]
    %v5148 = vld [vmem:[#allocation19 + $0x18] sm:$0xff]
    %v5149 = vld [vmem:[#allocation19 + $0x20] sm:$0xff]
    %v5150 = vld [vmem:[#allocation19 + $0x28] sm:$0xff]
    %v5151 = vld [vmem:[#allocation19 + $0x30] sm:$0xff]
    %v5152 = vld [vmem:[#allocation19 + $0x38] sm:$0xff]
    %v5153 = vld [vmem:[#allocation19 + $0x40] sm:$0xff]
    %v5154 = vld [vmem:[#allocation19 + $0x48] sm:$0xff]
    %v5155 = vld [vmem:[#allocation19 + $0x50] sm:$0xff]
    %v5156 = vld [vmem:[#allocation20] sm:$0x1]
    %v5157 = vld [vmem:[#allocation22] sm:$0x1]
    %v5158 = vsel %vm853, %v4351, 0.0
    %v5159 = vrot.slane %v5158, 4
    %v5160 = vadd.f32 %v5158, %v5159
    %v5161 = vrot.slane %v5160, 2
    %v5162 = vadd.f32 %v5160, %v5161
    %v5163 = vrot.slane %v5162, 1
    %v5164 = vadd.f32 %v5162, %v5163
    %v5165 = vsel %vm853, %v4353, 0.0
    %v5166 = vrot.slane %v5165, 4
    %v5167 = vadd.f32 %v5165, %v5166
    %v5168 = vrot.slane %v5167, 2
    %v5169 = vadd.f32 %v5167, %v5168
    %v5170 = vrot.slane %v5169, 1
    %v5171 = vadd.f32 %v5169, %v5170
    %v5172 = vsel %vm853, %v4474, 0.0
    %v5173 = vrot.slane %v5172, 4
    %v5174 = vadd.f32 %v5172, %v5173
    %v5175 = vrot.slane %v5174, 2
    %v5176 = vadd.f32 %v5174, %v5175
    %v5177 = vrot.slane %v5176, 1
    %v5178 = vadd.f32 %v5176, %v5177
    %v5179 = vsel %vm853, %v4476, 0.0
    %v5180 = vrot.slane %v5179, 4
    %v5181 = vadd.f32 %v5179, %v5180
    %v5182 = vrot.slane %v5181, 2
    %v5183 = vadd.f32 %v5181, %v5182
    %v5184 = vrot.slane %v5183, 1
    %v5185 = vadd.f32 %v5183, %v5184
    %v5186 = vsel %vm853, %v4597, 0.0
    %v5187 = vrot.slane %v5186, 4
    %v5188 = vadd.f32 %v5186, %v5187
    %v5189 = vrot.slane %v5188, 2
    %v5190 = vadd.f32 %v5188, %v5189
    %v5191 = vrot.slane %v5190, 1
    %v5192 = vadd.f32 %v5190, %v5191
    %v5193 = vsel %vm853, %v4599, 0.0
    %v5194 = vrot.slane %v5193, 4
    %v5195 = vadd.f32 %v5193, %v5194
    %v5196 = vrot.slane %v5195, 2
    %v5197 = vadd.f32 %v5195, %v5196
    %v5198 = vrot.slane %v5197, 1
    %v5199 = vadd.f32 %v5197, %v5198
    %v5200 = vsel %vm853, %v4720, 0.0
    %v5201 = vrot.slane %v5200, 4
    %v5202 = vadd.f32 %v5200, %v5201
    %v5203 = vrot.slane %v5202, 2
    %v5204 = vadd.f32 %v5202, %v5203
    %v5205 = vrot.slane %v5204, 1
    %v5206 = vadd.f32 %v5204, %v5205
    %v5207 = vsel %vm853, %v4722, 0.0
    %v5208 = vrot.slane %v5207, 4
    %v5209 = vadd.f32 %v5207, %v5208
    %v5210 = vrot.slane %v5209, 2
    %v5211 = vadd.f32 %v5209, %v5210
    %v5212 = vrot.slane %v5211, 1
    %v5213 = vadd.f32 %v5211, %v5212
    %v5214 = vsel %vm853, %v4843, 0.0
    %v5215 = vrot.slane %v5214, 4
    %v5216 = vadd.f32 %v5214, %v5215
    %v5217 = vrot.slane %v5216, 2
    %v5218 = vadd.f32 %v5216, %v5217
    %v5219 = vrot.slane %v5218, 1
    %v5220 = vadd.f32 %v5218, %v5219
    %v5221 = vsel %vm853, %v4845, 0.0
    %v5222 = vrot.slane %v5221, 4
    %v5223 = vadd.f32 %v5221, %v5222
    %v5224 = vrot.slane %v5223, 2
    %v5225 = vadd.f32 %v5223, %v5224
    %v5226 = vrot.slane %v5225, 1
    %v5227 = vadd.f32 %v5225, %v5226
    %v5228 = vsel %vm853, %v4964, 0.0
    %v5229 = vrot.slane %v5228, 4
    %v5230 = vadd.f32 %v5228, %v5229
    %v5231 = vrot.slane %v5230, 2
    %v5232 = vadd.f32 %v5230, %v5231
    %v5233 = vrot.slane %v5232, 1
    %v5234 = vadd.f32 %v5232, %v5233
    %v5235 = vmul.f32 %v4351, %v4351
    %v5236 = vmul.f32 %v4353, %v4353
    %v5237 = vmul.f32 %v4474, %v4474
    %v5238 = vmul.f32 %v4476, %v4476
    %v5239 = vmul.f32 %v4597, %v4597
    %v5240 = vmul.f32 %v4599, %v4599
    %v5241 = vmul.f32 %v4720, %v4720
    %v5242 = vmul.f32 %v4722, %v4722
    %v5243 = vmul.f32 %v4843, %v4843
    %v5244 = vmul.f32 %v4845, %v4845
    %v5245 = vmul.f32 %v4964, %v4964
    %v5246 = vsel %vm853, %v5235, 0.0
    %v5247 = vrot.slane %v5246, 4
    %v5248 = vadd.f32 %v5246, %v5247
    %v5249 = vrot.slane %v5248, 2
    %v5250 = vadd.f32 %v5248, %v5249
    %v5251 = vrot.slane %v5250, 1
    %v5252 = vadd.f32 %v5250, %v5251
    %v5253 = vsel %vm853, %v5236, 0.0
    %v5254 = vrot.slane %v5253, 4
    %v5255 = vadd.f32 %v5253, %v5254
    %v5256 = vrot.slane %v5255, 2
    %v5257 = vadd.f32 %v5255, %v5256
    %v5258 = vrot.slane %v5257, 1
    %v5259 = vadd.f32 %v5257, %v5258
    %v5260 = vsel %vm853, %v5237, 0.0
    %v5261 = vrot.slane %v5260, 4
    %v5262 = vadd.f32 %v5260, %v5261
    %v5263 = vrot.slane %v5262, 2
    %v5264 = vadd.f32 %v5262, %v5263
    %v5265 = vrot.slane %v5264, 1
    %v5266 = vadd.f32 %v5264, %v5265
    %v5267 = vsel %vm853, %v5238, 0.0
    %v5268 = vrot.slane %v5267, 4
    %v5269 = vadd.f32 %v5267, %v5268
    %v5270 = vrot.slane %v5269, 2
    %v5271 = vadd.f32 %v5269, %v5270
    %v5272 = vrot.slane %v5271, 1
    %v5273 = vadd.f32 %v5271, %v5272
    %v5274 = vsel %vm853, %v5239, 0.0
    %v5275 = vrot.slane %v5274, 4
    %v5276 = vadd.f32 %v5274, %v5275
    %v5277 = vrot.slane %v5276, 2
    %v5278 = vadd.f32 %v5276, %v5277
    %v5279 = vrot.slane %v5278, 1
    %v5280 = vadd.f32 %v5278, %v5279
    %v5281 = vsel %vm853, %v5240, 0.0
    %v5282 = vrot.slane %v5281, 4
    %v5283 = vadd.f32 %v5281, %v5282
    %v5284 = vrot.slane %v5283, 2
    %v5285 = vadd.f32 %v5283, %v5284
    %v5286 = vrot.slane %v5285, 1
    %v5287 = vadd.f32 %v5285, %v5286
    %v5288 = vsel %vm853, %v5241, 0.0
    %v5289 = vrot.slane %v5288, 4
    %v5290 = vadd.f32 %v5288, %v5289
    %v5291 = vrot.slane %v5290, 2
    %v5292 = vadd.f32 %v5290, %v5291
    %v5293 = vrot.slane %v5292, 1
    %v5294 = vadd.f32 %v5292, %v5293
    %v5295 = vsel %vm853, %v5242, 0.0
    %v5296 = vrot.slane %v5295, 4
    %v5297 = vadd.f32 %v5295, %v5296
    %v5298 = vrot.slane %v5297, 2
    %v5299 = vadd.f32 %v5297, %v5298
    %v5300 = vrot.slane %v5299, 1
    %v5301 = vadd.f32 %v5299, %v5300
    %v5302 = vsel %vm853, %v5243, 0.0
    %v5303 = vrot.slane %v5302, 4
    %v5304 = vadd.f32 %v5302, %v5303
    %v5305 = vrot.slane %v5304, 2
    %v5306 = vadd.f32 %v5304, %v5305
    %v5307 = vrot.slane %v5306, 1
    %v5308 = vadd.f32 %v5306, %v5307
    %v5309 = vsel %vm853, %v5244, 0.0
    %v5310 = vrot.slane %v5309, 4
    %v5311 = vadd.f32 %v5309, %v5310
    %v5312 = vrot.slane %v5311, 2
    %v5313 = vadd.f32 %v5311, %v5312
    %v5314 = vrot.slane %v5313, 1
    %v5315 = vadd.f32 %v5313, %v5314
    %v5316 = vsel %vm853, %v5245, 0.0
    %v5317 = vrot.slane %v5316, 4
    %v5318 = vadd.f32 %v5316, %v5317
    %v5319 = vrot.slane %v5318, 2
    %v5320 = vadd.f32 %v5318, %v5319
    %v5321 = vrot.slane %v5320, 1
    %v5322 = vadd.f32 %v5320, %v5321
    %v5323 = vsel %vm929, %v5164, %v5252
    %v5324 = vsel %vm929, %v5171, %v5259
    %v5325 = vsel %vm929, %v5178, %v5266
    %v5326 = vsel %vm929, %v5185, %v5273
    %v5327 = vsel %vm929, %v5192, %v5280
    %v5328 = vsel %vm929, %v5199, %v5287
    %v5329 = vsel %vm929, %v5206, %v5294
    %v5330 = vsel %vm929, %v5213, %v5301
    %v5331 = vsel %vm929, %v5220, %v5308
    %v5332 = vsel %vm929, %v5227, %v5315
    %v5333 = vsel %vm929, %v5234, %v5322
    %5334 = vmatprep.subr.mxu0 0.0
    %5335 = vmatpush1.msra.mxu0 %v4969
    %5336 = vmatprep.subr.mxu0 0.0
    %5337 = vmatpush1.msra.mxu0 %v4970
    %5338 = vmatprep.subr.mxu0 0.0
    %5339 = vmatpush1.msra.mxu0 %v4971
    %5340 = vmatprep.subr.mxu0 0.0
    %5341 = vmatpush1.msra.mxu0 %v4972
    %5342 = vmatprep.subr.mxu0 0.0
    %5343 = vmatpush1.msra.mxu0 %v4973
    %5344 = vmatprep.subr.mxu0 0.0
    %5345 = vmatpush1.msra.mxu0 %v4974
    %5346 = vmatprep.subr.mxu0 0.0
    %5347 = vmatpush1.msra.mxu0 %v4975
    %5348 = vmatprep.subr.mxu0 0.0
    %5349 = vmatpush1.msra.mxu0 %v4976
    %5350 = vmatprep.subr.mxu0 0.0
    %5351 = vmatpush1.msra.mxu0 %v4977
    %5352 = vmatprep.subr.mxu0 0.0
    %5353 = vmatpush1.msra.mxu0 %v4978
    %5354 = vmatprep.subr.mxu0 0.0
    %5355 = vmatpush1.msra.mxu0 %v4979
    %5356 = vmatprep.subr.mxu0 0.0
    %5357 = vmatpush1.msra.mxu0 %v4980
    %5358 = vmatprep.subr.mxu0 0.0
    %5359 = vmatpush1.msra.mxu0 %v4981
    %5360 = vmatprep.subr.mxu0 0.0
    %5361 = vmatpush1.msra.mxu0 %v4982
    %5362 = vmatprep.subr.mxu0 0.0
    %5363 = vmatpush1.msra.mxu0 %v4983
    %5364 = vmatprep.subr.mxu0 0.0
    %5365 = vmatpush1.msra.mxu0 %v4984
    %5366 = vmatprep.subr.mxu0 0.0
    %5367 = vmatpush1.msra.mxu0 %v4985
    %5368 = vmatprep.subr.mxu0 0.0
    %5369 = vmatpush1.msra.mxu0 %v4986
    %5370 = vmatprep.subr.mxu0 0.0
    %5371 = vmatpush1.msra.mxu0 %v4987
    %5372 = vmatprep.subr.mxu0 0.0
    %5373 = vmatpush1.msra.mxu0 %v4988
    %5374 = vmatprep.subr.mxu0 0.0
    %5375 = vmatpush1.msra.mxu0 %v4989
    %5376 = vmatprep.subr.mxu0 0.0
    %5377 = vmatpush1.msra.mxu0 %v4990
    %5378 = vmatprep.subr.mxu0 0.0
    %5379 = vmatpush1.msra.mxu0 %v4991
    %5380 = vmatprep.subr.mxu0 0.0
    %5381 = vmatpush1.msra.mxu0 %v4992
    %5382 = vmatprep.subr.mxu0 0.0
    %5383 = vmatpush1.msra.mxu0 %v4993
    %5384 = vmatprep.subr.mxu0 0.0
    %5385 = vmatpush1.msra.mxu0 %v4994
    %5386 = vmatprep.subr.mxu0 0.0
    %5387 = vmatpush1.msra.mxu0 %v4995
    %5388 = vmatprep.subr.mxu0 0.0
    %5389 = vmatpush1.msra.mxu0 %v4996
    %5390 = vmatprep.subr.mxu0 0.0
    %5391 = vmatpush1.msra.mxu0 %v4997
    %5392 = vmatprep.subr.mxu0 0.0
    %5393 = vmatpush1.msra.mxu0 %v4998
    %5394 = vmatprep.subr.mxu0 0.0
    %5395 = vmatpush1.msra.mxu0 %v4999
    %5396 = vmatprep.subr.mxu0 0.0
    %5397 = vmatpush1.msra.mxu0 %v5000
    %5398 = vmatprep.mubr.f32.mxu0 %v5324
    %5399 = vmatmul.mubr.f32.gmra.mrb[0].mxu0 %v5323
    %v5400 = vpop.f32.mrb[0].mxu0
    %v5401 = vadd.f32 0.0, %v5400
    %v5402 = vpop.f32.mrb[0].mxu0
    %5403 = vdwg.mxu0
    %5404 = vmatprep.subr.mxu0 0.0
    %5405 = vmatpush1.msra.mxu0 %v5001
    %5406 = vmatprep.subr.mxu0 0.0
    %5407 = vmatpush1.msra.mxu0 %v5002
    %5408 = vmatprep.subr.mxu0 0.0
    %5409 = vmatpush1.msra.mxu0 %v5003
    %5410 = vmatprep.subr.mxu0 0.0
    %5411 = vmatpush1.msra.mxu0 %v5004
    %5412 = vmatprep.subr.mxu0 0.0
    %5413 = vmatpush1.msra.mxu0 %v5005
    %5414 = vmatprep.subr.mxu0 0.0
    %5415 = vmatpush1.msra.mxu0 %v5006
    %5416 = vmatprep.subr.mxu0 0.0
    %5417 = vmatpush1.msra.mxu0 %v5007
    %5418 = vmatprep.subr.mxu0 0.0
    %5419 = vmatpush1.msra.mxu0 %v5008
    %5420 = vmatprep.subr.mxu0 0.0
    %5421 = vmatpush1.msra.mxu0 %v5009
    %5422 = vmatprep.subr.mxu0 0.0
    %5423 = vmatpush1.msra.mxu0 %v5010
    %5424 = vmatprep.subr.mxu0 0.0
    %5425 = vmatpush1.msra.mxu0 %v5011
    %5426 = vmatprep.subr.mxu0 0.0
    %5427 = vmatpush1.msra.mxu0 %v5012
    %5428 = vmatprep.subr.mxu0 0.0
    %5429 = vmatpush1.msra.mxu0 %v5013
    %5430 = vmatprep.subr.mxu0 0.0
    %5431 = vmatpush1.msra.mxu0 %v5014
    %5432 = vmatprep.subr.mxu0 0.0
    %5433 = vmatpush1.msra.mxu0 %v5015
    %5434 = vmatprep.subr.mxu0 0.0
    %5435 = vmatpush1.msra.mxu0 %v5016
    %5436 = vmatprep.subr.mxu0 0.0
    %5437 = vmatpush1.msra.mxu0 %v5017
    %5438 = vmatprep.subr.mxu0 0.0
    %5439 = vmatpush1.msra.mxu0 %v5018
    %5440 = vmatprep.subr.mxu0 0.0
    %5441 = vmatpush1.msra.mxu0 %v5019
    %5442 = vmatprep.subr.mxu0 0.0
    %5443 = vmatpush1.msra.mxu0 %v5020
    %5444 = vmatprep.subr.mxu0 0.0
    %5445 = vmatpush1.msra.mxu0 %v5021
    %5446 = vmatprep.subr.mxu0 0.0
    %5447 = vmatpush1.msra.mxu0 %v5022
    %5448 = vmatprep.subr.mxu0 0.0
    %5449 = vmatpush1.msra.mxu0 %v5023
    %5450 = vmatprep.subr.mxu0 0.0
    %5451 = vmatpush1.msra.mxu0 %v5024
    %5452 = vmatprep.subr.mxu0 0.0
    %5453 = vmatpush1.msra.mxu0 %v5025
    %5454 = vmatprep.subr.mxu0 0.0
    %5455 = vmatpush1.msra.mxu0 %v5026
    %5456 = vmatprep.subr.mxu0 0.0
    %5457 = vmatpush1.msra.mxu0 %v5027
    %5458 = vmatprep.subr.mxu0 0.0
    %5459 = vmatpush1.msra.mxu0 %v5028
    %5460 = vmatprep.subr.mxu0 0.0
    %5461 = vmatpush1.msra.mxu0 %v5029
    %5462 = vmatprep.subr.mxu0 0.0
    %5463 = vmatpush1.msra.mxu0 %v5030
    %5464 = vmatprep.subr.mxu0 0.0
    %5465 = vmatpush1.msra.mxu0 %v5031
    %5466 = vmatprep.subr.mxu0 0.0
    %5467 = vmatpush1.msra.mxu0 %v5032
    %5468 = vmatprep.mubr.f32.mxu0 %v5326
    %5469 = vmatmul.mubr.f32.gmra.mrb[0].mxu0 %v5325
    %v5470 = vpop.f32.mrb[0].mxu0
    %v5471 = vadd.f32 %v5401, %v5470
    %v5472 = vpop.f32.mrb[0].mxu0
    %5473 = vdwg.mxu0
    %5474 = vmatprep.subr.mxu0 0.0
    %5475 = vmatpush1.msra.mxu0 %v5033
    %5476 = vmatprep.subr.mxu0 0.0
    %5477 = vmatpush1.msra.mxu0 %v5034
    %5478 = vmatprep.subr.mxu0 0.0
    %5479 = vmatpush1.msra.mxu0 %v5035
    %5480 = vmatprep.subr.mxu0 0.0
    %5481 = vmatpush1.msra.mxu0 %v5036
    %5482 = vmatprep.subr.mxu0 0.0
    %5483 = vmatpush1.msra.mxu0 %v5037
    %5484 = vmatprep.subr.mxu0 0.0
    %5485 = vmatpush1.msra.mxu0 %v5038
    %5486 = vmatprep.subr.mxu0 0.0
    %5487 = vmatpush1.msra.mxu0 %v5039
    %5488 = vmatprep.subr.mxu0 0.0
    %5489 = vmatpush1.msra.mxu0 %v5040
    %5490 = vmatprep.subr.mxu0 0.0
    %5491 = vmatpush1.msra.mxu0 %v5041
    %5492 = vmatprep.subr.mxu0 0.0
    %5493 = vmatpush1.msra.mxu0 %v5042
    %5494 = vmatprep.subr.mxu0 0.0
    %5495 = vmatpush1.msra.mxu0 %v5043
    %5496 = vmatprep.subr.mxu0 0.0
    %5497 = vmatpush1.msra.mxu0 %v5044
    %5498 = vmatprep.subr.mxu0 0.0
    %5499 = vmatpush1.msra.mxu0 %v5045
    %5500 = vmatprep.subr.mxu0 0.0
    %5501 = vmatpush1.msra.mxu0 %v5046
    %5502 = vmatprep.subr.mxu0 0.0
    %5503 = vmatpush1.msra.mxu0 %v5047
    %5504 = vmatprep.subr.mxu0 0.0
    %5505 = vmatpush1.msra.mxu0 %v5048
    %5506 = vmatprep.subr.mxu0 0.0
    %5507 = vmatpush1.msra.mxu0 %v5049
    %5508 = vmatprep.subr.mxu0 0.0
    %5509 = vmatpush1.msra.mxu0 %v5050
    %5510 = vmatprep.subr.mxu0 0.0
    %5511 = vmatpush1.msra.mxu0 %v5051
    %5512 = vmatprep.subr.mxu0 0.0
    %5513 = vmatpush1.msra.mxu0 %v5052
    %5514 = vmatprep.subr.mxu0 0.0
    %5515 = vmatpush1.msra.mxu0 %v5053
    %5516 = vmatprep.subr.mxu0 0.0
    %5517 = vmatpush1.msra.mxu0 %v5054
    %5518 = vmatprep.subr.mxu0 0.0
    %5519 = vmatpush1.msra.mxu0 %v5055
    %5520 = vmatprep.subr.mxu0 0.0
    %5521 = vmatpush1.msra.mxu0 %v5056
    %5522 = vmatprep.subr.mxu0 0.0
    %5523 = vmatpush1.msra.mxu0 %v5057
    %5524 = vmatprep.subr.mxu0 0.0
    %5525 = vmatpush1.msra.mxu0 %v5058
    %5526 = vmatprep.subr.mxu0 0.0
    %5527 = vmatpush1.msra.mxu0 %v5059
    %5528 = vmatprep.subr.mxu0 0.0
    %5529 = vmatpush1.msra.mxu0 %v5060
    %5530 = vmatprep.subr.mxu0 0.0
    %5531 = vmatpush1.msra.mxu0 %v5061
    %5532 = vmatprep.subr.mxu0 0.0
    %5533 = vmatpush1.msra.mxu0 %v5062
    %5534 = vmatprep.subr.mxu0 0.0
    %5535 = vmatpush1.msra.mxu0 %v5063
    %5536 = vmatprep.subr.mxu0 0.0
    %5537 = vmatpush1.msra.mxu0 %v5064
    %5538 = vmatprep.mubr.f32.mxu0 %v5328
    %5539 = vmatmul.mubr.f32.gmra.mrb[0].mxu0 %v5327
    %v5540 = vpop.f32.mrb[0].mxu0
    %v5541 = vadd.f32 %v5471, %v5540
    %v5542 = vpop.f32.mrb[0].mxu0
    %5543 = vdwg.mxu0
    %5544 = vmatprep.subr.mxu0 0.0
    %5545 = vmatpush1.msra.mxu0 %v5065
    %5546 = vmatprep.subr.mxu0 0.0
    %5547 = vmatpush1.msra.mxu0 %v5066
    %5548 = vmatprep.subr.mxu0 0.0
    %5549 = vmatpush1.msra.mxu0 %v5067
    %5550 = vmatprep.subr.mxu0 0.0
    %5551 = vmatpush1.msra.mxu0 %v5068
    %5552 = vmatprep.subr.mxu0 0.0
    %5553 = vmatpush1.msra.mxu0 %v5069
    %5554 = vmatprep.subr.mxu0 0.0
    %5555 = vmatpush1.msra.mxu0 %v5070
    %5556 = vmatprep.subr.mxu0 0.0
    %5557 = vmatpush1.msra.mxu0 %v5071
    %5558 = vmatprep.subr.mxu0 0.0
    %5559 = vmatpush1.msra.mxu0 %v5072
    %5560 = vmatprep.subr.mxu0 0.0
    %5561 = vmatpush1.msra.mxu0 %v5073
    %5562 = vmatprep.subr.mxu0 0.0
    %5563 = vmatpush1.msra.mxu0 %v5074
    %5564 = vmatprep.subr.mxu0 0.0
    %5565 = vmatpush1.msra.mxu0 %v5075
    %5566 = vmatprep.subr.mxu0 0.0
    %5567 = vmatpush1.msra.mxu0 %v5076
    %5568 = vmatprep.subr.mxu0 0.0
    %5569 = vmatpush1.msra.mxu0 %v5077
    %5570 = vmatprep.subr.mxu0 0.0
    %5571 = vmatpush1.msra.mxu0 %v5078
    %5572 = vmatprep.subr.mxu0 0.0
    %5573 = vmatpush1.msra.mxu0 %v5079
    %5574 = vmatprep.subr.mxu0 0.0
    %5575 = vmatpush1.msra.mxu0 %v5080
    %5576 = vmatprep.subr.mxu0 0.0
    %5577 = vmatpush1.msra.mxu0 %v5081
    %5578 = vmatprep.subr.mxu0 0.0
    %5579 = vmatpush1.msra.mxu0 %v5082
    %5580 = vmatprep.subr.mxu0 0.0
    %5581 = vmatpush1.msra.mxu0 %v5083
    %5582 = vmatprep.subr.mxu0 0.0
    %5583 = vmatpush1.msra.mxu0 %v5084
    %5584 = vmatprep.subr.mxu0 0.0
    %5585 = vmatpush1.msra.mxu0 %v5085
    %5586 = vmatprep.subr.mxu0 0.0
    %5587 = vmatpush1.msra.mxu0 %v5086
    %5588 = vmatprep.subr.mxu0 0.0
    %5589 = vmatpush1.msra.mxu0 %v5087
    %5590 = vmatprep.subr.mxu0 0.0
    %5591 = vmatpush1.msra.mxu0 %v5088
    %5592 = vmatprep.subr.mxu0 0.0
    %5593 = vmatpush1.msra.mxu0 %v5089
    %5594 = vmatprep.subr.mxu0 0.0
    %5595 = vmatpush1.msra.mxu0 %v5090
    %5596 = vmatprep.subr.mxu0 0.0
    %5597 = vmatpush1.msra.mxu0 %v5091
    %5598 = vmatprep.subr.mxu0 0.0
    %5599 = vmatpush1.msra.mxu0 %v5092
    %5600 = vmatprep.subr.mxu0 0.0
    %5601 = vmatpush1.msra.mxu0 %v5093
    %5602 = vmatprep.subr.mxu0 0.0
    %5603 = vmatpush1.msra.mxu0 %v5094
    %5604 = vmatprep.subr.mxu0 0.0
    %5605 = vmatpush1.msra.mxu0 %v5095
    %5606 = vmatprep.subr.mxu0 0.0
    %5607 = vmatpush1.msra.mxu0 %v5096
    %5608 = vmatprep.mubr.f32.mxu0 %v5330
    %5609 = vmatmul.mubr.f32.gmra.mrb[0].mxu0 %v5329
    %v5610 = vpop.f32.mrb[0].mxu0
    %v5611 = vadd.f32 %v5541, %v5610
    %v5612 = vpop.f32.mrb[0].mxu0
    %5613 = vdwg.mxu0
    %5614 = vmatprep.subr.mxu0 0.0
    %5615 = vmatpush1.msra.mxu0 %v5097
    %5616 = vmatprep.subr.mxu0 0.0
    %5617 = vmatpush1.msra.mxu0 %v5098
    %5618 = vmatprep.subr.mxu0 0.0
    %5619 = vmatpush1.msra.mxu0 %v5099
    %5620 = vmatprep.subr.mxu0 0.0
    %5621 = vmatpush1.msra.mxu0 %v5100
    %5622 = vmatprep.subr.mxu0 0.0
    %5623 = vmatpush1.msra.mxu0 %v5101
    %5624 = vmatprep.subr.mxu0 0.0
    %5625 = vmatpush1.msra.mxu0 %v5102
    %5626 = vmatprep.subr.mxu0 0.0
    %5627 = vmatpush1.msra.mxu0 %v5103
    %5628 = vmatprep.subr.mxu0 0.0
    %5629 = vmatpush1.msra.mxu0 %v5104
    %5630 = vmatprep.subr.mxu0 0.0
    %5631 = vmatpush1.msra.mxu0 %v5105
    %5632 = vmatprep.subr.mxu0 0.0
    %5633 = vmatpush1.msra.mxu0 %v5106
    %5634 = vmatprep.subr.mxu0 0.0
    %5635 = vmatpush1.msra.mxu0 %v5107
    %5636 = vmatprep.subr.mxu0 0.0
    %5637 = vmatpush1.msra.mxu0 %v5108
    %5638 = vmatprep.subr.mxu0 0.0
    %5639 = vmatpush1.msra.mxu0 %v5109
    %5640 = vmatprep.subr.mxu0 0.0
    %5641 = vmatpush1.msra.mxu0 %v5110
    %5642 = vmatprep.subr.mxu0 0.0
    %5643 = vmatpush1.msra.mxu0 %v5111
    %5644 = vmatprep.subr.mxu0 0.0
    %5645 = vmatpush1.msra.mxu0 %v5112
    %5646 = vmatprep.subr.mxu0 0.0
    %5647 = vmatpush1.msra.mxu0 %v5113
    %5648 = vmatprep.subr.mxu0 0.0
    %5649 = vmatpush1.msra.mxu0 %v5114
    %5650 = vmatprep.subr.mxu0 0.0
    %5651 = vmatpush1.msra.mxu0 %v5115
    %5652 = vmatprep.subr.mxu0 0.0
    %5653 = vmatpush1.msra.mxu0 %v5116
    %5654 = vmatprep.subr.mxu0 0.0
    %5655 = vmatpush1.msra.mxu0 %v5117
    %5656 = vmatprep.subr.mxu0 0.0
    %5657 = vmatpush1.msra.mxu0 %v5118
    %5658 = vmatprep.subr.mxu0 0.0
    %5659 = vmatpush1.msra.mxu0 %v5119
    %5660 = vmatprep.subr.mxu0 0.0
    %5661 = vmatpush1.msra.mxu0 %v5120
    %5662 = vmatprep.subr.mxu0 0.0
    %5663 = vmatpush1.msra.mxu0 %v5121
    %5664 = vmatprep.subr.mxu0 0.0
    %5665 = vmatpush1.msra.mxu0 %v5122
    %5666 = vmatprep.subr.mxu0 0.0
    %5667 = vmatpush1.msra.mxu0 %v5123
    %5668 = vmatprep.subr.mxu0 0.0
    %5669 = vmatpush1.msra.mxu0 %v5124
    %5670 = vmatprep.subr.mxu0 0.0
    %5671 = vmatpush1.msra.mxu0 %v5125
    %5672 = vmatprep.subr.mxu0 0.0
    %5673 = vmatpush1.msra.mxu0 %v5126
    %5674 = vmatprep.subr.mxu0 0.0
    %5675 = vmatpush1.msra.mxu0 %v5127
    %5676 = vmatprep.subr.mxu0 0.0
    %5677 = vmatpush1.msra.mxu0 %v5128
    %5678 = vmatprep.mubr.f32.mxu0 %v5332
    %5679 = vmatmul.mubr.f32.gmra.mrb[0].mxu0 %v5331
    %v5680 = vpop.f32.mrb[0].mxu0
    %v5681 = vadd.f32 %v5611, %v5680
    %v5682 = vpop.f32.mrb[0].mxu0
    %5683 = vdwg.mxu0
    %5684 = vmatprep.subr.mxu0 0.0
    %5685 = vmatpush1.msra.mxu0 %v5129
    %5686 = vmatprep.subr.mxu0 0.0
    %5687 = vmatpush1.msra.mxu0 %v5130
    %5688 = vmatprep.subr.mxu0 0.0
    %5689 = vmatpush1.msra.mxu0 %v5131
    %5690 = vmatprep.subr.mxu0 0.0
    %5691 = vmatpush1.msra.mxu0 %v5132
    %5692 = vmatprep.subr.mxu0 0.0
    %5693 = vmatpush1.msra.mxu0 %v5133
    %5694 = vmatprep.subr.mxu0 0.0
    %5695 = vmatpush1.msra.mxu0 %v5134
    %5696 = vmatprep.subr.mxu0 0.0
    %5697 = vmatpush1.msra.mxu0 %v5135
    %5698 = vmatprep.subr.mxu0 0.0
    %5699 = vmatpush1.msra.mxu0 %v5136
    %5700 = vmatprep.subr.mxu0 0.0
    %5701 = vmatpush1.msra.mxu0 %v5137
    %5702 = vmatprep.subr.mxu0 0.0
    %5703 = vmatpush1.msra.mxu0 %v5138
    %5704 = vmatprep.subr.mxu0 0.0
    %5705 = vmatpush1.msra.mxu0 %v5139
    %5706 = vmatprep.subr.mxu0 0.0
    %5707 = vmatpush1.msra.mxu0 %v5140
    %5708 = vmatprep.subr.mxu0 0.0
    %5709 = vmatpush1.msra.mxu0 %v5141
    %5710 = vmatprep.subr.mxu0 0.0
    %5711 = vmatpush1.msra.mxu0 %v5142
    %5712 = vmatprep.subr.mxu0 0.0
    %5713 = vmatpush1.msra.mxu0 %v5143
    %5714 = vmatprep.subr.mxu0 0.0
    %5715 = vmatpush1.msra.mxu0 %v5144
    %5716 = vmatprep.subr.mxu0 0.0
    %5717 = vmatpush1.msra.mxu0 0.0
    %5718 = vmatprep.subr.mxu0 0.0
    %5719 = vmatpush1.msra.mxu0 0.0
    %5720 = vmatprep.subr.mxu0 0.0
    %5721 = vmatpush1.msra.mxu0 0.0
    %5722 = vmatprep.subr.mxu0 0.0
    %5723 = vmatpush1.msra.mxu0 0.0
    %5724 = vmatprep.subr.mxu0 0.0
    %5725 = vmatpush1.msra.mxu0 0.0
    %5726 = vmatprep.subr.mxu0 0.0
    %5727 = vmatpush1.msra.mxu0 0.0
    %5728 = vmatprep.subr.mxu0 0.0
    %5729 = vmatpush1.msra.mxu0 0.0
    %5730 = vmatprep.subr.mxu0 0.0
    %5731 = vmatpush1.msra.mxu0 0.0
    %5732 = vmatprep.subr.mxu0 0.0
    %5733 = vmatpush1.msra.mxu0 0.0
    %5734 = vmatprep.subr.mxu0 0.0
    %5735 = vmatpush1.msra.mxu0 0.0
    %5736 = vmatprep.subr.mxu0 0.0
    %5737 = vmatpush1.msra.mxu0 0.0
    %5738 = vmatprep.subr.mxu0 0.0
    %5739 = vmatpush1.msra.mxu0 0.0
    %5740 = vmatprep.subr.mxu0 0.0
    %5741 = vmatpush1.msra.mxu0 0.0
    %5742 = vmatprep.subr.mxu0 0.0
    %5743 = vmatpush1.msra.mxu0 0.0
    %5744 = vmatprep.subr.mxu0 0.0
    %5745 = vmatpush1.msra.mxu0 0.0
    %5746 = vmatprep.subr.mxu0 0.0
    %5747 = vmatpush1.msra.mxu0 0.0
    %5748 = vmatprep.mubr.f32.mxu0 0.0
    %5749 = vmatmul.mubr.f32.gmra.mrb[0].mxu0 %v5333
    %v5750 = vpop.f32.mrb[0].mxu0
    %v5751 = vadd.f32 %v5681, %v5750
    %v5752 = vpop.f32.mrb[0].mxu0
    %5753 = vdwg.mxu0
    %v5754 = vmul.f32 %v5751, %v5751
    %v5756 = vrot.slane %v5754, 7
    %v5758 = vsub.f32 %v5751, %v5756
    %v5759 = vadd.f32 %v5758, 1e-05
    %v5760 = vrsqrt.pop %v5759
    %v5763 = vunpack.c.l.s4 1966171168
    %v5764 = vunpack.c.0.s8 %v5763
    %v5765 = vlaneseq
    %v5766 = vshrl.u32 %v5765, 7
    %v5767 = vsub.s32 %v5764, %v5766
    %v5768 = vrot.slane %v5760, %v5767
    %v5769 = vcombine.high %v5768, %v5768
    %v5771 = vunpack.c.l.s4 1966171168
    %v5772 = vunpack.c.0.s8 %v5771
    %v5773 = vlaneseq
    %v5774 = vshrl.u32 %v5773, 7
    %v5775 = vsub.s32 %v5772, %v5774
    %v5776 = vrot.slane %v5769, %v5775
    %v5778 = vmul.f32 %v5156, %v5776
    %v5779 = vmul.f32 %v5751, %v5778
    %v5780 = vsub.f32 %v5157, %v5779
    %v5782 = vlaneseq
    %v5783 = vshrl.u32 %v5782, 7
    %v5784 = vsub.s32 0, %v5783
    %v5785 = vrot.slane %v5780, %v5784
    %v5787 = vsel %vm929, %v5778, %v5785
    %vm5788 = vcmask 64512
    %v5790 = vsel %vm5788, %v5787, 0
    %5792 = vmatprep.subr.mxu0 %v5146
    %5793 = vmatpush1.msra.mxu0 %v5145
    %5794 = vmatprep.subr.mxu0 0.0
    %5795 = vmatpush1.msra.mxu0 0.0
    %5796 = vmatprep.subr.mxu0 0.0
    %5797 = vmatpush1.msra.mxu0 0.0
    %5798 = vmatprep.subr.mxu0 0.0
    %5799 = vmatpush1.msra.mxu0 0.0
    %5800 = vmatprep.subr.mxu0 0.0
    %5801 = vmatpush1.msra.mxu0 0.0
    %5802 = vmatprep.subr.mxu0 0.0
    %5803 = vmatpush1.msra.mxu0 0.0
    %5804 = vmatprep.subr.mxu0 0.0
    %5805 = vmatpush1.msra.mxu0 0.0
    %5806 = vmatprep.subr.mxu0 0.0
    %5807 = vmatpush1.msra.mxu0 0.0
    %5808 = vmatprep.subr.mxu0 0.0
    %5809 = vmatpush1.msra.mxu0 0.0
    %5810 = vmatprep.subr.mxu0 0.0
    %5811 = vmatpush1.msra.mxu0 0.0
    %5812 = vmatprep.subr.mxu0 0.0
    %5813 = vmatpush1.msra.mxu0 0.0
    %5814 = vmatprep.subr.mxu0 0.0
    %5815 = vmatpush1.msra.mxu0 0.0
    %5816 = vmatprep.subr.mxu0 0.0
    %5817 = vmatpush1.msra.mxu0 0.0
    %5818 = vmatprep.subr.mxu0 0.0
    %5819 = vmatpush1.msra.mxu0 0.0
    %5820 = vmatprep.subr.mxu0 0.0
    %5821 = vmatpush1.msra.mxu0 0.0
    %5822 = vmatprep.subr.mxu0 0.0
    %5823 = vmatpush1.msra.mxu0 0.0
    %5824 = vmatprep.subr.mxu0 0.0
    %5825 = vmatpush1.msra.mxu0 0.0
    %5826 = vmatprep.subr.mxu0 0.0
    %5827 = vmatpush1.msra.mxu0 0.0
    %5828 = vmatprep.subr.mxu0 0.0
    %5829 = vmatpush1.msra.mxu0 0.0
    %5830 = vmatprep.subr.mxu0 0.0
    %5831 = vmatpush1.msra.mxu0 0.0
    %5832 = vmatprep.subr.mxu0 0.0
    %5833 = vmatpush1.msra.mxu0 0.0
    %5834 = vmatprep.subr.mxu0 0.0
    %5835 = vmatpush1.msra.mxu0 0.0
    %5836 = vmatprep.subr.mxu0 0.0
    %5837 = vmatpush1.msra.mxu0 0.0
    %5838 = vmatprep.subr.mxu0 0.0
    %5839 = vmatpush1.msra.mxu0 0.0
    %5840 = vmatprep.subr.mxu0 0.0
    %5841 = vmatpush1.msra.mxu0 0.0
    %5842 = vmatprep.subr.mxu0 0.0
    %5843 = vmatpush1.msra.mxu0 0.0
    %5844 = vmatprep.subr.mxu0 0.0
    %5845 = vmatpush1.msra.mxu0 0.0
    %5846 = vmatprep.subr.mxu0 0.0
    %5847 = vmatpush1.msra.mxu0 0.0
    %5848 = vmatprep.subr.mxu0 0.0
    %5849 = vmatpush1.msra.mxu0 0.0
    %5850 = vmatprep.subr.mxu0 0.0
    %5851 = vmatpush1.msra.mxu0 0.0
    %5852 = vmatprep.subr.mxu0 0.0
    %5853 = vmatpush1.msra.mxu0 0.0
    %5854 = vmatprep.subr.mxu0 0.0
    %5855 = vmatpush1.msra.mxu0 0.0
    %5856 = vmatprep.mubr.f32.mxu0 0.0
    %5857 = vmatmul.mubr.f32.gmra.mrb[0].mxu0 %v5790
    %v5858 = vpop.f32.mrb[0].mxu0
    %v5859 = vadd.f32 0.0, %v5858
    %v5860 = vpop.f32.mrb[0].mxu0
    %v5861 = vadd.f32 0.0, %v5860
    %5862 = vdwg.mxu0
    %5863 = vmatprep.subr.mxu0 %v5148
    %5864 = vmatpush1.msra.mxu0 %v5147
    %5865 = vmatprep.subr.mxu0 0.0
    %5866 = vmatpush1.msra.mxu0 0.0
    %5867 = vmatprep.subr.mxu0 0.0
    %5868 = vmatpush1.msra.mxu0 0.0
    %5869 = vmatprep.subr.mxu0 0.0
    %5870 = vmatpush1.msra.mxu0 0.0
    %5871 = vmatprep.subr.mxu0 0.0
    %5872 = vmatpush1.msra.mxu0 0.0
    %5873 = vmatprep.subr.mxu0 0.0
    %5874 = vmatpush1.msra.mxu0 0.0
    %5875 = vmatprep.subr.mxu0 0.0
    %5876 = vmatpush1.msra.mxu0 0.0
    %5877 = vmatprep.subr.mxu0 0.0
    %5878 = vmatpush1.msra.mxu0 0.0
    %5879 = vmatprep.subr.mxu0 0.0
    %5880 = vmatpush1.msra.mxu0 0.0
    %5881 = vmatprep.subr.mxu0 0.0
    %5882 = vmatpush1.msra.mxu0 0.0
    %5883 = vmatprep.subr.mxu0 0.0
    %5884 = vmatpush1.msra.mxu0 0.0
    %5885 = vmatprep.subr.mxu0 0.0
    %5886 = vmatpush1.msra.mxu0 0.0
    %5887 = vmatprep.subr.mxu0 0.0
    %5888 = vmatpush1.msra.mxu0 0.0
    %5889 = vmatprep.subr.mxu0 0.0
    %5890 = vmatpush1.msra.mxu0 0.0
    %5891 = vmatprep.subr.mxu0 0.0
    %5892 = vmatpush1.msra.mxu0 0.0
    %5893 = vmatprep.subr.mxu0 0.0
    %5894 = vmatpush1.msra.mxu0 0.0
    %5895 = vmatprep.subr.mxu0 0.0
    %5896 = vmatpush1.msra.mxu0 0.0
    %5897 = vmatprep.subr.mxu0 0.0
    %5898 = vmatpush1.msra.mxu0 0.0
    %5899 = vmatprep.subr.mxu0 0.0
    %5900 = vmatpush1.msra.mxu0 0.0
    %5901 = vmatprep.subr.mxu0 0.0
    %5902 = vmatpush1.msra.mxu0 0.0
    %5903 = vmatprep.subr.mxu0 0.0
    %5904 = vmatpush1.msra.mxu0 0.0
    %5905 = vmatprep.subr.mxu0 0.0
    %5906 = vmatpush1.msra.mxu0 0.0
    %5907 = vmatprep.subr.mxu0 0.0
    %5908 = vmatpush1.msra.mxu0 0.0
    %5909 = vmatprep.subr.mxu0 0.0
    %5910 = vmatpush1.msra.mxu0 0.0
    %5911 = vmatprep.subr.mxu0 0.0
    %5912 = vmatpush1.msra.mxu0 0.0
    %5913 = vmatprep.subr.mxu0 0.0
    %5914 = vmatpush1.msra.mxu0 0.0
    %5915 = vmatprep.subr.mxu0 0.0
    %5916 = vmatpush1.msra.mxu0 0.0
    %5917 = vmatprep.subr.mxu0 0.0
    %5918 = vmatpush1.msra.mxu0 0.0
    %5919 = vmatprep.subr.mxu0 0.0
    %5920 = vmatpush1.msra.mxu0 0.0
    %5921 = vmatprep.subr.mxu0 0.0
    %5922 = vmatpush1.msra.mxu0 0.0
    %5923 = vmatprep.subr.mxu0 0.0
    %5924 = vmatpush1.msra.mxu0 0.0
    %5925 = vmatprep.subr.mxu0 0.0
    %5926 = vmatpush1.msra.mxu0 0.0
    %5927 = vmatprep.mubr.f32.mxu0 0.0
    %5928 = vmatmul.mubr.f32.gmra.mrb[0].mxu0 %v5790
    %v5929 = vpop.f32.mrb[0].mxu0
    %v5930 = vadd.f32 0.0, %v5929
    %v5931 = vpop.f32.mrb[0].mxu0
    %v5932 = vadd.f32 0.0, %v5931
    %5933 = vdwg.mxu0
    %5934 = vmatprep.subr.mxu0 %v5150
    %5935 = vmatpush1.msra.mxu0 %v5149
    %5936 = vmatprep.subr.mxu0 0.0
    %5937 = vmatpush1.msra.mxu0 0.0
    %5938 = vmatprep.subr.mxu0 0.0
    %5939 = vmatpush1.msra.mxu0 0.0
    %5940 = vmatprep.subr.mxu0 0.0
    %5941 = vmatpush1.msra.mxu0 0.0
    %5942 = vmatprep.subr.mxu0 0.0
    %5943 = vmatpush1.msra.mxu0 0.0
    %5944 = vmatprep.subr.mxu0 0.0
    %5945 = vmatpush1.msra.mxu0 0.0
    %5946 = vmatprep.subr.mxu0 0.0
    %5947 = vmatpush1.msra.mxu0 0.0
    %5948 = vmatprep.subr.mxu0 0.0
    %5949 = vmatpush1.msra.mxu0 0.0
    %5950 = vmatprep.subr.mxu0 0.0
    %5951 = vmatpush1.msra.mxu0 0.0
    %5952 = vmatprep.subr.mxu0 0.0
    %5953 = vmatpush1.msra.mxu0 0.0
    %5954 = vmatprep.subr.mxu0 0.0
    %5955 = vmatpush1.msra.mxu0 0.0
    %5956 = vmatprep.subr.mxu0 0.0
    %5957 = vmatpush1.msra.mxu0 0.0
    %5958 = vmatprep.subr.mxu0 0.0
    %5959 = vmatpush1.msra.mxu0 0.0
    %5960 = vmatprep.subr.mxu0 0.0
    %5961 = vmatpush1.msra.mxu0 0.0
    %5962 = vmatprep.subr.mxu0 0.0
    %5963 = vmatpush1.msra.mxu0 0.0
    %5964 = vmatprep.subr.mxu0 0.0
    %5965 = vmatpush1.msra.mxu0 0.0
    %5966 = vmatprep.subr.mxu0 0.0
    %5967 = vmatpush1.msra.mxu0 0.0
    %5968 = vmatprep.subr.mxu0 0.0
    %5969 = vmatpush1.msra.mxu0 0.0
    %5970 = vmatprep.subr.mxu0 0.0
    %5971 = vmatpush1.msra.mxu0 0.0
    %5972 = vmatprep.subr.mxu0 0.0
    %5973 = vmatpush1.msra.mxu0 0.0
    %5974 = vmatprep.subr.mxu0 0.0
    %5975 = vmatpush1.msra.mxu0 0.0
    %5976 = vmatprep.subr.mxu0 0.0
    %5977 = vmatpush1.msra.mxu0 0.0
    %5978 = vmatprep.subr.mxu0 0.0
    %5979 = vmatpush1.msra.mxu0 0.0
    %5980 = vmatprep.subr.mxu0 0.0
    %5981 = vmatpush1.msra.mxu0 0.0
    %5982 = vmatprep.subr.mxu0 0.0
    %5983 = vmatpush1.msra.mxu0 0.0
    %5984 = vmatprep.subr.mxu0 0.0
    %5985 = vmatpush1.msra.mxu0 0.0
    %5986 = vmatprep.subr.mxu0 0.0
    %5987 = vmatpush1.msra.mxu0 0.0
    %5988 = vmatprep.subr.mxu0 0.0
    %5989 = vmatpush1.msra.mxu0 0.0
    %5990 = vmatprep.subr.mxu0 0.0
    %5991 = vmatpush1.msra.mxu0 0.0
    %5992 = vmatprep.subr.mxu0 0.0
    %5993 = vmatpush1.msra.mxu0 0.0
    %5994 = vmatprep.subr.mxu0 0.0
    %5995 = vmatpush1.msra.mxu0 0.0
    %5996 = vmatprep.subr.mxu0 0.0
    %5997 = vmatpush1.msra.mxu0 0.0
    %5998 = vmatprep.mubr.f32.mxu0 0.0
    %5999 = vmatmul.mubr.f32.gmra.mrb[0].mxu0 %v5790
    %v6000 = vpop.f32.mrb[0].mxu0
    %v6001 = vadd.f32 0.0, %v6000
    %v6002 = vpop.f32.mrb[0].mxu0
    %v6003 = vadd.f32 0.0, %v6002
    %6004 = vdwg.mxu0
    %6005 = vmatprep.subr.mxu0 %v5152
    %6006 = vmatpush1.msra.mxu0 %v5151
    %6007 = vmatprep.subr.mxu0 0.0
    %6008 = vmatpush1.msra.mxu0 0.0
    %6009 = vmatprep.subr.mxu0 0.0
    %6010 = vmatpush1.msra.mxu0 0.0
    %6011 = vmatprep.subr.mxu0 0.0
    %6012 = vmatpush1.msra.mxu0 0.0
    %6013 = vmatprep.subr.mxu0 0.0
    %6014 = vmatpush1.msra.mxu0 0.0
    %6015 = vmatprep.subr.mxu0 0.0
    %6016 = vmatpush1.msra.mxu0 0.0
    %6017 = vmatprep.subr.mxu0 0.0
    %6018 = vmatpush1.msra.mxu0 0.0
    %6019 = vmatprep.subr.mxu0 0.0
    %6020 = vmatpush1.msra.mxu0 0.0
    %6021 = vmatprep.subr.mxu0 0.0
    %6022 = vmatpush1.msra.mxu0 0.0
    %6023 = vmatprep.subr.mxu0 0.0
    %6024 = vmatpush1.msra.mxu0 0.0
    %6025 = vmatprep.subr.mxu0 0.0
    %6026 = vmatpush1.msra.mxu0 0.0
    %6027 = vmatprep.subr.mxu0 0.0
    %6028 = vmatpush1.msra.mxu0 0.0
    %6029 = vmatprep.subr.mxu0 0.0
    %6030 = vmatpush1.msra.mxu0 0.0
    %6031 = vmatprep.subr.mxu0 0.0
    %6032 = vmatpush1.msra.mxu0 0.0
    %6033 = vmatprep.subr.mxu0 0.0
    %6034 = vmatpush1.msra.mxu0 0.0
    %6035 = vmatprep.subr.mxu0 0.0
    %6036 = vmatpush1.msra.mxu0 0.0
    %6037 = vmatprep.subr.mxu0 0.0
    %6038 = vmatpush1.msra.mxu0 0.0
    %6039 = vmatprep.subr.mxu0 0.0
    %6040 = vmatpush1.msra.mxu0 0.0
    %6041 = vmatprep.subr.mxu0 0.0
    %6042 = vmatpush1.msra.mxu0 0.0
    %6043 = vmatprep.subr.mxu0 0.0
    %6044 = vmatpush1.msra.mxu0 0.0
    %6045 = vmatprep.subr.mxu0 0.0
    %6046 = vmatpush1.msra.mxu0 0.0
    %6047 = vmatprep.subr.mxu0 0.0
    %6048 = vmatpush1.msra.mxu0 0.0
    %6049 = vmatprep.subr.mxu0 0.0
    %6050 = vmatpush1.msra.mxu0 0.0
    %6051 = vmatprep.subr.mxu0 0.0
    %6052 = vmatpush1.msra.mxu0 0.0
    %6053 = vmatprep.subr.mxu0 0.0
    %6054 = vmatpush1.msra.mxu0 0.0
    %6055 = vmatprep.subr.mxu0 0.0
    %6056 = vmatpush1.msra.mxu0 0.0
    %6057 = vmatprep.subr.mxu0 0.0
    %6058 = vmatpush1.msra.mxu0 0.0
    %6059 = vmatprep.subr.mxu0 0.0
    %6060 = vmatpush1.msra.mxu0 0.0
    %6061 = vmatprep.subr.mxu0 0.0
    %6062 = vmatpush1.msra.mxu0 0.0
    %6063 = vmatprep.subr.mxu0 0.0
    %6064 = vmatpush1.msra.mxu0 0.0
    %6065 = vmatprep.subr.mxu0 0.0
    %6066 = vmatpush1.msra.mxu0 0.0
    %6067 = vmatprep.subr.mxu0 0.0
    %6068 = vmatpush1.msra.mxu0 0.0
    %6069 = vmatprep.mubr.f32.mxu0 0.0
    %6070 = vmatmul.mubr.f32.gmra.mrb[0].mxu0 %v5790
    %v6071 = vpop.f32.mrb[0].mxu0
    %v6072 = vadd.f32 0.0, %v6071
    %v6073 = vpop.f32.mrb[0].mxu0
    %v6074 = vadd.f32 0.0, %v6073
    %6075 = vdwg.mxu0
    %6076 = vmatprep.subr.mxu0 %v5154
    %6077 = vmatpush1.msra.mxu0 %v5153
    %6078 = vmatprep.subr.mxu0 0.0
    %6079 = vmatpush1.msra.mxu0 0.0
    %6080 = vmatprep.subr.mxu0 0.0
    %6081 = vmatpush1.msra.mxu0 0.0
    %6082 = vmatprep.subr.mxu0 0.0
    %6083 = vmatpush1.msra.mxu0 0.0
    %6084 = vmatprep.subr.mxu0 0.0
    %6085 = vmatpush1.msra.mxu0 0.0
    %6086 = vmatprep.subr.mxu0 0.0
    %6087 = vmatpush1.msra.mxu0 0.0
    %6088 = vmatprep.subr.mxu0 0.0
    %6089 = vmatpush1.msra.mxu0 0.0
    %6090 = vmatprep.subr.mxu0 0.0
    %6091 = vmatpush1.msra.mxu0 0.0
    %6092 = vmatprep.subr.mxu0 0.0
    %6093 = vmatpush1.msra.mxu0 0.0
    %6094 = vmatprep.subr.mxu0 0.0
    %6095 = vmatpush1.msra.mxu0 0.0
    %6096 = vmatprep.subr.mxu0 0.0
    %6097 = vmatpush1.msra.mxu0 0.0
    %6098 = vmatprep.subr.mxu0 0.0
    %6099 = vmatpush1.msra.mxu0 0.0
    %6100 = vmatprep.subr.mxu0 0.0
    %6101 = vmatpush1.msra.mxu0 0.0
    %6102 = vmatprep.subr.mxu0 0.0
    %6103 = vmatpush1.msra.mxu0 0.0
    %6104 = vmatprep.subr.mxu0 0.0
    %6105 = vmatpush1.msra.mxu0 0.0
    %6106 = vmatprep.subr.mxu0 0.0
    %6107 = vmatpush1.msra.mxu0 0.0
    %6108 = vmatprep.subr.mxu0 0.0
    %6109 = vmatpush1.msra.mxu0 0.0
    %6110 = vmatprep.subr.mxu0 0.0
    %6111 = vmatpush1.msra.mxu0 0.0
    %6112 = vmatprep.subr.mxu0 0.0
    %6113 = vmatpush1.msra.mxu0 0.0
    %6114 = vmatprep.subr.mxu0 0.0
    %6115 = vmatpush1.msra.mxu0 0.0
    %6116 = vmatprep.subr.mxu0 0.0
    %6117 = vmatpush1.msra.mxu0 0.0
    %6118 = vmatprep.subr.mxu0 0.0
    %6119 = vmatpush1.msra.mxu0 0.0
    %6120 = vmatprep.subr.mxu0 0.0
    %6121 = vmatpush1.msra.mxu0 0.0
    %6122 = vmatprep.subr.mxu0 0.0
    %6123 = vmatpush1.msra.mxu0 0.0
    %6124 = vmatprep.subr.mxu0 0.0
    %6125 = vmatpush1.msra.mxu0 0.0
    %6126 = vmatprep.subr.mxu0 0.0
    %6127 = vmatpush1.msra.mxu0 0.0
    %6128 = vmatprep.subr.mxu0 0.0
    %6129 = vmatpush1.msra.mxu0 0.0
    %6130 = vmatprep.subr.mxu0 0.0
    %6131 = vmatpush1.msra.mxu0 0.0
    %6132 = vmatprep.subr.mxu0 0.0
    %6133 = vmatpush1.msra.mxu0 0.0
    %6134 = vmatprep.subr.mxu0 0.0
    %6135 = vmatpush1.msra.mxu0 0.0
    %6136 = vmatprep.subr.mxu0 0.0
    %6137 = vmatpush1.msra.mxu0 0.0
    %6138 = vmatprep.subr.mxu0 0.0
    %6139 = vmatpush1.msra.mxu0 0.0
    %6140 = vmatprep.mubr.f32.mxu0 0.0
    %6141 = vmatmul.mubr.f32.gmra.mrb[0].mxu0 %v5790
    %v6142 = vpop.f32.mrb[0].mxu0
    %v6143 = vadd.f32 0.0, %v6142
    %v6144 = vpop.f32.mrb[0].mxu0
    %v6145 = vadd.f32 0.0, %v6144
    %6146 = vdwg.mxu0
    %6147 = vmatprep.subr.mxu0 0.0
    %6148 = vmatpush1.msra.mxu0 %v5155
    %6149 = vmatprep.subr.mxu0 0.0
    %6150 = vmatpush1.msra.mxu0 0.0
    %6151 = vmatprep.subr.mxu0 0.0
    %6152 = vmatpush1.msra.mxu0 0.0
    %6153 = vmatprep.subr.mxu0 0.0
    %6154 = vmatpush1.msra.mxu0 0.0
    %6155 = vmatprep.subr.mxu0 0.0
    %6156 = vmatpush1.msra.mxu0 0.0
    %6157 = vmatprep.subr.mxu0 0.0
    %6158 = vmatpush1.msra.mxu0 0.0
    %6159 = vmatprep.subr.mxu0 0.0
    %6160 = vmatpush1.msra.mxu0 0.0
    %6161 = vmatprep.subr.mxu0 0.0
    %6162 = vmatpush1.msra.mxu0 0.0
    %6163 = vmatprep.subr.mxu0 0.0
    %6164 = vmatpush1.msra.mxu0 0.0
    %6165 = vmatprep.subr.mxu0 0.0
    %6166 = vmatpush1.msra.mxu0 0.0
    %6167 = vmatprep.subr.mxu0 0.0
    %6168 = vmatpush1.msra.mxu0 0.0
    %6169 = vmatprep.subr.mxu0 0.0
    %6170 = vmatpush1.msra.mxu0 0.0
    %6171 = vmatprep.subr.mxu0 0.0
    %6172 = vmatpush1.msra.mxu0 0.0
    %6173 = vmatprep.subr.mxu0 0.0
    %6174 = vmatpush1.msra.mxu0 0.0
    %6175 = vmatprep.subr.mxu0 0.0
    %6176 = vmatpush1.msra.mxu0 0.0
    %6177 = vmatprep.subr.mxu0 0.0
    %6178 = vmatpush1.msra.mxu0 0.0
    %6179 = vmatprep.subr.mxu0 0.0
    %6180 = vmatpush1.msra.mxu0 0.0
    %6181 = vmatprep.subr.mxu0 0.0
    %6182 = vmatpush1.msra.mxu0 0.0
    %6183 = vmatprep.subr.mxu0 0.0
    %6184 = vmatpush1.msra.mxu0 0.0
    %6185 = vmatprep.subr.mxu0 0.0
    %6186 = vmatpush1.msra.mxu0 0.0
    %6187 = vmatprep.subr.mxu0 0.0
    %6188 = vmatpush1.msra.mxu0 0.0
    %6189 = vmatprep.subr.mxu0 0.0
    %6190 = vmatpush1.msra.mxu0 0.0
    %6191 = vmatprep.subr.mxu0 0.0
    %6192 = vmatpush1.msra.mxu0 0.0
    %6193 = vmatprep.subr.mxu0 0.0
    %6194 = vmatpush1.msra.mxu0 0.0
    %6195 = vmatprep.subr.mxu0 0.0
    %6196 = vmatpush1.msra.mxu0 0.0
    %6197 = vmatprep.subr.mxu0 0.0
    %6198 = vmatpush1.msra.mxu0 0.0
    %6199 = vmatprep.subr.mxu0 0.0
    %6200 = vmatpush1.msra.mxu0 0.0
    %6201 = vmatprep.subr.mxu0 0.0
    %6202 = vmatpush1.msra.mxu0 0.0
    %6203 = vmatprep.subr.mxu0 0.0
    %6204 = vmatpush1.msra.mxu0 0.0
    %6205 = vmatprep.subr.mxu0 0.0
    %6206 = vmatpush1.msra.mxu0 0.0
    %6207 = vmatprep.subr.mxu0 0.0
    %6208 = vmatpush1.msra.mxu0 0.0
    %6209 = vmatprep.subr.mxu0 0.0
    %6210 = vmatpush1.msra.mxu0 0.0
    %6211 = vmatprep.mubr.f32.mxu0 0.0
    %6212 = vmatmul.mubr.f32.gmra.mrb[0].mxu0 %v5790
    %v6213 = vpop.f32.mrb[0].mxu0
    %v6214 = vadd.f32 0.0, %v6213
    %v6215 = vpop.f32.mrb[0].mxu0
    %6216 = vdwg.mxu0
    %v6217 = vlaneseq
    %v6218 = vshrl.u32 %v6217, 7
    %v6219 = vsub.s32 0, %v6218
    %v6220 = vrot.slane %v5859, %v6219
    %v6221 = vlaneseq
    %v6222 = vshrl.u32 %v6221, 7
    %v6223 = vsub.s32 0, %v6222
    %v6224 = vrot.slane %v5861, %v6223
    %v6225 = vlaneseq
    %v6226 = vshrl.u32 %v6225, 7
    %v6227 = vsub.s32 0, %v6226
    %v6228 = vrot.slane %v5930, %v6227
    %v6229 = vlaneseq
    %v6230 = vshrl.u32 %v6229, 7
    %v6231 = vsub.s32 0, %v6230
    %v6232 = vrot.slane %v5932, %v6231
    %v6233 = vlaneseq
    %v6234 = vshrl.u32 %v6233, 7
    %v6235 = vsub.s32 0, %v6234
    %v6236 = vrot.slane %v6001, %v6235
    %v6237 = vlaneseq
    %v6238 = vshrl.u32 %v6237, 7
    %v6239 = vsub.s32 0, %v6238
    %v6240 = vrot.slane %v6003, %v6239
    %v6241 = vlaneseq
    %v6242 = vshrl.u32 %v6241, 7
    %v6243 = vsub.s32 0, %v6242
    %v6244 = vrot.slane %v6072, %v6243
    %v6245 = vlaneseq
    %v6246 = vshrl.u32 %v6245, 7
    %v6247 = vsub.s32 0, %v6246
    %v6248 = vrot.slane %v6074, %v6247
    %v6249 = vlaneseq
    %v6250 = vshrl.u32 %v6249, 7
    %v6251 = vsub.s32 0, %v6250
    %v6252 = vrot.slane %v6143, %v6251
    %v6253 = vlaneseq
    %v6254 = vshrl.u32 %v6253, 7
    %v6255 = vsub.s32 0, %v6254
    %v6256 = vrot.slane %v6145, %v6255
    %v6257 = vlaneseq
    %v6258 = vshrl.u32 %v6257, 7
    %v6259 = vsub.s32 0, %v6258
    %v6260 = vrot.slane %v6214, %v6259
    %v6261 = vmul.f32 %v4351, %v6220
    %v6262 = vmul.f32 %v4353, %v6224
    %v6263 = vmul.f32 %v4474, %v6228
    %v6264 = vmul.f32 %v4476, %v6232
    %v6265 = vmul.f32 %v4597, %v6236
    %v6266 = vmul.f32 %v4599, %v6240
    %v6267 = vmul.f32 %v4720, %v6244
    %v6268 = vmul.f32 %v4722, %v6248
    %v6269 = vmul.f32 %v4843, %v6252
    %v6270 = vmul.f32 %v4845, %v6256
    %v6271 = vmul.f32 %v4964, %v6260
    %v6272 = vlaneseq
    %v6273 = vshrl.u32 %v6272, 7
    %v6274 = vsub.s32 1, %v6273
    %v6275 = vrot.slane %v5859, %v6274
    %v6276 = vlaneseq
    %v6277 = vshrl.u32 %v6276, 7
    %v6278 = vsub.s32 1, %v6277
    %v6279 = vrot.slane %v5861, %v6278
    %v6280 = vlaneseq
    %v6281 = vshrl.u32 %v6280, 7
    %v6282 = vsub.s32 1, %v6281
    %v6283 = vrot.slane %v5930, %v6282
    %v6284 = vlaneseq
    %v6285 = vshrl.u32 %v6284, 7
    %v6286 = vsub.s32 1, %v6285
    %v6287 = vrot.slane %v5932, %v6286
    %v6288 = vlaneseq
    %v6289 = vshrl.u32 %v6288, 7
    %v6290 = vsub.s32 1, %v6289
    %v6291 = vrot.slane %v6001, %v6290
    %v6292 = vlaneseq
    %v6293 = vshrl.u32 %v6292, 7
    %v6294 = vsub.s32 1, %v6293
    %v6295 = vrot.slane %v6003, %v6294
    %v6296 = vlaneseq
    %v6297 = vshrl.u32 %v6296, 7
    %v6298 = vsub.s32 1, %v6297
    %v6299 = vrot.slane %v6072, %v6298
    %v6300 = vlaneseq
    %v6301 = vshrl.u32 %v6300, 7
    %v6302 = vsub.s32 1, %v6301
    %v6303 = vrot.slane %v6074, %v6302
    %v6304 = vlaneseq
    %v6305 = vshrl.u32 %v6304, 7
    %v6306 = vsub.s32 1, %v6305
    %v6307 = vrot.slane %v6143, %v6306
    %v6308 = vlaneseq
    %v6309 = vshrl.u32 %v6308, 7
    %v6310 = vsub.s32 1, %v6309
    %v6311 = vrot.slane %v6145, %v6310
    %v6312 = vlaneseq
    %v6313 = vshrl.u32 %v6312, 7
    %v6314 = vsub.s32 1, %v6313
    %v6315 = vrot.slane %v6214, %v6314
    %v6316 = vadd.f32 %v6261, %v6275
    %v6317 = vadd.f32 %v6262, %v6279
    %v6318 = vadd.f32 %v6263, %v6283
    %v6319 = vadd.f32 %v6264, %v6287
    %v6320 = vadd.f32 %v6265, %v6291
    %v6321 = vadd.f32 %v6266, %v6295
    %v6322 = vadd.f32 %v6267, %v6299
    %v6323 = vadd.f32 %v6268, %v6303
    %v6324 = vadd.f32 %v6269, %v6307
    %v6325 = vadd.f32 %v6270, %v6311
    %v6326 = vadd.f32 %v6271, %v6315
    %v6327 = vmax.f32 %v6316, 0.0
    %v6328 = vmax.f32 %v6317, 0.0
    %v6329 = vmax.f32 %v6318, 0.0
    %v6330 = vmax.f32 %v6319, 0.0
    %v6331 = vmax.f32 %v6320, 0.0
    %v6332 = vmax.f32 %v6321, 0.0
    %v6333 = vmax.f32 %v6322, 0.0
    %v6334 = vmax.f32 %v6323, 0.0
    %v6335 = vmax.f32 %v6324, 0.0
    %v6336 = vmax.f32 %v6325, 0.0
    %v6337 = vmax.f32 %v6326, 0.0
    %v6338 = vpack.c.bf16 %v6327, %v6327
    %v6339 = vpack.c.bf16 %v6328, %v6328
    %v6340 = vpack.c.bf16 %v6329, %v6329
    %v6341 = vpack.c.bf16 %v6330, %v6330
    %v6342 = vpack.c.bf16 %v6331, %v6331
    %v6343 = vpack.c.bf16 %v6332, %v6332
    %v6344 = vpack.c.bf16 %v6333, %v6333
    %v6345 = vpack.c.bf16 %v6334, %v6334
    %v6346 = vpack.c.bf16 %v6335, %v6335
    %v6347 = vpack.c.bf16 %v6336, %v6336
    %v6348 = vpack.c.bf16 %v6337, %v6337
    %v6349 = vld [vmem:[#allocation23] sm:$0xff]
    %v6350 = vld [vmem:[#allocation23 + $0x8] sm:$0xff]
    %v6351 = vld [vmem:[#allocation23 + $0x10] sm:$0xff]
    %v6352 = vld [vmem:[#allocation23 + $0x18] sm:$0xf]
    %v6353 = vld [vmem:[#allocation23 + $0x1c] sm:$0xff]
    %v6354 = vld [vmem:[#allocation23 + $0x24] sm:$0xff]
    %v6355 = vld [vmem:[#allocation23 + $0x2c] sm:$0xff]
    %v6356 = vld [vmem:[#allocation23 + $0x34] sm:$0xf]
    %v6357 = vld [vmem:[#allocation23 + $0x38] sm:$0xff]
    %v6358 = vld [vmem:[#allocation23 + $0x40] sm:$0xff]
    %v6359 = vld [vmem:[#allocation23 + $0x48] sm:$0xff]
    %v6360 = vld [vmem:[#allocation23 + $0x50] sm:$0xf]
    %v6361 = vld [vmem:[#allocation23 + $0x54] sm:$0xff]
    %v6362 = vld [vmem:[#allocation23 + $0x5c] sm:$0xff]
    %v6363 = vld [vmem:[#allocation23 + $0x64] sm:$0xff]
    %v6364 = vld [vmem:[#allocation23 + $0x6c] sm:$0xf]
    %v6365 = vld [vmem:[#allocation23 + $0x70] sm:$0xff]
    %v6366 = vld [vmem:[#allocation23 + $0x78] sm:$0xff]
    %v6367 = vld [vmem:[#allocation23 + $0x80] sm:$0xff]
    %v6368 = vld [vmem:[#allocation23 + $0x88] sm:$0xf]
    %v6369 = vld [vmem:[#allocation23 + $0x8c] sm:$0xff]
    %v6370 = vld [vmem:[#allocation23 + $0x94] sm:$0xff]
    %v6371 = vld [vmem:[#allocation23 + $0x9c] sm:$0xff]
    %v6372 = vld [vmem:[#allocation23 + $0xa4] sm:$0xf]
    %v6373 = vld [vmem:[#allocation23 + $0xa8] sm:$0xff]
    %v6374 = vld [vmem:[#allocation23 + $0xb0] sm:$0xff]
    %v6375 = vld [vmem:[#allocation23 + $0xb8] sm:$0xff]
    %v6376 = vld [vmem:[#allocation23 + $0xc0] sm:$0xf]
    %v6377 = vld [vmem:[#allocation23 + $0xc4] sm:$0xff]
    %v6378 = vld [vmem:[#allocation23 + $0xcc] sm:$0xff]
    %v6379 = vld [vmem:[#allocation23 + $0xd4] sm:$0xff]
    %v6380 = vld [vmem:[#allocation23 + $0xdc] sm:$0xf]
    %v6381 = vld [vmem:[#allocation23 + $0xe0] sm:$0xff]
    %v6382 = vld [vmem:[#allocation23 + $0xe8] sm:$0xff]
    %v6383 = vld [vmem:[#allocation23 + $0xf0] sm:$0xff]
    %v6384 = vld [vmem:[#allocation23 + $0xf8] sm:$0xf]
    %v6385 = vld [vmem:[#allocation23 + $0xfc] sm:$0xff]
    %v6386 = vld [vmem:[#allocation23 + $0x104] sm:$0xff]
    %v6387 = vld [vmem:[#allocation23 + $0x10c] sm:$0xff]
    %v6388 = vld [vmem:[#allocation23 + $0x114] sm:$0xf]
    %v6389 = vld [vmem:[#allocation23 + $0x118] sm:$0xff]
    %v6390 = vld [vmem:[#allocation23 + $0x120] sm:$0xff]
    %v6391 = vld [vmem:[#allocation23 + $0x128] sm:$0xff]
    %v6392 = vld [vmem:[#allocation23 + $0x130] sm:$0xf]
    %v6393 = vld [vmem:[#allocation23 + $0x134] sm:$0xff]
    %v6394 = vld [vmem:[#allocation23 + $0x13c] sm:$0xff]
    %v6395 = vld [vmem:[#allocation23 + $0x144] sm:$0xff]
    %v6396 = vld [vmem:[#allocation23 + $0x14c] sm:$0xf]
    %v6397 = vld [vmem:[#allocation23 + $0x150] sm:$0xff]
    %v6398 = vld [vmem:[#allocation23 + $0x158] sm:$0xff]
    %v6399 = vld [vmem:[#allocation23 + $0x160] sm:$0xff]
    %v6400 = vld [vmem:[#allocation23 + $0x168] sm:$0xf]
    %v6401 = vld [vmem:[#allocation23 + $0x16c] sm:$0xff]
    %v6402 = vld [vmem:[#allocation23 + $0x174] sm:$0xff]
    %v6403 = vld [vmem:[#allocation23 + $0x17c] sm:$0xff]
    %v6404 = vld [vmem:[#allocation23 + $0x184] sm:$0xf]
    %v6405 = vld [vmem:[#allocation23 + $0x188] sm:$0xff]
    %v6406 = vld [vmem:[#allocation23 + $0x190] sm:$0xff]
    %v6407 = vld [vmem:[#allocation23 + $0x198] sm:$0xff]
    %v6408 = vld [vmem:[#allocation23 + $0x1a0] sm:$0xf]
    %v6409 = vld [vmem:[#allocation23 + $0x1a4] sm:$0xff]
    %v6410 = vld [vmem:[#allocation23 + $0x1ac] sm:$0xff]
    %v6411 = vld [vmem:[#allocation23 + $0x1b4] sm:$0xff]
    %v6412 = vld [vmem:[#allocation23 + $0x1bc] sm:$0xf]
    %v6413 = vld [vmem:[#allocation23 + $0x1c0] sm:$0xff]
    %v6414 = vld [vmem:[#allocation23 + $0x1c8] sm:$0xff]
    %v6415 = vld [vmem:[#allocation23 + $0x1d0] sm:$0xff]
    %v6416 = vld [vmem:[#allocation23 + $0x1d8] sm:$0xf]
    %v6417 = vld [vmem:[#allocation23 + $0x1dc] sm:$0xff]
    %v6418 = vld [vmem:[#allocation23 + $0x1e4] sm:$0xff]
    %v6419 = vld [vmem:[#allocation23 + $0x1ec] sm:$0xff]
    %v6420 = vld [vmem:[#allocation23 + $0x1f4] sm:$0xf]
    %v6421 = vld [vmem:[#allocation23 + $0x1f8] sm:$0xff]
    %v6422 = vld [vmem:[#allocation23 + $0x200] sm:$0xff]
    %v6423 = vld [vmem:[#allocation23 + $0x208] sm:$0xff]
    %v6424 = vld [vmem:[#allocation23 + $0x210] sm:$0xf]
    %v6425 = vld [vmem:[#allocation23 + $0x214] sm:$0xff]
    %v6426 = vld [vmem:[#allocation23 + $0x21c] sm:$0xff]
    %v6427 = vld [vmem:[#allocation23 + $0x224] sm:$0xff]
    %v6428 = vld [vmem:[#allocation23 + $0x22c] sm:$0xf]
    %v6429 = vld [vmem:[#allocation23 + $0x230] sm:$0xff]
    %v6430 = vld [vmem:[#allocation23 + $0x238] sm:$0xff]
    %v6431 = vld [vmem:[#allocation23 + $0x240] sm:$0xff]
    %v6432 = vld [vmem:[#allocation23 + $0x248] sm:$0xf]
    %v6433 = vld [vmem:[#allocation23 + $0x24c] sm:$0xff]
    %v6434 = vld [vmem:[#allocation23 + $0x254] sm:$0xff]
    %v6435 = vld [vmem:[#allocation23 + $0x25c] sm:$0xff]
    %v6436 = vld [vmem:[#allocation23 + $0x264] sm:$0xf]
    %v6437 = vld [vmem:[#allocation23 + $0x268] sm:$0xff]
    %v6438 = vld [vmem:[#allocation23 + $0x270] sm:$0xff]
    %v6439 = vld [vmem:[#allocation23 + $0x278] sm:$0xff]
    %v6440 = vld [vmem:[#allocation23 + $0x280] sm:$0xf]
    %v6441 = vld [vmem:[#allocation23 + $0x284] sm:$0xff]
    %v6442 = vld [vmem:[#allocation23 + $0x28c] sm:$0xff]
    %v6443 = vld [vmem:[#allocation23 + $0x294] sm:$0xff]
    %v6444 = vld [vmem:[#allocation23 + $0x29c] sm:$0xf]
    %v6445 = vld [vmem:[#allocation23 + $0x2a0] sm:$0xff]
    %v6446 = vld [vmem:[#allocation23 + $0x2a8] sm:$0xff]
    %v6447 = vld [vmem:[#allocation23 + $0x2b0] sm:$0xff]
    %v6448 = vld [vmem:[#allocation23 + $0x2b8] sm:$0xf]
    %v6449 = vld [vmem:[#allocation23 + $0x2bc] sm:$0xff]
    %v6450 = vld [vmem:[#allocation23 + $0x2c4] sm:$0xff]
    %v6451 = vld [vmem:[#allocation23 + $0x2cc] sm:$0xff]
    %v6452 = vld [vmem:[#allocation23 + $0x2d4] sm:$0xf]
    %v6453 = vld [vmem:[#allocation23 + $0x2d8] sm:$0xff]
    %v6454 = vld [vmem:[#allocation23 + $0x2e0] sm:$0xff]
    %v6455 = vld [vmem:[#allocation23 + $0x2e8] sm:$0xff]
    %v6456 = vld [vmem:[#allocation23 + $0x2f0] sm:$0xf]
    %v6457 = vld [vmem:[#allocation23 + $0x2f4] sm:$0xff]
    %v6458 = vld [vmem:[#allocation23 + $0x2fc] sm:$0xff]
    %v6459 = vld [vmem:[#allocation23 + $0x304] sm:$0xff]
    %v6460 = vld [vmem:[#allocation23 + $0x30c] sm:$0xf]
    %v6461 = vld [vmem:[#allocation23 + $0x310] sm:$0xff]
    %v6462 = vld [vmem:[#allocation23 + $0x318] sm:$0xff]
    %v6463 = vld [vmem:[#allocation23 + $0x320] sm:$0xff]
    %v6464 = vld [vmem:[#allocation23 + $0x328] sm:$0xf]
    %v6465 = vld [vmem:[#allocation23 + $0x32c] sm:$0xff]
    %v6466 = vld [vmem:[#allocation23 + $0x334] sm:$0xff]
    %v6467 = vld [vmem:[#allocation23 + $0x33c] sm:$0xff]
    %v6468 = vld [vmem:[#allocation23 + $0x344] sm:$0xf]
    %v6469 = vld [vmem:[#allocation23 + $0x348] sm:$0xff]
    %v6470 = vld [vmem:[#allocation23 + $0x350] sm:$0xff]
    %v6471 = vld [vmem:[#allocation23 + $0x358] sm:$0xff]
    %v6472 = vld [vmem:[#allocation23 + $0x360] sm:$0xf]
    %v6473 = vld [vmem:[#allocation23 + $0x364] sm:$0xff]
    %v6474 = vld [vmem:[#allocation23 + $0x36c] sm:$0xff]
    %v6475 = vld [vmem:[#allocation23 + $0x374] sm:$0xff]
    %v6476 = vld [vmem:[#allocation23 + $0x37c] sm:$0xf]
    %v6477 = vld [vmem:[#allocation23 + $0x380] sm:$0xff]
    %v6478 = vld [vmem:[#allocation23 + $0x388] sm:$0xff]
    %v6479 = vld [vmem:[#allocation23 + $0x390] sm:$0xff]
    %v6480 = vld [vmem:[#allocation23 + $0x398] sm:$0xf]
    %v6481 = vld [vmem:[#allocation23 + $0x39c] sm:$0xff]
    %v6482 = vld [vmem:[#allocation23 + $0x3a4] sm:$0xff]
    %v6483 = vld [vmem:[#allocation23 + $0x3ac] sm:$0xff]
    %v6484 = vld [vmem:[#allocation23 + $0x3b4] sm:$0xf]
    %v6485 = vld [vmem:[#allocation23 + $0x3b8] sm:$0xff]
    %v6486 = vld [vmem:[#allocation23 + $0x3c0] sm:$0xff]
    %v6487 = vld [vmem:[#allocation23 + $0x3c8] sm:$0xff]
    %v6488 = vld [vmem:[#allocation23 + $0x3d0] sm:$0xf]
    %v6489 = vld [vmem:[#allocation23 + $0x3d4] sm:$0xff]
    %v6490 = vld [vmem:[#allocation23 + $0x3dc] sm:$0xff]
    %v6491 = vld [vmem:[#allocation23 + $0x3e4] sm:$0xff]
    %v6492 = vld [vmem:[#allocation23 + $0x3ec] sm:$0xf]
    %v6493 = vld [vmem:[#allocation23 + $0x3f0] sm:$0xff]
    %v6494 = vld [vmem:[#allocation23 + $0x3f8] sm:$0xff]
    %v6495 = vld [vmem:[#allocation23 + $0x400] sm:$0xff]
    %v6496 = vld [vmem:[#allocation23 + $0x408] sm:$0xf]
    %v6497 = vld [vmem:[#allocation23 + $0x40c] sm:$0xff]
    %v6498 = vld [vmem:[#allocation23 + $0x414] sm:$0xff]
    %v6499 = vld [vmem:[#allocation23 + $0x41c] sm:$0xff]
    %v6500 = vld [vmem:[#allocation23 + $0x424] sm:$0xf]
    %v6501 = vld [vmem:[#allocation23 + $0x428] sm:$0xff]
    %v6502 = vld [vmem:[#allocation23 + $0x430] sm:$0xff]
    %v6503 = vld [vmem:[#allocation23 + $0x438] sm:$0xff]
    %v6504 = vld [vmem:[#allocation23 + $0x440] sm:$0xf]
    %v6505 = vld [vmem:[#allocation23 + $0x444] sm:$0xff]
    %v6506 = vld [vmem:[#allocation23 + $0x44c] sm:$0xff]
    %v6507 = vld [vmem:[#allocation23 + $0x454] sm:$0xff]
    %v6508 = vld [vmem:[#allocation23 + $0x45c] sm:$0xf]
    %v6509 = vld [vmem:[#allocation23 + $0x460] sm:$0xff]
    %v6510 = vld [vmem:[#allocation23 + $0x468] sm:$0xff]
    %v6511 = vld [vmem:[#allocation23 + $0x470] sm:$0xff]
    %v6512 = vld [vmem:[#allocation23 + $0x478] sm:$0xf]
    %v6513 = vld [vmem:[#allocation23 + $0x47c] sm:$0xff]
    %v6514 = vld [vmem:[#allocation23 + $0x484] sm:$0xff]
    %v6515 = vld [vmem:[#allocation23 + $0x48c] sm:$0xff]
    %v6516 = vld [vmem:[#allocation23 + $0x494] sm:$0xf]
    %v6517 = vld [vmem:[#allocation23 + $0x498] sm:$0xff]
    %v6518 = vld [vmem:[#allocation23 + $0x4a0] sm:$0xff]
    %v6519 = vld [vmem:[#allocation23 + $0x4a8] sm:$0xff]
    %v6520 = vld [vmem:[#allocation23 + $0x4b0] sm:$0xf]
    %v6521 = vld [vmem:[#allocation23 + $0x4b4] sm:$0xff]
    %v6522 = vld [vmem:[#allocation23 + $0x4bc] sm:$0xff]
    %v6523 = vld [vmem:[#allocation23 + $0x4c4] sm:$0xff]
    %v6524 = vld [vmem:[#allocation23 + $0x4cc] sm:$0xf]
    %v6525 = vld [vmem:[#allocation23 + $0x4d0] sm:$0xff]
    %v6526 = vld [vmem:[#allocation23 + $0x4d8] sm:$0xff]
    %v6527 = vld [vmem:[#allocation23 + $0x4e0] sm:$0xff]
    %v6528 = vld [vmem:[#allocation23 + $0x4e8] sm:$0xf]
    %v6529 = vld [vmem:[#allocation23 + $0x4ec] sm:$0xff]
    %v6530 = vld [vmem:[#allocation23 + $0x4f4] sm:$0xff]
    %v6531 = vld [vmem:[#allocation23 + $0x4fc] sm:$0xff]
    %v6532 = vld [vmem:[#allocation23 + $0x504] sm:$0xf]
    %v6533 = vld [vmem:[#allocation23 + $0x508] sm:$0xff]
    %v6534 = vld [vmem:[#allocation23 + $0x510] sm:$0xff]
    %v6535 = vld [vmem:[#allocation23 + $0x518] sm:$0xff]
    %v6536 = vld [vmem:[#allocation23 + $0x520] sm:$0xf]
    %v6537 = vld [vmem:[#allocation23 + $0x524] sm:$0xff]
    %v6538 = vld [vmem:[#allocation23 + $0x52c] sm:$0xff]
    %v6539 = vld [vmem:[#allocation23 + $0x534] sm:$0xff]
    %v6540 = vld [vmem:[#allocation23 + $0x53c] sm:$0xf]
    %v6541 = vld [vmem:[#allocation23 + $0x540] sm:$0xff]
    %v6542 = vld [vmem:[#allocation23 + $0x548] sm:$0xff]
    %v6543 = vld [vmem:[#allocation23 + $0x550] sm:$0xff]
    %v6544 = vld [vmem:[#allocation23 + $0x558] sm:$0xf]
    %v6545 = vld [vmem:[#allocation23 + $0x55c] sm:$0xff]
    %v6546 = vld [vmem:[#allocation23 + $0x564] sm:$0xff]
    %v6547 = vld [vmem:[#allocation23 + $0x56c] sm:$0xff]
    %v6548 = vld [vmem:[#allocation23 + $0x574] sm:$0xf]
    %v6549 = vld [vmem:[#allocation23 + $0x578] sm:$0xff]
    %v6550 = vld [vmem:[#allocation23 + $0x580] sm:$0xff]
    %v6551 = vld [vmem:[#allocation23 + $0x588] sm:$0xff]
    %v6552 = vld [vmem:[#allocation23 + $0x590] sm:$0xf]
    %v6553 = vld [vmem:[#allocation23 + $0x594] sm:$0xff]
    %v6554 = vld [vmem:[#allocation23 + $0x59c] sm:$0xff]
    %v6555 = vld [vmem:[#allocation23 + $0x5a4] sm:$0xff]
    %v6556 = vld [vmem:[#allocation23 + $0x5ac] sm:$0xf]
    %v6557 = vld [vmem:[#allocation23 + $0x5b0] sm:$0xff]
    %v6558 = vld [vmem:[#allocation23 + $0x5b8] sm:$0xff]
    %v6559 = vld [vmem:[#allocation23 + $0x5c0] sm:$0xff]
    %v6560 = vld [vmem:[#allocation23 + $0x5c8] sm:$0xf]
    %v6561 = vld [vmem:[#allocation23 + $0x5cc] sm:$0xff]
    %v6562 = vld [vmem:[#allocation23 + $0x5d4] sm:$0xff]
    %v6563 = vld [vmem:[#allocation23 + $0x5dc] sm:$0xff]
    %v6564 = vld [vmem:[#allocation23 + $0x5e4] sm:$0xf]
    %v6565 = vld [vmem:[#allocation23 + $0x5e8] sm:$0xff]
    %v6566 = vld [vmem:[#allocation23 + $0x5f0] sm:$0xff]
    %v6567 = vld [vmem:[#allocation23 + $0x5f8] sm:$0xff]
    %v6568 = vld [vmem:[#allocation23 + $0x600] sm:$0xf]
    %v6569 = vld [vmem:[#allocation23 + $0x604] sm:$0xff]
    %v6570 = vld [vmem:[#allocation23 + $0x60c] sm:$0xff]
    %v6571 = vld [vmem:[#allocation23 + $0x614] sm:$0xff]
    %v6572 = vld [vmem:[#allocation23 + $0x61c] sm:$0xf]
    %v6573 = vld [vmem:[#allocation23 + $0x620] sm:$0xff]
    %v6574 = vld [vmem:[#allocation23 + $0x628] sm:$0xff]
    %v6575 = vld [vmem:[#allocation23 + $0x630] sm:$0xff]
    %v6576 = vld [vmem:[#allocation23 + $0x638] sm:$0xf]
    %v6577 = vld [vmem:[#allocation23 + $0x63c] sm:$0xff]
    %v6578 = vld [vmem:[#allocation23 + $0x644] sm:$0xff]
    %v6579 = vld [vmem:[#allocation23 + $0x64c] sm:$0xff]
    %v6580 = vld [vmem:[#allocation23 + $0x654] sm:$0xf]
    %v6581 = vld [vmem:[#allocation23 + $0x658] sm:$0xff]
    %v6582 = vld [vmem:[#allocation23 + $0x660] sm:$0xff]
    %v6583 = vld [vmem:[#allocation23 + $0x668] sm:$0xff]
    %v6584 = vld [vmem:[#allocation23 + $0x670] sm:$0xf]
    %v6585 = vld [vmem:[#allocation23 + $0x674] sm:$0xff]
    %v6586 = vld [vmem:[#allocation23 + $0x67c] sm:$0xff]
    %v6587 = vld [vmem:[#allocation23 + $0x684] sm:$0xff]
    %v6588 = vld [vmem:[#allocation23 + $0x68c] sm:$0xf]
    %v6589 = vld [vmem:[#allocation23 + $0x690] sm:$0xff]
    %v6590 = vld [vmem:[#allocation23 + $0x698] sm:$0xff]
    %v6591 = vld [vmem:[#allocation23 + $0x6a0] sm:$0xff]
    %v6592 = vld [vmem:[#allocation23 + $0x6a8] sm:$0xf]
    %v6593 = vld [vmem:[#allocation23 + $0x6ac] sm:$0xff]
    %v6594 = vld [vmem:[#allocation23 + $0x6b4] sm:$0xff]
    %v6595 = vld [vmem:[#allocation23 + $0x6bc] sm:$0xff]
    %v6596 = vld [vmem:[#allocation23 + $0x6c4] sm:$0xf]
    %v6597 = vld [vmem:[#allocation23 + $0x6c8] sm:$0xff]
    %v6598 = vld [vmem:[#allocation23 + $0x6d0] sm:$0xff]
    %v6599 = vld [vmem:[#allocation23 + $0x6d8] sm:$0xff]
    %v6600 = vld [vmem:[#allocation23 + $0x6e0] sm:$0xf]
    %v6601 = vld [vmem:[#allocation23 + $0x6e4] sm:$0xff]
    %v6602 = vld [vmem:[#allocation23 + $0x6ec] sm:$0xff]
    %v6603 = vld [vmem:[#allocation23 + $0x6f4] sm:$0xff]
    %v6604 = vld [vmem:[#allocation23 + $0x6fc] sm:$0xf]
    %v6605 = vld [vmem:[#allocation23 + $0x700] sm:$0xff]
    %v6606 = vld [vmem:[#allocation23 + $0x708] sm:$0xff]
    %v6607 = vld [vmem:[#allocation23 + $0x710] sm:$0xff]
    %v6608 = vld [vmem:[#allocation23 + $0x718] sm:$0xf]
    %v6609 = vld [vmem:[#allocation23 + $0x71c] sm:$0xff]
    %v6610 = vld [vmem:[#allocation23 + $0x724] sm:$0xff]
    %v6611 = vld [vmem:[#allocation23 + $0x72c] sm:$0xff]
    %v6612 = vld [vmem:[#allocation23 + $0x734] sm:$0xf]
    %v6613 = vld [vmem:[#allocation23 + $0x738] sm:$0xff]
    %v6614 = vld [vmem:[#allocation23 + $0x740] sm:$0xff]
    %v6615 = vld [vmem:[#allocation23 + $0x748] sm:$0xff]
    %v6616 = vld [vmem:[#allocation23 + $0x750] sm:$0xf]
    %v6617 = vld [vmem:[#allocation23 + $0x754] sm:$0xff]
    %v6618 = vld [vmem:[#allocation23 + $0x75c] sm:$0xff]
    %v6619 = vld [vmem:[#allocation23 + $0x764] sm:$0xff]
    %v6620 = vld [vmem:[#allocation23 + $0x76c] sm:$0xf]
    %v6621 = vld [vmem:[#allocation23 + $0x770] sm:$0xff]
    %v6622 = vld [vmem:[#allocation23 + $0x778] sm:$0xff]
    %v6623 = vld [vmem:[#allocation23 + $0x780] sm:$0xff]
    %v6624 = vld [vmem:[#allocation23 + $0x788] sm:$0xf]
    %v6625 = vld [vmem:[#allocation23 + $0x78c] sm:$0xff]
    %v6626 = vld [vmem:[#allocation23 + $0x794] sm:$0xff]
    %v6627 = vld [vmem:[#allocation23 + $0x79c] sm:$0xff]
    %v6628 = vld [vmem:[#allocation23 + $0x7a4] sm:$0xf]
    %v6629 = vld [vmem:[#allocation23 + $0x7a8] sm:$0xff]
    %v6630 = vld [vmem:[#allocation23 + $0x7b0] sm:$0xff]
    %v6631 = vld [vmem:[#allocation23 + $0x7b8] sm:$0xff]
    %v6632 = vld [vmem:[#allocation23 + $0x7c0] sm:$0xf]
    %v6633 = vld [vmem:[#allocation23 + $0x7c4] sm:$0xff]
    %v6634 = vld [vmem:[#allocation23 + $0x7cc] sm:$0xff]
    %v6635 = vld [vmem:[#allocation23 + $0x7d4] sm:$0xff]
    %v6636 = vld [vmem:[#allocation23 + $0x7dc] sm:$0xf]
    %v6637 = vld [vmem:[#allocation23 + $0x7e0] sm:$0xff]
    %v6638 = vld [vmem:[#allocation23 + $0x7e8] sm:$0xff]
    %v6639 = vld [vmem:[#allocation23 + $0x7f0] sm:$0xff]
    %v6640 = vld [vmem:[#allocation23 + $0x7f8] sm:$0xf]
    %v6641 = vld [vmem:[#allocation23 + $0x7fc] sm:$0xff]
    %v6642 = vld [vmem:[#allocation23 + $0x804] sm:$0xff]
    %v6643 = vld [vmem:[#allocation23 + $0x80c] sm:$0xff]
    %v6644 = vld [vmem:[#allocation23 + $0x814] sm:$0xf]
    %v6645 = vld [vmem:[#allocation23 + $0x818] sm:$0xff]
    %v6646 = vld [vmem:[#allocation23 + $0x820] sm:$0xff]
    %v6647 = vld [vmem:[#allocation23 + $0x828] sm:$0xff]
    %v6648 = vld [vmem:[#allocation23 + $0x830] sm:$0xf]
    %v6649 = vld [vmem:[#allocation23 + $0x834] sm:$0xff]
    %v6650 = vld [vmem:[#allocation23 + $0x83c] sm:$0xff]
    %v6651 = vld [vmem:[#allocation23 + $0x844] sm:$0xff]
    %v6652 = vld [vmem:[#allocation23 + $0x84c] sm:$0xf]
    %v6653 = vld [vmem:[#allocation23 + $0x850] sm:$0xff]
    %v6654 = vld [vmem:[#allocation23 + $0x858] sm:$0xff]
    %v6655 = vld [vmem:[#allocation23 + $0x860] sm:$0xff]
    %v6656 = vld [vmem:[#allocation23 + $0x868] sm:$0xf]
    %v6657 = vld [vmem:[#allocation23 + $0x86c] sm:$0xff]
    %v6658 = vld [vmem:[#allocation23 + $0x874] sm:$0xff]
    %v6659 = vld [vmem:[#allocation23 + $0x87c] sm:$0xff]
    %v6660 = vld [vmem:[#allocation23 + $0x884] sm:$0xf]
    %v6661 = vld [vmem:[#allocation23 + $0x888] sm:$0xff]
    %v6662 = vld [vmem:[#allocation23 + $0x890] sm:$0xff]
    %v6663 = vld [vmem:[#allocation23 + $0x898] sm:$0xff]
    %v6664 = vld [vmem:[#allocation23 + $0x8a0] sm:$0xf]
    %v6665 = vld [vmem:[#allocation23 + $0x8a4] sm:$0xff]
    %v6666 = vld [vmem:[#allocation23 + $0x8ac] sm:$0xff]
    %v6667 = vld [vmem:[#allocation23 + $0x8b4] sm:$0xff]
    %v6668 = vld [vmem:[#allocation23 + $0x8bc] sm:$0xf]
    %v6669 = vld [vmem:[#allocation23 + $0x8c0] sm:$0xff]
    %v6670 = vld [vmem:[#allocation23 + $0x8c8] sm:$0xff]
    %v6671 = vld [vmem:[#allocation23 + $0x8d0] sm:$0xff]
    %v6672 = vld [vmem:[#allocation23 + $0x8d8] sm:$0xf]
    %v6673 = vld [vmem:[#allocation23 + $0x8dc] sm:$0xff]
    %v6674 = vld [vmem:[#allocation23 + $0x8e4] sm:$0xff]
    %v6675 = vld [vmem:[#allocation23 + $0x8ec] sm:$0xff]
    %v6676 = vld [vmem:[#allocation23 + $0x8f4] sm:$0xf]
    %v6677 = vld [vmem:[#allocation23 + $0x8f8] sm:$0xff]
    %v6678 = vld [vmem:[#allocation23 + $0x900] sm:$0xff]
    %v6679 = vld [vmem:[#allocation23 + $0x908] sm:$0xff]
    %v6680 = vld [vmem:[#allocation23 + $0x910] sm:$0xf]
    %v6681 = vld [vmem:[#allocation23 + $0x914] sm:$0xff]
    %v6682 = vld [vmem:[#allocation23 + $0x91c] sm:$0xff]
    %v6683 = vld [vmem:[#allocation23 + $0x924] sm:$0xff]
    %v6684 = vld [vmem:[#allocation23 + $0x92c] sm:$0xf]
    %v6685 = vld [vmem:[#allocation23 + $0x930] sm:$0xff]
    %v6686 = vld [vmem:[#allocation23 + $0x938] sm:$0xff]
    %v6687 = vld [vmem:[#allocation23 + $0x940] sm:$0xff]
    %v6688 = vld [vmem:[#allocation23 + $0x948] sm:$0xf]
    %v6689 = vld [vmem:[#allocation23 + $0x94c] sm:$0xff]
    %v6690 = vld [vmem:[#allocation23 + $0x954] sm:$0xff]
    %v6691 = vld [vmem:[#allocation23 + $0x95c] sm:$0xff]
    %v6692 = vld [vmem:[#allocation23 + $0x964] sm:$0xf]
    %v6693 = vld [vmem:[#allocation23 + $0x968] sm:$0xff]
    %v6694 = vld [vmem:[#allocation23 + $0x970] sm:$0xff]
    %v6695 = vld [vmem:[#allocation23 + $0x978] sm:$0xff]
    %v6696 = vld [vmem:[#allocation23 + $0x980] sm:$0xf]
    %v6697 = vld [vmem:[#allocation23 + $0x984] sm:$0xff]
    %v6698 = vld [vmem:[#allocation23 + $0x98c] sm:$0xff]
    %v6699 = vld [vmem:[#allocation23 + $0x994] sm:$0xff]
    %v6700 = vld [vmem:[#allocation23 + $0x99c] sm:$0xf]
    %v6701 = vld [vmem:[#allocation23 + $0x9a0] sm:$0xff]
    %v6702 = vld [vmem:[#allocation23 + $0x9a8] sm:$0xff]
    %v6703 = vld [vmem:[#allocation23 + $0x9b0] sm:$0xff]
    %v6704 = vld [vmem:[#allocation23 + $0x9b8] sm:$0xf]
    %v6705 = vld [vmem:[#allocation23 + $0x9bc] sm:$0xff]
    %v6706 = vld [vmem:[#allocation23 + $0x9c4] sm:$0xff]
    %v6707 = vld [vmem:[#allocation23 + $0x9cc] sm:$0xff]
    %v6708 = vld [vmem:[#allocation23 + $0x9d4] sm:$0xf]
    %v6709 = vld [vmem:[#allocation23 + $0x9d8] sm:$0xff]
    %v6710 = vld [vmem:[#allocation23 + $0x9e0] sm:$0xff]
    %v6711 = vld [vmem:[#allocation23 + $0x9e8] sm:$0xff]
    %v6712 = vld [vmem:[#allocation23 + $0x9f0] sm:$0xf]
    %v6713 = vld [vmem:[#allocation23 + $0x9f4] sm:$0xff]
    %v6714 = vld [vmem:[#allocation23 + $0x9fc] sm:$0xff]
    %v6715 = vld [vmem:[#allocation23 + $0xa04] sm:$0xff]
    %v6716 = vld [vmem:[#allocation23 + $0xa0c] sm:$0xf]
    %v6717 = vld [vmem:[#allocation23 + $0xa10] sm:$0xff]
    %v6718 = vld [vmem:[#allocation23 + $0xa18] sm:$0xff]
    %v6719 = vld [vmem:[#allocation23 + $0xa20] sm:$0xff]
    %v6720 = vld [vmem:[#allocation23 + $0xa28] sm:$0xf]
    %v6721 = vld [vmem:[#allocation23 + $0xa2c] sm:$0xff]
    %v6722 = vld [vmem:[#allocation23 + $0xa34] sm:$0xff]
    %v6723 = vld [vmem:[#allocation23 + $0xa3c] sm:$0xff]
    %v6724 = vld [vmem:[#allocation23 + $0xa44] sm:$0xf]
    %v6725 = vld [vmem:[#allocation23 + $0xa48] sm:$0xff]
    %v6726 = vld [vmem:[#allocation23 + $0xa50] sm:$0xff]
    %v6727 = vld [vmem:[#allocation23 + $0xa58] sm:$0xff]
    %v6728 = vld [vmem:[#allocation23 + $0xa60] sm:$0xf]
    %v6729 = vld [vmem:[#allocation23 + $0xa64] sm:$0xff]
    %v6730 = vld [vmem:[#allocation23 + $0xa6c] sm:$0xff]
    %v6731 = vld [vmem:[#allocation23 + $0xa74] sm:$0xff]
    %v6732 = vld [vmem:[#allocation23 + $0xa7c] sm:$0xf]
    %v6733 = vld [vmem:[#allocation23 + $0xa80] sm:$0xff]
    %v6734 = vld [vmem:[#allocation23 + $0xa88] sm:$0xff]
    %v6735 = vld [vmem:[#allocation23 + $0xa90] sm:$0xff]
    %v6736 = vld [vmem:[#allocation23 + $0xa98] sm:$0xf]
    %v6737 = vld [vmem:[#allocation23 + $0xa9c] sm:$0xff]
    %v6738 = vld [vmem:[#allocation23 + $0xaa4] sm:$0xff]
    %v6739 = vld [vmem:[#allocation23 + $0xaac] sm:$0xff]
    %v6740 = vld [vmem:[#allocation23 + $0xab4] sm:$0xf]
    %v6741 = vld [vmem:[#allocation23 + $0xab8] sm:$0xff]
    %v6742 = vld [vmem:[#allocation23 + $0xac0] sm:$0xff]
    %v6743 = vld [vmem:[#allocation23 + $0xac8] sm:$0xff]
    %v6744 = vld [vmem:[#allocation23 + $0xad0] sm:$0xf]
    %v6745 = vld [vmem:[#allocation23 + $0xad4] sm:$0xff]
    %v6746 = vld [vmem:[#allocation23 + $0xadc] sm:$0xff]
    %v6747 = vld [vmem:[#allocation23 + $0xae4] sm:$0xff]
    %v6748 = vld [vmem:[#allocation23 + $0xaec] sm:$0xf]
    %v6749 = vld [vmem:[#allocation23 + $0xaf0] sm:$0xff]
    %v6750 = vld [vmem:[#allocation23 + $0xaf8] sm:$0xff]
    %v6751 = vld [vmem:[#allocation23 + $0xb00] sm:$0xff]
    %v6752 = vld [vmem:[#allocation23 + $0xb08] sm:$0xf]
    %v6753 = vld [vmem:[#allocation23 + $0xb0c] sm:$0xff]
    %v6754 = vld [vmem:[#allocation23 + $0xb14] sm:$0xff]
    %v6755 = vld [vmem:[#allocation23 + $0xb1c] sm:$0xff]
    %v6756 = vld [vmem:[#allocation23 + $0xb24] sm:$0xf]
    %v6757 = vld [vmem:[#allocation23 + $0xb28] sm:$0xff]
    %v6758 = vld [vmem:[#allocation23 + $0xb30] sm:$0xff]
    %v6759 = vld [vmem:[#allocation23 + $0xb38] sm:$0xff]
    %v6760 = vld [vmem:[#allocation23 + $0xb40] sm:$0xf]
    %v6761 = vld [vmem:[#allocation23 + $0xb44] sm:$0xff]
    %v6762 = vld [vmem:[#allocation23 + $0xb4c] sm:$0xff]
    %v6763 = vld [vmem:[#allocation23 + $0xb54] sm:$0xff]
    %v6764 = vld [vmem:[#allocation23 + $0xb5c] sm:$0xf]
    %v6765 = vld [vmem:[#allocation23 + $0xb60] sm:$0xff]
    %v6766 = vld [vmem:[#allocation23 + $0xb68] sm:$0xff]
    %v6767 = vld [vmem:[#allocation23 + $0xb70] sm:$0xff]
    %v6768 = vld [vmem:[#allocation23 + $0xb78] sm:$0xf]
    %v6769 = vld [vmem:[#allocation23 + $0xb7c] sm:$0xff]
    %v6770 = vld [vmem:[#allocation23 + $0xb84] sm:$0xff]
    %v6771 = vld [vmem:[#allocation23 + $0xb8c] sm:$0xff]
    %v6772 = vld [vmem:[#allocation23 + $0xb94] sm:$0xf]
    %v6773 = vld [vmem:[#allocation23 + $0xb98] sm:$0xff]
    %v6774 = vld [vmem:[#allocation23 + $0xba0] sm:$0xff]
    %v6775 = vld [vmem:[#allocation23 + $0xba8] sm:$0xff]
    %v6776 = vld [vmem:[#allocation23 + $0xbb0] sm:$0xf]
    %v6777 = vld [vmem:[#allocation23 + $0xbb4] sm:$0xff]
    %v6778 = vld [vmem:[#allocation23 + $0xbbc] sm:$0xff]
    %v6779 = vld [vmem:[#allocation23 + $0xbc4] sm:$0xff]
    %v6780 = vld [vmem:[#allocation23 + $0xbcc] sm:$0xf]
    %v6781 = vld [vmem:[#allocation23 + $0xbd0] sm:$0xff]
    %v6782 = vld [vmem:[#allocation23 + $0xbd8] sm:$0xff]
    %v6783 = vld [vmem:[#allocation23 + $0xbe0] sm:$0xff]
    %v6784 = vld [vmem:[#allocation23 + $0xbe8] sm:$0xf]
    %v6785 = vld [vmem:[#allocation23 + $0xbec] sm:$0xff]
    %v6786 = vld [vmem:[#allocation23 + $0xbf4] sm:$0xff]
    %v6787 = vld [vmem:[#allocation23 + $0xbfc] sm:$0xff]
    %v6788 = vld [vmem:[#allocation23 + $0xc04] sm:$0xf]
    %v6789 = vld [vmem:[#allocation23 + $0xc08] sm:$0xff]
    %v6790 = vld [vmem:[#allocation23 + $0xc10] sm:$0xff]
    %v6791 = vld [vmem:[#allocation23 + $0xc18] sm:$0xff]
    %v6792 = vld [vmem:[#allocation23 + $0xc20] sm:$0xf]
    %v6793 = vld [vmem:[#allocation23 + $0xc24] sm:$0xff]
    %v6794 = vld [vmem:[#allocation23 + $0xc2c] sm:$0xff]
    %v6795 = vld [vmem:[#allocation23 + $0xc34] sm:$0xff]
    %v6796 = vld [vmem:[#allocation23 + $0xc3c] sm:$0xf]
    %v6797 = vld [vmem:[#allocation23 + $0xc40] sm:$0xff]
    %v6798 = vld [vmem:[#allocation23 + $0xc48] sm:$0xff]
    %v6799 = vld [vmem:[#allocation23 + $0xc50] sm:$0xff]
    %v6800 = vld [vmem:[#allocation23 + $0xc58] sm:$0xf]
    %v6801 = vld [vmem:[#allocation23 + $0xc5c] sm:$0xff]
    %v6802 = vld [vmem:[#allocation23 + $0xc64] sm:$0xff]
    %v6803 = vld [vmem:[#allocation23 + $0xc6c] sm:$0xff]
    %v6804 = vld [vmem:[#allocation23 + $0xc74] sm:$0xf]
    %v6805 = vld [vmem:[#allocation23 + $0xc78] sm:$0xff]
    %v6806 = vld [vmem:[#allocation23 + $0xc80] sm:$0xff]
    %v6807 = vld [vmem:[#allocation23 + $0xc88] sm:$0xff]
    %v6808 = vld [vmem:[#allocation23 + $0xc90] sm:$0xf]
    %v6809 = vld [vmem:[#allocation23 + $0xc94] sm:$0xff]
    %v6810 = vld [vmem:[#allocation23 + $0xc9c] sm:$0xff]
    %v6811 = vld [vmem:[#allocation23 + $0xca4] sm:$0xff]
    %v6812 = vld [vmem:[#allocation23 + $0xcac] sm:$0xf]
    %v6813 = vld [vmem:[#allocation23 + $0xcb0] sm:$0xff]
    %v6814 = vld [vmem:[#allocation23 + $0xcb8] sm:$0xff]
    %v6815 = vld [vmem:[#allocation23 + $0xcc0] sm:$0xff]
    %v6816 = vld [vmem:[#allocation23 + $0xcc8] sm:$0xf]
    %v6817 = vld [vmem:[#allocation23 + $0xccc] sm:$0xff]
    %v6818 = vld [vmem:[#allocation23 + $0xcd4] sm:$0xff]
    %v6819 = vld [vmem:[#allocation23 + $0xcdc] sm:$0xff]
    %v6820 = vld [vmem:[#allocation23 + $0xce4] sm:$0xf]
    %v6821 = vld [vmem:[#allocation23 + $0xce8] sm:$0xff]
    %v6822 = vld [vmem:[#allocation23 + $0xcf0] sm:$0xff]
    %v6823 = vld [vmem:[#allocation23 + $0xcf8] sm:$0xff]
    %v6824 = vld [vmem:[#allocation23 + $0xd00] sm:$0xf]
    %v6825 = vld [vmem:[#allocation23 + $0xd04] sm:$0xff]
    %v6826 = vld [vmem:[#allocation23 + $0xd0c] sm:$0xff]
    %v6827 = vld [vmem:[#allocation23 + $0xd14] sm:$0xff]
    %v6828 = vld [vmem:[#allocation23 + $0xd1c] sm:$0xf]
    %v6829 = vld [vmem:[#allocation23 + $0xd20] sm:$0xff]
    %v6830 = vld [vmem:[#allocation23 + $0xd28] sm:$0xff]
    %v6831 = vld [vmem:[#allocation23 + $0xd30] sm:$0xff]
    %v6832 = vld [vmem:[#allocation23 + $0xd38] sm:$0xf]
    %v6833 = vld [vmem:[#allocation23 + $0xd3c] sm:$0xff]
    %v6834 = vld [vmem:[#allocation23 + $0xd44] sm:$0xff]
    %v6835 = vld [vmem:[#allocation23 + $0xd4c] sm:$0xff]
    %v6836 = vld [vmem:[#allocation23 + $0xd54] sm:$0xf]
    %v6837 = vld [vmem:[#allocation23 + $0xd58] sm:$0xff]
    %v6838 = vld [vmem:[#allocation23 + $0xd60] sm:$0xff]
    %v6839 = vld [vmem:[#allocation23 + $0xd68] sm:$0xff]
    %v6840 = vld [vmem:[#allocation23 + $0xd70] sm:$0xf]
    %v6841 = vld [vmem:[#allocation23 + $0xd74] sm:$0xff]
    %v6842 = vld [vmem:[#allocation23 + $0xd7c] sm:$0xff]
    %v6843 = vld [vmem:[#allocation23 + $0xd84] sm:$0xff]
    %v6844 = vld [vmem:[#allocation23 + $0xd8c] sm:$0xf]
    %v6845 = vld [vmem:[#allocation23 + $0xd90] sm:$0xff]
    %v6846 = vld [vmem:[#allocation23 + $0xd98] sm:$0xff]
    %v6847 = vld [vmem:[#allocation23 + $0xda0] sm:$0xff]
    %v6848 = vld [vmem:[#allocation23 + $0xda8] sm:$0xf]
    %v6849 = vld [vmem:[#allocation23 + $0xdac] sm:$0xff]
    %v6850 = vld [vmem:[#allocation23 + $0xdb4] sm:$0xff]
    %v6851 = vld [vmem:[#allocation23 + $0xdbc] sm:$0xff]
    %v6852 = vld [vmem:[#allocation23 + $0xdc4] sm:$0xf]
    %v6853 = vld [vmem:[#allocation23 + $0xdc8] sm:$0xff]
    %v6854 = vld [vmem:[#allocation23 + $0xdd0] sm:$0xff]
    %v6855 = vld [vmem:[#allocation23 + $0xdd8] sm:$0xff]
    %v6856 = vld [vmem:[#allocation23 + $0xde0] sm:$0xf]
    %v6857 = vld [vmem:[#allocation23 + $0xde4] sm:$0xff]
    %v6858 = vld [vmem:[#allocation23 + $0xdec] sm:$0xff]
    %v6859 = vld [vmem:[#allocation23 + $0xdf4] sm:$0xff]
    %v6860 = vld [vmem:[#allocation23 + $0xdfc] sm:$0xf]
    %v6861 = vld [vmem:[#allocation23 + $0xe00] sm:$0xff]
    %v6862 = vld [vmem:[#allocation23 + $0xe08] sm:$0xff]
    %v6863 = vld [vmem:[#allocation23 + $0xe10] sm:$0xff]
    %v6864 = vld [vmem:[#allocation23 + $0xe18] sm:$0xf]
    %v6865 = vld [vmem:[#allocation23 + $0xe1c] sm:$0xff]
    %v6866 = vld [vmem:[#allocation23 + $0xe24] sm:$0xff]
    %v6867 = vld [vmem:[#allocation23 + $0xe2c] sm:$0xff]
    %v6868 = vld [vmem:[#allocation23 + $0xe34] sm:$0xf]
    %v6869 = vld [vmem:[#allocation23 + $0xe38] sm:$0xff]
    %v6870 = vld [vmem:[#allocation23 + $0xe40] sm:$0xff]
    %v6871 = vld [vmem:[#allocation23 + $0xe48] sm:$0xff]
    %v6872 = vld [vmem:[#allocation23 + $0xe50] sm:$0xf]
    %v6873 = vld [vmem:[#allocation23 + $0xe54] sm:$0xff]
    %v6874 = vld [vmem:[#allocation23 + $0xe5c] sm:$0xff]
    %v6875 = vld [vmem:[#allocation23 + $0xe64] sm:$0xff]
    %v6876 = vld [vmem:[#allocation23 + $0xe6c] sm:$0xf]
    %v6877 = vld [vmem:[#allocation23 + $0xe70] sm:$0xff]
    %v6878 = vld [vmem:[#allocation23 + $0xe78] sm:$0xff]
    %v6879 = vld [vmem:[#allocation23 + $0xe80] sm:$0xff]
    %v6880 = vld [vmem:[#allocation23 + $0xe88] sm:$0xf]
    %v6881 = vld [vmem:[#allocation23 + $0xe8c] sm:$0xff]
    %v6882 = vld [vmem:[#allocation23 + $0xe94] sm:$0xff]
    %v6883 = vld [vmem:[#allocation23 + $0xe9c] sm:$0xff]
    %v6884 = vld [vmem:[#allocation23 + $0xea4] sm:$0xf]
    %v6885 = vld [vmem:[#allocation23 + $0xea8] sm:$0xff]
    %v6886 = vld [vmem:[#allocation23 + $0xeb0] sm:$0xff]
    %v6887 = vld [vmem:[#allocation23 + $0xeb8] sm:$0xff]
    %v6888 = vld [vmem:[#allocation23 + $0xec0] sm:$0xf]
    %v6889 = vld [vmem:[#allocation23 + $0xec4] sm:$0xff]
    %v6890 = vld [vmem:[#allocation23 + $0xecc] sm:$0xff]
    %v6891 = vld [vmem:[#allocation23 + $0xed4] sm:$0xff]
    %v6892 = vld [vmem:[#allocation23 + $0xedc] sm:$0xf]
    %v6893 = vld [vmem:[#allocation23 + $0xee0] sm:$0xff]
    %v6894 = vld [vmem:[#allocation23 + $0xee8] sm:$0xff]
    %v6895 = vld [vmem:[#allocation23 + $0xef0] sm:$0xff]
    %v6896 = vld [vmem:[#allocation23 + $0xef8] sm:$0xf]
    %v6897 = vld [vmem:[#allocation23 + $0xefc] sm:$0xff]
    %v6898 = vld [vmem:[#allocation23 + $0xf04] sm:$0xff]
    %v6899 = vld [vmem:[#allocation23 + $0xf0c] sm:$0xff]
    %v6900 = vld [vmem:[#allocation23 + $0xf14] sm:$0xf]
    %v6901 = vld [vmem:[#allocation23 + $0xf18] sm:$0xff]
    %v6902 = vld [vmem:[#allocation23 + $0xf20] sm:$0xff]
    %v6903 = vld [vmem:[#allocation23 + $0xf28] sm:$0xff]
    %v6904 = vld [vmem:[#allocation23 + $0xf30] sm:$0xf]
    %v6905 = vld [vmem:[#allocation23 + $0xf34] sm:$0xff]
    %v6906 = vld [vmem:[#allocation23 + $0xf3c] sm:$0xff]
    %v6907 = vld [vmem:[#allocation23 + $0xf44] sm:$0xff]
    %v6908 = vld [vmem:[#allocation23 + $0xf4c] sm:$0xf]
    %v6909 = vld [vmem:[#allocation23 + $0xf50] sm:$0xff]
    %v6910 = vld [vmem:[#allocation23 + $0xf58] sm:$0xff]
    %v6911 = vld [vmem:[#allocation23 + $0xf60] sm:$0xff]
    %v6912 = vld [vmem:[#allocation23 + $0xf68] sm:$0xf]
    %v6913 = vld [vmem:[#allocation23 + $0xf6c] sm:$0xff]
    %v6914 = vld [vmem:[#allocation23 + $0xf74] sm:$0xff]
    %v6915 = vld [vmem:[#allocation23 + $0xf7c] sm:$0xff]
    %v6916 = vld [vmem:[#allocation23 + $0xf84] sm:$0xf]
    %v6917 = vld [vmem:[#allocation23 + $0xf88] sm:$0xff]
    %v6918 = vld [vmem:[#allocation23 + $0xf90] sm:$0xff]
    %v6919 = vld [vmem:[#allocation23 + $0xf98] sm:$0xff]
    %v6920 = vld [vmem:[#allocation23 + $0xfa0] sm:$0xf]
    %v6921 = vld [vmem:[#allocation23 + $0xfa4] sm:$0xff]
    %v6922 = vld [vmem:[#allocation23 + $0xfac] sm:$0xff]
    %v6923 = vld [vmem:[#allocation23 + $0xfb4] sm:$0xff]
    %v6924 = vld [vmem:[#allocation23 + $0xfbc] sm:$0xf]
    %v6925 = vld [vmem:[#allocation23 + $0xfc0] sm:$0xff]
    %v6926 = vld [vmem:[#allocation23 + $0xfc8] sm:$0xff]
    %v6927 = vld [vmem:[#allocation23 + $0xfd0] sm:$0xff]
    %v6928 = vld [vmem:[#allocation23 + $0xfd8] sm:$0xf]
    %v6929 = vld [vmem:[#allocation23 + $0xfdc] sm:$0xff]
    %v6930 = vld [vmem:[#allocation23 + $0xfe4] sm:$0xff]
    %v6931 = vld [vmem:[#allocation23 + $0xfec] sm:$0xff]
    %v6932 = vld [vmem:[#allocation23 + $0xff4] sm:$0xf]
    %v6933 = vld [vmem:[#allocation23 + $0xff8] sm:$0xff]
    %v6934 = vld [vmem:[#allocation23 + $0x1000] sm:$0xff]
    %v6935 = vld [vmem:[#allocation23 + $0x1008] sm:$0xff]
    %v6936 = vld [vmem:[#allocation23 + $0x1010] sm:$0xf]
    %v6937 = vld [vmem:[#allocation23 + $0x1014] sm:$0xff]
    %v6938 = vld [vmem:[#allocation23 + $0x101c] sm:$0xff]
    %v6939 = vld [vmem:[#allocation23 + $0x1024] sm:$0xff]
    %v6940 = vld [vmem:[#allocation23 + $0x102c] sm:$0xf]
    %v6941 = vld [vmem:[#allocation23 + $0x1030] sm:$0xff]
    %v6942 = vld [vmem:[#allocation23 + $0x1038] sm:$0xff]
    %v6943 = vld [vmem:[#allocation23 + $0x1040] sm:$0xff]
    %v6944 = vld [vmem:[#allocation23 + $0x1048] sm:$0xf]
    %v6945 = vld [vmem:[#allocation23 + $0x104c] sm:$0xff]
    %v6946 = vld [vmem:[#allocation23 + $0x1054] sm:$0xff]
    %v6947 = vld [vmem:[#allocation23 + $0x105c] sm:$0xff]
    %v6948 = vld [vmem:[#allocation23 + $0x1064] sm:$0xf]
    %v6949 = vld [vmem:[#allocation23 + $0x1068] sm:$0xff]
    %v6950 = vld [vmem:[#allocation23 + $0x1070] sm:$0xff]
    %v6951 = vld [vmem:[#allocation23 + $0x1078] sm:$0xff]
    %v6952 = vld [vmem:[#allocation23 + $0x1080] sm:$0xf]
    %v6953 = vld [vmem:[#allocation23 + $0x1084] sm:$0xff]
    %v6954 = vld [vmem:[#allocation23 + $0x108c] sm:$0xff]
    %v6955 = vld [vmem:[#allocation23 + $0x1094] sm:$0xff]
    %v6956 = vld [vmem:[#allocation23 + $0x109c] sm:$0xf]
    %v6957 = vld [vmem:[#allocation23 + $0x10a0] sm:$0xff]
    %v6958 = vld [vmem:[#allocation23 + $0x10a8] sm:$0xff]
    %v6959 = vld [vmem:[#allocation23 + $0x10b0] sm:$0xff]
    %v6960 = vld [vmem:[#allocation23 + $0x10b8] sm:$0xf]
    %v6961 = vld [vmem:[#allocation23 + $0x10bc] sm:$0xff]
    %v6962 = vld [vmem:[#allocation23 + $0x10c4] sm:$0xff]
    %v6963 = vld [vmem:[#allocation23 + $0x10cc] sm:$0xff]
    %v6964 = vld [vmem:[#allocation23 + $0x10d4] sm:$0xf]
    %v6965 = vld [vmem:[#allocation23 + $0x10d8] sm:$0xff]
    %v6966 = vld [vmem:[#allocation23 + $0x10e0] sm:$0xff]
    %v6967 = vld [vmem:[#allocation23 + $0x10e8] sm:$0xff]
    %v6968 = vld [vmem:[#allocation23 + $0x10f0] sm:$0xf]
    %v6969 = vld [vmem:[#allocation23 + $0x10f4] sm:$0xff]
    %v6970 = vld [vmem:[#allocation23 + $0x10fc] sm:$0xff]
    %v6971 = vld [vmem:[#allocation23 + $0x1104] sm:$0xff]
    %v6972 = vld [vmem:[#allocation23 + $0x110c] sm:$0xf]
    %v6973 = vld [vmem:[#allocation23 + $0x1110] sm:$0xff]
    %v6974 = vld [vmem:[#allocation23 + $0x1118] sm:$0xff]
    %v6975 = vld [vmem:[#allocation23 + $0x1120] sm:$0xff]
    %v6976 = vld [vmem:[#allocation23 + $0x1128] sm:$0xf]
    %v6977 = vld [vmem:[#allocation23 + $0x112c] sm:$0xff]
    %v6978 = vld [vmem:[#allocation23 + $0x1134] sm:$0xff]
    %v6979 = vld [vmem:[#allocation23 + $0x113c] sm:$0xff]
    %v6980 = vld [vmem:[#allocation23 + $0x1144] sm:$0xf]
    %v6981 = vld [vmem:[#allocation23 + $0x1148] sm:$0xff]
    %v6982 = vld [vmem:[#allocation23 + $0x1150] sm:$0xff]
    %v6983 = vld [vmem:[#allocation23 + $0x1158] sm:$0xff]
    %v6984 = vld [vmem:[#allocation23 + $0x1160] sm:$0xf]
    %v6985 = vld [vmem:[#allocation23 + $0x1164] sm:$0xff]
    %v6986 = vld [vmem:[#allocation23 + $0x116c] sm:$0xff]
    %v6987 = vld [vmem:[#allocation23 + $0x1174] sm:$0xff]
    %v6988 = vld [vmem:[#allocation23 + $0x117c] sm:$0xf]
    %v6989 = vld [vmem:[#allocation23 + $0x1180] sm:$0xff]
    %v6990 = vld [vmem:[#allocation23 + $0x1188] sm:$0xff]
    %v6991 = vld [vmem:[#allocation23 + $0x1190] sm:$0xff]
    %v6992 = vld [vmem:[#allocation23 + $0x1198] sm:$0xf]
    %v6993 = vld [vmem:[#allocation23 + $0x119c] sm:$0xff]
    %v6994 = vld [vmem:[#allocation23 + $0x11a4] sm:$0xff]
    %v6995 = vld [vmem:[#allocation23 + $0x11ac] sm:$0xff]
    %v6996 = vld [vmem:[#allocation23 + $0x11b4] sm:$0xf]
    %v6997 = vld [vmem:[#allocation23 + $0x11b8] sm:$0xff]
    %v6998 = vld [vmem:[#allocation23 + $0x11c0] sm:$0xff]
    %v6999 = vld [vmem:[#allocation23 + $0x11c8] sm:$0xff]
    %v7000 = vld [vmem:[#allocation23 + $0x11d0] sm:$0xf]
    %v7001 = vld [vmem:[#allocation23 + $0x11d4] sm:$0xff]
    %v7002 = vld [vmem:[#allocation23 + $0x11dc] sm:$0xff]
    %v7003 = vld [vmem:[#allocation23 + $0x11e4] sm:$0xff]
    %v7004 = vld [vmem:[#allocation23 + $0x11ec] sm:$0xf]
    %v7005 = vld [vmem:[#allocation23 + $0x11f0] sm:$0xff]
    %v7006 = vld [vmem:[#allocation23 + $0x11f8] sm:$0xff]
    %v7007 = vld [vmem:[#allocation23 + $0x1200] sm:$0xff]
    %v7008 = vld [vmem:[#allocation23 + $0x1208] sm:$0xf]
    %v7009 = vld [vmem:[#allocation23 + $0x120c] sm:$0xff]
    %v7010 = vld [vmem:[#allocation23 + $0x1214] sm:$0xff]
    %v7011 = vld [vmem:[#allocation23 + $0x121c] sm:$0xff]
    %v7012 = vld [vmem:[#allocation23 + $0x1224] sm:$0xf]
    %v7013 = vld [vmem:[#allocation23 + $0x1228] sm:$0xff]
    %v7014 = vld [vmem:[#allocation23 + $0x1230] sm:$0xff]
    %v7015 = vld [vmem:[#allocation23 + $0x1238] sm:$0xff]
    %v7016 = vld [vmem:[#allocation23 + $0x1240] sm:$0xf]
    %v7017 = vld [vmem:[#allocation23 + $0x1244] sm:$0xff]
    %v7018 = vld [vmem:[#allocation23 + $0x124c] sm:$0xff]
    %v7019 = vld [vmem:[#allocation23 + $0x1254] sm:$0xff]
    %v7020 = vld [vmem:[#allocation23 + $0x125c] sm:$0xf]
    %v7021 = vld [vmem:[#allocation23 + $0x1260] sm:$0xff]
    %v7022 = vld [vmem:[#allocation23 + $0x1268] sm:$0xff]
    %v7023 = vld [vmem:[#allocation23 + $0x1270] sm:$0xff]
    %v7024 = vld [vmem:[#allocation23 + $0x1278] sm:$0xf]
    %v7025 = vld [vmem:[#allocation23 + $0x127c] sm:$0xff]
    %v7026 = vld [vmem:[#allocation23 + $0x1284] sm:$0xff]
    %v7027 = vld [vmem:[#allocation23 + $0x128c] sm:$0xff]
    %v7028 = vld [vmem:[#allocation23 + $0x1294] sm:$0xf]
    %v7029 = vld [vmem:[#allocation23 + $0x1298] sm:$0xff]
    %v7030 = vld [vmem:[#allocation23 + $0x12a0] sm:$0xff]
    %v7031 = vld [vmem:[#allocation23 + $0x12a8] sm:$0xff]
    %v7032 = vld [vmem:[#allocation23 + $0x12b0] sm:$0xf]
    %v7033 = vld [vmem:[#allocation23 + $0x12b4] sm:$0xff]
    %v7034 = vld [vmem:[#allocation23 + $0x12bc] sm:$0xff]
    %v7035 = vld [vmem:[#allocation23 + $0x12c4] sm:$0xff]
    %v7036 = vld [vmem:[#allocation23 + $0x12cc] sm:$0xf]
    %v7037 = vld [vmem:[#allocation23 + $0x12d0] sm:$0xff]
    %v7038 = vld [vmem:[#allocation23 + $0x12d8] sm:$0xff]
    %v7039 = vld [vmem:[#allocation23 + $0x12e0] sm:$0xff]
    %v7040 = vld [vmem:[#allocation23 + $0x12e8] sm:$0xf]
    %v7041 = vld [vmem:[#allocation23 + $0x12ec] sm:$0xff]
    %v7042 = vld [vmem:[#allocation23 + $0x12f4] sm:$0xff]
    %v7043 = vld [vmem:[#allocation23 + $0x12fc] sm:$0xff]
    %v7044 = vld [vmem:[#allocation23 + $0x1304] sm:$0xf]
    %v7045 = vld [vmem:[#allocation23 + $0x1308] sm:$0xff]
    %v7046 = vld [vmem:[#allocation23 + $0x1310] sm:$0xff]
    %v7047 = vld [vmem:[#allocation23 + $0x1318] sm:$0xff]
    %v7048 = vld [vmem:[#allocation23 + $0x1320] sm:$0xf]
    %v7049 = vld [vmem:[#allocation23 + $0x1324] sm:$0xff]
    %v7050 = vld [vmem:[#allocation23 + $0x132c] sm:$0xff]
    %v7051 = vld [vmem:[#allocation23 + $0x1334] sm:$0xff]
    %v7052 = vld [vmem:[#allocation23 + $0x133c] sm:$0xf]
    %v7053 = vld [vmem:[#allocation25] sm:$0xff]
    %v7055 = vlaneseq
    %v7056 = vshrl.u32 %v7055, 7
    %v7057 = vsub.s32 0, %v7056
    %v7058 = vrot.slane %v7053, %v7057
    %v7059 = vlaneseq
    %v7060 = vshrl.u32 %v7059, 7
    %v7061 = vsub.s32 1, %v7060
    %v7062 = vrot.slane %v7053, %v7061
    %v7063 = vlaneseq
    %v7064 = vshrl.u32 %v7063, 7
    %v7065 = vsub.s32 2, %v7064
    %v7066 = vrot.slane %v7053, %v7065
    %v7067 = vlaneseq
    %v7068 = vshrl.u32 %v7067, 7
    %v7069 = vsub.s32 3, %v7068
    %v7070 = vrot.slane %v7053, %v7069
    %v7071 = vlaneseq
    %v7072 = vshrl.u32 %v7071, 7
    %v7073 = vsub.s32 4, %v7072
    %v7074 = vrot.slane %v7053, %v7073
    %v7075 = vlaneseq
    %v7076 = vshrl.u32 %v7075, 7
    %v7077 = vsub.s32 5, %v7076
    %v7078 = vrot.slane %v7053, %v7077
    %v7079 = vlaneseq
    %v7080 = vshrl.u32 %v7079, 7
    %v7081 = vsub.s32 6, %v7080
    %v7082 = vrot.slane %v7053, %v7081
    %v7794 = vunpack.c.l.b16 %v6349
    %v7795 = vunpack.c.h.b16 %v6349
    %v7796 = vunpack.c.l.b16 %v6350
    %v7797 = vunpack.c.h.b16 %v6350
    %v7798 = vunpack.c.l.b16 %v6351
    %v7799 = vunpack.c.h.b16 %v6351
    %v7800 = vunpack.c.l.b16 %v6352
    %v7801 = vunpack.c.l.b16 %v6353
    %v7802 = vunpack.c.h.b16 %v6353
    %v7803 = vunpack.c.l.b16 %v6354
    %v7804 = vunpack.c.h.b16 %v6354
    %v7805 = vunpack.c.l.b16 %v6355
    %v7806 = vunpack.c.h.b16 %v6355
    %v7807 = vunpack.c.l.b16 %v6356
    %v7808 = vunpack.c.l.b16 %v6357
    %v7809 = vunpack.c.h.b16 %v6357
    %v7810 = vunpack.c.l.b16 %v6358
    %v7811 = vunpack.c.h.b16 %v6358
    %v7812 = vunpack.c.l.b16 %v6359
    %v7813 = vunpack.c.h.b16 %v6359
    %v7814 = vunpack.c.l.b16 %v6360
    %v7815 = vunpack.c.l.b16 %v6361
    %v7816 = vunpack.c.h.b16 %v6361
    %v7817 = vunpack.c.l.b16 %v6362
    %v7818 = vunpack.c.h.b16 %v6362
    %v7819 = vunpack.c.l.b16 %v6363
    %v7820 = vunpack.c.h.b16 %v6363
    %v7821 = vunpack.c.l.b16 %v6364
    %v7822 = vunpack.c.l.b16 %v6365
    %v7823 = vunpack.c.h.b16 %v6365
    %v7824 = vunpack.c.l.b16 %v6366
    %v7825 = vunpack.c.h.b16 %v6366
    %v7826 = vunpack.c.l.b16 %v6367
    %v7827 = vunpack.c.h.b16 %v6367
    %v7828 = vunpack.c.l.b16 %v6368
    %v7829 = vunpack.c.l.b16 %v6369
    %v7830 = vunpack.c.h.b16 %v6369
    %v7831 = vunpack.c.l.b16 %v6370
    %v7832 = vunpack.c.h.b16 %v6370
    %v7833 = vunpack.c.l.b16 %v6371
    %v7834 = vunpack.c.h.b16 %v6371
    %v7835 = vunpack.c.l.b16 %v6372
    %v7836 = vunpack.c.l.b16 %v6373
    %v7837 = vunpack.c.h.b16 %v6373
    %v7838 = vunpack.c.l.b16 %v6374
    %v7839 = vunpack.c.h.b16 %v6374
    %v7840 = vunpack.c.l.b16 %v6375
    %v7841 = vunpack.c.h.b16 %v6375
    %v7842 = vunpack.c.l.b16 %v6376
    %v7843 = vunpack.c.l.b16 %v6377
    %v7844 = vunpack.c.h.b16 %v6377
    %v7845 = vunpack.c.l.b16 %v6378
    %v7846 = vunpack.c.h.b16 %v6378
    %v7847 = vunpack.c.l.b16 %v6379
    %v7848 = vunpack.c.h.b16 %v6379
    %v7849 = vunpack.c.l.b16 %v6380
    %v7850 = vunpack.c.l.b16 %v6381
    %v7851 = vunpack.c.h.b16 %v6381
    %v7852 = vunpack.c.l.b16 %v6382
    %v7853 = vunpack.c.h.b16 %v6382
    %v7854 = vunpack.c.l.b16 %v6383
    %v7855 = vunpack.c.h.b16 %v6383
    %v7856 = vunpack.c.l.b16 %v6384
    %v7857 = vunpack.c.l.b16 %v6385
    %v7858 = vunpack.c.h.b16 %v6385
    %v7859 = vunpack.c.l.b16 %v6386
    %v7860 = vunpack.c.h.b16 %v6386
    %v7861 = vunpack.c.l.b16 %v6387
    %v7862 = vunpack.c.h.b16 %v6387
    %v7863 = vunpack.c.l.b16 %v6388
    %v7864 = vunpack.c.l.b16 %v6389
    %v7865 = vunpack.c.h.b16 %v6389
    %v7866 = vunpack.c.l.b16 %v6390
    %v7867 = vunpack.c.h.b16 %v6390
    %v7868 = vunpack.c.l.b16 %v6391
    %v7869 = vunpack.c.h.b16 %v6391
    %v7870 = vunpack.c.l.b16 %v6392
    %v7871 = vunpack.c.l.b16 %v6393
    %v7872 = vunpack.c.h.b16 %v6393
    %v7873 = vunpack.c.l.b16 %v6394
    %v7874 = vunpack.c.h.b16 %v6394
    %v7875 = vunpack.c.l.b16 %v6395
    %v7876 = vunpack.c.h.b16 %v6395
    %v7877 = vunpack.c.l.b16 %v6396
    %v7878 = vunpack.c.l.b16 %v6397
    %v7879 = vunpack.c.h.b16 %v6397
    %v7880 = vunpack.c.l.b16 %v6398
    %v7881 = vunpack.c.h.b16 %v6398
    %v7882 = vunpack.c.l.b16 %v6399
    %v7883 = vunpack.c.h.b16 %v6399
    %v7884 = vunpack.c.l.b16 %v6400
    %v7885 = vunpack.c.l.b16 %v6401
    %v7886 = vunpack.c.h.b16 %v6401
    %v7887 = vunpack.c.l.b16 %v6402
    %v7888 = vunpack.c.h.b16 %v6402
    %v7889 = vunpack.c.l.b16 %v6403
    %v7890 = vunpack.c.h.b16 %v6403
    %v7891 = vunpack.c.l.b16 %v6404
    %v7892 = vunpack.c.l.b16 %v6405
    %v7893 = vunpack.c.h.b16 %v6405
    %v7894 = vunpack.c.l.b16 %v6406
    %v7895 = vunpack.c.h.b16 %v6406
    %v7896 = vunpack.c.l.b16 %v6407
    %v7897 = vunpack.c.h.b16 %v6407
    %v7898 = vunpack.c.l.b16 %v6408
    %v7899 = vunpack.c.l.b16 %v6409
    %v7900 = vunpack.c.h.b16 %v6409
    %v7901 = vunpack.c.l.b16 %v6410
    %v7902 = vunpack.c.h.b16 %v6410
    %v7903 = vunpack.c.l.b16 %v6411
    %v7904 = vunpack.c.h.b16 %v6411
    %v7905 = vunpack.c.l.b16 %v6412
    %v7906 = vunpack.c.l.b16 %v6413
    %v7907 = vunpack.c.h.b16 %v6413
    %v7908 = vunpack.c.l.b16 %v6414
    %v7909 = vunpack.c.h.b16 %v6414
    %v7910 = vunpack.c.l.b16 %v6415
    %v7911 = vunpack.c.h.b16 %v6415
    %v7912 = vunpack.c.l.b16 %v6416
    %v7913 = vunpack.c.l.b16 %v6417
    %v7914 = vunpack.c.h.b16 %v6417
    %v7915 = vunpack.c.l.b16 %v6418
    %v7916 = vunpack.c.h.b16 %v6418
    %v7917 = vunpack.c.l.b16 %v6419
    %v7918 = vunpack.c.h.b16 %v6419
    %v7919 = vunpack.c.l.b16 %v6420
    %v7920 = vunpack.c.l.b16 %v6421
    %v7921 = vunpack.c.h.b16 %v6421
    %v7922 = vunpack.c.l.b16 %v6422
    %v7923 = vunpack.c.h.b16 %v6422
    %v7924 = vunpack.c.l.b16 %v6423
    %v7925 = vunpack.c.h.b16 %v6423
    %v7926 = vunpack.c.l.b16 %v6424
    %v7927 = vunpack.c.l.b16 %v6425
    %v7928 = vunpack.c.h.b16 %v6425
    %v7929 = vunpack.c.l.b16 %v6426
    %v7930 = vunpack.c.h.b16 %v6426
    %v7931 = vunpack.c.l.b16 %v6427
    %v7932 = vunpack.c.h.b16 %v6427
    %v7933 = vunpack.c.l.b16 %v6428
    %v7934 = vunpack.c.l.b16 %v6429
    %v7935 = vunpack.c.h.b16 %v6429
    %v7936 = vunpack.c.l.b16 %v6430
    %v7937 = vunpack.c.h.b16 %v6430
    %v7938 = vunpack.c.l.b16 %v6431
    %v7939 = vunpack.c.h.b16 %v6431
    %v7940 = vunpack.c.l.b16 %v6432
    %v7941 = vunpack.c.l.b16 %v6433
    %v7942 = vunpack.c.h.b16 %v6433
    %v7943 = vunpack.c.l.b16 %v6434
    %v7944 = vunpack.c.h.b16 %v6434
    %v7945 = vunpack.c.l.b16 %v6435
    %v7946 = vunpack.c.h.b16 %v6435
    %v7947 = vunpack.c.l.b16 %v6436
    %v7948 = vunpack.c.l.b16 %v6437
    %v7949 = vunpack.c.h.b16 %v6437
    %v7950 = vunpack.c.l.b16 %v6438
    %v7951 = vunpack.c.h.b16 %v6438
    %v7952 = vunpack.c.l.b16 %v6439
    %v7953 = vunpack.c.h.b16 %v6439
    %v7954 = vunpack.c.l.b16 %v6440
    %v7955 = vunpack.c.l.b16 %v6441
    %v7956 = vunpack.c.h.b16 %v6441
    %v7957 = vunpack.c.l.b16 %v6442
    %v7958 = vunpack.c.h.b16 %v6442
    %v7959 = vunpack.c.l.b16 %v6443
    %v7960 = vunpack.c.h.b16 %v6443
    %v7961 = vunpack.c.l.b16 %v6444
    %v7962 = vunpack.c.l.b16 %v6445
    %v7963 = vunpack.c.h.b16 %v6445
    %v7964 = vunpack.c.l.b16 %v6446
    %v7965 = vunpack.c.h.b16 %v6446
    %v7966 = vunpack.c.l.b16 %v6447
    %v7967 = vunpack.c.h.b16 %v6447
    %v7968 = vunpack.c.l.b16 %v6448
    %v7969 = vunpack.c.l.b16 %v6449
    %v7970 = vunpack.c.h.b16 %v6449
    %v7971 = vunpack.c.l.b16 %v6450
    %v7972 = vunpack.c.h.b16 %v6450
    %v7973 = vunpack.c.l.b16 %v6451
    %v7974 = vunpack.c.h.b16 %v6451
    %v7975 = vunpack.c.l.b16 %v6452
    %v7976 = vunpack.c.l.b16 %v6453
    %v7977 = vunpack.c.h.b16 %v6453
    %v7978 = vunpack.c.l.b16 %v6454
    %v7979 = vunpack.c.h.b16 %v6454
    %v7980 = vunpack.c.l.b16 %v6455
    %v7981 = vunpack.c.h.b16 %v6455
    %v7982 = vunpack.c.l.b16 %v6456
    %v7983 = vunpack.c.l.b16 %v6457
    %v7984 = vunpack.c.h.b16 %v6457
    %v7985 = vunpack.c.l.b16 %v6458
    %v7986 = vunpack.c.h.b16 %v6458
    %v7987 = vunpack.c.l.b16 %v6459
    %v7988 = vunpack.c.h.b16 %v6459
    %v7989 = vunpack.c.l.b16 %v6460
    %v7990 = vunpack.c.l.b16 %v6461
    %v7991 = vunpack.c.h.b16 %v6461
    %v7992 = vunpack.c.l.b16 %v6462
    %v7993 = vunpack.c.h.b16 %v6462
    %v7994 = vunpack.c.l.b16 %v6463
    %v7995 = vunpack.c.h.b16 %v6463
    %v7996 = vunpack.c.l.b16 %v6464
    %v7997 = vunpack.c.l.b16 %v6465
    %v7998 = vunpack.c.h.b16 %v6465
    %v7999 = vunpack.c.l.b16 %v6466
    %v8000 = vunpack.c.h.b16 %v6466
    %v8001 = vunpack.c.l.b16 %v6467
    %v8002 = vunpack.c.h.b16 %v6467
    %v8003 = vunpack.c.l.b16 %v6468
    %v8004 = vunpack.c.l.b16 %v6469
    %v8005 = vunpack.c.h.b16 %v6469
    %v8006 = vunpack.c.l.b16 %v6470
    %v8007 = vunpack.c.h.b16 %v6470
    %v8008 = vunpack.c.l.b16 %v6471
    %v8009 = vunpack.c.h.b16 %v6471
    %v8010 = vunpack.c.l.b16 %v6472
    %v8011 = vunpack.c.l.b16 %v6473
    %v8012 = vunpack.c.h.b16 %v6473
    %v8013 = vunpack.c.l.b16 %v6474
    %v8014 = vunpack.c.h.b16 %v6474
    %v8015 = vunpack.c.l.b16 %v6475
    %v8016 = vunpack.c.h.b16 %v6475
    %v8017 = vunpack.c.l.b16 %v6476
    %v8018 = vunpack.c.l.b16 %v6477
    %v8019 = vunpack.c.h.b16 %v6477
    %v8020 = vunpack.c.l.b16 %v6478
    %v8021 = vunpack.c.h.b16 %v6478
    %v8022 = vunpack.c.l.b16 %v6479
    %v8023 = vunpack.c.h.b16 %v6479
    %v8024 = vunpack.c.l.b16 %v6480
    %v8025 = vunpack.c.l.b16 %v6481
    %v8026 = vunpack.c.h.b16 %v6481
    %v8027 = vunpack.c.l.b16 %v6482
    %v8028 = vunpack.c.h.b16 %v6482
    %v8029 = vunpack.c.l.b16 %v6483
    %v8030 = vunpack.c.h.b16 %v6483
    %v8031 = vunpack.c.l.b16 %v6484
    %v8032 = vunpack.c.l.b16 %v6485
    %v8033 = vunpack.c.h.b16 %v6485
    %v8034 = vunpack.c.l.b16 %v6486
    %v8035 = vunpack.c.h.b16 %v6486
    %v8036 = vunpack.c.l.b16 %v6487
    %v8037 = vunpack.c.h.b16 %v6487
    %v8038 = vunpack.c.l.b16 %v6488
    %v8039 = vunpack.c.l.b16 %v6489
    %v8040 = vunpack.c.h.b16 %v6489
    %v8041 = vunpack.c.l.b16 %v6490
    %v8042 = vunpack.c.h.b16 %v6490
    %v8043 = vunpack.c.l.b16 %v6491
    %v8044 = vunpack.c.h.b16 %v6491
    %v8045 = vunpack.c.l.b16 %v6492
    %v8046 = vunpack.c.l.b16 %v6493
    %v8047 = vunpack.c.h.b16 %v6493
    %v8048 = vunpack.c.l.b16 %v6494
    %v8049 = vunpack.c.h.b16 %v6494
    %v8050 = vunpack.c.l.b16 %v6495
    %v8051 = vunpack.c.h.b16 %v6495
    %v8052 = vunpack.c.l.b16 %v6496
    %v8053 = vunpack.c.l.b16 %v6497
    %v8054 = vunpack.c.h.b16 %v6497
    %v8055 = vunpack.c.l.b16 %v6498
    %v8056 = vunpack.c.h.b16 %v6498
    %v8057 = vunpack.c.l.b16 %v6499
    %v8058 = vunpack.c.h.b16 %v6499
    %v8059 = vunpack.c.l.b16 %v6500
    %v8060 = vunpack.c.l.b16 %v6501
    %v8061 = vunpack.c.h.b16 %v6501
    %v8062 = vunpack.c.l.b16 %v6502
    %v8063 = vunpack.c.h.b16 %v6502
    %v8064 = vunpack.c.l.b16 %v6503
    %v8065 = vunpack.c.h.b16 %v6503
    %v8066 = vunpack.c.l.b16 %v6504
    %v8067 = vunpack.c.l.b16 %v6505
    %v8068 = vunpack.c.h.b16 %v6505
    %v8069 = vunpack.c.l.b16 %v6506
    %v8070 = vunpack.c.h.b16 %v6506
    %v8071 = vunpack.c.l.b16 %v6507
    %v8072 = vunpack.c.h.b16 %v6507
    %v8073 = vunpack.c.l.b16 %v6508
    %v8074 = vunpack.c.l.b16 %v6509
    %v8075 = vunpack.c.h.b16 %v6509
    %v8076 = vunpack.c.l.b16 %v6510
    %v8077 = vunpack.c.h.b16 %v6510
    %v8078 = vunpack.c.l.b16 %v6511
    %v8079 = vunpack.c.h.b16 %v6511
    %v8080 = vunpack.c.l.b16 %v6512
    %v8081 = vunpack.c.l.b16 %v6513
    %v8082 = vunpack.c.h.b16 %v6513
    %v8083 = vunpack.c.l.b16 %v6514
    %v8084 = vunpack.c.h.b16 %v6514
    %v8085 = vunpack.c.l.b16 %v6515
    %v8086 = vunpack.c.h.b16 %v6515
    %v8087 = vunpack.c.l.b16 %v6516
    %v8088 = vunpack.c.l.b16 %v6517
    %v8089 = vunpack.c.h.b16 %v6517
    %v8090 = vunpack.c.l.b16 %v6518
    %v8091 = vunpack.c.h.b16 %v6518
    %v8092 = vunpack.c.l.b16 %v6519
    %v8093 = vunpack.c.h.b16 %v6519
    %v8094 = vunpack.c.l.b16 %v6520
    %v8095 = vunpack.c.l.b16 %v6521
    %v8096 = vunpack.c.h.b16 %v6521
    %v8097 = vunpack.c.l.b16 %v6522
    %v8098 = vunpack.c.h.b16 %v6522
    %v8099 = vunpack.c.l.b16 %v6523
    %v8100 = vunpack.c.h.b16 %v6523
    %v8101 = vunpack.c.l.b16 %v6524
    %v8102 = vunpack.c.l.b16 %v6525
    %v8103 = vunpack.c.h.b16 %v6525
    %v8104 = vunpack.c.l.b16 %v6526
    %v8105 = vunpack.c.h.b16 %v6526
    %v8106 = vunpack.c.l.b16 %v6527
    %v8107 = vunpack.c.h.b16 %v6527
    %v8108 = vunpack.c.l.b16 %v6528
    %v8109 = vunpack.c.l.b16 %v6529
    %v8110 = vunpack.c.h.b16 %v6529
    %v8111 = vunpack.c.l.b16 %v6530
    %v8112 = vunpack.c.h.b16 %v6530
    %v8113 = vunpack.c.l.b16 %v6531
    %v8114 = vunpack.c.h.b16 %v6531
    %v8115 = vunpack.c.l.b16 %v6532
    %v8116 = vunpack.c.l.b16 %v6533
    %v8117 = vunpack.c.h.b16 %v6533
    %v8118 = vunpack.c.l.b16 %v6534
    %v8119 = vunpack.c.h.b16 %v6534
    %v8120 = vunpack.c.l.b16 %v6535
    %v8121 = vunpack.c.h.b16 %v6535
    %v8122 = vunpack.c.l.b16 %v6536
    %v8123 = vunpack.c.l.b16 %v6537
    %v8124 = vunpack.c.h.b16 %v6537
    %v8125 = vunpack.c.l.b16 %v6538
    %v8126 = vunpack.c.h.b16 %v6538
    %v8127 = vunpack.c.l.b16 %v6539
    %v8128 = vunpack.c.h.b16 %v6539
    %v8129 = vunpack.c.l.b16 %v6540
    %v8130 = vunpack.c.l.b16 %v6541
    %v8131 = vunpack.c.h.b16 %v6541
    %v8132 = vunpack.c.l.b16 %v6542
    %v8133 = vunpack.c.h.b16 %v6542
    %v8134 = vunpack.c.l.b16 %v6543
    %v8135 = vunpack.c.h.b16 %v6543
    %v8136 = vunpack.c.l.b16 %v6544
    %v8137 = vunpack.c.l.b16 %v6545
    %v8138 = vunpack.c.h.b16 %v6545
    %v8139 = vunpack.c.l.b16 %v6546
    %v8140 = vunpack.c.h.b16 %v6546
    %v8141 = vunpack.c.l.b16 %v6547
    %v8142 = vunpack.c.h.b16 %v6547
    %v8143 = vunpack.c.l.b16 %v6548
    %v8144 = vunpack.c.l.b16 %v6549
    %v8145 = vunpack.c.h.b16 %v6549
    %v8146 = vunpack.c.l.b16 %v6550
    %v8147 = vunpack.c.h.b16 %v6550
    %v8148 = vunpack.c.l.b16 %v6551
    %v8149 = vunpack.c.h.b16 %v6551
    %v8150 = vunpack.c.l.b16 %v6552
    %v8151 = vunpack.c.l.b16 %v6553
    %v8152 = vunpack.c.h.b16 %v6553
    %v8153 = vunpack.c.l.b16 %v6554
    %v8154 = vunpack.c.h.b16 %v6554
    %v8155 = vunpack.c.l.b16 %v6555
    %v8156 = vunpack.c.h.b16 %v6555
    %v8157 = vunpack.c.l.b16 %v6556
    %v8158 = vunpack.c.l.b16 %v6557
    %v8159 = vunpack.c.h.b16 %v6557
    %v8160 = vunpack.c.l.b16 %v6558
    %v8161 = vunpack.c.h.b16 %v6558
    %v8162 = vunpack.c.l.b16 %v6559
    %v8163 = vunpack.c.h.b16 %v6559
    %v8164 = vunpack.c.l.b16 %v6560
    %v8165 = vunpack.c.l.b16 %v6561
    %v8166 = vunpack.c.h.b16 %v6561
    %v8167 = vunpack.c.l.b16 %v6562
    %v8168 = vunpack.c.h.b16 %v6562
    %v8169 = vunpack.c.l.b16 %v6563
    %v8170 = vunpack.c.h.b16 %v6563
    %v8171 = vunpack.c.l.b16 %v6564
    %v8172 = vunpack.c.l.b16 %v6565
    %v8173 = vunpack.c.h.b16 %v6565
    %v8174 = vunpack.c.l.b16 %v6566
    %v8175 = vunpack.c.h.b16 %v6566
    %v8176 = vunpack.c.l.b16 %v6567
    %v8177 = vunpack.c.h.b16 %v6567
    %v8178 = vunpack.c.l.b16 %v6568
    %v8179 = vunpack.c.l.b16 %v6569
    %v8180 = vunpack.c.h.b16 %v6569
    %v8181 = vunpack.c.l.b16 %v6570
    %v8182 = vunpack.c.h.b16 %v6570
    %v8183 = vunpack.c.l.b16 %v6571
    %v8184 = vunpack.c.h.b16 %v6571
    %v8185 = vunpack.c.l.b16 %v6572
    %v8186 = vunpack.c.l.b16 %v6573
    %v8187 = vunpack.c.h.b16 %v6573
    %v8188 = vunpack.c.l.b16 %v6574
    %v8189 = vunpack.c.h.b16 %v6574
    %v8190 = vunpack.c.l.b16 %v6575
    %v8191 = vunpack.c.h.b16 %v6575
    %v8192 = vunpack.c.l.b16 %v6576
    %v8193 = vunpack.c.l.b16 %v6577
    %v8194 = vunpack.c.h.b16 %v6577
    %v8195 = vunpack.c.l.b16 %v6578
    %v8196 = vunpack.c.h.b16 %v6578
    %v8197 = vunpack.c.l.b16 %v6579
    %v8198 = vunpack.c.h.b16 %v6579
    %v8199 = vunpack.c.l.b16 %v6580
    %v8200 = vunpack.c.l.b16 %v6581
    %v8201 = vunpack.c.h.b16 %v6581
    %v8202 = vunpack.c.l.b16 %v6582
    %v8203 = vunpack.c.h.b16 %v6582
    %v8204 = vunpack.c.l.b16 %v6583
    %v8205 = vunpack.c.h.b16 %v6583
    %v8206 = vunpack.c.l.b16 %v6584
    %v8207 = vunpack.c.l.b16 %v6585
    %v8208 = vunpack.c.h.b16 %v6585
    %v8209 = vunpack.c.l.b16 %v6586
    %v8210 = vunpack.c.h.b16 %v6586
    %v8211 = vunpack.c.l.b16 %v6587
    %v8212 = vunpack.c.h.b16 %v6587
    %v8213 = vunpack.c.l.b16 %v6588
    %v8214 = vunpack.c.l.b16 %v6589
    %v8215 = vunpack.c.h.b16 %v6589
    %v8216 = vunpack.c.l.b16 %v6590
    %v8217 = vunpack.c.h.b16 %v6590
    %v8218 = vunpack.c.l.b16 %v6591
    %v8219 = vunpack.c.h.b16 %v6591
    %v8220 = vunpack.c.l.b16 %v6592
    %v8221 = vunpack.c.l.b16 %v6593
    %v8222 = vunpack.c.h.b16 %v6593
    %v8223 = vunpack.c.l.b16 %v6594
    %v8224 = vunpack.c.h.b16 %v6594
    %v8225 = vunpack.c.l.b16 %v6595
    %v8226 = vunpack.c.h.b16 %v6595
    %v8227 = vunpack.c.l.b16 %v6596
    %v8228 = vunpack.c.l.b16 %v6597
    %v8229 = vunpack.c.h.b16 %v6597
    %v8230 = vunpack.c.l.b16 %v6598
    %v8231 = vunpack.c.h.b16 %v6598
    %v8232 = vunpack.c.l.b16 %v6599
    %v8233 = vunpack.c.h.b16 %v6599
    %v8234 = vunpack.c.l.b16 %v6600
    %v8235 = vunpack.c.l.b16 %v6601
    %v8236 = vunpack.c.h.b16 %v6601
    %v8237 = vunpack.c.l.b16 %v6602
    %v8238 = vunpack.c.h.b16 %v6602
    %v8239 = vunpack.c.l.b16 %v6603
    %v8240 = vunpack.c.h.b16 %v6603
    %v8241 = vunpack.c.l.b16 %v6604
    %v8242 = vunpack.c.l.b16 %v6605
    %v8243 = vunpack.c.h.b16 %v6605
    %v8244 = vunpack.c.l.b16 %v6606
    %v8245 = vunpack.c.h.b16 %v6606
    %v8246 = vunpack.c.l.b16 %v6607
    %v8247 = vunpack.c.h.b16 %v6607
    %v8248 = vunpack.c.l.b16 %v6608
    %v8249 = vunpack.c.l.b16 %v6609
    %v8250 = vunpack.c.h.b16 %v6609
    %v8251 = vunpack.c.l.b16 %v6610
    %v8252 = vunpack.c.h.b16 %v6610
    %v8253 = vunpack.c.l.b16 %v6611
    %v8254 = vunpack.c.h.b16 %v6611
    %v8255 = vunpack.c.l.b16 %v6612
    %v8256 = vunpack.c.l.b16 %v6613
    %v8257 = vunpack.c.h.b16 %v6613
    %v8258 = vunpack.c.l.b16 %v6614
    %v8259 = vunpack.c.h.b16 %v6614
    %v8260 = vunpack.c.l.b16 %v6615
    %v8261 = vunpack.c.h.b16 %v6615
    %v8262 = vunpack.c.l.b16 %v6616
    %v8263 = vunpack.c.l.b16 %v6617
    %v8264 = vunpack.c.h.b16 %v6617
    %v8265 = vunpack.c.l.b16 %v6618
    %v8266 = vunpack.c.h.b16 %v6618
    %v8267 = vunpack.c.l.b16 %v6619
    %v8268 = vunpack.c.h.b16 %v6619
    %v8269 = vunpack.c.l.b16 %v6620
    %v8270 = vunpack.c.l.b16 %v6621
    %v8271 = vunpack.c.h.b16 %v6621
    %v8272 = vunpack.c.l.b16 %v6622
    %v8273 = vunpack.c.h.b16 %v6622
    %v8274 = vunpack.c.l.b16 %v6623
    %v8275 = vunpack.c.h.b16 %v6623
    %v8276 = vunpack.c.l.b16 %v6624
    %v8277 = vunpack.c.l.b16 %v6625
    %v8278 = vunpack.c.h.b16 %v6625
    %v8279 = vunpack.c.l.b16 %v6626
    %v8280 = vunpack.c.h.b16 %v6626
    %v8281 = vunpack.c.l.b16 %v6627
    %v8282 = vunpack.c.h.b16 %v6627
    %v8283 = vunpack.c.l.b16 %v6628
    %v8284 = vunpack.c.l.b16 %v6629
    %v8285 = vunpack.c.h.b16 %v6629
    %v8286 = vunpack.c.l.b16 %v6630
    %v8287 = vunpack.c.h.b16 %v6630
    %v8288 = vunpack.c.l.b16 %v6631
    %v8289 = vunpack.c.h.b16 %v6631
    %v8290 = vunpack.c.l.b16 %v6632
    %v8291 = vunpack.c.l.b16 %v6633
    %v8292 = vunpack.c.h.b16 %v6633
    %v8293 = vunpack.c.l.b16 %v6634
    %v8294 = vunpack.c.h.b16 %v6634
    %v8295 = vunpack.c.l.b16 %v6635
    %v8296 = vunpack.c.h.b16 %v6635
    %v8297 = vunpack.c.l.b16 %v6636
    %v8298 = vunpack.c.l.b16 %v6637
    %v8299 = vunpack.c.h.b16 %v6637
    %v8300 = vunpack.c.l.b16 %v6638
    %v8301 = vunpack.c.h.b16 %v6638
    %v8302 = vunpack.c.l.b16 %v6639
    %v8303 = vunpack.c.h.b16 %v6639
    %v8304 = vunpack.c.l.b16 %v6640
    %v8305 = vunpack.c.l.b16 %v6641
    %v8306 = vunpack.c.h.b16 %v6641
    %v8307 = vunpack.c.l.b16 %v6642
    %v8308 = vunpack.c.h.b16 %v6642
    %v8309 = vunpack.c.l.b16 %v6643
    %v8310 = vunpack.c.h.b16 %v6643
    %v8311 = vunpack.c.l.b16 %v6644
    %v8312 = vunpack.c.l.b16 %v6645
    %v8313 = vunpack.c.h.b16 %v6645
    %v8314 = vunpack.c.l.b16 %v6646
    %v8315 = vunpack.c.h.b16 %v6646
    %v8316 = vunpack.c.l.b16 %v6647
    %v8317 = vunpack.c.h.b16 %v6647
    %v8318 = vunpack.c.l.b16 %v6648
    %v8319 = vunpack.c.l.b16 %v6649
    %v8320 = vunpack.c.h.b16 %v6649
    %v8321 = vunpack.c.l.b16 %v6650
    %v8322 = vunpack.c.h.b16 %v6650
    %v8323 = vunpack.c.l.b16 %v6651
    %v8324 = vunpack.c.h.b16 %v6651
    %v8325 = vunpack.c.l.b16 %v6652
    %v8326 = vunpack.c.l.b16 %v6653
    %v8327 = vunpack.c.h.b16 %v6653
    %v8328 = vunpack.c.l.b16 %v6654
    %v8329 = vunpack.c.h.b16 %v6654
    %v8330 = vunpack.c.l.b16 %v6655
    %v8331 = vunpack.c.h.b16 %v6655
    %v8332 = vunpack.c.l.b16 %v6656
    %v8333 = vunpack.c.l.b16 %v6657
    %v8334 = vunpack.c.h.b16 %v6657
    %v8335 = vunpack.c.l.b16 %v6658
    %v8336 = vunpack.c.h.b16 %v6658
    %v8337 = vunpack.c.l.b16 %v6659
    %v8338 = vunpack.c.h.b16 %v6659
    %v8339 = vunpack.c.l.b16 %v6660
    %v8340 = vunpack.c.l.b16 %v6661
    %v8341 = vunpack.c.h.b16 %v6661
    %v8342 = vunpack.c.l.b16 %v6662
    %v8343 = vunpack.c.h.b16 %v6662
    %v8344 = vunpack.c.l.b16 %v6663
    %v8345 = vunpack.c.h.b16 %v6663
    %v8346 = vunpack.c.l.b16 %v6664
    %v8347 = vunpack.c.l.b16 %v6665
    %v8348 = vunpack.c.h.b16 %v6665
    %v8349 = vunpack.c.l.b16 %v6666
    %v8350 = vunpack.c.h.b16 %v6666
    %v8351 = vunpack.c.l.b16 %v6667
    %v8352 = vunpack.c.h.b16 %v6667
    %v8353 = vunpack.c.l.b16 %v6668
    %v8354 = vunpack.c.l.b16 %v6669
    %v8355 = vunpack.c.h.b16 %v6669
    %v8356 = vunpack.c.l.b16 %v6670
    %v8357 = vunpack.c.h.b16 %v6670
    %v8358 = vunpack.c.l.b16 %v6671
    %v8359 = vunpack.c.h.b16 %v6671
    %v8360 = vunpack.c.l.b16 %v6672
    %v8361 = vunpack.c.l.b16 %v6673
    %v8362 = vunpack.c.h.b16 %v6673
    %v8363 = vunpack.c.l.b16 %v6674
    %v8364 = vunpack.c.h.b16 %v6674
    %v8365 = vunpack.c.l.b16 %v6675
    %v8366 = vunpack.c.h.b16 %v6675
    %v8367 = vunpack.c.l.b16 %v6676
    %v8368 = vunpack.c.l.b16 %v6677
    %v8369 = vunpack.c.h.b16 %v6677
    %v8370 = vunpack.c.l.b16 %v6678
    %v8371 = vunpack.c.h.b16 %v6678
    %v8372 = vunpack.c.l.b16 %v6679
    %v8373 = vunpack.c.h.b16 %v6679
    %v8374 = vunpack.c.l.b16 %v6680
    %v8375 = vunpack.c.l.b16 %v6681
    %v8376 = vunpack.c.h.b16 %v6681
    %v8377 = vunpack.c.l.b16 %v6682
    %v8378 = vunpack.c.h.b16 %v6682
    %v8379 = vunpack.c.l.b16 %v6683
    %v8380 = vunpack.c.h.b16 %v6683
    %v8381 = vunpack.c.l.b16 %v6684
    %v8382 = vunpack.c.l.b16 %v6685
    %v8383 = vunpack.c.h.b16 %v6685
    %v8384 = vunpack.c.l.b16 %v6686
    %v8385 = vunpack.c.h.b16 %v6686
    %v8386 = vunpack.c.l.b16 %v6687
    %v8387 = vunpack.c.h.b16 %v6687
    %v8388 = vunpack.c.l.b16 %v6688
    %v8389 = vunpack.c.l.b16 %v6689
    %v8390 = vunpack.c.h.b16 %v6689
    %v8391 = vunpack.c.l.b16 %v6690
    %v8392 = vunpack.c.h.b16 %v6690
    %v8393 = vunpack.c.l.b16 %v6691
    %v8394 = vunpack.c.h.b16 %v6691
    %v8395 = vunpack.c.l.b16 %v6692
    %v8396 = vunpack.c.l.b16 %v6693
    %v8397 = vunpack.c.h.b16 %v6693
    %v8398 = vunpack.c.l.b16 %v6694
    %v8399 = vunpack.c.h.b16 %v6694
    %v8400 = vunpack.c.l.b16 %v6695
    %v8401 = vunpack.c.h.b16 %v6695
    %v8402 = vunpack.c.l.b16 %v6696
    %v8403 = vunpack.c.l.b16 %v6697
    %v8404 = vunpack.c.h.b16 %v6697
    %v8405 = vunpack.c.l.b16 %v6698
    %v8406 = vunpack.c.h.b16 %v6698
    %v8407 = vunpack.c.l.b16 %v6699
    %v8408 = vunpack.c.h.b16 %v6699
    %v8409 = vunpack.c.l.b16 %v6700
    %v8410 = vunpack.c.l.b16 %v6701
    %v8411 = vunpack.c.h.b16 %v6701
    %v8412 = vunpack.c.l.b16 %v6702
    %v8413 = vunpack.c.h.b16 %v6702
    %v8414 = vunpack.c.l.b16 %v6703
    %v8415 = vunpack.c.h.b16 %v6703
    %v8416 = vunpack.c.l.b16 %v6704
    %v8417 = vunpack.c.l.b16 %v6705
    %v8418 = vunpack.c.h.b16 %v6705
    %v8419 = vunpack.c.l.b16 %v6706
    %v8420 = vunpack.c.h.b16 %v6706
    %v8421 = vunpack.c.l.b16 %v6707
    %v8422 = vunpack.c.h.b16 %v6707
    %v8423 = vunpack.c.l.b16 %v6708
    %v8424 = vunpack.c.l.b16 %v6709
    %v8425 = vunpack.c.h.b16 %v6709
    %v8426 = vunpack.c.l.b16 %v6710
    %v8427 = vunpack.c.h.b16 %v6710
    %v8428 = vunpack.c.l.b16 %v6711
    %v8429 = vunpack.c.h.b16 %v6711
    %v8430 = vunpack.c.l.b16 %v6712
    %v8431 = vunpack.c.l.b16 %v6713
    %v8432 = vunpack.c.h.b16 %v6713
    %v8433 = vunpack.c.l.b16 %v6714
    %v8434 = vunpack.c.h.b16 %v6714
    %v8435 = vunpack.c.l.b16 %v6715
    %v8436 = vunpack.c.h.b16 %v6715
    %v8437 = vunpack.c.l.b16 %v6716
    %v8438 = vunpack.c.l.b16 %v6717
    %v8439 = vunpack.c.h.b16 %v6717
    %v8440 = vunpack.c.l.b16 %v6718
    %v8441 = vunpack.c.h.b16 %v6718
    %v8442 = vunpack.c.l.b16 %v6719
    %v8443 = vunpack.c.h.b16 %v6719
    %v8444 = vunpack.c.l.b16 %v6720
    %v8445 = vunpack.c.l.b16 %v6721
    %v8446 = vunpack.c.h.b16 %v6721
    %v8447 = vunpack.c.l.b16 %v6722
    %v8448 = vunpack.c.h.b16 %v6722
    %v8449 = vunpack.c.l.b16 %v6723
    %v8450 = vunpack.c.h.b16 %v6723
    %v8451 = vunpack.c.l.b16 %v6724
    %v8452 = vunpack.c.l.b16 %v6725
    %v8453 = vunpack.c.h.b16 %v6725
    %v8454 = vunpack.c.l.b16 %v6726
    %v8455 = vunpack.c.h.b16 %v6726
    %v8456 = vunpack.c.l.b16 %v6727
    %v8457 = vunpack.c.h.b16 %v6727
    %v8458 = vunpack.c.l.b16 %v6728
    %v8459 = vunpack.c.l.b16 %v6729
    %v8460 = vunpack.c.h.b16 %v6729
    %v8461 = vunpack.c.l.b16 %v6730
    %v8462 = vunpack.c.h.b16 %v6730
    %v8463 = vunpack.c.l.b16 %v6731
    %v8464 = vunpack.c.h.b16 %v6731
    %v8465 = vunpack.c.l.b16 %v6732
    %v8466 = vunpack.c.l.b16 %v6733
    %v8467 = vunpack.c.h.b16 %v6733
    %v8468 = vunpack.c.l.b16 %v6734
    %v8469 = vunpack.c.h.b16 %v6734
    %v8470 = vunpack.c.l.b16 %v6735
    %v8471 = vunpack.c.h.b16 %v6735
    %v8472 = vunpack.c.l.b16 %v6736
    %v8473 = vunpack.c.l.b16 %v6737
    %v8474 = vunpack.c.h.b16 %v6737
    %v8475 = vunpack.c.l.b16 %v6738
    %v8476 = vunpack.c.h.b16 %v6738
    %v8477 = vunpack.c.l.b16 %v6739
    %v8478 = vunpack.c.h.b16 %v6739
    %v8479 = vunpack.c.l.b16 %v6740
    %v8480 = vunpack.c.l.b16 %v6741
    %v8481 = vunpack.c.h.b16 %v6741
    %v8482 = vunpack.c.l.b16 %v6742
    %v8483 = vunpack.c.h.b16 %v6742
    %v8484 = vunpack.c.l.b16 %v6743
    %v8485 = vunpack.c.h.b16 %v6743
    %v8486 = vunpack.c.l.b16 %v6744
    %v8487 = vunpack.c.l.b16 %v6745
    %v8488 = vunpack.c.h.b16 %v6745
    %v8489 = vunpack.c.l.b16 %v6746
    %v8490 = vunpack.c.h.b16 %v6746
    %v8491 = vunpack.c.l.b16 %v6747
    %v8492 = vunpack.c.h.b16 %v6747
    %v8493 = vunpack.c.l.b16 %v6748
    %v8494 = vunpack.c.l.b16 %v6749
    %v8495 = vunpack.c.h.b16 %v6749
    %v8496 = vunpack.c.l.b16 %v6750
    %v8497 = vunpack.c.h.b16 %v6750
    %v8498 = vunpack.c.l.b16 %v6751
    %v8499 = vunpack.c.h.b16 %v6751
    %v8500 = vunpack.c.l.b16 %v6752
    %v8501 = vunpack.c.l.b16 %v6753
    %v8502 = vunpack.c.h.b16 %v6753
    %v8503 = vunpack.c.l.b16 %v6754
    %v8504 = vunpack.c.h.b16 %v6754
    %v8505 = vunpack.c.l.b16 %v6755
    %v8506 = vunpack.c.h.b16 %v6755
    %v8507 = vunpack.c.l.b16 %v6756
    %v8508 = vunpack.c.l.b16 %v6757
    %v8509 = vunpack.c.h.b16 %v6757
    %v8510 = vunpack.c.l.b16 %v6758
    %v8511 = vunpack.c.h.b16 %v6758
    %v8512 = vunpack.c.l.b16 %v6759
    %v8513 = vunpack.c.h.b16 %v6759
    %v8514 = vunpack.c.l.b16 %v6760
    %v8515 = vunpack.c.l.b16 %v6761
    %v8516 = vunpack.c.h.b16 %v6761
    %v8517 = vunpack.c.l.b16 %v6762
    %v8518 = vunpack.c.h.b16 %v6762
    %v8519 = vunpack.c.l.b16 %v6763
    %v8520 = vunpack.c.h.b16 %v6763
    %v8521 = vunpack.c.l.b16 %v6764
    %v8522 = vunpack.c.l.b16 %v6765
    %v8523 = vunpack.c.h.b16 %v6765
    %v8524 = vunpack.c.l.b16 %v6766
    %v8525 = vunpack.c.h.b16 %v6766
    %v8526 = vunpack.c.l.b16 %v6767
    %v8527 = vunpack.c.h.b16 %v6767
    %v8528 = vunpack.c.l.b16 %v6768
    %v8529 = vunpack.c.l.b16 %v6769
    %v8530 = vunpack.c.h.b16 %v6769
    %v8531 = vunpack.c.l.b16 %v6770
    %v8532 = vunpack.c.h.b16 %v6770
    %v8533 = vunpack.c.l.b16 %v6771
    %v8534 = vunpack.c.h.b16 %v6771
    %v8535 = vunpack.c.l.b16 %v6772
    %v8536 = vunpack.c.l.b16 %v6773
    %v8537 = vunpack.c.h.b16 %v6773
    %v8538 = vunpack.c.l.b16 %v6774
    %v8539 = vunpack.c.h.b16 %v6774
    %v8540 = vunpack.c.l.b16 %v6775
    %v8541 = vunpack.c.h.b16 %v6775
    %v8542 = vunpack.c.l.b16 %v6776
    %v8543 = vunpack.c.l.b16 %v6777
    %v8544 = vunpack.c.h.b16 %v6777
    %v8545 = vunpack.c.l.b16 %v6778
    %v8546 = vunpack.c.h.b16 %v6778
    %v8547 = vunpack.c.l.b16 %v6779
    %v8548 = vunpack.c.h.b16 %v6779
    %v8549 = vunpack.c.l.b16 %v6780
    %v8550 = vunpack.c.l.b16 %v6781
    %v8551 = vunpack.c.h.b16 %v6781
    %v8552 = vunpack.c.l.b16 %v6782
    %v8553 = vunpack.c.h.b16 %v6782
    %v8554 = vunpack.c.l.b16 %v6783
    %v8555 = vunpack.c.h.b16 %v6783
    %v8556 = vunpack.c.l.b16 %v6784
    %v8557 = vunpack.c.l.b16 %v6785
    %v8558 = vunpack.c.h.b16 %v6785
    %v8559 = vunpack.c.l.b16 %v6786
    %v8560 = vunpack.c.h.b16 %v6786
    %v8561 = vunpack.c.l.b16 %v6787
    %v8562 = vunpack.c.h.b16 %v6787
    %v8563 = vunpack.c.l.b16 %v6788
    %v8564 = vunpack.c.l.b16 %v6789
    %v8565 = vunpack.c.h.b16 %v6789
    %v8566 = vunpack.c.l.b16 %v6790
    %v8567 = vunpack.c.h.b16 %v6790
    %v8568 = vunpack.c.l.b16 %v6791
    %v8569 = vunpack.c.h.b16 %v6791
    %v8570 = vunpack.c.l.b16 %v6792
    %v8571 = vunpack.c.l.b16 %v6793
    %v8572 = vunpack.c.h.b16 %v6793
    %v8573 = vunpack.c.l.b16 %v6794
    %v8574 = vunpack.c.h.b16 %v6794
    %v8575 = vunpack.c.l.b16 %v6795
    %v8576 = vunpack.c.h.b16 %v6795
    %v8577 = vunpack.c.l.b16 %v6796
    %v8578 = vunpack.c.l.b16 %v6797
    %v8579 = vunpack.c.h.b16 %v6797
    %v8580 = vunpack.c.l.b16 %v6798
    %v8581 = vunpack.c.h.b16 %v6798
    %v8582 = vunpack.c.l.b16 %v6799
    %v8583 = vunpack.c.h.b16 %v6799
    %v8584 = vunpack.c.l.b16 %v6800
    %v8585 = vunpack.c.l.b16 %v6801
    %v8586 = vunpack.c.h.b16 %v6801
    %v8587 = vunpack.c.l.b16 %v6802
    %v8588 = vunpack.c.h.b16 %v6802
    %v8589 = vunpack.c.l.b16 %v6803
    %v8590 = vunpack.c.h.b16 %v6803
    %v8591 = vunpack.c.l.b16 %v6804
    %v8592 = vunpack.c.l.b16 %v6805
    %v8593 = vunpack.c.h.b16 %v6805
    %v8594 = vunpack.c.l.b16 %v6806
    %v8595 = vunpack.c.h.b16 %v6806
    %v8596 = vunpack.c.l.b16 %v6807
    %v8597 = vunpack.c.h.b16 %v6807
    %v8598 = vunpack.c.l.b16 %v6808
    %v8599 = vunpack.c.l.b16 %v6809
    %v8600 = vunpack.c.h.b16 %v6809
    %v8601 = vunpack.c.l.b16 %v6810
    %v8602 = vunpack.c.h.b16 %v6810
    %v8603 = vunpack.c.l.b16 %v6811
    %v8604 = vunpack.c.h.b16 %v6811
    %v8605 = vunpack.c.l.b16 %v6812
    %v8606 = vunpack.c.l.b16 %v6813
    %v8607 = vunpack.c.h.b16 %v6813
    %v8608 = vunpack.c.l.b16 %v6814
    %v8609 = vunpack.c.h.b16 %v6814
    %v8610 = vunpack.c.l.b16 %v6815
    %v8611 = vunpack.c.h.b16 %v6815
    %v8612 = vunpack.c.l.b16 %v6816
    %v8613 = vunpack.c.l.b16 %v6817
    %v8614 = vunpack.c.h.b16 %v6817
    %v8615 = vunpack.c.l.b16 %v6818
    %v8616 = vunpack.c.h.b16 %v6818
    %v8617 = vunpack.c.l.b16 %v6819
    %v8618 = vunpack.c.h.b16 %v6819
    %v8619 = vunpack.c.l.b16 %v6820
    %v8620 = vunpack.c.l.b16 %v6821
    %v8621 = vunpack.c.h.b16 %v6821
    %v8622 = vunpack.c.l.b16 %v6822
    %v8623 = vunpack.c.h.b16 %v6822
    %v8624 = vunpack.c.l.b16 %v6823
    %v8625 = vunpack.c.h.b16 %v6823
    %v8626 = vunpack.c.l.b16 %v6824
    %v8627 = vunpack.c.l.b16 %v6825
    %v8628 = vunpack.c.h.b16 %v6825
    %v8629 = vunpack.c.l.b16 %v6826
    %v8630 = vunpack.c.h.b16 %v6826
    %v8631 = vunpack.c.l.b16 %v6827
    %v8632 = vunpack.c.h.b16 %v6827
    %v8633 = vunpack.c.l.b16 %v6828
    %v8634 = vunpack.c.l.b16 %v6829
    %v8635 = vunpack.c.h.b16 %v6829
    %v8636 = vunpack.c.l.b16 %v6830
    %v8637 = vunpack.c.h.b16 %v6830
    %v8638 = vunpack.c.l.b16 %v6831
    %v8639 = vunpack.c.h.b16 %v6831
    %v8640 = vunpack.c.l.b16 %v6832
    %v8641 = vunpack.c.l.b16 %v6833
    %v8642 = vunpack.c.h.b16 %v6833
    %v8643 = vunpack.c.l.b16 %v6834
    %v8644 = vunpack.c.h.b16 %v6834
    %v8645 = vunpack.c.l.b16 %v6835
    %v8646 = vunpack.c.h.b16 %v6835
    %v8647 = vunpack.c.l.b16 %v6836
    %v8648 = vunpack.c.l.b16 %v6837
    %v8649 = vunpack.c.h.b16 %v6837
    %v8650 = vunpack.c.l.b16 %v6838
    %v8651 = vunpack.c.h.b16 %v6838
    %v8652 = vunpack.c.l.b16 %v6839
    %v8653 = vunpack.c.h.b16 %v6839
    %v8654 = vunpack.c.l.b16 %v6840
    %v8655 = vunpack.c.l.b16 %v6841
    %v8656 = vunpack.c.h.b16 %v6841
    %v8657 = vunpack.c.l.b16 %v6842
    %v8658 = vunpack.c.h.b16 %v6842
    %v8659 = vunpack.c.l.b16 %v6843
    %v8660 = vunpack.c.h.b16 %v6843
    %v8661 = vunpack.c.l.b16 %v6844
    %v8662 = vunpack.c.l.b16 %v6845
    %v8663 = vunpack.c.h.b16 %v6845
    %v8664 = vunpack.c.l.b16 %v6846
    %v8665 = vunpack.c.h.b16 %v6846
    %v8666 = vunpack.c.l.b16 %v6847
    %v8667 = vunpack.c.h.b16 %v6847
    %v8668 = vunpack.c.l.b16 %v6848
    %v8669 = vunpack.c.l.b16 %v6849
    %v8670 = vunpack.c.h.b16 %v6849
    %v8671 = vunpack.c.l.b16 %v6850
    %v8672 = vunpack.c.h.b16 %v6850
    %v8673 = vunpack.c.l.b16 %v6851
    %v8674 = vunpack.c.h.b16 %v6851
    %v8675 = vunpack.c.l.b16 %v6852
    %v8676 = vunpack.c.l.b16 %v6853
    %v8677 = vunpack.c.h.b16 %v6853
    %v8678 = vunpack.c.l.b16 %v6854
    %v8679 = vunpack.c.h.b16 %v6854
    %v8680 = vunpack.c.l.b16 %v6855
    %v8681 = vunpack.c.h.b16 %v6855
    %v8682 = vunpack.c.l.b16 %v6856
    %v8683 = vunpack.c.l.b16 %v6857
    %v8684 = vunpack.c.h.b16 %v6857
    %v8685 = vunpack.c.l.b16 %v6858
    %v8686 = vunpack.c.h.b16 %v6858
    %v8687 = vunpack.c.l.b16 %v6859
    %v8688 = vunpack.c.h.b16 %v6859
    %v8689 = vunpack.c.l.b16 %v6860
    %v8690 = vunpack.c.l.b16 %v6861
    %v8691 = vunpack.c.h.b16 %v6861
    %v8692 = vunpack.c.l.b16 %v6862
    %v8693 = vunpack.c.h.b16 %v6862
    %v8694 = vunpack.c.l.b16 %v6863
    %v8695 = vunpack.c.h.b16 %v6863
    %v8696 = vunpack.c.l.b16 %v6864
    %v8697 = vunpack.c.l.b16 %v6865
    %v8698 = vunpack.c.h.b16 %v6865
    %v8699 = vunpack.c.l.b16 %v6866
    %v8700 = vunpack.c.h.b16 %v6866
    %v8701 = vunpack.c.l.b16 %v6867
    %v8702 = vunpack.c.h.b16 %v6867
    %v8703 = vunpack.c.l.b16 %v6868
    %v8704 = vunpack.c.l.b16 %v6869
    %v8705 = vunpack.c.h.b16 %v6869
    %v8706 = vunpack.c.l.b16 %v6870
    %v8707 = vunpack.c.h.b16 %v6870
    %v8708 = vunpack.c.l.b16 %v6871
    %v8709 = vunpack.c.h.b16 %v6871
    %v8710 = vunpack.c.l.b16 %v6872
    %v8711 = vunpack.c.l.b16 %v6873
    %v8712 = vunpack.c.h.b16 %v6873
    %v8713 = vunpack.c.l.b16 %v6874
    %v8714 = vunpack.c.h.b16 %v6874
    %v8715 = vunpack.c.l.b16 %v6875
    %v8716 = vunpack.c.h.b16 %v6875
    %v8717 = vunpack.c.l.b16 %v6876
    %v8718 = vunpack.c.l.b16 %v6877
    %v8719 = vunpack.c.h.b16 %v6877
    %v8720 = vunpack.c.l.b16 %v6878
    %v8721 = vunpack.c.h.b16 %v6878
    %v8722 = vunpack.c.l.b16 %v6879
    %v8723 = vunpack.c.h.b16 %v6879
    %v8724 = vunpack.c.l.b16 %v6880
    %v8725 = vunpack.c.l.b16 %v6881
    %v8726 = vunpack.c.h.b16 %v6881
    %v8727 = vunpack.c.l.b16 %v6882
    %v8728 = vunpack.c.h.b16 %v6882
    %v8729 = vunpack.c.l.b16 %v6883
    %v8730 = vunpack.c.h.b16 %v6883
    %v8731 = vunpack.c.l.b16 %v6884
    %v8732 = vunpack.c.l.b16 %v6885
    %v8733 = vunpack.c.h.b16 %v6885
    %v8734 = vunpack.c.l.b16 %v6886
    %v8735 = vunpack.c.h.b16 %v6886
    %v8736 = vunpack.c.l.b16 %v6887
    %v8737 = vunpack.c.h.b16 %v6887
    %v8738 = vunpack.c.l.b16 %v6888
    %v8739 = vunpack.c.l.b16 %v6889
    %v8740 = vunpack.c.h.b16 %v6889
    %v8741 = vunpack.c.l.b16 %v6890
    %v8742 = vunpack.c.h.b16 %v6890
    %v8743 = vunpack.c.l.b16 %v6891
    %v8744 = vunpack.c.h.b16 %v6891
    %v8745 = vunpack.c.l.b16 %v6892
    %v8746 = vunpack.c.l.b16 %v6893
    %v8747 = vunpack.c.h.b16 %v6893
    %v8748 = vunpack.c.l.b16 %v6894
    %v8749 = vunpack.c.h.b16 %v6894
    %v8750 = vunpack.c.l.b16 %v6895
    %v8751 = vunpack.c.h.b16 %v6895
    %v8752 = vunpack.c.l.b16 %v6896
    %v8753 = vunpack.c.l.b16 %v6897
    %v8754 = vunpack.c.h.b16 %v6897
    %v8755 = vunpack.c.l.b16 %v6898
    %v8756 = vunpack.c.h.b16 %v6898
    %v8757 = vunpack.c.l.b16 %v6899
    %v8758 = vunpack.c.h.b16 %v6899
    %v8759 = vunpack.c.l.b16 %v6900
    %v8760 = vunpack.c.l.b16 %v6901
    %v8761 = vunpack.c.h.b16 %v6901
    %v8762 = vunpack.c.l.b16 %v6902
    %v8763 = vunpack.c.h.b16 %v6902
    %v8764 = vunpack.c.l.b16 %v6903
    %v8765 = vunpack.c.h.b16 %v6903
    %v8766 = vunpack.c.l.b16 %v6904
    %v8767 = vunpack.c.l.b16 %v6905
    %v8768 = vunpack.c.h.b16 %v6905
    %v8769 = vunpack.c.l.b16 %v6906
    %v8770 = vunpack.c.h.b16 %v6906
    %v8771 = vunpack.c.l.b16 %v6907
    %v8772 = vunpack.c.h.b16 %v6907
    %v8773 = vunpack.c.l.b16 %v6908
    %v8774 = vunpack.c.l.b16 %v6909
    %v8775 = vunpack.c.h.b16 %v6909
    %v8776 = vunpack.c.l.b16 %v6910
    %v8777 = vunpack.c.h.b16 %v6910
    %v8778 = vunpack.c.l.b16 %v6911
    %v8779 = vunpack.c.h.b16 %v6911
    %v8780 = vunpack.c.l.b16 %v6912
    %v8781 = vunpack.c.l.b16 %v6913
    %v8782 = vunpack.c.h.b16 %v6913
    %v8783 = vunpack.c.l.b16 %v6914
    %v8784 = vunpack.c.h.b16 %v6914
    %v8785 = vunpack.c.l.b16 %v6915
    %v8786 = vunpack.c.h.b16 %v6915
    %v8787 = vunpack.c.l.b16 %v6916
    %v8788 = vunpack.c.l.b16 %v6917
    %v8789 = vunpack.c.h.b16 %v6917
    %v8790 = vunpack.c.l.b16 %v6918
    %v8791 = vunpack.c.h.b16 %v6918
    %v8792 = vunpack.c.l.b16 %v6919
    %v8793 = vunpack.c.h.b16 %v6919
    %v8794 = vunpack.c.l.b16 %v6920
    %v8795 = vunpack.c.l.b16 %v6921
    %v8796 = vunpack.c.h.b16 %v6921
    %v8797 = vunpack.c.l.b16 %v6922
    %v8798 = vunpack.c.h.b16 %v6922
    %v8799 = vunpack.c.l.b16 %v6923
    %v8800 = vunpack.c.h.b16 %v6923
    %v8801 = vunpack.c.l.b16 %v6924
    %v8802 = vunpack.c.l.b16 %v6925
    %v8803 = vunpack.c.h.b16 %v6925
    %v8804 = vunpack.c.l.b16 %v6926
    %v8805 = vunpack.c.h.b16 %v6926
    %v8806 = vunpack.c.l.b16 %v6927
    %v8807 = vunpack.c.h.b16 %v6927
    %v8808 = vunpack.c.l.b16 %v6928
    %v8809 = vunpack.c.l.b16 %v6929
    %v8810 = vunpack.c.h.b16 %v6929
    %v8811 = vunpack.c.l.b16 %v6930
    %v8812 = vunpack.c.h.b16 %v6930
    %v8813 = vunpack.c.l.b16 %v6931
    %v8814 = vunpack.c.h.b16 %v6931
    %v8815 = vunpack.c.l.b16 %v6932
    %v8816 = vunpack.c.l.b16 %v6933
    %v8817 = vunpack.c.h.b16 %v6933
    %v8818 = vunpack.c.l.b16 %v6934
    %v8819 = vunpack.c.h.b16 %v6934
    %v8820 = vunpack.c.l.b16 %v6935
    %v8821 = vunpack.c.h.b16 %v6935
    %v8822 = vunpack.c.l.b16 %v6936
    %v8823 = vunpack.c.l.b16 %v6937
    %v8824 = vunpack.c.h.b16 %v6937
    %v8825 = vunpack.c.l.b16 %v6938
    %v8826 = vunpack.c.h.b16 %v6938
    %v8827 = vunpack.c.l.b16 %v6939
    %v8828 = vunpack.c.h.b16 %v6939
    %v8829 = vunpack.c.l.b16 %v6940
    %v8830 = vunpack.c.l.b16 %v6941
    %v8831 = vunpack.c.h.b16 %v6941
    %v8832 = vunpack.c.l.b16 %v6942
    %v8833 = vunpack.c.h.b16 %v6942
    %v8834 = vunpack.c.l.b16 %v6943
    %v8835 = vunpack.c.h.b16 %v6943
    %v8836 = vunpack.c.l.b16 %v6944
    %v8837 = vunpack.c.l.b16 %v6945
    %v8838 = vunpack.c.h.b16 %v6945
    %v8839 = vunpack.c.l.b16 %v6946
    %v8840 = vunpack.c.h.b16 %v6946
    %v8841 = vunpack.c.l.b16 %v6947
    %v8842 = vunpack.c.h.b16 %v6947
    %v8843 = vunpack.c.l.b16 %v6948
    %v8844 = vunpack.c.l.b16 %v6949
    %v8845 = vunpack.c.h.b16 %v6949
    %v8846 = vunpack.c.l.b16 %v6950
    %v8847 = vunpack.c.h.b16 %v6950
    %v8848 = vunpack.c.l.b16 %v6951
    %v8849 = vunpack.c.h.b16 %v6951
    %v8850 = vunpack.c.l.b16 %v6952
    %v8851 = vunpack.c.l.b16 %v6953
    %v8852 = vunpack.c.h.b16 %v6953
    %v8853 = vunpack.c.l.b16 %v6954
    %v8854 = vunpack.c.h.b16 %v6954
    %v8855 = vunpack.c.l.b16 %v6955
    %v8856 = vunpack.c.h.b16 %v6955
    %v8857 = vunpack.c.l.b16 %v6956
    %v8858 = vunpack.c.l.b16 %v6957
    %v8859 = vunpack.c.h.b16 %v6957
    %v8860 = vunpack.c.l.b16 %v6958
    %v8861 = vunpack.c.h.b16 %v6958
    %v8862 = vunpack.c.l.b16 %v6959
    %v8863 = vunpack.c.h.b16 %v6959
    %v8864 = vunpack.c.l.b16 %v6960
    %v8865 = vunpack.c.l.b16 %v6961
    %v8866 = vunpack.c.h.b16 %v6961
    %v8867 = vunpack.c.l.b16 %v6962
    %v8868 = vunpack.c.h.b16 %v6962
    %v8869 = vunpack.c.l.b16 %v6963
    %v8870 = vunpack.c.h.b16 %v6963
    %v8871 = vunpack.c.l.b16 %v6964
    %v8872 = vunpack.c.l.b16 %v6965
    %v8873 = vunpack.c.h.b16 %v6965
    %v8874 = vunpack.c.l.b16 %v6966
    %v8875 = vunpack.c.h.b16 %v6966
    %v8876 = vunpack.c.l.b16 %v6967
    %v8877 = vunpack.c.h.b16 %v6967
    %v8878 = vunpack.c.l.b16 %v6968
    %v8879 = vunpack.c.l.b16 %v6969
    %v8880 = vunpack.c.h.b16 %v6969
    %v8881 = vunpack.c.l.b16 %v6970
    %v8882 = vunpack.c.h.b16 %v6970
    %v8883 = vunpack.c.l.b16 %v6971
    %v8884 = vunpack.c.h.b16 %v6971
    %v8885 = vunpack.c.l.b16 %v6972
    %v8886 = vunpack.c.l.b16 %v6973
    %v8887 = vunpack.c.h.b16 %v6973
    %v8888 = vunpack.c.l.b16 %v6974
    %v8889 = vunpack.c.h.b16 %v6974
    %v8890 = vunpack.c.l.b16 %v6975
    %v8891 = vunpack.c.h.b16 %v6975
    %v8892 = vunpack.c.l.b16 %v6976
    %v8893 = vunpack.c.l.b16 %v6977
    %v8894 = vunpack.c.h.b16 %v6977
    %v8895 = vunpack.c.l.b16 %v6978
    %v8896 = vunpack.c.h.b16 %v6978
    %v8897 = vunpack.c.l.b16 %v6979
    %v8898 = vunpack.c.h.b16 %v6979
    %v8899 = vunpack.c.l.b16 %v6980
    %v8900 = vunpack.c.l.b16 %v6981
    %v8901 = vunpack.c.h.b16 %v6981
    %v8902 = vunpack.c.l.b16 %v6982
    %v8903 = vunpack.c.h.b16 %v6982
    %v8904 = vunpack.c.l.b16 %v6983
    %v8905 = vunpack.c.h.b16 %v6983
    %v8906 = vunpack.c.l.b16 %v6984
    %v8907 = vunpack.c.l.b16 %v6985
    %v8908 = vunpack.c.h.b16 %v6985
    %v8909 = vunpack.c.l.b16 %v6986
    %v8910 = vunpack.c.h.b16 %v6986
    %v8911 = vunpack.c.l.b16 %v6987
    %v8912 = vunpack.c.h.b16 %v6987
    %v8913 = vunpack.c.l.b16 %v6988
    %v8914 = vunpack.c.l.b16 %v6989
    %v8915 = vunpack.c.h.b16 %v6989
    %v8916 = vunpack.c.l.b16 %v6990
    %v8917 = vunpack.c.h.b16 %v6990
    %v8918 = vunpack.c.l.b16 %v6991
    %v8919 = vunpack.c.h.b16 %v6991
    %v8920 = vunpack.c.l.b16 %v6992
    %v8921 = vunpack.c.l.b16 %v6993
    %v8922 = vunpack.c.h.b16 %v6993
    %v8923 = vunpack.c.l.b16 %v6994
    %v8924 = vunpack.c.h.b16 %v6994
    %v8925 = vunpack.c.l.b16 %v6995
    %v8926 = vunpack.c.h.b16 %v6995
    %v8927 = vunpack.c.l.b16 %v6996
    %v8928 = vunpack.c.l.b16 %v6997
    %v8929 = vunpack.c.h.b16 %v6997
    %v8930 = vunpack.c.l.b16 %v6998
    %v8931 = vunpack.c.h.b16 %v6998
    %v8932 = vunpack.c.l.b16 %v6999
    %v8933 = vunpack.c.h.b16 %v6999
    %v8934 = vunpack.c.l.b16 %v7000
    %v8935 = vunpack.c.l.b16 %v7001
    %v8936 = vunpack.c.h.b16 %v7001
    %v8937 = vunpack.c.l.b16 %v7002
    %v8938 = vunpack.c.h.b16 %v7002
    %v8939 = vunpack.c.l.b16 %v7003
    %v8940 = vunpack.c.h.b16 %v7003
    %v8941 = vunpack.c.l.b16 %v7004
    %v8942 = vunpack.c.l.b16 %v7005
    %v8943 = vunpack.c.h.b16 %v7005
    %v8944 = vunpack.c.l.b16 %v7006
    %v8945 = vunpack.c.h.b16 %v7006
    %v8946 = vunpack.c.l.b16 %v7007
    %v8947 = vunpack.c.h.b16 %v7007
    %v8948 = vunpack.c.l.b16 %v7008
    %v8949 = vunpack.c.l.b16 %v7009
    %v8950 = vunpack.c.h.b16 %v7009
    %v8951 = vunpack.c.l.b16 %v7010
    %v8952 = vunpack.c.h.b16 %v7010
    %v8953 = vunpack.c.l.b16 %v7011
    %v8954 = vunpack.c.h.b16 %v7011
    %v8955 = vunpack.c.l.b16 %v7012
    %v8956 = vunpack.c.l.b16 %v7013
    %v8957 = vunpack.c.h.b16 %v7013
    %v8958 = vunpack.c.l.b16 %v7014
    %v8959 = vunpack.c.h.b16 %v7014
    %v8960 = vunpack.c.l.b16 %v7015
    %v8961 = vunpack.c.h.b16 %v7015
    %v8962 = vunpack.c.l.b16 %v7016
    %v8963 = vunpack.c.l.b16 %v7017
    %v8964 = vunpack.c.h.b16 %v7017
    %v8965 = vunpack.c.l.b16 %v7018
    %v8966 = vunpack.c.h.b16 %v7018
    %v8967 = vunpack.c.l.b16 %v7019
    %v8968 = vunpack.c.h.b16 %v7019
    %v8969 = vunpack.c.l.b16 %v7020
    %v8970 = vunpack.c.l.b16 %v7021
    %v8971 = vunpack.c.h.b16 %v7021
    %v8972 = vunpack.c.l.b16 %v7022
    %v8973 = vunpack.c.h.b16 %v7022
    %v8974 = vunpack.c.l.b16 %v7023
    %v8975 = vunpack.c.h.b16 %v7023
    %v8976 = vunpack.c.l.b16 %v7024
    %v8977 = vunpack.c.l.b16 %v7025
    %v8978 = vunpack.c.h.b16 %v7025
    %v8979 = vunpack.c.l.b16 %v7026
    %v8980 = vunpack.c.h.b16 %v7026
    %v8981 = vunpack.c.l.b16 %v7027
    %v8982 = vunpack.c.h.b16 %v7027
    %v8983 = vunpack.c.l.b16 %v7028
    %v8984 = vunpack.c.l.b16 %v7029
    %v8985 = vunpack.c.h.b16 %v7029
    %v8986 = vunpack.c.l.b16 %v7030
    %v8987 = vunpack.c.h.b16 %v7030
    %v8988 = vunpack.c.l.b16 %v7031
    %v8989 = vunpack.c.h.b16 %v7031
    %v8990 = vunpack.c.l.b16 %v7032
    %v8991 = vunpack.c.l.b16 %v7033
    %v8992 = vunpack.c.h.b16 %v7033
    %v8993 = vunpack.c.l.b16 %v7034
    %v8994 = vunpack.c.h.b16 %v7034
    %v8995 = vunpack.c.l.b16 %v7035
    %v8996 = vunpack.c.h.b16 %v7035
    %v8997 = vunpack.c.l.b16 %v7036
    %v8998 = vunpack.c.l.b16 %v7037
    %v8999 = vunpack.c.h.b16 %v7037
    %v9000 = vunpack.c.l.b16 %v7038
    %v9001 = vunpack.c.h.b16 %v7038
    %v9002 = vunpack.c.l.b16 %v7039
    %v9003 = vunpack.c.h.b16 %v7039
    %v9004 = vunpack.c.l.b16 %v7040
    %v9005 = vunpack.c.l.b16 %v7041
    %v9006 = vunpack.c.h.b16 %v7041
    %v9007 = vunpack.c.l.b16 %v7042
    %v9008 = vunpack.c.h.b16 %v7042
    %v9009 = vunpack.c.l.b16 %v7043
    %v9010 = vunpack.c.h.b16 %v7043
    %v9011 = vunpack.c.l.b16 %v7044
    %v9012 = vunpack.c.l.b16 %v7045
    %v9013 = vunpack.c.h.b16 %v7045
    %v9014 = vunpack.c.l.b16 %v7046
    %v9015 = vunpack.c.h.b16 %v7046
    %v9016 = vunpack.c.l.b16 %v7047
    %v9017 = vunpack.c.h.b16 %v7047
    %v9018 = vunpack.c.l.b16 %v7048
    %v9019 = vunpack.c.l.b16 %v7049
    %v9020 = vunpack.c.h.b16 %v7049
    %v9021 = vunpack.c.l.b16 %v7050
    %v9022 = vunpack.c.h.b16 %v7050
    %v9023 = vunpack.c.l.b16 %v7051
    %v9024 = vunpack.c.h.b16 %v7051
    %v9025 = vunpack.c.l.b16 %v7052
    %v9026 = vpack.c.b16 %v7801, %v7794
    %v9027 = vpack.c.b16 %v7802, %v7795
    %v9028 = vpack.c.b16 %v7803, %v7796
    %v9029 = vpack.c.b16 %v7804, %v7797
    %v9030 = vpack.c.b16 %v7805, %v7798
    %v9031 = vpack.c.b16 %v7806, %v7799
    %v9032 = vpack.c.b16 %v7807, %v7800
    %v9033 = vpack.c.b16 %v7815, %v7808
    %v9034 = vpack.c.b16 %v7816, %v7809
    %v9035 = vpack.c.b16 %v7817, %v7810
    %v9036 = vpack.c.b16 %v7818, %v7811
    %v9037 = vpack.c.b16 %v7819, %v7812
    %v9038 = vpack.c.b16 %v7820, %v7813
    %v9039 = vpack.c.b16 %v7821, %v7814
    %v9040 = vpack.c.b16 %v7829, %v7822
    %v9041 = vpack.c.b16 %v7830, %v7823
    %v9042 = vpack.c.b16 %v7831, %v7824
    %v9043 = vpack.c.b16 %v7832, %v7825
    %v9044 = vpack.c.b16 %v7833, %v7826
    %v9045 = vpack.c.b16 %v7834, %v7827
    %v9046 = vpack.c.b16 %v7835, %v7828
    %v9047 = vpack.c.b16 %v7843, %v7836
    %v9048 = vpack.c.b16 %v7844, %v7837
    %v9049 = vpack.c.b16 %v7845, %v7838
    %v9050 = vpack.c.b16 %v7846, %v7839
    %v9051 = vpack.c.b16 %v7847, %v7840
    %v9052 = vpack.c.b16 %v7848, %v7841
    %v9053 = vpack.c.b16 %v7849, %v7842
    %v9054 = vpack.c.b16 %v7857, %v7850
    %v9055 = vpack.c.b16 %v7858, %v7851
    %v9056 = vpack.c.b16 %v7859, %v7852
    %v9057 = vpack.c.b16 %v7860, %v7853
    %v9058 = vpack.c.b16 %v7861, %v7854
    %v9059 = vpack.c.b16 %v7862, %v7855
    %v9060 = vpack.c.b16 %v7863, %v7856
    %v9061 = vpack.c.b16 %v7871, %v7864
    %v9062 = vpack.c.b16 %v7872, %v7865
    %v9063 = vpack.c.b16 %v7873, %v7866
    %v9064 = vpack.c.b16 %v7874, %v7867
    %v9065 = vpack.c.b16 %v7875, %v7868
    %v9066 = vpack.c.b16 %v7876, %v7869
    %v9067 = vpack.c.b16 %v7877, %v7870
    %v9068 = vpack.c.b16 %v7885, %v7878
    %v9069 = vpack.c.b16 %v7886, %v7879
    %v9070 = vpack.c.b16 %v7887, %v7880
    %v9071 = vpack.c.b16 %v7888, %v7881
    %v9072 = vpack.c.b16 %v7889, %v7882
    %v9073 = vpack.c.b16 %v7890, %v7883
    %v9074 = vpack.c.b16 %v7891, %v7884
    %v9075 = vpack.c.b16 %v7899, %v7892
    %v9076 = vpack.c.b16 %v7900, %v7893
    %v9077 = vpack.c.b16 %v7901, %v7894
    %v9078 = vpack.c.b16 %v7902, %v7895
    %v9079 = vpack.c.b16 %v7903, %v7896
    %v9080 = vpack.c.b16 %v7904, %v7897
    %v9081 = vpack.c.b16 %v7905, %v7898
    %v9082 = vpack.c.b16 %v7913, %v7906
    %v9083 = vpack.c.b16 %v7914, %v7907
    %v9084 = vpack.c.b16 %v7915, %v7908
    %v9085 = vpack.c.b16 %v7916, %v7909
    %v9086 = vpack.c.b16 %v7917, %v7910
    %v9087 = vpack.c.b16 %v7918, %v7911
    %v9088 = vpack.c.b16 %v7919, %v7912
    %v9089 = vpack.c.b16 %v7927, %v7920
    %v9090 = vpack.c.b16 %v7928, %v7921
    %v9091 = vpack.c.b16 %v7929, %v7922
    %v9092 = vpack.c.b16 %v7930, %v7923
    %v9093 = vpack.c.b16 %v7931, %v7924
    %v9094 = vpack.c.b16 %v7932, %v7925
    %v9095 = vpack.c.b16 %v7933, %v7926
    %v9096 = vpack.c.b16 %v7941, %v7934
    %v9097 = vpack.c.b16 %v7942, %v7935
    %v9098 = vpack.c.b16 %v7943, %v7936
    %v9099 = vpack.c.b16 %v7944, %v7937
    %v9100 = vpack.c.b16 %v7945, %v7938
    %v9101 = vpack.c.b16 %v7946, %v7939
    %v9102 = vpack.c.b16 %v7947, %v7940
    %v9103 = vpack.c.b16 %v7955, %v7948
    %v9104 = vpack.c.b16 %v7956, %v7949
    %v9105 = vpack.c.b16 %v7957, %v7950
    %v9106 = vpack.c.b16 %v7958, %v7951
    %v9107 = vpack.c.b16 %v7959, %v7952
    %v9108 = vpack.c.b16 %v7960, %v7953
    %v9109 = vpack.c.b16 %v7961, %v7954
    %v9110 = vpack.c.b16 %v7969, %v7962
    %v9111 = vpack.c.b16 %v7970, %v7963
    %v9112 = vpack.c.b16 %v7971, %v7964
    %v9113 = vpack.c.b16 %v7972, %v7965
    %v9114 = vpack.c.b16 %v7973, %v7966
    %v9115 = vpack.c.b16 %v7974, %v7967
    %v9116 = vpack.c.b16 %v7975, %v7968
    %v9117 = vpack.c.b16 %v7983, %v7976
    %v9118 = vpack.c.b16 %v7984, %v7977
    %v9119 = vpack.c.b16 %v7985, %v7978
    %v9120 = vpack.c.b16 %v7986, %v7979
    %v9121 = vpack.c.b16 %v7987, %v7980
    %v9122 = vpack.c.b16 %v7988, %v7981
    %v9123 = vpack.c.b16 %v7989, %v7982
    %v9124 = vpack.c.b16 %v7997, %v7990
    %v9125 = vpack.c.b16 %v7998, %v7991
    %v9126 = vpack.c.b16 %v7999, %v7992
    %v9127 = vpack.c.b16 %v8000, %v7993
    %v9128 = vpack.c.b16 %v8001, %v7994
    %v9129 = vpack.c.b16 %v8002, %v7995
    %v9130 = vpack.c.b16 %v8003, %v7996
    %v9131 = vpack.c.b16 %v8011, %v8004
    %v9132 = vpack.c.b16 %v8012, %v8005
    %v9133 = vpack.c.b16 %v8013, %v8006
    %v9134 = vpack.c.b16 %v8014, %v8007
    %v9135 = vpack.c.b16 %v8015, %v8008
    %v9136 = vpack.c.b16 %v8016, %v8009
    %v9137 = vpack.c.b16 %v8017, %v8010
    %v9138 = vpack.c.b16 %v8025, %v8018
    %v9139 = vpack.c.b16 %v8026, %v8019
    %v9140 = vpack.c.b16 %v8027, %v8020
    %v9141 = vpack.c.b16 %v8028, %v8021
    %v9142 = vpack.c.b16 %v8029, %v8022
    %v9143 = vpack.c.b16 %v8030, %v8023
    %v9144 = vpack.c.b16 %v8031, %v8024
    %v9145 = vpack.c.b16 %v8039, %v8032
    %v9146 = vpack.c.b16 %v8040, %v8033
    %v9147 = vpack.c.b16 %v8041, %v8034
    %v9148 = vpack.c.b16 %v8042, %v8035
    %v9149 = vpack.c.b16 %v8043, %v8036
    %v9150 = vpack.c.b16 %v8044, %v8037
    %v9151 = vpack.c.b16 %v8045, %v8038
    %v9152 = vpack.c.b16 %v8053, %v8046
    %v9153 = vpack.c.b16 %v8054, %v8047
    %v9154 = vpack.c.b16 %v8055, %v8048
    %v9155 = vpack.c.b16 %v8056, %v8049
    %v9156 = vpack.c.b16 %v8057, %v8050
    %v9157 = vpack.c.b16 %v8058, %v8051
    %v9158 = vpack.c.b16 %v8059, %v8052
    %v9159 = vpack.c.b16 %v8067, %v8060
    %v9160 = vpack.c.b16 %v8068, %v8061
    %v9161 = vpack.c.b16 %v8069, %v8062
    %v9162 = vpack.c.b16 %v8070, %v8063
    %v9163 = vpack.c.b16 %v8071, %v8064
    %v9164 = vpack.c.b16 %v8072, %v8065
    %v9165 = vpack.c.b16 %v8073, %v8066
    %v9166 = vpack.c.b16 %v8081, %v8074
    %v9167 = vpack.c.b16 %v8082, %v8075
    %v9168 = vpack.c.b16 %v8083, %v8076
    %v9169 = vpack.c.b16 %v8084, %v8077
    %v9170 = vpack.c.b16 %v8085, %v8078
    %v9171 = vpack.c.b16 %v8086, %v8079
    %v9172 = vpack.c.b16 %v8087, %v8080
    %v9173 = vpack.c.b16 %v8095, %v8088
    %v9174 = vpack.c.b16 %v8096, %v8089
    %v9175 = vpack.c.b16 %v8097, %v8090
    %v9176 = vpack.c.b16 %v8098, %v8091
    %v9177 = vpack.c.b16 %v8099, %v8092
    %v9178 = vpack.c.b16 %v8100, %v8093
    %v9179 = vpack.c.b16 %v8101, %v8094
    %v9180 = vpack.c.b16 %v8109, %v8102
    %v9181 = vpack.c.b16 %v8110, %v8103
    %v9182 = vpack.c.b16 %v8111, %v8104
    %v9183 = vpack.c.b16 %v8112, %v8105
    %v9184 = vpack.c.b16 %v8113, %v8106
    %v9185 = vpack.c.b16 %v8114, %v8107
    %v9186 = vpack.c.b16 %v8115, %v8108
    %v9187 = vpack.c.b16 %v8123, %v8116
    %v9188 = vpack.c.b16 %v8124, %v8117
    %v9189 = vpack.c.b16 %v8125, %v8118
    %v9190 = vpack.c.b16 %v8126, %v8119
    %v9191 = vpack.c.b16 %v8127, %v8120
    %v9192 = vpack.c.b16 %v8128, %v8121
    %v9193 = vpack.c.b16 %v8129, %v8122
    %v9194 = vpack.c.b16 %v8137, %v8130
    %v9195 = vpack.c.b16 %v8138, %v8131
    %v9196 = vpack.c.b16 %v8139, %v8132
    %v9197 = vpack.c.b16 %v8140, %v8133
    %v9198 = vpack.c.b16 %v8141, %v8134
    %v9199 = vpack.c.b16 %v8142, %v8135
    %v9200 = vpack.c.b16 %v8143, %v8136
    %v9201 = vpack.c.b16 %v8151, %v8144
    %v9202 = vpack.c.b16 %v8152, %v8145
    %v9203 = vpack.c.b16 %v8153, %v8146
    %v9204 = vpack.c.b16 %v8154, %v8147
    %v9205 = vpack.c.b16 %v8155, %v8148
    %v9206 = vpack.c.b16 %v8156, %v8149
    %v9207 = vpack.c.b16 %v8157, %v8150
    %v9208 = vpack.c.b16 %v8165, %v8158
    %v9209 = vpack.c.b16 %v8166, %v8159
    %v9210 = vpack.c.b16 %v8167, %v8160
    %v9211 = vpack.c.b16 %v8168, %v8161
    %v9212 = vpack.c.b16 %v8169, %v8162
    %v9213 = vpack.c.b16 %v8170, %v8163
    %v9214 = vpack.c.b16 %v8171, %v8164
    %v9215 = vpack.c.b16 %v8179, %v8172
    %v9216 = vpack.c.b16 %v8180, %v8173
    %v9217 = vpack.c.b16 %v8181, %v8174
    %v9218 = vpack.c.b16 %v8182, %v8175
    %v9219 = vpack.c.b16 %v8183, %v8176
    %v9220 = vpack.c.b16 %v8184, %v8177
    %v9221 = vpack.c.b16 %v8185, %v8178
    %v9222 = vpack.c.b16 %v8193, %v8186
    %v9223 = vpack.c.b16 %v8194, %v8187
    %v9224 = vpack.c.b16 %v8195, %v8188
    %v9225 = vpack.c.b16 %v8196, %v8189
    %v9226 = vpack.c.b16 %v8197, %v8190
    %v9227 = vpack.c.b16 %v8198, %v8191
    %v9228 = vpack.c.b16 %v8199, %v8192
    %v9229 = vpack.c.b16 %v8207, %v8200
    %v9230 = vpack.c.b16 %v8208, %v8201
    %v9231 = vpack.c.b16 %v8209, %v8202
    %v9232 = vpack.c.b16 %v8210, %v8203
    %v9233 = vpack.c.b16 %v8211, %v8204
    %v9234 = vpack.c.b16 %v8212, %v8205
    %v9235 = vpack.c.b16 %v8213, %v8206
    %v9236 = vpack.c.b16 %v8221, %v8214
    %v9237 = vpack.c.b16 %v8222, %v8215
    %v9238 = vpack.c.b16 %v8223, %v8216
    %v9239 = vpack.c.b16 %v8224, %v8217
    %v9240 = vpack.c.b16 %v8225, %v8218
    %v9241 = vpack.c.b16 %v8226, %v8219
    %v9242 = vpack.c.b16 %v8227, %v8220
    %v9243 = vpack.c.b16 %v8235, %v8228
    %v9244 = vpack.c.b16 %v8236, %v8229
    %v9245 = vpack.c.b16 %v8237, %v8230
    %v9246 = vpack.c.b16 %v8238, %v8231
    %v9247 = vpack.c.b16 %v8239, %v8232
    %v9248 = vpack.c.b16 %v8240, %v8233
    %v9249 = vpack.c.b16 %v8241, %v8234
    %v9250 = vpack.c.b16 %v8249, %v8242
    %v9251 = vpack.c.b16 %v8250, %v8243
    %v9252 = vpack.c.b16 %v8251, %v8244
    %v9253 = vpack.c.b16 %v8252, %v8245
    %v9254 = vpack.c.b16 %v8253, %v8246
    %v9255 = vpack.c.b16 %v8254, %v8247
    %v9256 = vpack.c.b16 %v8255, %v8248
    %v9257 = vpack.c.b16 %v8263, %v8256
    %v9258 = vpack.c.b16 %v8264, %v8257
    %v9259 = vpack.c.b16 %v8265, %v8258
    %v9260 = vpack.c.b16 %v8266, %v8259
    %v9261 = vpack.c.b16 %v8267, %v8260
    %v9262 = vpack.c.b16 %v8268, %v8261
    %v9263 = vpack.c.b16 %v8269, %v8262
    %v9264 = vpack.c.b16 %v8277, %v8270
    %v9265 = vpack.c.b16 %v8278, %v8271
    %v9266 = vpack.c.b16 %v8279, %v8272
    %v9267 = vpack.c.b16 %v8280, %v8273
    %v9268 = vpack.c.b16 %v8281, %v8274
    %v9269 = vpack.c.b16 %v8282, %v8275
    %v9270 = vpack.c.b16 %v8283, %v8276
    %v9271 = vpack.c.b16 %v8291, %v8284
    %v9272 = vpack.c.b16 %v8292, %v8285
    %v9273 = vpack.c.b16 %v8293, %v8286
    %v9274 = vpack.c.b16 %v8294, %v8287
    %v9275 = vpack.c.b16 %v8295, %v8288
    %v9276 = vpack.c.b16 %v8296, %v8289
    %v9277 = vpack.c.b16 %v8297, %v8290
    %v9278 = vpack.c.b16 %v8305, %v8298
    %v9279 = vpack.c.b16 %v8306, %v8299
    %v9280 = vpack.c.b16 %v8307, %v8300
    %v9281 = vpack.c.b16 %v8308, %v8301
    %v9282 = vpack.c.b16 %v8309, %v8302
    %v9283 = vpack.c.b16 %v8310, %v8303
    %v9284 = vpack.c.b16 %v8311, %v8304
    %v9285 = vpack.c.b16 %v8319, %v8312
    %v9286 = vpack.c.b16 %v8320, %v8313
    %v9287 = vpack.c.b16 %v8321, %v8314
    %v9288 = vpack.c.b16 %v8322, %v8315
    %v9289 = vpack.c.b16 %v8323, %v8316
    %v9290 = vpack.c.b16 %v8324, %v8317
    %v9291 = vpack.c.b16 %v8325, %v8318
    %v9292 = vpack.c.b16 %v8333, %v8326
    %v9293 = vpack.c.b16 %v8334, %v8327
    %v9294 = vpack.c.b16 %v8335, %v8328
    %v9295 = vpack.c.b16 %v8336, %v8329
    %v9296 = vpack.c.b16 %v8337, %v8330
    %v9297 = vpack.c.b16 %v8338, %v8331
    %v9298 = vpack.c.b16 %v8339, %v8332
    %v9299 = vpack.c.b16 %v8347, %v8340
    %v9300 = vpack.c.b16 %v8348, %v8341
    %v9301 = vpack.c.b16 %v8349, %v8342
    %v9302 = vpack.c.b16 %v8350, %v8343
    %v9303 = vpack.c.b16 %v8351, %v8344
    %v9304 = vpack.c.b16 %v8352, %v8345
    %v9305 = vpack.c.b16 %v8353, %v8346
    %v9306 = vpack.c.b16 %v8361, %v8354
    %v9307 = vpack.c.b16 %v8362, %v8355
    %v9308 = vpack.c.b16 %v8363, %v8356
    %v9309 = vpack.c.b16 %v8364, %v8357
    %v9310 = vpack.c.b16 %v8365, %v8358
    %v9311 = vpack.c.b16 %v8366, %v8359
    %v9312 = vpack.c.b16 %v8367, %v8360
    %v9313 = vpack.c.b16 %v8375, %v8368
    %v9314 = vpack.c.b16 %v8376, %v8369
    %v9315 = vpack.c.b16 %v8377, %v8370
    %v9316 = vpack.c.b16 %v8378, %v8371
    %v9317 = vpack.c.b16 %v8379, %v8372
    %v9318 = vpack.c.b16 %v8380, %v8373
    %v9319 = vpack.c.b16 %v8381, %v8374
    %v9320 = vpack.c.b16 %v8389, %v8382
    %v9321 = vpack.c.b16 %v8390, %v8383
    %v9322 = vpack.c.b16 %v8391, %v8384
    %v9323 = vpack.c.b16 %v8392, %v8385
    %v9324 = vpack.c.b16 %v8393, %v8386
    %v9325 = vpack.c.b16 %v8394, %v8387
    %v9326 = vpack.c.b16 %v8395, %v8388
    %v9327 = vpack.c.b16 %v8403, %v8396
    %v9328 = vpack.c.b16 %v8404, %v8397
    %v9329 = vpack.c.b16 %v8405, %v8398
    %v9330 = vpack.c.b16 %v8406, %v8399
    %v9331 = vpack.c.b16 %v8407, %v8400
    %v9332 = vpack.c.b16 %v8408, %v8401
    %v9333 = vpack.c.b16 %v8409, %v8402
    %v9334 = vpack.c.b16 %v8417, %v8410
    %v9335 = vpack.c.b16 %v8418, %v8411
    %v9336 = vpack.c.b16 %v8419, %v8412
    %v9337 = vpack.c.b16 %v8420, %v8413
    %v9338 = vpack.c.b16 %v8421, %v8414
    %v9339 = vpack.c.b16 %v8422, %v8415
    %v9340 = vpack.c.b16 %v8423, %v8416
    %v9341 = vpack.c.b16 %v8431, %v8424
    %v9342 = vpack.c.b16 %v8432, %v8425
    %v9343 = vpack.c.b16 %v8433, %v8426
    %v9344 = vpack.c.b16 %v8434, %v8427
    %v9345 = vpack.c.b16 %v8435, %v8428
    %v9346 = vpack.c.b16 %v8436, %v8429
    %v9347 = vpack.c.b16 %v8437, %v8430
    %v9348 = vpack.c.b16 %v8445, %v8438
    %v9349 = vpack.c.b16 %v8446, %v8439
    %v9350 = vpack.c.b16 %v8447, %v8440
    %v9351 = vpack.c.b16 %v8448, %v8441
    %v9352 = vpack.c.b16 %v8449, %v8442
    %v9353 = vpack.c.b16 %v8450, %v8443
    %v9354 = vpack.c.b16 %v8451, %v8444
    %v9355 = vpack.c.b16 %v8459, %v8452
    %v9356 = vpack.c.b16 %v8460, %v8453
    %v9357 = vpack.c.b16 %v8461, %v8454
    %v9358 = vpack.c.b16 %v8462, %v8455
    %v9359 = vpack.c.b16 %v8463, %v8456
    %v9360 = vpack.c.b16 %v8464, %v8457
    %v9361 = vpack.c.b16 %v8465, %v8458
    %v9362 = vpack.c.b16 %v8473, %v8466
    %v9363 = vpack.c.b16 %v8474, %v8467
    %v9364 = vpack.c.b16 %v8475, %v8468
    %v9365 = vpack.c.b16 %v8476, %v8469
    %v9366 = vpack.c.b16 %v8477, %v8470
    %v9367 = vpack.c.b16 %v8478, %v8471
    %v9368 = vpack.c.b16 %v8479, %v8472
    %v9369 = vpack.c.b16 %v8487, %v8480
    %v9370 = vpack.c.b16 %v8488, %v8481
    %v9371 = vpack.c.b16 %v8489, %v8482
    %v9372 = vpack.c.b16 %v8490, %v8483
    %v9373 = vpack.c.b16 %v8491, %v8484
    %v9374 = vpack.c.b16 %v8492, %v8485
    %v9375 = vpack.c.b16 %v8493, %v8486
    %v9376 = vpack.c.b16 %v8501, %v8494
    %v9377 = vpack.c.b16 %v8502, %v8495
    %v9378 = vpack.c.b16 %v8503, %v8496
    %v9379 = vpack.c.b16 %v8504, %v8497
    %v9380 = vpack.c.b16 %v8505, %v8498
    %v9381 = vpack.c.b16 %v8506, %v8499
    %v9382 = vpack.c.b16 %v8507, %v8500
    %v9383 = vpack.c.b16 %v8515, %v8508
    %v9384 = vpack.c.b16 %v8516, %v8509
    %v9385 = vpack.c.b16 %v8517, %v8510
    %v9386 = vpack.c.b16 %v8518, %v8511
    %v9387 = vpack.c.b16 %v8519, %v8512
    %v9388 = vpack.c.b16 %v8520, %v8513
    %v9389 = vpack.c.b16 %v8521, %v8514
    %v9390 = vpack.c.b16 %v8529, %v8522
    %v9391 = vpack.c.b16 %v8530, %v8523
    %v9392 = vpack.c.b16 %v8531, %v8524
    %v9393 = vpack.c.b16 %v8532, %v8525
    %v9394 = vpack.c.b16 %v8533, %v8526
    %v9395 = vpack.c.b16 %v8534, %v8527
    %v9396 = vpack.c.b16 %v8535, %v8528
    %v9397 = vpack.c.b16 %v8543, %v8536
    %v9398 = vpack.c.b16 %v8544, %v8537
    %v9399 = vpack.c.b16 %v8545, %v8538
    %v9400 = vpack.c.b16 %v8546, %v8539
    %v9401 = vpack.c.b16 %v8547, %v8540
    %v9402 = vpack.c.b16 %v8548, %v8541
    %v9403 = vpack.c.b16 %v8549, %v8542
    %v9404 = vpack.c.b16 %v8557, %v8550
    %v9405 = vpack.c.b16 %v8558, %v8551
    %v9406 = vpack.c.b16 %v8559, %v8552
    %v9407 = vpack.c.b16 %v8560, %v8553
    %v9408 = vpack.c.b16 %v8561, %v8554
    %v9409 = vpack.c.b16 %v8562, %v8555
    %v9410 = vpack.c.b16 %v8563, %v8556
    %v9411 = vpack.c.b16 %v8571, %v8564
    %v9412 = vpack.c.b16 %v8572, %v8565
    %v9413 = vpack.c.b16 %v8573, %v8566
    %v9414 = vpack.c.b16 %v8574, %v8567
    %v9415 = vpack.c.b16 %v8575, %v8568
    %v9416 = vpack.c.b16 %v8576, %v8569
    %v9417 = vpack.c.b16 %v8577, %v8570
    %v9418 = vpack.c.b16 %v8585, %v8578
    %v9419 = vpack.c.b16 %v8586, %v8579
    %v9420 = vpack.c.b16 %v8587, %v8580
    %v9421 = vpack.c.b16 %v8588, %v8581
    %v9422 = vpack.c.b16 %v8589, %v8582
    %v9423 = vpack.c.b16 %v8590, %v8583
    %v9424 = vpack.c.b16 %v8591, %v8584
    %v9425 = vpack.c.b16 %v8599, %v8592
    %v9426 = vpack.c.b16 %v8600, %v8593
    %v9427 = vpack.c.b16 %v8601, %v8594
    %v9428 = vpack.c.b16 %v8602, %v8595
    %v9429 = vpack.c.b16 %v8603, %v8596
    %v9430 = vpack.c.b16 %v8604, %v8597
    %v9431 = vpack.c.b16 %v8605, %v8598
    %v9432 = vpack.c.b16 %v8613, %v8606
    %v9433 = vpack.c.b16 %v8614, %v8607
    %v9434 = vpack.c.b16 %v8615, %v8608
    %v9435 = vpack.c.b16 %v8616, %v8609
    %v9436 = vpack.c.b16 %v8617, %v8610
    %v9437 = vpack.c.b16 %v8618, %v8611
    %v9438 = vpack.c.b16 %v8619, %v8612
    %v9439 = vpack.c.b16 %v8627, %v8620
    %v9440 = vpack.c.b16 %v8628, %v8621
    %v9441 = vpack.c.b16 %v8629, %v8622
    %v9442 = vpack.c.b16 %v8630, %v8623
    %v9443 = vpack.c.b16 %v8631, %v8624
    %v9444 = vpack.c.b16 %v8632, %v8625
    %v9445 = vpack.c.b16 %v8633, %v8626
    %v9446 = vpack.c.b16 %v8641, %v8634
    %v9447 = vpack.c.b16 %v8642, %v8635
    %v9448 = vpack.c.b16 %v8643, %v8636
    %v9449 = vpack.c.b16 %v8644, %v8637
    %v9450 = vpack.c.b16 %v8645, %v8638
    %v9451 = vpack.c.b16 %v8646, %v8639
    %v9452 = vpack.c.b16 %v8647, %v8640
    %v9453 = vpack.c.b16 %v8655, %v8648
    %v9454 = vpack.c.b16 %v8656, %v8649
    %v9455 = vpack.c.b16 %v8657, %v8650
    %v9456 = vpack.c.b16 %v8658, %v8651
    %v9457 = vpack.c.b16 %v8659, %v8652
    %v9458 = vpack.c.b16 %v8660, %v8653
    %v9459 = vpack.c.b16 %v8661, %v8654
    %v9460 = vpack.c.b16 %v8669, %v8662
    %v9461 = vpack.c.b16 %v8670, %v8663
    %v9462 = vpack.c.b16 %v8671, %v8664
    %v9463 = vpack.c.b16 %v8672, %v8665
    %v9464 = vpack.c.b16 %v8673, %v8666
    %v9465 = vpack.c.b16 %v8674, %v8667
    %v9466 = vpack.c.b16 %v8675, %v8668
    %v9467 = vpack.c.b16 %v8683, %v8676
    %v9468 = vpack.c.b16 %v8684, %v8677
    %v9469 = vpack.c.b16 %v8685, %v8678
    %v9470 = vpack.c.b16 %v8686, %v8679
    %v9471 = vpack.c.b16 %v8687, %v8680
    %v9472 = vpack.c.b16 %v8688, %v8681
    %v9473 = vpack.c.b16 %v8689, %v8682
    %v9474 = vpack.c.b16 %v8697, %v8690
    %v9475 = vpack.c.b16 %v8698, %v8691
    %v9476 = vpack.c.b16 %v8699, %v8692
    %v9477 = vpack.c.b16 %v8700, %v8693
    %v9478 = vpack.c.b16 %v8701, %v8694
    %v9479 = vpack.c.b16 %v8702, %v8695
    %v9480 = vpack.c.b16 %v8703, %v8696
    %v9481 = vpack.c.b16 %v8711, %v8704
    %v9482 = vpack.c.b16 %v8712, %v8705
    %v9483 = vpack.c.b16 %v8713, %v8706
    %v9484 = vpack.c.b16 %v8714, %v8707
    %v9485 = vpack.c.b16 %v8715, %v8708
    %v9486 = vpack.c.b16 %v8716, %v8709
    %v9487 = vpack.c.b16 %v8717, %v8710
    %v9488 = vpack.c.b16 %v8725, %v8718
    %v9489 = vpack.c.b16 %v8726, %v8719
    %v9490 = vpack.c.b16 %v8727, %v8720
    %v9491 = vpack.c.b16 %v8728, %v8721
    %v9492 = vpack.c.b16 %v8729, %v8722
    %v9493 = vpack.c.b16 %v8730, %v8723
    %v9494 = vpack.c.b16 %v8731, %v8724
    %v9495 = vpack.c.b16 %v8739, %v8732
    %v9496 = vpack.c.b16 %v8740, %v8733
    %v9497 = vpack.c.b16 %v8741, %v8734
    %v9498 = vpack.c.b16 %v8742, %v8735
    %v9499 = vpack.c.b16 %v8743, %v8736
    %v9500 = vpack.c.b16 %v8744, %v8737
    %v9501 = vpack.c.b16 %v8745, %v8738
    %v9502 = vpack.c.b16 %v8753, %v8746
    %v9503 = vpack.c.b16 %v8754, %v8747
    %v9504 = vpack.c.b16 %v8755, %v8748
    %v9505 = vpack.c.b16 %v8756, %v8749
    %v9506 = vpack.c.b16 %v8757, %v8750
    %v9507 = vpack.c.b16 %v8758, %v8751
    %v9508 = vpack.c.b16 %v8759, %v8752
    %v9509 = vpack.c.b16 %v8767, %v8760
    %v9510 = vpack.c.b16 %v8768, %v8761
    %v9511 = vpack.c.b16 %v8769, %v8762
    %v9512 = vpack.c.b16 %v8770, %v8763
    %v9513 = vpack.c.b16 %v8771, %v8764
    %v9514 = vpack.c.b16 %v8772, %v8765
    %v9515 = vpack.c.b16 %v8773, %v8766
    %v9516 = vpack.c.b16 %v8781, %v8774
    %v9517 = vpack.c.b16 %v8782, %v8775
    %v9518 = vpack.c.b16 %v8783, %v8776
    %v9519 = vpack.c.b16 %v8784, %v8777
    %v9520 = vpack.c.b16 %v8785, %v8778
    %v9521 = vpack.c.b16 %v8786, %v8779
    %v9522 = vpack.c.b16 %v8787, %v8780
    %v9523 = vpack.c.b16 %v8795, %v8788
    %v9524 = vpack.c.b16 %v8796, %v8789
    %v9525 = vpack.c.b16 %v8797, %v8790
    %v9526 = vpack.c.b16 %v8798, %v8791
    %v9527 = vpack.c.b16 %v8799, %v8792
    %v9528 = vpack.c.b16 %v8800, %v8793
    %v9529 = vpack.c.b16 %v8801, %v8794
    %v9530 = vpack.c.b16 %v8809, %v8802
    %v9531 = vpack.c.b16 %v8810, %v8803
    %v9532 = vpack.c.b16 %v8811, %v8804
    %v9533 = vpack.c.b16 %v8812, %v8805
    %v9534 = vpack.c.b16 %v8813, %v8806
    %v9535 = vpack.c.b16 %v8814, %v8807
    %v9536 = vpack.c.b16 %v8815, %v8808
    %v9537 = vpack.c.b16 %v8823, %v8816
    %v9538 = vpack.c.b16 %v8824, %v8817
    %v9539 = vpack.c.b16 %v8825, %v8818
    %v9540 = vpack.c.b16 %v8826, %v8819
    %v9541 = vpack.c.b16 %v8827, %v8820
    %v9542 = vpack.c.b16 %v8828, %v8821
    %v9543 = vpack.c.b16 %v8829, %v8822
    %v9544 = vpack.c.b16 %v8837, %v8830
    %v9545 = vpack.c.b16 %v8838, %v8831
    %v9546 = vpack.c.b16 %v8839, %v8832
    %v9547 = vpack.c.b16 %v8840, %v8833
    %v9548 = vpack.c.b16 %v8841, %v8834
    %v9549 = vpack.c.b16 %v8842, %v8835
    %v9550 = vpack.c.b16 %v8843, %v8836
    %v9551 = vpack.c.b16 %v8851, %v8844
    %v9552 = vpack.c.b16 %v8852, %v8845
    %v9553 = vpack.c.b16 %v8853, %v8846
    %v9554 = vpack.c.b16 %v8854, %v8847
    %v9555 = vpack.c.b16 %v8855, %v8848
    %v9556 = vpack.c.b16 %v8856, %v8849
    %v9557 = vpack.c.b16 %v8857, %v8850
    %v9558 = vpack.c.b16 %v8865, %v8858
    %v9559 = vpack.c.b16 %v8866, %v8859
    %v9560 = vpack.c.b16 %v8867, %v8860
    %v9561 = vpack.c.b16 %v8868, %v8861
    %v9562 = vpack.c.b16 %v8869, %v8862
    %v9563 = vpack.c.b16 %v8870, %v8863
    %v9564 = vpack.c.b16 %v8871, %v8864
    %v9565 = vpack.c.b16 %v8879, %v8872
    %v9566 = vpack.c.b16 %v8880, %v8873
    %v9567 = vpack.c.b16 %v8881, %v8874
    %v9568 = vpack.c.b16 %v8882, %v8875
    %v9569 = vpack.c.b16 %v8883, %v8876
    %v9570 = vpack.c.b16 %v8884, %v8877
    %v9571 = vpack.c.b16 %v8885, %v8878
    %v9572 = vpack.c.b16 %v8893, %v8886
    %v9573 = vpack.c.b16 %v8894, %v8887
    %v9574 = vpack.c.b16 %v8895, %v8888
    %v9575 = vpack.c.b16 %v8896, %v8889
    %v9576 = vpack.c.b16 %v8897, %v8890
    %v9577 = vpack.c.b16 %v8898, %v8891
    %v9578 = vpack.c.b16 %v8899, %v8892
    %v9579 = vpack.c.b16 %v8907, %v8900
    %v9580 = vpack.c.b16 %v8908, %v8901
    %v9581 = vpack.c.b16 %v8909, %v8902
    %v9582 = vpack.c.b16 %v8910, %v8903
    %v9583 = vpack.c.b16 %v8911, %v8904
    %v9584 = vpack.c.b16 %v8912, %v8905
    %v9585 = vpack.c.b16 %v8913, %v8906
    %v9586 = vpack.c.b16 %v8921, %v8914
    %v9587 = vpack.c.b16 %v8922, %v8915
    %v9588 = vpack.c.b16 %v8923, %v8916
    %v9589 = vpack.c.b16 %v8924, %v8917
    %v9590 = vpack.c.b16 %v8925, %v8918
    %v9591 = vpack.c.b16 %v8926, %v8919
    %v9592 = vpack.c.b16 %v8927, %v8920
    %v9593 = vpack.c.b16 %v8935, %v8928
    %v9594 = vpack.c.b16 %v8936, %v8929
    %v9595 = vpack.c.b16 %v8937, %v8930
    %v9596 = vpack.c.b16 %v8938, %v8931
    %v9597 = vpack.c.b16 %v8939, %v8932
    %v9598 = vpack.c.b16 %v8940, %v8933
    %v9599 = vpack.c.b16 %v8941, %v8934
    %v9600 = vpack.c.b16 %v8949, %v8942
    %v9601 = vpack.c.b16 %v8950, %v8943
    %v9602 = vpack.c.b16 %v8951, %v8944
    %v9603 = vpack.c.b16 %v8952, %v8945
    %v9604 = vpack.c.b16 %v8953, %v8946
    %v9605 = vpack.c.b16 %v8954, %v8947
    %v9606 = vpack.c.b16 %v8955, %v8948
    %v9607 = vpack.c.b16 %v8963, %v8956
    %v9608 = vpack.c.b16 %v8964, %v8957
    %v9609 = vpack.c.b16 %v8965, %v8958
    %v9610 = vpack.c.b16 %v8966, %v8959
    %v9611 = vpack.c.b16 %v8967, %v8960
    %v9612 = vpack.c.b16 %v8968, %v8961
    %v9613 = vpack.c.b16 %v8969, %v8962
    %v9614 = vpack.c.b16 %v8977, %v8970
    %v9615 = vpack.c.b16 %v8978, %v8971
    %v9616 = vpack.c.b16 %v8979, %v8972
    %v9617 = vpack.c.b16 %v8980, %v8973
    %v9618 = vpack.c.b16 %v8981, %v8974
    %v9619 = vpack.c.b16 %v8982, %v8975
    %v9620 = vpack.c.b16 %v8983, %v8976
    %v9621 = vpack.c.b16 %v8991, %v8984
    %v9622 = vpack.c.b16 %v8992, %v8985
    %v9623 = vpack.c.b16 %v8993, %v8986
    %v9624 = vpack.c.b16 %v8994, %v8987
    %v9625 = vpack.c.b16 %v8995, %v8988
    %v9626 = vpack.c.b16 %v8996, %v8989
    %v9627 = vpack.c.b16 %v8997, %v8990
    %v9628 = vpack.c.b16 %v9005, %v8998
    %v9629 = vpack.c.b16 %v9006, %v8999
    %v9630 = vpack.c.b16 %v9007, %v9000
    %v9631 = vpack.c.b16 %v9008, %v9001
    %v9632 = vpack.c.b16 %v9009, %v9002
    %v9633 = vpack.c.b16 %v9010, %v9003
    %v9634 = vpack.c.b16 %v9011, %v9004
    %v9635 = vpack.c.b16 %v9019, %v9012
    %v9636 = vpack.c.b16 %v9020, %v9013
    %v9637 = vpack.c.b16 %v9021, %v9014
    %v9638 = vpack.c.b16 %v9022, %v9015
    %v9639 = vpack.c.b16 %v9023, %v9016
    %v9640 = vpack.c.b16 %v9024, %v9017
    %v9641 = vpack.c.b16 %v9025, %v9018
    %10258 = vmatprep.subr.bf16.mxu0 %v9027
    %10259 = vmatpush1.bf16.msra.mxu0 %v9026
    %10260 = vmatprep.subr.bf16.mxu0 %v9034
    %10261 = vmatpush1.bf16.msra.mxu0 %v9033
    %10262 = vmatprep.subr.bf16.mxu0 %v9041
    %10263 = vmatpush1.bf16.msra.mxu0 %v9040
    %10264 = vmatprep.subr.bf16.mxu0 %v9048
    %10265 = vmatpush1.bf16.msra.mxu0 %v9047
    %10266 = vmatprep.subr.bf16.mxu0 %v9055
    %10267 = vmatpush1.bf16.msra.mxu0 %v9054
    %10268 = vmatprep.subr.bf16.mxu0 %v9062
    %10269 = vmatpush1.bf16.msra.mxu0 %v9061
    %10270 = vmatprep.subr.bf16.mxu0 %v9069
    %10271 = vmatpush1.bf16.msra.mxu0 %v9068
    %10272 = vmatprep.subr.bf16.mxu0 %v9076
    %10273 = vmatpush1.bf16.msra.mxu0 %v9075
    %10274 = vmatprep.subr.bf16.mxu0 %v9083
    %10275 = vmatpush1.bf16.msra.mxu0 %v9082
    %10276 = vmatprep.subr.bf16.mxu0 %v9090
    %10277 = vmatpush1.bf16.msra.mxu0 %v9089
    %10278 = vmatprep.subr.bf16.mxu0 %v9097
    %10279 = vmatpush1.bf16.msra.mxu0 %v9096
    %10280 = vmatprep.subr.bf16.mxu0 %v9104
    %10281 = vmatpush1.bf16.msra.mxu0 %v9103
    %10282 = vmatprep.subr.bf16.mxu0 %v9111
    %10283 = vmatpush1.bf16.msra.mxu0 %v9110
    %10284 = vmatprep.subr.bf16.mxu0 %v9118
    %10285 = vmatpush1.bf16.msra.mxu0 %v9117
    %10286 = vmatprep.subr.bf16.mxu0 %v9125
    %10287 = vmatpush1.bf16.msra.mxu0 %v9124
    %10288 = vmatprep.subr.bf16.mxu0 %v9132
    %10289 = vmatpush1.bf16.msra.mxu0 %v9131
    %10290 = vmatprep.mubr.bf16.mxu0 %v6339
    %10291 = vmatmul.mubr.bf16.gmra.mrb[0].mxu0 %v6338
    %v10292 = vpop.f32.mrb[0].mxu0
    %v10293 = vadd.f32 %v7058, %v10292
    %v10294 = vpop.f32.mrb[0].mxu0
    %v10295 = vadd.f32 %v7062, %v10294
    %v10296 = vpop.f32.mrb[0].mxu0
    %v10297 = vpop.f32.mrb[0].mxu0
    %10298 = vdwg.mxu0
    %10299 = vmatprep.subr.bf16.mxu0 %v9139
    %10300 = vmatpush1.bf16.msra.mxu0 %v9138
    %10301 = vmatprep.subr.bf16.mxu0 %v9146
    %10302 = vmatpush1.bf16.msra.mxu0 %v9145
    %10303 = vmatprep.subr.bf16.mxu0 %v9153
    %10304 = vmatpush1.bf16.msra.mxu0 %v9152
    %10305 = vmatprep.subr.bf16.mxu0 %v9160
    %10306 = vmatpush1.bf16.msra.mxu0 %v9159
    %10307 = vmatprep.subr.bf16.mxu0 %v9167
    %10308 = vmatpush1.bf16.msra.mxu0 %v9166
    %10309 = vmatprep.subr.bf16.mxu0 %v9174
    %10310 = vmatpush1.bf16.msra.mxu0 %v9173
    %10311 = vmatprep.subr.bf16.mxu0 %v9181
    %10312 = vmatpush1.bf16.msra.mxu0 %v9180
    %10313 = vmatprep.subr.bf16.mxu0 %v9188
    %10314 = vmatpush1.bf16.msra.mxu0 %v9187
    %10315 = vmatprep.subr.bf16.mxu0 %v9195
    %10316 = vmatpush1.bf16.msra.mxu0 %v9194
    %10317 = vmatprep.subr.bf16.mxu0 %v9202
    %10318 = vmatpush1.bf16.msra.mxu0 %v9201
    %10319 = vmatprep.subr.bf16.mxu0 %v9209
    %10320 = vmatpush1.bf16.msra.mxu0 %v9208
    %10321 = vmatprep.subr.bf16.mxu0 %v9216
    %10322 = vmatpush1.bf16.msra.mxu0 %v9215
    %10323 = vmatprep.subr.bf16.mxu0 %v9223
    %10324 = vmatpush1.bf16.msra.mxu0 %v9222
    %10325 = vmatprep.subr.bf16.mxu0 %v9230
    %10326 = vmatpush1.bf16.msra.mxu0 %v9229
    %10327 = vmatprep.subr.bf16.mxu0 %v9237
    %10328 = vmatpush1.bf16.msra.mxu0 %v9236
    %10329 = vmatprep.subr.bf16.mxu0 %v9244
    %10330 = vmatpush1.bf16.msra.mxu0 %v9243
    %10331 = vmatprep.mubr.bf16.mxu0 %v6341
    %10332 = vmatmul.mubr.bf16.gmra.mrb[0].mxu0 %v6340
    %v10333 = vpop.f32.mrb[0].mxu0
    %v10334 = vadd.f32 %v10293, %v10333
    %v10335 = vpop.f32.mrb[0].mxu0
    %v10336 = vadd.f32 %v10295, %v10335
    %v10337 = vpop.f32.mrb[0].mxu0
    %v10338 = vpop.f32.mrb[0].mxu0
    %10339 = vdwg.mxu0
    %10340 = vmatprep.subr.bf16.mxu0 %v9251
    %10341 = vmatpush1.bf16.msra.mxu0 %v9250
    %10342 = vmatprep.subr.bf16.mxu0 %v9258
    %10343 = vmatpush1.bf16.msra.mxu0 %v9257
    %10344 = vmatprep.subr.bf16.mxu0 %v9265
    %10345 = vmatpush1.bf16.msra.mxu0 %v9264
    %10346 = vmatprep.subr.bf16.mxu0 %v9272
    %10347 = vmatpush1.bf16.msra.mxu0 %v9271
    %10348 = vmatprep.subr.bf16.mxu0 %v9279
    %10349 = vmatpush1.bf16.msra.mxu0 %v9278
    %10350 = vmatprep.subr.bf16.mxu0 %v9286
    %10351 = vmatpush1.bf16.msra.mxu0 %v9285
    %10352 = vmatprep.subr.bf16.mxu0 %v9293
    %10353 = vmatpush1.bf16.msra.mxu0 %v9292
    %10354 = vmatprep.subr.bf16.mxu0 %v9300
    %10355 = vmatpush1.bf16.msra.mxu0 %v9299
    %10356 = vmatprep.subr.bf16.mxu0 %v9307
    %10357 = vmatpush1.bf16.msra.mxu0 %v9306
    %10358 = vmatprep.subr.bf16.mxu0 %v9314
    %10359 = vmatpush1.bf16.msra.mxu0 %v9313
    %10360 = vmatprep.subr.bf16.mxu0 %v9321
    %10361 = vmatpush1.bf16.msra.mxu0 %v9320
    %10362 = vmatprep.subr.bf16.mxu0 %v9328
    %10363 = vmatpush1.bf16.msra.mxu0 %v9327
    %10364 = vmatprep.subr.bf16.mxu0 %v9335
    %10365 = vmatpush1.bf16.msra.mxu0 %v9334
    %10366 = vmatprep.subr.bf16.mxu0 %v9342
    %10367 = vmatpush1.bf16.msra.mxu0 %v9341
    %10368 = vmatprep.subr.bf16.mxu0 %v9349
    %10369 = vmatpush1.bf16.msra.mxu0 %v9348
    %10370 = vmatprep.subr.bf16.mxu0 %v9356
    %10371 = vmatpush1.bf16.msra.mxu0 %v9355
    %10372 = vmatprep.mubr.bf16.mxu0 %v6343
    %10373 = vmatmul.mubr.bf16.gmra.mrb[0].mxu0 %v6342
    %v10374 = vpop.f32.mrb[0].mxu0
    %v10375 = vadd.f32 %v10334, %v10374
    %v10376 = vpop.f32.mrb[0].mxu0
    %v10377 = vadd.f32 %v10336, %v10376
    %v10378 = vpop.f32.mrb[0].mxu0
    %v10379 = vpop.f32.mrb[0].mxu0
    %10380 = vdwg.mxu0
    %10381 = vmatprep.subr.bf16.mxu0 %v9363
    %10382 = vmatpush1.bf16.msra.mxu0 %v9362
    %10383 = vmatprep.subr.bf16.mxu0 %v9370
    %10384 = vmatpush1.bf16.msra.mxu0 %v9369
    %10385 = vmatprep.subr.bf16.mxu0 %v9377
    %10386 = vmatpush1.bf16.msra.mxu0 %v9376
    %10387 = vmatprep.subr.bf16.mxu0 %v9384
    %10388 = vmatpush1.bf16.msra.mxu0 %v9383
    %10389 = vmatprep.subr.bf16.mxu0 %v9391
    %10390 = vmatpush1.bf16.msra.mxu0 %v9390
    %10391 = vmatprep.subr.bf16.mxu0 %v9398
    %10392 = vmatpush1.bf16.msra.mxu0 %v9397
    %10393 = vmatprep.subr.bf16.mxu0 %v9405
    %10394 = vmatpush1.bf16.msra.mxu0 %v9404
    %10395 = vmatprep.subr.bf16.mxu0 %v9412
    %10396 = vmatpush1.bf16.msra.mxu0 %v9411
    %10397 = vmatprep.subr.bf16.mxu0 %v9419
    %10398 = vmatpush1.bf16.msra.mxu0 %v9418
    %10399 = vmatprep.subr.bf16.mxu0 %v9426
    %10400 = vmatpush1.bf16.msra.mxu0 %v9425
    %10401 = vmatprep.subr.bf16.mxu0 %v9433
    %10402 = vmatpush1.bf16.msra.mxu0 %v9432
    %10403 = vmatprep.subr.bf16.mxu0 %v9440
    %10404 = vmatpush1.bf16.msra.mxu0 %v9439
    %10405 = vmatprep.subr.bf16.mxu0 %v9447
    %10406 = vmatpush1.bf16.msra.mxu0 %v9446
    %10407 = vmatprep.subr.bf16.mxu0 %v9454
    %10408 = vmatpush1.bf16.msra.mxu0 %v9453
    %10409 = vmatprep.subr.bf16.mxu0 %v9461
    %10410 = vmatpush1.bf16.msra.mxu0 %v9460
    %10411 = vmatprep.subr.bf16.mxu0 %v9468
    %10412 = vmatpush1.bf16.msra.mxu0 %v9467
    %10413 = vmatprep.mubr.bf16.mxu0 %v6345
    %10414 = vmatmul.mubr.bf16.gmra.mrb[0].mxu0 %v6344
    %v10415 = vpop.f32.mrb[0].mxu0
    %v10416 = vadd.f32 %v10375, %v10415
    %v10417 = vpop.f32.mrb[0].mxu0
    %v10418 = vadd.f32 %v10377, %v10417
    %v10419 = vpop.f32.mrb[0].mxu0
    %v10420 = vpop.f32.mrb[0].mxu0
    %10421 = vdwg.mxu0
    %10422 = vmatprep.subr.bf16.mxu0 %v9475
    %10423 = vmatpush1.bf16.msra.mxu0 %v9474
    %10424 = vmatprep.subr.bf16.mxu0 %v9482
    %10425 = vmatpush1.bf16.msra.mxu0 %v9481
    %10426 = vmatprep.subr.bf16.mxu0 %v9489
    %10427 = vmatpush1.bf16.msra.mxu0 %v9488
    %10428 = vmatprep.subr.bf16.mxu0 %v9496
    %10429 = vmatpush1.bf16.msra.mxu0 %v9495
    %10430 = vmatprep.subr.bf16.mxu0 %v9503
    %10431 = vmatpush1.bf16.msra.mxu0 %v9502
    %10432 = vmatprep.subr.bf16.mxu0 %v9510
    %10433 = vmatpush1.bf16.msra.mxu0 %v9509
    %10434 = vmatprep.subr.bf16.mxu0 %v9517
    %10435 = vmatpush1.bf16.msra.mxu0 %v9516
    %10436 = vmatprep.subr.bf16.mxu0 %v9524
    %10437 = vmatpush1.bf16.msra.mxu0 %v9523
    %10438 = vmatprep.subr.bf16.mxu0 %v9531
    %10439 = vmatpush1.bf16.msra.mxu0 %v9530
    %10440 = vmatprep.subr.bf16.mxu0 %v9538
    %10441 = vmatpush1.bf16.msra.mxu0 %v9537
    %10442 = vmatprep.subr.bf16.mxu0 %v9545
    %10443 = vmatpush1.bf16.msra.mxu0 %v9544
    %10444 = vmatprep.subr.bf16.mxu0 %v9552
    %10445 = vmatpush1.bf16.msra.mxu0 %v9551
    %10446 = vmatprep.subr.bf16.mxu0 %v9559
    %10447 = vmatpush1.bf16.msra.mxu0 %v9558
    %10448 = vmatprep.subr.bf16.mxu0 %v9566
    %10449 = vmatpush1.bf16.msra.mxu0 %v9565
    %10450 = vmatprep.subr.bf16.mxu0 %v9573
    %10451 = vmatpush1.bf16.msra.mxu0 %v9572
    %10452 = vmatprep.subr.bf16.mxu0 %v9580
    %10453 = vmatpush1.bf16.msra.mxu0 %v9579
    %10454 = vmatprep.mubr.bf16.mxu0 %v6347
    %10455 = vmatmul.mubr.bf16.gmra.mrb[0].mxu0 %v6346
    %v10456 = vpop.f32.mrb[0].mxu0
    %v10457 = vadd.f32 %v10416, %v10456
    %v10458 = vpop.f32.mrb[0].mxu0
    %v10459 = vadd.f32 %v10418, %v10458
    %v10460 = vpop.f32.mrb[0].mxu0
    %v10461 = vpop.f32.mrb[0].mxu0
    %10462 = vdwg.mxu0
    %10463 = vmatprep.subr.bf16.mxu0 %v9587
    %10464 = vmatpush1.bf16.msra.mxu0 %v9586
    %10465 = vmatprep.subr.bf16.mxu0 %v9594
    %10466 = vmatpush1.bf16.msra.mxu0 %v9593
    %10467 = vmatprep.subr.bf16.mxu0 %v9601
    %10468 = vmatpush1.bf16.msra.mxu0 %v9600
    %10469 = vmatprep.subr.bf16.mxu0 %v9608
    %10470 = vmatpush1.bf16.msra.mxu0 %v9607
    %10471 = vmatprep.subr.bf16.mxu0 %v9615
    %10472 = vmatpush1.bf16.msra.mxu0 %v9614
    %10473 = vmatprep.subr.bf16.mxu0 %v9622
    %10474 = vmatpush1.bf16.msra.mxu0 %v9621
    %10475 = vmatprep.subr.bf16.mxu0 %v9629
    %10476 = vmatpush1.bf16.msra.mxu0 %v9628
    %10477 = vmatprep.subr.bf16.mxu0 %v9636
    %10478 = vmatpush1.bf16.msra.mxu0 %v9635
    %10479 = vmatprep.subr.bf16.mxu0 0
    %10480 = vmatpush1.bf16.msra.mxu0 0
    %10481 = vmatprep.subr.bf16.mxu0 0
    %10482 = vmatpush1.bf16.msra.mxu0 0
    %10483 = vmatprep.subr.bf16.mxu0 0
    %10484 = vmatpush1.bf16.msra.mxu0 0
    %10485 = vmatprep.subr.bf16.mxu0 0
    %10486 = vmatpush1.bf16.msra.mxu0 0
    %10487 = vmatprep.subr.bf16.mxu0 0
    %10488 = vmatpush1.bf16.msra.mxu0 0
    %10489 = vmatprep.subr.bf16.mxu0 0
    %10490 = vmatpush1.bf16.msra.mxu0 0
    %10491 = vmatprep.subr.bf16.mxu0 0
    %10492 = vmatpush1.bf16.msra.mxu0 0
    %10493 = vmatprep.subr.bf16.mxu0 0
    %10494 = vmatpush1.bf16.msra.mxu0 0
    %10495 = vmatprep.mubr.bf16.mxu0 0
    %10496 = vmatmul.mubr.bf16.gmra.mrb[0].mxu0 %v6348
    %v10497 = vpop.f32.mrb[0].mxu0
    %v10498 = vadd.f32 %v10457, %v10497
    %v10499 = vpop.f32.mrb[0].mxu0
    %v10500 = vadd.f32 %v10459, %v10499
    %v10501 = vpop.f32.mrb[0].mxu0
    %v10502 = vpop.f32.mrb[0].mxu0
    %10503 = vdwg.mxu0
    %10504 = vmatprep.subr.bf16.mxu0 %v9029
    %10505 = vmatpush1.bf16.msra.mxu0 %v9028
    %10506 = vmatprep.subr.bf16.mxu0 %v9036
    %10507 = vmatpush1.bf16.msra.mxu0 %v9035
    %10508 = vmatprep.subr.bf16.mxu0 %v9043
    %10509 = vmatpush1.bf16.msra.mxu0 %v9042
    %10510 = vmatprep.subr.bf16.mxu0 %v9050
    %10511 = vmatpush1.bf16.msra.mxu0 %v9049
    %10512 = vmatprep.subr.bf16.mxu0 %v9057
    %10513 = vmatpush1.bf16.msra.mxu0 %v9056
    %10514 = vmatprep.subr.bf16.mxu0 %v9064
    %10515 = vmatpush1.bf16.msra.mxu0 %v9063
    %10516 = vmatprep.subr.bf16.mxu0 %v9071
    %10517 = vmatpush1.bf16.msra.mxu0 %v9070
    %10518 = vmatprep.subr.bf16.mxu0 %v9078
    %10519 = vmatpush1.bf16.msra.mxu0 %v9077
    %10520 = vmatprep.subr.bf16.mxu0 %v9085
    %10521 = vmatpush1.bf16.msra.mxu0 %v9084
    %10522 = vmatprep.subr.bf16.mxu0 %v9092
    %10523 = vmatpush1.bf16.msra.mxu0 %v9091
    %10524 = vmatprep.subr.bf16.mxu0 %v9099
    %10525 = vmatpush1.bf16.msra.mxu0 %v9098
    %10526 = vmatprep.subr.bf16.mxu0 %v9106
    %10527 = vmatpush1.bf16.msra.mxu0 %v9105
    %10528 = vmatprep.subr.bf16.mxu0 %v9113
    %10529 = vmatpush1.bf16.msra.mxu0 %v9112
    %10530 = vmatprep.subr.bf16.mxu0 %v9120
    %10531 = vmatpush1.bf16.msra.mxu0 %v9119
    %10532 = vmatprep.subr.bf16.mxu0 %v9127
    %10533 = vmatpush1.bf16.msra.mxu0 %v9126
    %10534 = vmatprep.subr.bf16.mxu0 %v9134
    %10535 = vmatpush1.bf16.msra.mxu0 %v9133
    %10536 = vmatprep.mubr.bf16.mxu0 %v6339
    %10537 = vmatmul.mubr.bf16.gmra.mrb[0].mxu0 %v6338
    %v10538 = vpop.f32.mrb[0].mxu0
    %v10539 = vadd.f32 %v7066, %v10538
    %v10540 = vpop.f32.mrb[0].mxu0
    %v10541 = vadd.f32 %v7070, %v10540
    %v10542 = vpop.f32.mrb[0].mxu0
    %v10543 = vpop.f32.mrb[0].mxu0
    %10544 = vdwg.mxu0
    %10545 = vmatprep.subr.bf16.mxu0 %v9141
    %10546 = vmatpush1.bf16.msra.mxu0 %v9140
    %10547 = vmatprep.subr.bf16.mxu0 %v9148
    %10548 = vmatpush1.bf16.msra.mxu0 %v9147
    %10549 = vmatprep.subr.bf16.mxu0 %v9155
    %10550 = vmatpush1.bf16.msra.mxu0 %v9154
    %10551 = vmatprep.subr.bf16.mxu0 %v9162
    %10552 = vmatpush1.bf16.msra.mxu0 %v9161
    %10553 = vmatprep.subr.bf16.mxu0 %v9169
    %10554 = vmatpush1.bf16.msra.mxu0 %v9168
    %10555 = vmatprep.subr.bf16.mxu0 %v9176
    %10556 = vmatpush1.bf16.msra.mxu0 %v9175
    %10557 = vmatprep.subr.bf16.mxu0 %v9183
    %10558 = vmatpush1.bf16.msra.mxu0 %v9182
    %10559 = vmatprep.subr.bf16.mxu0 %v9190
    %10560 = vmatpush1.bf16.msra.mxu0 %v9189
    %10561 = vmatprep.subr.bf16.mxu0 %v9197
    %10562 = vmatpush1.bf16.msra.mxu0 %v9196
    %10563 = vmatprep.subr.bf16.mxu0 %v9204
    %10564 = vmatpush1.bf16.msra.mxu0 %v9203
    %10565 = vmatprep.subr.bf16.mxu0 %v9211
    %10566 = vmatpush1.bf16.msra.mxu0 %v9210
    %10567 = vmatprep.subr.bf16.mxu0 %v9218
    %10568 = vmatpush1.bf16.msra.mxu0 %v9217
    %10569 = vmatprep.subr.bf16.mxu0 %v9225
    %10570 = vmatpush1.bf16.msra.mxu0 %v9224
    %10571 = vmatprep.subr.bf16.mxu0 %v9232
    %10572 = vmatpush1.bf16.msra.mxu0 %v9231
    %10573 = vmatprep.subr.bf16.mxu0 %v9239
    %10574 = vmatpush1.bf16.msra.mxu0 %v9238
    %10575 = vmatprep.subr.bf16.mxu0 %v9246
    %10576 = vmatpush1.bf16.msra.mxu0 %v9245
    %10577 = vmatprep.mubr.bf16.mxu0 %v6341
    %10578 = vmatmul.mubr.bf16.gmra.mrb[0].mxu0 %v6340
    %v10579 = vpop.f32.mrb[0].mxu0
    %v10580 = vadd.f32 %v10539, %v10579
    %v10581 = vpop.f32.mrb[0].mxu0
    %v10582 = vadd.f32 %v10541, %v10581
    %v10583 = vpop.f32.mrb[0].mxu0
    %v10584 = vpop.f32.mrb[0].mxu0
    %10585 = vdwg.mxu0
    %10586 = vmatprep.subr.bf16.mxu0 %v9253
    %10587 = vmatpush1.bf16.msra.mxu0 %v9252
    %10588 = vmatprep.subr.bf16.mxu0 %v9260
    %10589 = vmatpush1.bf16.msra.mxu0 %v9259
    %10590 = vmatprep.subr.bf16.mxu0 %v9267
    %10591 = vmatpush1.bf16.msra.mxu0 %v9266
    %10592 = vmatprep.subr.bf16.mxu0 %v9274
    %10593 = vmatpush1.bf16.msra.mxu0 %v9273
    %10594 = vmatprep.subr.bf16.mxu0 %v9281
    %10595 = vmatpush1.bf16.msra.mxu0 %v9280
    %10596 = vmatprep.subr.bf16.mxu0 %v9288
    %10597 = vmatpush1.bf16.msra.mxu0 %v9287
    %10598 = vmatprep.subr.bf16.mxu0 %v9295
    %10599 = vmatpush1.bf16.msra.mxu0 %v9294
    %10600 = vmatprep.subr.bf16.mxu0 %v9302
    %10601 = vmatpush1.bf16.msra.mxu0 %v9301
    %10602 = vmatprep.subr.bf16.mxu0 %v9309
    %10603 = vmatpush1.bf16.msra.mxu0 %v9308
    %10604 = vmatprep.subr.bf16.mxu0 %v9316
    %10605 = vmatpush1.bf16.msra.mxu0 %v9315
    %10606 = vmatprep.subr.bf16.mxu0 %v9323
    %10607 = vmatpush1.bf16.msra.mxu0 %v9322
    %10608 = vmatprep.subr.bf16.mxu0 %v9330
    %10609 = vmatpush1.bf16.msra.mxu0 %v9329
    %10610 = vmatprep.subr.bf16.mxu0 %v9337
    %10611 = vmatpush1.bf16.msra.mxu0 %v9336
    %10612 = vmatprep.subr.bf16.mxu0 %v9344
    %10613 = vmatpush1.bf16.msra.mxu0 %v9343
    %10614 = vmatprep.subr.bf16.mxu0 %v9351
    %10615 = vmatpush1.bf16.msra.mxu0 %v9350
    %10616 = vmatprep.subr.bf16.mxu0 %v9358
    %10617 = vmatpush1.bf16.msra.mxu0 %v9357
    %10618 = vmatprep.mubr.bf16.mxu0 %v6343
    %10619 = vmatmul.mubr.bf16.gmra.mrb[0].mxu0 %v6342
    %v10620 = vpop.f32.mrb[0].mxu0
    %v10621 = vadd.f32 %v10580, %v10620
    %v10622 = vpop.f32.mrb[0].mxu0
    %v10623 = vadd.f32 %v10582, %v10622
    %v10624 = vpop.f32.mrb[0].mxu0
    %v10625 = vpop.f32.mrb[0].mxu0
    %10626 = vdwg.mxu0
    %10627 = vmatprep.subr.bf16.mxu0 %v9365
    %10628 = vmatpush1.bf16.msra.mxu0 %v9364
    %10629 = vmatprep.subr.bf16.mxu0 %v9372
    %10630 = vmatpush1.bf16.msra.mxu0 %v9371
    %10631 = vmatprep.subr.bf16.mxu0 %v9379
    %10632 = vmatpush1.bf16.msra.mxu0 %v9378
    %10633 = vmatprep.subr.bf16.mxu0 %v9386
    %10634 = vmatpush1.bf16.msra.mxu0 %v9385
    %10635 = vmatprep.subr.bf16.mxu0 %v9393
    %10636 = vmatpush1.bf16.msra.mxu0 %v9392
    %10637 = vmatprep.subr.bf16.mxu0 %v9400
    %10638 = vmatpush1.bf16.msra.mxu0 %v9399
    %10639 = vmatprep.subr.bf16.mxu0 %v9407
    %10640 = vmatpush1.bf16.msra.mxu0 %v9406
    %10641 = vmatprep.subr.bf16.mxu0 %v9414
    %10642 = vmatpush1.bf16.msra.mxu0 %v9413
    %10643 = vmatprep.subr.bf16.mxu0 %v9421
    %10644 = vmatpush1.bf16.msra.mxu0 %v9420
    %10645 = vmatprep.subr.bf16.mxu0 %v9428
    %10646 = vmatpush1.bf16.msra.mxu0 %v9427
    %10647 = vmatprep.subr.bf16.mxu0 %v9435
    %10648 = vmatpush1.bf16.msra.mxu0 %v9434
    %10649 = vmatprep.subr.bf16.mxu0 %v9442
    %10650 = vmatpush1.bf16.msra.mxu0 %v9441
    %10651 = vmatprep.subr.bf16.mxu0 %v9449
    %10652 = vmatpush1.bf16.msra.mxu0 %v9448
    %10653 = vmatprep.subr.bf16.mxu0 %v9456
    %10654 = vmatpush1.bf16.msra.mxu0 %v9455
    %10655 = vmatprep.subr.bf16.mxu0 %v9463
    %10656 = vmatpush1.bf16.msra.mxu0 %v9462
    %10657 = vmatprep.subr.bf16.mxu0 %v9470
    %10658 = vmatpush1.bf16.msra.mxu0 %v9469
    %10659 = vmatprep.mubr.bf16.mxu0 %v6345
    %10660 = vmatmul.mubr.bf16.gmra.mrb[0].mxu0 %v6344
    %v10661 = vpop.f32.mrb[0].mxu0
    %v10662 = vadd.f32 %v10621, %v10661
    %v10663 = vpop.f32.mrb[0].mxu0
    %v10664 = vadd.f32 %v10623, %v10663
    %v10665 = vpop.f32.mrb[0].mxu0
    %v10666 = vpop.f32.mrb[0].mxu0
    %10667 = vdwg.mxu0
    %10668 = vmatprep.subr.bf16.mxu0 %v9477
    %10669 = vmatpush1.bf16.msra.mxu0 %v9476
    %10670 = vmatprep.subr.bf16.mxu0 %v9484
    %10671 = vmatpush1.bf16.msra.mxu0 %v9483
    %10672 = vmatprep.subr.bf16.mxu0 %v9491
    %10673 = vmatpush1.bf16.msra.mxu0 %v9490
    %10674 = vmatprep.subr.bf16.mxu0 %v9498
    %10675 = vmatpush1.bf16.msra.mxu0 %v9497
    %10676 = vmatprep.subr.bf16.mxu0 %v9505
    %10677 = vmatpush1.bf16.msra.mxu0 %v9504
    %10678 = vmatprep.subr.bf16.mxu0 %v9512
    %10679 = vmatpush1.bf16.msra.mxu0 %v9511
    %10680 = vmatprep.subr.bf16.mxu0 %v9519
    %10681 = vmatpush1.bf16.msra.mxu0 %v9518
    %10682 = vmatprep.subr.bf16.mxu0 %v9526
    %10683 = vmatpush1.bf16.msra.mxu0 %v9525
    %10684 = vmatprep.subr.bf16.mxu0 %v9533
    %10685 = vmatpush1.bf16.msra.mxu0 %v9532
    %10686 = vmatprep.subr.bf16.mxu0 %v9540
    %10687 = vmatpush1.bf16.msra.mxu0 %v9539
    %10688 = vmatprep.subr.bf16.mxu0 %v9547
    %10689 = vmatpush1.bf16.msra.mxu0 %v9546
    %10690 = vmatprep.subr.bf16.mxu0 %v9554
    %10691 = vmatpush1.bf16.msra.mxu0 %v9553
    %10692 = vmatprep.subr.bf16.mxu0 %v9561
    %10693 = vmatpush1.bf16.msra.mxu0 %v9560
    %10694 = vmatprep.subr.bf16.mxu0 %v9568
    %10695 = vmatpush1.bf16.msra.mxu0 %v9567
    %10696 = vmatprep.subr.bf16.mxu0 %v9575
    %10697 = vmatpush1.bf16.msra.mxu0 %v9574
    %10698 = vmatprep.subr.bf16.mxu0 %v9582
    %10699 = vmatpush1.bf16.msra.mxu0 %v9581
    %10700 = vmatprep.mubr.bf16.mxu0 %v6347
    %10701 = vmatmul.mubr.bf16.gmra.mrb[0].mxu0 %v6346
    %v10702 = vpop.f32.mrb[0].mxu0
    %v10703 = vadd.f32 %v10662, %v10702
    %v10704 = vpop.f32.mrb[0].mxu0
    %v10705 = vadd.f32 %v10664, %v10704
    %v10706 = vpop.f32.mrb[0].mxu0
    %v10707 = vpop.f32.mrb[0].mxu0
    %10708 = vdwg.mxu0
    %10709 = vmatprep.subr.bf16.mxu0 %v9589
    %10710 = vmatpush1.bf16.msra.mxu0 %v9588
    %10711 = vmatprep.subr.bf16.mxu0 %v9596
    %10712 = vmatpush1.bf16.msra.mxu0 %v9595
    %10713 = vmatprep.subr.bf16.mxu0 %v9603
    %10714 = vmatpush1.bf16.msra.mxu0 %v9602
    %10715 = vmatprep.subr.bf16.mxu0 %v9610
    %10716 = vmatpush1.bf16.msra.mxu0 %v9609
    %10717 = vmatprep.subr.bf16.mxu0 %v9617
    %10718 = vmatpush1.bf16.msra.mxu0 %v9616
    %10719 = vmatprep.subr.bf16.mxu0 %v9624
    %10720 = vmatpush1.bf16.msra.mxu0 %v9623
    %10721 = vmatprep.subr.bf16.mxu0 %v9631
    %10722 = vmatpush1.bf16.msra.mxu0 %v9630
    %10723 = vmatprep.subr.bf16.mxu0 %v9638
    %10724 = vmatpush1.bf16.msra.mxu0 %v9637
    %10725 = vmatprep.subr.bf16.mxu0 0
    %10726 = vmatpush1.bf16.msra.mxu0 0
    %10727 = vmatprep.subr.bf16.mxu0 0
    %10728 = vmatpush1.bf16.msra.mxu0 0
    %10729 = vmatprep.subr.bf16.mxu0 0
    %10730 = vmatpush1.bf16.msra.mxu0 0
    %10731 = vmatprep.subr.bf16.mxu0 0
    %10732 = vmatpush1.bf16.msra.mxu0 0
    %10733 = vmatprep.subr.bf16.mxu0 0
    %10734 = vmatpush1.bf16.msra.mxu0 0
    %10735 = vmatprep.subr.bf16.mxu0 0
    %10736 = vmatpush1.bf16.msra.mxu0 0
    %10737 = vmatprep.subr.bf16.mxu0 0
    %10738 = vmatpush1.bf16.msra.mxu0 0
    %10739 = vmatprep.subr.bf16.mxu0 0
    %10740 = vmatpush1.bf16.msra.mxu0 0
    %10741 = vmatprep.mubr.bf16.mxu0 0
    %10742 = vmatmul.mubr.bf16.gmra.mrb[0].mxu0 %v6348
    %v10743 = vpop.f32.mrb[0].mxu0
    %v10744 = vadd.f32 %v10703, %v10743
    %v10745 = vpop.f32.mrb[0].mxu0
    %v10746 = vadd.f32 %v10705, %v10745
    %v10747 = vpop.f32.mrb[0].mxu0
    %v10748 = vpop.f32.mrb[0].mxu0
    %10749 = vdwg.mxu0
    %10750 = vmatprep.subr.bf16.mxu0 %v9031
    %10751 = vmatpush1.bf16.msra.mxu0 %v9030
    %10752 = vmatprep.subr.bf16.mxu0 %v9038
    %10753 = vmatpush1.bf16.msra.mxu0 %v9037
    %10754 = vmatprep.subr.bf16.mxu0 %v9045
    %10755 = vmatpush1.bf16.msra.mxu0 %v9044
    %10756 = vmatprep.subr.bf16.mxu0 %v9052
    %10757 = vmatpush1.bf16.msra.mxu0 %v9051
    %10758 = vmatprep.subr.bf16.mxu0 %v9059
    %10759 = vmatpush1.bf16.msra.mxu0 %v9058
    %10760 = vmatprep.subr.bf16.mxu0 %v9066
    %10761 = vmatpush1.bf16.msra.mxu0 %v9065
    %10762 = vmatprep.subr.bf16.mxu0 %v9073
    %10763 = vmatpush1.bf16.msra.mxu0 %v9072
    %10764 = vmatprep.subr.bf16.mxu0 %v9080
    %10765 = vmatpush1.bf16.msra.mxu0 %v9079
    %10766 = vmatprep.subr.bf16.mxu0 %v9087
    %10767 = vmatpush1.bf16.msra.mxu0 %v9086
    %10768 = vmatprep.subr.bf16.mxu0 %v9094
    %10769 = vmatpush1.bf16.msra.mxu0 %v9093
    %10770 = vmatprep.subr.bf16.mxu0 %v9101
    %10771 = vmatpush1.bf16.msra.mxu0 %v9100
    %10772 = vmatprep.subr.bf16.mxu0 %v9108
    %10773 = vmatpush1.bf16.msra.mxu0 %v9107
    %10774 = vmatprep.subr.bf16.mxu0 %v9115
    %10775 = vmatpush1.bf16.msra.mxu0 %v9114
    %10776 = vmatprep.subr.bf16.mxu0 %v9122
    %10777 = vmatpush1.bf16.msra.mxu0 %v9121
    %10778 = vmatprep.subr.bf16.mxu0 %v9129
    %10779 = vmatpush1.bf16.msra.mxu0 %v9128
    %10780 = vmatprep.subr.bf16.mxu0 %v9136
    %10781 = vmatpush1.bf16.msra.mxu0 %v9135
    %10782 = vmatprep.mubr.bf16.mxu0 %v6339
    %10783 = vmatmul.mubr.bf16.gmra.mrb[0].mxu0 %v6338
    %v10784 = vpop.f32.mrb[0].mxu0
    %v10785 = vadd.f32 %v7074, %v10784
    %v10786 = vpop.f32.mrb[0].mxu0
    %v10787 = vadd.f32 %v7078, %v10786
    %v10788 = vpop.f32.mrb[0].mxu0
    %v10789 = vpop.f32.mrb[0].mxu0
    %10790 = vdwg.mxu0
    %10791 = vmatprep.subr.bf16.mxu0 %v9143
    %10792 = vmatpush1.bf16.msra.mxu0 %v9142
    %10793 = vmatprep.subr.bf16.mxu0 %v9150
    %10794 = vmatpush1.bf16.msra.mxu0 %v9149
    %10795 = vmatprep.subr.bf16.mxu0 %v9157
    %10796 = vmatpush1.bf16.msra.mxu0 %v9156
    %10797 = vmatprep.subr.bf16.mxu0 %v9164
    %10798 = vmatpush1.bf16.msra.mxu0 %v9163
    %10799 = vmatprep.subr.bf16.mxu0 %v9171
    %10800 = vmatpush1.bf16.msra.mxu0 %v9170
    %10801 = vmatprep.subr.bf16.mxu0 %v9178
    %10802 = vmatpush1.bf16.msra.mxu0 %v9177
    %10803 = vmatprep.subr.bf16.mxu0 %v9185
    %10804 = vmatpush1.bf16.msra.mxu0 %v9184
    %10805 = vmatprep.subr.bf16.mxu0 %v9192
    %10806 = vmatpush1.bf16.msra.mxu0 %v9191
    %10807 = vmatprep.subr.bf16.mxu0 %v9199
    %10808 = vmatpush1.bf16.msra.mxu0 %v9198
    %10809 = vmatprep.subr.bf16.mxu0 %v9206
    %10810 = vmatpush1.bf16.msra.mxu0 %v9205
    %10811 = vmatprep.subr.bf16.mxu0 %v9213
    %10812 = vmatpush1.bf16.msra.mxu0 %v9212
    %10813 = vmatprep.subr.bf16.mxu0 %v9220
    %10814 = vmatpush1.bf16.msra.mxu0 %v9219
    %10815 = vmatprep.subr.bf16.mxu0 %v9227
    %10816 = vmatpush1.bf16.msra.mxu0 %v9226
    %10817 = vmatprep.subr.bf16.mxu0 %v9234
    %10818 = vmatpush1.bf16.msra.mxu0 %v9233
    %10819 = vmatprep.subr.bf16.mxu0 %v9241
    %10820 = vmatpush1.bf16.msra.mxu0 %v9240
    %10821 = vmatprep.subr.bf16.mxu0 %v9248
    %10822 = vmatpush1.bf16.msra.mxu0 %v9247
    %10823 = vmatprep.mubr.bf16.mxu0 %v6341
    %10824 = vmatmul.mubr.bf16.gmra.mrb[0].mxu0 %v6340
    %v10825 = vpop.f32.mrb[0].mxu0
    %v10826 = vadd.f32 %v10785, %v10825
    %v10827 = vpop.f32.mrb[0].mxu0
    %v10828 = vadd.f32 %v10787, %v10827
    %v10829 = vpop.f32.mrb[0].mxu0
    %v10830 = vpop.f32.mrb[0].mxu0
    %10831 = vdwg.mxu0
    %10832 = vmatprep.subr.bf16.mxu0 %v9255
    %10833 = vmatpush1.bf16.msra.mxu0 %v9254
    %10834 = vmatprep.subr.bf16.mxu0 %v9262
    %10835 = vmatpush1.bf16.msra.mxu0 %v9261
    %10836 = vmatprep.subr.bf16.mxu0 %v9269
    %10837 = vmatpush1.bf16.msra.mxu0 %v9268
    %10838 = vmatprep.subr.bf16.mxu0 %v9276
    %10839 = vmatpush1.bf16.msra.mxu0 %v9275
    %10840 = vmatprep.subr.bf16.mxu0 %v9283
    %10841 = vmatpush1.bf16.msra.mxu0 %v9282
    %10842 = vmatprep.subr.bf16.mxu0 %v9290
    %10843 = vmatpush1.bf16.msra.mxu0 %v9289
    %10844 = vmatprep.subr.bf16.mxu0 %v9297
    %10845 = vmatpush1.bf16.msra.mxu0 %v9296
    %10846 = vmatprep.subr.bf16.mxu0 %v9304
    %10847 = vmatpush1.bf16.msra.mxu0 %v9303
    %10848 = vmatprep.subr.bf16.mxu0 %v9311
    %10849 = vmatpush1.bf16.msra.mxu0 %v9310
    %10850 = vmatprep.subr.bf16.mxu0 %v9318
    %10851 = vmatpush1.bf16.msra.mxu0 %v9317
    %10852 = vmatprep.subr.bf16.mxu0 %v9325
    %10853 = vmatpush1.bf16.msra.mxu0 %v9324
    %10854 = vmatprep.subr.bf16.mxu0 %v9332
    %10855 = vmatpush1.bf16.msra.mxu0 %v9331
    %10856 = vmatprep.subr.bf16.mxu0 %v9339
    %10857 = vmatpush1.bf16.msra.mxu0 %v9338
    %10858 = vmatprep.subr.bf16.mxu0 %v9346
    %10859 = vmatpush1.bf16.msra.mxu0 %v9345
    %10860 = vmatprep.subr.bf16.mxu0 %v9353
    %10861 = vmatpush1.bf16.msra.mxu0 %v9352
    %10862 = vmatprep.subr.bf16.mxu0 %v9360
    %10863 = vmatpush1.bf16.msra.mxu0 %v9359
    %10864 = vmatprep.mubr.bf16.mxu0 %v6343
    %10865 = vmatmul.mubr.bf16.gmra.mrb[0].mxu0 %v6342
    %v10866 = vpop.f32.mrb[0].mxu0
    %v10867 = vadd.f32 %v10826, %v10866
    %v10868 = vpop.f32.mrb[0].mxu0
    %v10869 = vadd.f32 %v10828, %v10868
    %v10870 = vpop.f32.mrb[0].mxu0
    %v10871 = vpop.f32.mrb[0].mxu0
    %10872 = vdwg.mxu0
    %10873 = vmatprep.subr.bf16.mxu0 %v9367
    %10874 = vmatpush1.bf16.msra.mxu0 %v9366
    %10875 = vmatprep.subr.bf16.mxu0 %v9374
    %10876 = vmatpush1.bf16.msra.mxu0 %v9373
    %10877 = vmatprep.subr.bf16.mxu0 %v9381
    %10878 = vmatpush1.bf16.msra.mxu0 %v9380
    %10879 = vmatprep.subr.bf16.mxu0 %v9388
    %10880 = vmatpush1.bf16.msra.mxu0 %v9387
    %10881 = vmatprep.subr.bf16.mxu0 %v9395
    %10882 = vmatpush1.bf16.msra.mxu0 %v9394
    %10883 = vmatprep.subr.bf16.mxu0 %v9402
    %10884 = vmatpush1.bf16.msra.mxu0 %v9401
    %10885 = vmatprep.subr.bf16.mxu0 %v9409
    %10886 = vmatpush1.bf16.msra.mxu0 %v9408
    %10887 = vmatprep.subr.bf16.mxu0 %v9416
    %10888 = vmatpush1.bf16.msra.mxu0 %v9415
    %10889 = vmatprep.subr.bf16.mxu0 %v9423
    %10890 = vmatpush1.bf16.msra.mxu0 %v9422
    %10891 = vmatprep.subr.bf16.mxu0 %v9430
    %10892 = vmatpush1.bf16.msra.mxu0 %v9429
    %10893 = vmatprep.subr.bf16.mxu0 %v9437
    %10894 = vmatpush1.bf16.msra.mxu0 %v9436
    %10895 = vmatprep.subr.bf16.mxu0 %v9444
    %10896 = vmatpush1.bf16.msra.mxu0 %v9443
    %10897 = vmatprep.subr.bf16.mxu0 %v9451
    %10898 = vmatpush1.bf16.msra.mxu0 %v9450
    %10899 = vmatprep.subr.bf16.mxu0 %v9458
    %10900 = vmatpush1.bf16.msra.mxu0 %v9457
    %10901 = vmatprep.subr.bf16.mxu0 %v9465
    %10902 = vmatpush1.bf16.msra.mxu0 %v9464
    %10903 = vmatprep.subr.bf16.mxu0 %v9472
    %10904 = vmatpush1.bf16.msra.mxu0 %v9471
    %10905 = vmatprep.mubr.bf16.mxu0 %v6345
    %10906 = vmatmul.mubr.bf16.gmra.mrb[0].mxu0 %v6344
    %v10907 = vpop.f32.mrb[0].mxu0
    %v10908 = vadd.f32 %v10867, %v10907
    %v10909 = vpop.f32.mrb[0].mxu0
    %v10910 = vadd.f32 %v10869, %v10909
    %v10911 = vpop.f32.mrb[0].mxu0
    %v10912 = vpop.f32.mrb[0].mxu0
    %10913 = vdwg.mxu0
    %10914 = vmatprep.subr.bf16.mxu0 %v9479
    %10915 = vmatpush1.bf16.msra.mxu0 %v9478
    %10916 = vmatprep.subr.bf16.mxu0 %v9486
    %10917 = vmatpush1.bf16.msra.mxu0 %v9485
    %10918 = vmatprep.subr.bf16.mxu0 %v9493
    %10919 = vmatpush1.bf16.msra.mxu0 %v9492
    %10920 = vmatprep.subr.bf16.mxu0 %v9500
    %10921 = vmatpush1.bf16.msra.mxu0 %v9499
    %10922 = vmatprep.subr.bf16.mxu0 %v9507
    %10923 = vmatpush1.bf16.msra.mxu0 %v9506
    %10924 = vmatprep.subr.bf16.mxu0 %v9514
    %10925 = vmatpush1.bf16.msra.mxu0 %v9513
    %10926 = vmatprep.subr.bf16.mxu0 %v9521
    %10927 = vmatpush1.bf16.msra.mxu0 %v9520
    %10928 = vmatprep.subr.bf16.mxu0 %v9528
    %10929 = vmatpush1.bf16.msra.mxu0 %v9527
    %10930 = vmatprep.subr.bf16.mxu0 %v9535
    %10931 = vmatpush1.bf16.msra.mxu0 %v9534
    %10932 = vmatprep.subr.bf16.mxu0 %v9542
    %10933 = vmatpush1.bf16.msra.mxu0 %v9541
    %10934 = vmatprep.subr.bf16.mxu0 %v9549
    %10935 = vmatpush1.bf16.msra.mxu0 %v9548
    %10936 = vmatprep.subr.bf16.mxu0 %v9556
    %10937 = vmatpush1.bf16.msra.mxu0 %v9555
    %10938 = vmatprep.subr.bf16.mxu0 %v9563
    %10939 = vmatpush1.bf16.msra.mxu0 %v9562
    %10940 = vmatprep.subr.bf16.mxu0 %v9570
    %10941 = vmatpush1.bf16.msra.mxu0 %v9569
    %10942 = vmatprep.subr.bf16.mxu0 %v9577
    %10943 = vmatpush1.bf16.msra.mxu0 %v9576
    %10944 = vmatprep.subr.bf16.mxu0 %v9584
    %10945 = vmatpush1.bf16.msra.mxu0 %v9583
    %10946 = vmatprep.mubr.bf16.mxu0 %v6347
    %10947 = vmatmul.mubr.bf16.gmra.mrb[0].mxu0 %v6346
    %v10948 = vpop.f32.mrb[0].mxu0
    %v10949 = vadd.f32 %v10908, %v10948
    %v10950 = vpop.f32.mrb[0].mxu0
    %v10951 = vadd.f32 %v10910, %v10950
    %v10952 = vpop.f32.mrb[0].mxu0
    %v10953 = vpop.f32.mrb[0].mxu0
    %10954 = vdwg.mxu0
    %10955 = vmatprep.subr.bf16.mxu0 %v9591
    %10956 = vmatpush1.bf16.msra.mxu0 %v9590
    %10957 = vmatprep.subr.bf16.mxu0 %v9598
    %10958 = vmatpush1.bf16.msra.mxu0 %v9597
    %10959 = vmatprep.subr.bf16.mxu0 %v9605
    %10960 = vmatpush1.bf16.msra.mxu0 %v9604
    %10961 = vmatprep.subr.bf16.mxu0 %v9612
    %10962 = vmatpush1.bf16.msra.mxu0 %v9611
    %10963 = vmatprep.subr.bf16.mxu0 %v9619
    %10964 = vmatpush1.bf16.msra.mxu0 %v9618
    %10965 = vmatprep.subr.bf16.mxu0 %v9626
    %10966 = vmatpush1.bf16.msra.mxu0 %v9625
    %10967 = vmatprep.subr.bf16.mxu0 %v9633
    %10968 = vmatpush1.bf16.msra.mxu0 %v9632
    %10969 = vmatprep.subr.bf16.mxu0 %v9640
    %10970 = vmatpush1.bf16.msra.mxu0 %v9639
    %10971 = vmatprep.subr.bf16.mxu0 0
    %10972 = vmatpush1.bf16.msra.mxu0 0
    %10973 = vmatprep.subr.bf16.mxu0 0
    %10974 = vmatpush1.bf16.msra.mxu0 0
    %10975 = vmatprep.subr.bf16.mxu0 0
    %10976 = vmatpush1.bf16.msra.mxu0 0
    %10977 = vmatprep.subr.bf16.mxu0 0
    %10978 = vmatpush1.bf16.msra.mxu0 0
    %10979 = vmatprep.subr.bf16.mxu0 0
    %10980 = vmatpush1.bf16.msra.mxu0 0
    %10981 = vmatprep.subr.bf16.mxu0 0
    %10982 = vmatpush1.bf16.msra.mxu0 0
    %10983 = vmatprep.subr.bf16.mxu0 0
    %10984 = vmatpush1.bf16.msra.mxu0 0
    %10985 = vmatprep.subr.bf16.mxu0 0
    %10986 = vmatpush1.bf16.msra.mxu0 0
    %10987 = vmatprep.mubr.bf16.mxu0 0
    %10988 = vmatmul.mubr.bf16.gmra.mrb[0].mxu0 %v6348
    %v10989 = vpop.f32.mrb[0].mxu0
    %v10990 = vadd.f32 %v10949, %v10989
    %v10991 = vpop.f32.mrb[0].mxu0
    %v10992 = vadd.f32 %v10951, %v10991
    %v10993 = vpop.f32.mrb[0].mxu0
    %v10994 = vpop.f32.mrb[0].mxu0
    %10995 = vdwg.mxu0
    %10996 = vmatprep.subr.bf16.mxu0 0
    %10997 = vmatpush1.bf16.msra.mxu0 %v9032
    %10998 = vmatprep.subr.bf16.mxu0 0
    %10999 = vmatpush1.bf16.msra.mxu0 %v9039
    %11000 = vmatprep.subr.bf16.mxu0 0
    %11001 = vmatpush1.bf16.msra.mxu0 %v9046
    %11002 = vmatprep.subr.bf16.mxu0 0
    %11003 = vmatpush1.bf16.msra.mxu0 %v9053
    %11004 = vmatprep.subr.bf16.mxu0 0
    %11005 = vmatpush1.bf16.msra.mxu0 %v9060
    %11006 = vmatprep.subr.bf16.mxu0 0
    %11007 = vmatpush1.bf16.msra.mxu0 %v9067
    %11008 = vmatprep.subr.bf16.mxu0 0
    %11009 = vmatpush1.bf16.msra.mxu0 %v9074
    %11010 = vmatprep.subr.bf16.mxu0 0
    %11011 = vmatpush1.bf16.msra.mxu0 %v9081
    %11012 = vmatprep.subr.bf16.mxu0 0
    %11013 = vmatpush1.bf16.msra.mxu0 %v9088
    %11014 = vmatprep.subr.bf16.mxu0 0
    %11015 = vmatpush1.bf16.msra.mxu0 %v9095
    %11016 = vmatprep.subr.bf16.mxu0 0
    %11017 = vmatpush1.bf16.msra.mxu0 %v9102
    %11018 = vmatprep.subr.bf16.mxu0 0
    %11019 = vmatpush1.bf16.msra.mxu0 %v9109
    %11020 = vmatprep.subr.bf16.mxu0 0
    %11021 = vmatpush1.bf16.msra.mxu0 %v9116
    %11022 = vmatprep.subr.bf16.mxu0 0
    %11023 = vmatpush1.bf16.msra.mxu0 %v9123
    %11024 = vmatprep.subr.bf16.mxu0 0
    %11025 = vmatpush1.bf16.msra.mxu0 %v9130
    %11026 = vmatprep.subr.bf16.mxu0 0
    %11027 = vmatpush1.bf16.msra.mxu0 %v9137
    %11028 = vmatprep.mubr.bf16.mxu0 %v6339
    %11029 = vmatmul.mubr.bf16.gmra.mrb[0].mxu0 %v6338
    %v11030 = vpop.f32.mrb[0].mxu0
    %v11031 = vadd.f32 %v7082, %v11030
    %v11032 = vpop.f32.mrb[0].mxu0
    %v11033 = vpop.f32.mrb[0].mxu0
    %v11034 = vpop.f32.mrb[0].mxu0
    %11035 = vdwg.mxu0
    %11036 = vmatprep.subr.bf16.mxu0 0
    %11037 = vmatpush1.bf16.msra.mxu0 %v9144
    %11038 = vmatprep.subr.bf16.mxu0 0
    %11039 = vmatpush1.bf16.msra.mxu0 %v9151
    %11040 = vmatprep.subr.bf16.mxu0 0
    %11041 = vmatpush1.bf16.msra.mxu0 %v9158
    %11042 = vmatprep.subr.bf16.mxu0 0
    %11043 = vmatpush1.bf16.msra.mxu0 %v9165
    %11044 = vmatprep.subr.bf16.mxu0 0
    %11045 = vmatpush1.bf16.msra.mxu0 %v9172
    %11046 = vmatprep.subr.bf16.mxu0 0
    %11047 = vmatpush1.bf16.msra.mxu0 %v9179
    %11048 = vmatprep.subr.bf16.mxu0 0
    %11049 = vmatpush1.bf16.msra.mxu0 %v9186
    %11050 = vmatprep.subr.bf16.mxu0 0
    %11051 = vmatpush1.bf16.msra.mxu0 %v9193
    %11052 = vmatprep.subr.bf16.mxu0 0
    %11053 = vmatpush1.bf16.msra.mxu0 %v9200
    %11054 = vmatprep.subr.bf16.mxu0 0
    %11055 = vmatpush1.bf16.msra.mxu0 %v9207
    %11056 = vmatprep.subr.bf16.mxu0 0
    %11057 = vmatpush1.bf16.msra.mxu0 %v9214
    %11058 = vmatprep.subr.bf16.mxu0 0
    %11059 = vmatpush1.bf16.msra.mxu0 %v9221
    %11060 = vmatprep.subr.bf16.mxu0 0
    %11061 = vmatpush1.bf16.msra.mxu0 %v9228
    %11062 = vmatprep.subr.bf16.mxu0 0
    %11063 = vmatpush1.bf16.msra.mxu0 %v9235
    %11064 = vmatprep.subr.bf16.mxu0 0
    %11065 = vmatpush1.bf16.msra.mxu0 %v9242
    %11066 = vmatprep.subr.bf16.mxu0 0
    %11067 = vmatpush1.bf16.msra.mxu0 %v9249
    %11068 = vmatprep.mubr.bf16.mxu0 %v6341
    %11069 = vmatmul.mubr.bf16.gmra.mrb[0].mxu0 %v6340
    %v11070 = vpop.f32.mrb[0].mxu0
    %v11071 = vadd.f32 %v11031, %v11070
    %v11072 = vpop.f32.mrb[0].mxu0
    %v11073 = vpop.f32.mrb[0].mxu0
    %v11074 = vpop.f32.mrb[0].mxu0
    %11075 = vdwg.mxu0
    %11076 = vmatprep.subr.bf16.mxu0 0
    %11077 = vmatpush1.bf16.msra.mxu0 %v9256
    %11078 = vmatprep.subr.bf16.mxu0 0
    %11079 = vmatpush1.bf16.msra.mxu0 %v9263
    %11080 = vmatprep.subr.bf16.mxu0 0
    %11081 = vmatpush1.bf16.msra.mxu0 %v9270
    %11082 = vmatprep.subr.bf16.mxu0 0
    %11083 = vmatpush1.bf16.msra.mxu0 %v9277
    %11084 = vmatprep.subr.bf16.mxu0 0
    %11085 = vmatpush1.bf16.msra.mxu0 %v9284
    %11086 = vmatprep.subr.bf16.mxu0 0
    %11087 = vmatpush1.bf16.msra.mxu0 %v9291
    %11088 = vmatprep.subr.bf16.mxu0 0
    %11089 = vmatpush1.bf16.msra.mxu0 %v9298
    %11090 = vmatprep.subr.bf16.mxu0 0
    %11091 = vmatpush1.bf16.msra.mxu0 %v9305
    %11092 = vmatprep.subr.bf16.mxu0 0
    %11093 = vmatpush1.bf16.msra.mxu0 %v9312
    %11094 = vmatprep.subr.bf16.mxu0 0
    %11095 = vmatpush1.bf16.msra.mxu0 %v9319
    %11096 = vmatprep.subr.bf16.mxu0 0
    %11097 = vmatpush1.bf16.msra.mxu0 %v9326
    %11098 = vmatprep.subr.bf16.mxu0 0
    %11099 = vmatpush1.bf16.msra.mxu0 %v9333
    %11100 = vmatprep.subr.bf16.mxu0 0
    %11101 = vmatpush1.bf16.msra.mxu0 %v9340
    %11102 = vmatprep.subr.bf16.mxu0 0
    %11103 = vmatpush1.bf16.msra.mxu0 %v9347
    %11104 = vmatprep.subr.bf16.mxu0 0
    %11105 = vmatpush1.bf16.msra.mxu0 %v9354
    %11106 = vmatprep.subr.bf16.mxu0 0
    %11107 = vmatpush1.bf16.msra.mxu0 %v9361
    %11108 = vmatprep.mubr.bf16.mxu0 %v6343
    %11109 = vmatmul.mubr.bf16.gmra.mrb[0].mxu0 %v6342
    %v11110 = vpop.f32.mrb[0].mxu0
    %v11111 = vadd.f32 %v11071, %v11110
    %v11112 = vpop.f32.mrb[0].mxu0
    %v11113 = vpop.f32.mrb[0].mxu0
    %v11114 = vpop.f32.mrb[0].mxu0
    %11115 = vdwg.mxu0
    %11116 = vmatprep.subr.bf16.mxu0 0
    %11117 = vmatpush1.bf16.msra.mxu0 %v9368
    %11118 = vmatprep.subr.bf16.mxu0 0
    %11119 = vmatpush1.bf16.msra.mxu0 %v9375
    %11120 = vmatprep.subr.bf16.mxu0 0
    %11121 = vmatpush1.bf16.msra.mxu0 %v9382
    %11122 = vmatprep.subr.bf16.mxu0 0
    %11123 = vmatpush1.bf16.msra.mxu0 %v9389
    %11124 = vmatprep.subr.bf16.mxu0 0
    %11125 = vmatpush1.bf16.msra.mxu0 %v9396
    %11126 = vmatprep.subr.bf16.mxu0 0
    %11127 = vmatpush1.bf16.msra.mxu0 %v9403
    %11128 = vmatprep.subr.bf16.mxu0 0
    %11129 = vmatpush1.bf16.msra.mxu0 %v9410
    %11130 = vmatprep.subr.bf16.mxu0 0
    %11131 = vmatpush1.bf16.msra.mxu0 %v9417
    %11132 = vmatprep.subr.bf16.mxu0 0
    %11133 = vmatpush1.bf16.msra.mxu0 %v9424
    %11134 = vmatprep.subr.bf16.mxu0 0
    %11135 = vmatpush1.bf16.msra.mxu0 %v9431
    %11136 = vmatprep.subr.bf16.mxu0 0
    %11137 = vmatpush1.bf16.msra.mxu0 %v9438
    %11138 = vmatprep.subr.bf16.mxu0 0
    %11139 = vmatpush1.bf16.msra.mxu0 %v9445
    %11140 = vmatprep.subr.bf16.mxu0 0
    %11141 = vmatpush1.bf16.msra.mxu0 %v9452
    %11142 = vmatprep.subr.bf16.mxu0 0
    %11143 = vmatpush1.bf16.msra.mxu0 %v9459
    %11144 = vmatprep.subr.bf16.mxu0 0
    %11145 = vmatpush1.bf16.msra.mxu0 %v9466
    %11146 = vmatprep.subr.bf16.mxu0 0
    %11147 = vmatpush1.bf16.msra.mxu0 %v9473
    %11148 = vmatprep.mubr.bf16.mxu0 %v6345
    %11149 = vmatmul.mubr.bf16.gmra.mrb[0].mxu0 %v6344
    %v11150 = vpop.f32.mrb[0].mxu0
    %v11151 = vadd.f32 %v11111, %v11150
    %v11152 = vpop.f32.mrb[0].mxu0
    %v11153 = vpop.f32.mrb[0].mxu0
    %v11154 = vpop.f32.mrb[0].mxu0
    %11155 = vdwg.mxu0
    %11156 = vmatprep.subr.bf16.mxu0 0
    %11157 = vmatpush1.bf16.msra.mxu0 %v9480
    %11158 = vmatprep.subr.bf16.mxu0 0
    %11159 = vmatpush1.bf16.msra.mxu0 %v9487
    %11160 = vmatprep.subr.bf16.mxu0 0
    %11161 = vmatpush1.bf16.msra.mxu0 %v9494
    %11162 = vmatprep.subr.bf16.mxu0 0
    %11163 = vmatpush1.bf16.msra.mxu0 %v9501
    %11164 = vmatprep.subr.bf16.mxu0 0
    %11165 = vmatpush1.bf16.msra.mxu0 %v9508
    %11166 = vmatprep.subr.bf16.mxu0 0
    %11167 = vmatpush1.bf16.msra.mxu0 %v9515
    %11168 = vmatprep.subr.bf16.mxu0 0
    %11169 = vmatpush1.bf16.msra.mxu0 %v9522
    %11170 = vmatprep.subr.bf16.mxu0 0
    %11171 = vmatpush1.bf16.msra.mxu0 %v9529
    %11172 = vmatprep.subr.bf16.mxu0 0
    %11173 = vmatpush1.bf16.msra.mxu0 %v9536
    %11174 = vmatprep.subr.bf16.mxu0 0
    %11175 = vmatpush1.bf16.msra.mxu0 %v9543
    %11176 = vmatprep.subr.bf16.mxu0 0
    %11177 = vmatpush1.bf16.msra.mxu0 %v9550
    %11178 = vmatprep.subr.bf16.mxu0 0
    %11179 = vmatpush1.bf16.msra.mxu0 %v9557
    %11180 = vmatprep.subr.bf16.mxu0 0
    %11181 = vmatpush1.bf16.msra.mxu0 %v9564
    %11182 = vmatprep.subr.bf16.mxu0 0
    %11183 = vmatpush1.bf16.msra.mxu0 %v9571
    %11184 = vmatprep.subr.bf16.mxu0 0
    %11185 = vmatpush1.bf16.msra.mxu0 %v9578
    %11186 = vmatprep.subr.bf16.mxu0 0
    %11187 = vmatpush1.bf16.msra.mxu0 %v9585
    %11188 = vmatprep.mubr.bf16.mxu0 %v6347
    %11189 = vmatmul.mubr.bf16.gmra.mrb[0].mxu0 %v6346
    %v11190 = vpop.f32.mrb[0].mxu0
    %v11191 = vadd.f32 %v11151, %v11190
    %v11192 = vpop.f32.mrb[0].mxu0
    %v11193 = vpop.f32.mrb[0].mxu0
    %v11194 = vpop.f32.mrb[0].mxu0
    %11195 = vdwg.mxu0
    %11196 = vmatprep.subr.bf16.mxu0 0
    %11197 = vmatpush1.bf16.msra.mxu0 %v9592
    %11198 = vmatprep.subr.bf16.mxu0 0
    %11199 = vmatpush1.bf16.msra.mxu0 %v9599
    %11200 = vmatprep.subr.bf16.mxu0 0
    %11201 = vmatpush1.bf16.msra.mxu0 %v9606
    %11202 = vmatprep.subr.bf16.mxu0 0
    %11203 = vmatpush1.bf16.msra.mxu0 %v9613
    %11204 = vmatprep.subr.bf16.mxu0 0
    %11205 = vmatpush1.bf16.msra.mxu0 %v9620
    %11206 = vmatprep.subr.bf16.mxu0 0
    %11207 = vmatpush1.bf16.msra.mxu0 %v9627
    %11208 = vmatprep.subr.bf16.mxu0 0
    %11209 = vmatpush1.bf16.msra.mxu0 %v9634
    %11210 = vmatprep.subr.bf16.mxu0 0
    %11211 = vmatpush1.bf16.msra.mxu0 %v9641
    %11212 = vmatprep.subr.bf16.mxu0 0
    %11213 = vmatpush1.bf16.msra.mxu0 0
    %11214 = vmatprep.subr.bf16.mxu0 0
    %11215 = vmatpush1.bf16.msra.mxu0 0
    %11216 = vmatprep.subr.bf16.mxu0 0
    %11217 = vmatpush1.bf16.msra.mxu0 0
    %11218 = vmatprep.subr.bf16.mxu0 0
    %11219 = vmatpush1.bf16.msra.mxu0 0
    %11220 = vmatprep.subr.bf16.mxu0 0
    %11221 = vmatpush1.bf16.msra.mxu0 0
    %11222 = vmatprep.subr.bf16.mxu0 0
    %11223 = vmatpush1.bf16.msra.mxu0 0
    %11224 = vmatprep.subr.bf16.mxu0 0
    %11225 = vmatpush1.bf16.msra.mxu0 0
    %11226 = vmatprep.subr.bf16.mxu0 0
    %11227 = vmatpush1.bf16.msra.mxu0 0
    %11228 = vmatprep.mubr.bf16.mxu0 0
    %11229 = vmatmul.mubr.bf16.gmra.mrb[0].mxu0 %v6348
    %v11230 = vpop.f32.mrb[0].mxu0
    %v11231 = vadd.f32 %v11191, %v11230
    %v11232 = vpop.f32.mrb[0].mxu0
    %v11233 = vpop.f32.mrb[0].mxu0
    %v11234 = vpop.f32.mrb[0].mxu0
    %11235 = vdwg.mxu0
    %v11236 = vxor.u32 %v10498, 2147483648
    %v11237 = vxor.u32 %v10500, 2147483648
    %v11238 = vxor.u32 %v10744, 2147483648
    %v11239 = vxor.u32 %v10746, 2147483648
    %v11240 = vxor.u32 %v10990, 2147483648
    %v11241 = vxor.u32 %v10992, 2147483648
    %v11242 = vxor.u32 %v11231, 2147483648
    %v11243 = vmul.f32 %v11236, 1.442695
    %v11244 = vpow.pop %v11243
    %v11245 = vmul.f32 %v11237, 1.442695
    %v11246 = vpow.pop %v11245
    %v11247 = vmul.f32 %v11238, 1.442695
    %v11248 = vpow.pop %v11247
    %v11249 = vmul.f32 %v11239, 1.442695
    %v11250 = vpow.pop %v11249
    %v11251 = vmul.f32 %v11240, 1.442695
    %v11252 = vpow.pop %v11251
    %v11253 = vmul.f32 %v11241, 1.442695
    %v11254 = vpow.pop %v11253
    %v11255 = vmul.f32 %v11242, 1.442695
    %v11256 = vpow.pop %v11255
    %v11257 = vadd.f32 %v11244, 1.0
    %v11258 = vadd.f32 %v11246, 1.0
    %v11259 = vadd.f32 %v11248, 1.0
    %v11260 = vadd.f32 %v11250, 1.0
    %v11261 = vadd.f32 %v11252, 1.0
    %v11262 = vadd.f32 %v11254, 1.0
    %v11263 = vadd.f32 %v11256, 1.0
    %v11264 = vrcp.pop %v11257
    %v11265 = vmul.f32 1.0, %v11264
    %v11266 = vrcp.pop %v11258
    %v11267 = vmul.f32 1.0, %v11266
    %v11268 = vrcp.pop %v11259
    %v11269 = vmul.f32 1.0, %v11268
    %v11270 = vrcp.pop %v11260
    %v11271 = vmul.f32 1.0, %v11270
    %v11272 = vrcp.pop %v11261
    %v11273 = vmul.f32 1.0, %v11272
    %v11274 = vrcp.pop %v11262
    %v11275 = vmul.f32 1.0, %v11274
    %v11276 = vrcp.pop %v11263
    %v11277 = vmul.f32 1.0, %v11276
    %v11284 = vcombine.low %v11265, %v11267
    %v11285 = vcombine.low %v11269, %v11271
    %v11286 = vcombine.low %v11273, %v11275
    %11290 = vst [vmem:[#allocation26] sm:$0xff] %v11284
    %11291 = vst [vmem:[#allocation26 + $0x8] sm:$0xff] %v11285
    %11292 = vst [vmem:[#allocation26 + $0x10] sm:$0xff] %v11286
    %11293 = vst [vmem:[#allocation26 + $0x18] sm:$0xf] %v11277
    // Predicated region
    $region130: #{tpu_custom_call.1} parent=1 // pred_check
      _
    $region131: #{tpu_custom_call.1} parent=1 // pred_check_branch
      %11295 = sbr.rel (0) target = $region133
    $region132: #{tpu_custom_call.1} parent=1 // pred_region
      %s11297 = ssub.s32 448, 448
      %11298 = vsyncadd [#allocation4], %s11297
      %s11300 = sshll.u32 [#allocation26], 4
      %s11301 = int_to_ptr.vmem [resolvable:$true] %s11300
      %11303 = dma.vmem_to_hbm [thread:$0]  %s11301, 448, %s17, [#allocation4]
    $region133: #{tpu_custom_call.1} parent=1 // pred_fallthru
      _
    // Predicated region
    $region134: #{tpu_custom_call.1} parent=1 // pred_check
      _
    $region135: #{tpu_custom_call.1} parent=1 // pred_check_branch
      %11305 = sbr.rel (0) target = $region137
    $region136: #{tpu_custom_call.1} parent=1 // pred_region
      %11306 = dma.done [#allocation4], 448
    $region137: #{tpu_custom_call.1} parent=1 // pred_fallthru
      _
    %11307 = vsyncpa [#allocation3], 1
    %11308 = vsyncpa [#allocation6], 1
    %11309 = vsyncpa [#allocation9], 1
    %11310 = vsyncpa [#allocation12], 1
    %11311 = vsyncpa [#allocation15], 1
    %11312 = vsyncpa [#allocation18], 1
    %11313 = vsyncpa [#allocation21], 1
    %11314 = vsyncpa [#allocation24], 1
    %11315 = vsyncpa [#allocation4], 1

</llo_original>
